<compile_context>
chip_gen: v6e
topology: v6e:2x2x1
jax: 0.10.0
libtpu: 0.0.40
codegen_flags: <defaults>
</compile_context>

<pallas_src>
import functools

import jax
import jax.numpy as jnp
import numpy as np
from jax import lax
from jax.experimental import pallas as pl
from jax.experimental.pallas import tpu as pltpu


def _round_up(x, m):
    return (x + m - 1) // m * m


# ----------------------------- Pallas kernels ------------------------------ #

def _taps_matmul(x_refs, w_ref, *, M, Wp, Cin, Cout):
    """Accumulate all 27 taps of the 3x3x3 conv as 2-D matmuls.

    x_refs: three refs, each (1, 1, L, Cin) bf16 -- padded planes d, d+1, d+2.
    w_ref:  (27*Cin, Cout) bf16 -- tap-major weight.
    Returns acc (M, Cout) f32, where row i*Wp + j is the output at (h=i, w=j).
    """
    acc = jnp.zeros((M, Cout), jnp.float32)
    for kd, xr in enumerate(x_refs):
        for kh in range(3):
            for kw in range(3):
                start = kh * Wp + kw                      # static offset
                patch = xr[0, 0, start:start + M, :]      # (M, Cin) bf16
                t = (kd * 3 + kh) * 3 + kw
                w_tap = w_ref[t * Cin:(t + 1) * Cin, :]   # (Cin, Cout) bf16
                acc = acc + jnp.dot(patch, w_tap,
                                    preferred_element_type=jnp.float32)
    return acc


def _conv_bn_relu_kernel(x0, x1, x2, w_ref, s_ref, b_ref, o_ref,
                         *, M, Wp, Cin, Cout):
    """out = relu( conv3x3x3(x) * scale + shift )"""
    acc = _taps_matmul((x0, x1, x2), w_ref, M=M, Wp=Wp, Cin=Cin, Cout=Cout)
    y = jnp.maximum(acc * s_ref[...] + b_ref[...], 0.0)
    o_ref[0, 0] = y.astype(o_ref.dtype)


def _conv_bn_add_relu_kernel(x0, x1, x2, w_ref, s_ref, b_ref, r_ref, o_ref,
                             *, M, Wp, Cin, Cout):
    """out = relu( conv3x3x3(x) * scale + shift + residual )"""
    acc = _taps_matmul((x0, x1, x2), w_ref, M=M, Wp=Wp, Cin=Cin, Cout=Cout)
    y = acc * s_ref[...] + b_ref[...] + r_ref[0, 0].astype(jnp.float32)
    o_ref[0, 0] = jnp.maximum(y, 0.0).astype(o_ref.dtype)


def _fused_conv3d(x_flat, w, scale, shift, residual=None, *,
                  N, D, H, W, Cin, Cout, out_dtype):
    """Fused 3x3x3 conv + BN affine + [residual] + ReLU.

    x_flat:   (N, D+2, (H+3)*(W+2), Cin) bf16 -- depth/spatially padded, rows
              flattened over (h, w) so the kernel only needs 2-D slices.
    w:        (27*Cin, Cout) bf16
    scale:    (1, Cout) f32     shift: (1, Cout) f32
    residual: (N, D, H*(W+2), Cin) bf16 or None
    Returns   (N, D, H*(W+2), Cout) out_dtype  (garbage cols j>=W sliced by caller)
    """
    Wp = W + 2
    M = H * Wp                    # output rows per plane (lane dim stays Cout)
    L = (H + 3) * Wp              # rows of the flattened, padded input plane
    grid = (N, D)

    def x_spec(kd):
        # depth-block size is 1, so the block index along depth is the element
        # index: plane d+kd of the padded activation (input depth d-1+kd).
        return pl.BlockSpec((1, 1, L, Cin),
                            lambda n, d, kd=kd: (n, d + kd, 0, 0))

    w_spec = pl.BlockSpec((27 * Cin, Cout), lambda n, d: (0, 0))   # resident
    s_spec = pl.BlockSpec((1, Cout), lambda n, d: (0, 0))          # resident
    o_spec = pl.BlockSpec((1, 1, M, Cout), lambda n, d: (n, d, 0, 0))

    in_specs = [x_spec(0), x_spec(1), x_spec(2), w_spec, s_spec, s_spec]
    args = [x_flat, x_flat, x_flat, w, scale, shift]

    if residual is None:
        kernel = functools.partial(_conv_bn_relu_kernel,
                                   M=M, Wp=Wp, Cin=Cin, Cout=Cout)
    else:
        kernel = functools.partial(_conv_bn_add_relu_kernel,
                                   M=M, Wp=Wp, Cin=Cin, Cout=Cout)
        in_specs.append(pl.BlockSpec((1, 1, M, Cin), lambda n, d: (n, d, 0, 0)))
        args.append(residual)

    return pl.pallas_call(
        kernel,
        out_shape=jax.ShapeDtypeStruct((N, D, M, Cout), out_dtype),
        grid_spec=pltpu.PrefetchScalarGridSpec(
            num_scalar_prefetch=0,
            grid=grid,
            in_specs=in_specs,
            out_specs=o_spec,
        ),
        compiler_params=pltpu.CompilerParams(
            dimension_semantics=("parallel", "parallel"),
            vmem_limit_bytes=48 * 1024 * 1024,
        ),
    )(*args)


# ------------------------------- glue code --------------------------------- #

def _flatten_padded(x):
    """x: (N, D, H, W, C) -> (N, D+2, (H+3)*(W+2), C), zero halo, rows flattened.

    H is padded by (1, 2) so every static tap slice of length H*(W+2) stays in
    bounds (the extra bottom row is only touched by discarded garbage rows).
    """
    N, D, H, W, C = x.shape
    xp = jnp.pad(x, ((0, 0), (1, 1), (1, 2), (1, 1), (0, 0)))
    return xp.reshape(N, D + 2, (H + 3) * (W + 2), C)


def _prep_weight(w_pt, cp_in, cp_out):
    """PyTorch conv3d weight (Cout, Cin, 3, 3, 3) -> (27*cp_in, cp_out) bf16."""
    cout, cin = w_pt.shape[0], w_pt.shape[1]
    w = jnp.transpose(w_pt, (2, 3, 4, 1, 0))                     # (3,3,3,Cin,Cout)
    w = jnp.pad(w, ((0, 0), (0, 0), (0, 0),
                    (0, cp_in - cin), (0, cp_out - cout)))
    return w.reshape(27 * cp_in, cp_out).astype(jnp.bfloat16)


def _fold_bn(gamma, beta, mean, var, eps=1e-5):
    scale = gamma / jnp.sqrt(var + eps)
    shift = beta - mean * scale
    return scale, shift


def _pad_vec(v, n):
    return jnp.pad(v.astype(jnp.float32), (0, n - v.shape[0])).reshape(1, n)


def basic_block_forward(x_ncdhw, params):
    """BasicBlock forward. x_ncdhw: (N, C, D, H, W) float32 -> same shape (f32)."""
    N, C, D, H, W = x_ncdhw.shape
    planes = params["conv1_w"].shape[0]
    Cp = _round_up(C, 128)        # lane-dense input channels
    Pp = _round_up(planes, 128)   # lane-dense output channels
    Wp = W + 2
    M = H * Wp

    # NCDHW -> NDHWC, pad channels to 128-multiple, cast to bf16 once.
    x = jnp.transpose(x_ncdhw, (0, 2, 3, 4, 1))
    x = jnp.pad(x, ((0, 0), (0, 0), (0, 0), (0, 0), (0, Cp - C)))
    x = x.astype(jnp.bfloat16)                                   # (N,D,H,W,Cp)

    s1, b1 = _fold_bn(*params["bn1"])
    s2, b2 = _fold_bn(*params["bn2"])
    s1, b1 = _pad_vec(s1, Pp), _pad_vec(b1, Pp)
    s2, b2 = _pad_vec(s2, Pp), _pad_vec(b2, Pp)
    w1 = _prep_weight(params["conv1_w"], Cp, Pp)                 # (27*Cp, Pp)
    w2 = _prep_weight(params["conv2_w"], Pp, Pp)                 # (27*Pp, Pp)

    # conv1 -> bn1 -> relu
    out1 = _fused_conv3d(_flatten_padded(x), w1, s1, b1, None,
                         N=N, D=D, H=H, W=W, Cin=Cp, Cout=Pp,
                         out_dtype=jnp.bfloat16)                 # (N,D,M,Pp)
    out1 = out1.reshape(N, D, H, Wp, Pp)[:, :, :, :W, :]         # drop garbage cols

    # conv2 -> bn2 -> +residual -> relu (residual is the bf16 channel-padded x)
    resid = jnp.pad(x, ((0, 0), (0, 0), (0, 0), (0, 2), (0, 0)))
    resid = resid.reshape(N, D, M, Cp)
    out2 = _fused_conv3d(_flatten_padded(out1), w2, s2, b2, resid,
                         N=N, D=D, H=H, W=W, Cin=Pp, Cout=Pp,
                         out_dtype=jnp.float32)                  # (N,D,M,Pp)
    out2 = out2.reshape(N, D, H, Wp, Pp)[:, :, :, :W, :C]
    return jnp.transpose(out2, (0, 4, 1, 2, 3))                  # back to NCDHW


# ------------------------------ reference ---------------------------------- #

def _reference_forward(x_ncdhw, params):
    """Pure-JAX reference mirroring the kernel's bf16 rounding (eval-mode BN)."""
    f32 = jnp.float32
    x = jnp.transpose(x_ncdhw, (0, 2, 3, 4, 1))
    xb = x.astype(jnp.bfloat16).astype(f32)
    dn = ("NDHWC", "DHWIO", "NDHWC")

    def conv(inp, w_pt):
        w = jnp.transpose(w_pt, (2, 3, 4, 1, 0)).astype(jnp.bfloat16).astype(f32)
        return lax.conv_general_dilated(inp, w, (1, 1, 1), "SAME",
                                        dimension_numbers=dn)

    s1, b1 = _fold_bn(*params["bn1"])
    s2, b2 = _fold_bn(*params["bn2"])
    out1 = jnp.maximum(conv(xb, params["conv1_w"]) * s1 + b1, 0.0)
    out1 = out1.astype(jnp.bfloat16).astype(f32)                 # kernel stores bf16
    out2 = conv(out1, params["conv2_w"]) * s2 + b2 + xb
    out2 = jnp.maximum(out2, 0.0)
    return jnp.transpose(out2, (0, 4, 1, 2, 3))


# --------------------------------- main ------------------------------------ #

if __name__ == "__main__":
    # Small shapes: batch=2, in_planes=planes=4, D=4, H=8, W=8
    N, C, D, H, W = 2, 4, 4, 8, 8
    planes = C  # downsample=None requires matching channels

    key = jax.random.PRNGKey(0)
    ks = jax.random.split(key, 11)

    x = jax.random.normal(ks[0], (N, C, D, H, W), dtype=jnp.float32)

    fan1 = C * 27
    fan2 = planes * 27
    params = {
        # Kaiming-ish deterministic init for conv weights (bias=False in module).
        "conv1_w": jax.random.normal(ks[1], (planes, C, 3, 3, 3), jnp.float32)
                   * (2.0 / fan1) ** 0.5,
        "conv2_w": jax.random.normal(ks[2], (planes, planes, 3, 3, 3), jnp.float32)
                   * (2.0 / fan2) ** 0.5,
        # BN params: (gamma, beta, running_mean, running_var)
        "bn1": (jax.random.normal(ks[3], (planes,)) * 0.1 + 1.0,
                jax.random.normal(ks[4], (planes,)) * 0.1,
                jax.random.normal(ks[5], (planes,)) * 0.1,
                jax.nn.softplus(jax.random.normal(ks[6], (planes,))) + 0.5),
        "bn2": (jax.random.normal(ks[7], (planes,)) * 0.1 + 1.0,
                jax.random.normal(ks[8], (planes,)) * 0.1,
                jax.random.normal(ks[9], (planes,)) * 0.1,
                jax.nn.softplus(jax.random.normal(ks[10], (planes,))) + 0.5),
    }

    fwd = jax.jit(basic_block_forward)
    out = jax.block_until_ready(fwd(x, params))

    ref = jax.block_until_ready(_reference_forward(x, params))
    np.testing.assert_allclose(np.asarray(out), np.asarray(ref),
                               rtol=1e-2, atol=1e-2)

    print("KERNEL_OK")
</pallas_src>

<mosaic_0001>
module attributes {stable_mosaic.version = 11 : i64} {
  func.func @_conv_bn_relu_kernel(%arg0: i32, %arg1: i32, %arg2: memref<1x1x110x128xbf16, #tpu.memory_space<vmem>>, %arg3: memref<1x1x110x128xbf16, #tpu.memory_space<vmem>>, %arg4: memref<1x1x110x128xbf16, #tpu.memory_space<vmem>>, %arg5: memref<3456x128xbf16, #tpu.memory_space<vmem>>, %arg6: memref<1x128xf32, #tpu.memory_space<vmem>>, %arg7: memref<1x128xf32, #tpu.memory_space<vmem>>, %arg8: memref<1x1x80x128xbf16, #tpu.memory_space<vmem>>) attributes {dimension_semantics = [#tpu.dimension_semantics<parallel>, #tpu.dimension_semantics<parallel>], iteration_bounds = array<i64: 2, 4>, scalar_prefetch = 0 : i64, scratch_operands = 0 : i64, tpu.core_type = #tpu.core_type<tc>, window_params = [{transform_indices = @transform_0, window_bounds = array<i64: 1, 1, 110, 128>}, {transform_indices = @transform_1, window_bounds = array<i64: 1, 1, 110, 128>}, {transform_indices = @transform_2, window_bounds = array<i64: 1, 1, 110, 128>}, {pipeline_mode = #tpu.pipeline_mode<synchronous>, transform_indices = @transform_3, window_bounds = array<i64: 3456, 128>}, {pipeline_mode = #tpu.pipeline_mode<synchronous>, transform_indices = @transform_4, window_bounds = array<i64: 1, 128>}, {pipeline_mode = #tpu.pipeline_mode<synchronous>, transform_indices = @transform_5, window_bounds = array<i64: 1, 128>}, {transform_indices = @transform_6, window_bounds = array<i64: 1, 1, 80, 128>}]} {
    %cst = arith.constant 0.000000e+00 : f32
    %0 = vector.broadcast %cst : f32 to vector<80x128xf32>
    %c0 = arith.constant 0 : index
    %c0_0 = arith.constant 0 : index
    %c0_1 = arith.constant 0 : index
    %c0_2 = arith.constant 0 : index
    %1 = vector.load %arg2[%c0, %c0_0, %c0_1, %c0_2] : memref<1x1x110x128xbf16, #tpu.memory_space<vmem>>, vector<1x1x80x128xbf16>
    %2 = vector.shape_cast %1 : vector<1x1x80x128xbf16> to vector<80x128xbf16>
    %c0_3 = arith.constant 0 : index
    %c0_4 = arith.constant 0 : index
    %3 = vector.load %arg5[%c0_3, %c0_4] : memref<3456x128xbf16, #tpu.memory_space<vmem>>, vector<128x128xbf16>
    %cst_5 = arith.constant dense<0.000000e+00> : vector<80x128xf32>
    %4 = tpu.matmul %2, %3, %cst_5 {dimension_numbers = #tpu.dot_dimension_numbers<[1], [0], [0], [1], [0, 0, 1, 1], [], []>} : vector<80x128xbf16>, vector<128x128xbf16>, vector<80x128xf32> -> vector<80x128xf32>
    %5 = arith.addf %0, %4 : vector<80x128xf32>
    %c0_6 = arith.constant 0 : index
    %c0_7 = arith.constant 0 : index
    %c1 = arith.constant 1 : index
    %c0_8 = arith.constant 0 : index
    %6 = vector.load %arg2[%c0_6, %c0_7, %c1, %c0_8] : memref<1x1x110x128xbf16, #tpu.memory_space<vmem>>, vector<1x1x80x128xbf16>
    %7 = vector.shape_cast %6 : vector<1x1x80x128xbf16> to vector<80x128xbf16>
    %c128 = arith.constant 128 : index
    %c0_9 = arith.constant 0 : index
    %8 = vector.load %arg5[%c128, %c0_9] : memref<3456x128xbf16, #tpu.memory_space<vmem>>, vector<128x128xbf16>
    %cst_10 = arith.constant dense<0.000000e+00> : vector<80x128xf32>
    %9 = tpu.matmul %7, %8, %cst_10 {dimension_numbers = #tpu.dot_dimension_numbers<[1], [0], [0], [1], [0, 0, 1, 1], [], []>} : vector<80x128xbf16>, vector<128x128xbf16>, vector<80x128xf32> -> vector<80x128xf32>
    %10 = arith.addf %5, %9 : vector<80x128xf32>
    %c0_11 = arith.constant 0 : index
    %c0_12 = arith.constant 0 : index
    %c2 = arith.constant 2 : index
    %c0_13 = arith.constant 0 : index
    %11 = vector.load %arg2[%c0_11, %c0_12, %c2, %c0_13] : memref<1x1x110x128xbf16, #tpu.memory_space<vmem>>, vector<1x1x80x128xbf16>
    %12 = vector.shape_cast %11 : vector<1x1x80x128xbf16> to vector<80x128xbf16>
    %c256 = arith.constant 256 : index
    %c0_14 = arith.constant 0 : index
    %13 = vector.load %arg5[%c256, %c0_14] : memref<3456x128xbf16, #tpu.memory_space<vmem>>, vector<128x128xbf16>
    %cst_15 = arith.constant dense<0.000000e+00> : vector<80x128xf32>
    %14 = tpu.matmul %12, %13, %cst_15 {dimension_numbers = #tpu.dot_dimension_numbers<[1], [0], [0], [1], [0, 0, 1, 1], [], []>} : vector<80x128xbf16>, vector<128x128xbf16>, vector<80x128xf32> -> vector<80x128xf32>
    %15 = arith.addf %10, %14 : vector<80x128xf32>
    %c0_16 = arith.constant 0 : index
    %c0_17 = arith.constant 0 : index
    %c10 = arith.constant 10 : index
    %c0_18 = arith.constant 0 : index
    %16 = vector.load %arg2[%c0_16, %c0_17, %c10, %c0_18] : memref<1x1x110x128xbf16, #tpu.memory_space<vmem>>, vector<1x1x80x128xbf16>
    %17 = vector.shape_cast %16 : vector<1x1x80x128xbf16> to vector<80x128xbf16>
    %c384 = arith.constant 384 : index
    %c0_19 = arith.constant 0 : index
    %18 = vector.load %arg5[%c384, %c0_19] : memref<3456x128xbf16, #tpu.memory_space<vmem>>, vector<128x128xbf16>
    %cst_20 = arith.constant dense<0.000000e+00> : vector<80x128xf32>
    %19 = tpu.matmul %17, %18, %cst_20 {dimension_numbers = #tpu.dot_dimension_numbers<[1], [0], [0], [1], [0, 0, 1, 1], [], []>} : vector<80x128xbf16>, vector<128x128xbf16>, vector<80x128xf32> -> vector<80x128xf32>
    %20 = arith.addf %15, %19 : vector<80x128xf32>
    %c0_21 = arith.constant 0 : index
    %c0_22 = arith.constant 0 : index
    %c11 = arith.constant 11 : index
    %c0_23 = arith.constant 0 : index
    %21 = vector.load %arg2[%c0_21, %c0_22, %c11, %c0_23] : memref<1x1x110x128xbf16, #tpu.memory_space<vmem>>, vector<1x1x80x128xbf16>
    %22 = vector.shape_cast %21 : vector<1x1x80x128xbf16> to vector<80x128xbf16>
    %c512 = arith.constant 512 : index
    %c0_24 = arith.constant 0 : index
    %23 = vector.load %arg5[%c512, %c0_24] : memref<3456x128xbf16, #tpu.memory_space<vmem>>, vector<128x128xbf16>
    %cst_25 = arith.constant dense<0.000000e+00> : vector<80x128xf32>
    %24 = tpu.matmul %22, %23, %cst_25 {dimension_numbers = #tpu.dot_dimension_numbers<[1], [0], [0], [1], [0, 0, 1, 1], [], []>} : vector<80x128xbf16>, vector<128x128xbf16>, vector<80x128xf32> -> vector<80x128xf32>
    %25 = arith.addf %20, %24 : vector<80x128xf32>
    %c0_26 = arith.constant 0 : index
    %c0_27 = arith.constant 0 : index
    %c12 = arith.constant 12 : index
    %c0_28 = arith.constant 0 : index
    %26 = vector.load %arg2[%c0_26, %c0_27, %c12, %c0_28] : memref<1x1x110x128xbf16, #tpu.memory_space<vmem>>, vector<1x1x80x128xbf16>
    %27 = vector.shape_cast %26 : vector<1x1x80x128xbf16> to vector<80x128xbf16>
    %c640 = arith.constant 640 : index
    %c0_29 = arith.constant 0 : index
    %28 = vector.load %arg5[%c640, %c0_29] : memref<3456x128xbf16, #tpu.memory_space<vmem>>, vector<128x128xbf16>
    %cst_30 = arith.constant dense<0.000000e+00> : vector<80x128xf32>
    %29 = tpu.matmul %27, %28, %cst_30 {dimension_numbers = #tpu.dot_dimension_numbers<[1], [0], [0], [1], [0, 0, 1, 1], [], []>} : vector<80x128xbf16>, vector<128x128xbf16>, vector<80x128xf32> -> vector<80x128xf32>
    %30 = arith.addf %25, %29 : vector<80x128xf32>
    %c0_31 = arith.constant 0 : index
    %c0_32 = arith.constant 0 : index
    %c20 = arith.constant 20 : index
    %c0_33 = arith.constant 0 : index
    %31 = vector.load %arg2[%c0_31, %c0_32, %c20, %c0_33] : memref<1x1x110x128xbf16, #tpu.memory_space<vmem>>, vector<1x1x80x128xbf16>
    %32 = vector.shape_cast %31 : vector<1x1x80x128xbf16> to vector<80x128xbf16>
    %c768 = arith.constant 768 : index
    %c0_34 = arith.constant 0 : index
    %33 = vector.load %arg5[%c768, %c0_34] : memref<3456x128xbf16, #tpu.memory_space<vmem>>, vector<128x128xbf16>
    %cst_35 = arith.constant dense<0.000000e+00> : vector<80x128xf32>
    %34 = tpu.matmul %32, %33, %cst_35 {dimension_numbers = #tpu.dot_dimension_numbers<[1], [0], [0], [1], [0, 0, 1, 1], [], []>} : vector<80x128xbf16>, vector<128x128xbf16>, vector<80x128xf32> -> vector<80x128xf32>
    %35 = arith.addf %30, %34 : vector<80x128xf32>
    %c0_36 = arith.constant 0 : index
    %c0_37 = arith.constant 0 : index
    %c21 = arith.constant 21 : index
    %c0_38 = arith.constant 0 : index
    %36 = vector.load %arg2[%c0_36, %c0_37, %c21, %c0_38] : memref<1x1x110x128xbf16, #tpu.memory_space<vmem>>, vector<1x1x80x128xbf16>
    %37 = vector.shape_cast %36 : vector<1x1x80x128xbf16> to vector<80x128xbf16>
    %c896 = arith.constant 896 : index
    %c0_39 = arith.constant 0 : index
    %38 = vector.load %arg5[%c896, %c0_39] : memref<3456x128xbf16, #tpu.memory_space<vmem>>, vector<128x128xbf16>
    %cst_40 = arith.constant dense<0.000000e+00> : vector<80x128xf32>
    %39 = tpu.matmul %37, %38, %cst_40 {dimension_numbers = #tpu.dot_dimension_numbers<[1], [0], [0], [1], [0, 0, 1, 1], [], []>} : vector<80x128xbf16>, vector<128x128xbf16>, vector<80x128xf32> -> vector<80x128xf32>
    %40 = arith.addf %35, %39 : vector<80x128xf32>
    %c0_41 = arith.constant 0 : index
    %c0_42 = arith.constant 0 : index
    %c22 = arith.constant 22 : index
    %c0_43 = arith.constant 0 : index
    %41 = vector.load %arg2[%c0_41, %c0_42, %c22, %c0_43] : memref<1x1x110x128xbf16, #tpu.memory_space<vmem>>, vector<1x1x80x128xbf16>
    %42 = vector.shape_cast %41 : vector<1x1x80x128xbf16> to vector<80x128xbf16>
    %c1024 = arith.constant 1024 : index
    %c0_44 = arith.constant 0 : index
    %43 = vector.load %arg5[%c1024, %c0_44] : memref<3456x128xbf16, #tpu.memory_space<vmem>>, vector<128x128xbf16>
    %cst_45 = arith.constant dense<0.000000e+00> : vector<80x128xf32>
    %44 = tpu.matmul %42, %43, %cst_45 {dimension_numbers = #tpu.dot_dimension_numbers<[1], [0], [0], [1], [0, 0, 1, 1], [], []>} : vector<80x128xbf16>, vector<128x128xbf16>, vector<80x128xf32> -> vector<80x128xf32>
    %45 = arith.addf %40, %44 : vector<80x128xf32>
    %c0_46 = arith.constant 0 : index
    %c0_47 = arith.constant 0 : index
    %c0_48 = arith.constant 0 : index
    %c0_49 = arith.constant 0 : index
    %46 = vector.load %arg3[%c0_46, %c0_47, %c0_48, %c0_49] : memref<1x1x110x128xbf16, #tpu.memory_space<vmem>>, vector<1x1x80x128xbf16>
    %47 = vector.shape_cast %46 : vector<1x1x80x128xbf16> to vector<80x128xbf16>
    %c1152 = arith.constant 1152 : index
    %c0_50 = arith.constant 0 : index
    %48 = vector.load %arg5[%c1152, %c0_50] : memref<3456x128xbf16, #tpu.memory_space<vmem>>, vector<128x128xbf16>
    %cst_51 = arith.constant dense<0.000000e+00> : vector<80x128xf32>
    %49 = tpu.matmul %47, %48, %cst_51 {dimension_numbers = #tpu.dot_dimension_numbers<[1], [0], [0], [1], [0, 0, 1, 1], [], []>} : vector<80x128xbf16>, vector<128x128xbf16>, vector<80x128xf32> -> vector<80x128xf32>
    %50 = arith.addf %45, %49 : vector<80x128xf32>
    %c0_52 = arith.constant 0 : index
    %c0_53 = arith.constant 0 : index
    %c1_54 = arith.constant 1 : index
    %c0_55 = arith.constant 0 : index
    %51 = vector.load %arg3[%c0_52, %c0_53, %c1_54, %c0_55] : memref<1x1x110x128xbf16, #tpu.memory_space<vmem>>, vector<1x1x80x128xbf16>
    %52 = vector.shape_cast %51 : vector<1x1x80x128xbf16> to vector<80x128xbf16>
    %c1280 = arith.constant 1280 : index
    %c0_56 = arith.constant 0 : index
    %53 = vector.load %arg5[%c1280, %c0_56] : memref<3456x128xbf16, #tpu.memory_space<vmem>>, vector<128x128xbf16>
    %cst_57 = arith.constant dense<0.000000e+00> : vector<80x128xf32>
    %54 = tpu.matmul %52, %53, %cst_57 {dimension_numbers = #tpu.dot_dimension_numbers<[1], [0], [0], [1], [0, 0, 1, 1], [], []>} : vector<80x128xbf16>, vector<128x128xbf16>, vector<80x128xf32> -> vector<80x128xf32>
    %55 = arith.addf %50, %54 : vector<80x128xf32>
    %c0_58 = arith.constant 0 : index
    %c0_59 = arith.constant 0 : index
    %c2_60 = arith.constant 2 : index
    %c0_61 = arith.constant 0 : index
    %56 = vector.load %arg3[%c0_58, %c0_59, %c2_60, %c0_61] : memref<1x1x110x128xbf16, #tpu.memory_space<vmem>>, vector<1x1x80x128xbf16>
    %57 = vector.shape_cast %56 : vector<1x1x80x128xbf16> to vector<80x128xbf16>
    %c1408 = arith.constant 1408 : index
    %c0_62 = arith.constant 0 : index
    %58 = vector.load %arg5[%c1408, %c0_62] : memref<3456x128xbf16, #tpu.memory_space<vmem>>, vector<128x128xbf16>
    %cst_63 = arith.constant dense<0.000000e+00> : vector<80x128xf32>
    %59 = tpu.matmul %57, %58, %cst_63 {dimension_numbers = #tpu.dot_dimension_numbers<[1], [0], [0], [1], [0, 0, 1, 1], [], []>} : vector<80x128xbf16>, vector<128x128xbf16>, vector<80x128xf32> -> vector<80x128xf32>
    %60 = arith.addf %55, %59 : vector<80x128xf32>
    %c0_64 = arith.constant 0 : index
    %c0_65 = arith.constant 0 : index
    %c10_66 = arith.constant 10 : index
    %c0_67 = arith.constant 0 : index
    %61 = vector.load %arg3[%c0_64, %c0_65, %c10_66, %c0_67] : memref<1x1x110x128xbf16, #tpu.memory_space<vmem>>, vector<1x1x80x128xbf16>
    %62 = vector.shape_cast %61 : vector<1x1x80x128xbf16> to vector<80x128xbf16>
    %c1536 = arith.constant 1536 : index
    %c0_68 = arith.constant 0 : index
    %63 = vector.load %arg5[%c1536, %c0_68] : memref<3456x128xbf16, #tpu.memory_space<vmem>>, vector<128x128xbf16>
    %cst_69 = arith.constant dense<0.000000e+00> : vector<80x128xf32>
    %64 = tpu.matmul %62, %63, %cst_69 {dimension_numbers = #tpu.dot_dimension_numbers<[1], [0], [0], [1], [0, 0, 1, 1], [], []>} : vector<80x128xbf16>, vector<128x128xbf16>, vector<80x128xf32> -> vector<80x128xf32>
    %65 = arith.addf %60, %64 : vector<80x128xf32>
    %c0_70 = arith.constant 0 : index
    %c0_71 = arith.constant 0 : index
    %c11_72 = arith.constant 11 : index
    %c0_73 = arith.constant 0 : index
    %66 = vector.load %arg3[%c0_70, %c0_71, %c11_72, %c0_73] : memref<1x1x110x128xbf16, #tpu.memory_space<vmem>>, vector<1x1x80x128xbf16>
    %67 = vector.shape_cast %66 : vector<1x1x80x128xbf16> to vector<80x128xbf16>
    %c1664 = arith.constant 1664 : index
    %c0_74 = arith.constant 0 : index
    %68 = vector.load %arg5[%c1664, %c0_74] : memref<3456x128xbf16, #tpu.memory_space<vmem>>, vector<128x128xbf16>
    %cst_75 = arith.constant dense<0.000000e+00> : vector<80x128xf32>
    %69 = tpu.matmul %67, %68, %cst_75 {dimension_numbers = #tpu.dot_dimension_numbers<[1], [0], [0], [1], [0, 0, 1, 1], [], []>} : vector<80x128xbf16>, vector<128x128xbf16>, vector<80x128xf32> -> vector<80x128xf32>
    %70 = arith.addf %65, %69 : vector<80x128xf32>
    %c0_76 = arith.constant 0 : index
    %c0_77 = arith.constant 0 : index
    %c12_78 = arith.constant 12 : index
    %c0_79 = arith.constant 0 : index
    %71 = vector.load %arg3[%c0_76, %c0_77, %c12_78, %c0_79] : memref<1x1x110x128xbf16, #tpu.memory_space<vmem>>, vector<1x1x80x128xbf16>
    %72 = vector.shape_cast %71 : vector<1x1x80x128xbf16> to vector<80x128xbf16>
    %c1792 = arith.constant 1792 : index
    %c0_80 = arith.constant 0 : index
    %73 = vector.load %arg5[%c1792, %c0_80] : memref<3456x128xbf16, #tpu.memory_space<vmem>>, vector<128x128xbf16>
    %cst_81 = arith.constant dense<0.000000e+00> : vector<80x128xf32>
    %74 = tpu.matmul %72, %73, %cst_81 {dimension_numbers = #tpu.dot_dimension_numbers<[1], [0], [0], [1], [0, 0, 1, 1], [], []>} : vector<80x128xbf16>, vector<128x128xbf16>, vector<80x128xf32> -> vector<80x128xf32>
    %75 = arith.addf %70, %74 : vector<80x128xf32>
    %c0_82 = arith.constant 0 : index
    %c0_83 = arith.constant 0 : index
    %c20_84 = arith.constant 20 : index
    %c0_85 = arith.constant 0 : index
    %76 = vector.load %arg3[%c0_82, %c0_83, %c20_84, %c0_85] : memref<1x1x110x128xbf16, #tpu.memory_space<vmem>>, vector<1x1x80x128xbf16>
    %77 = vector.shape_cast %76 : vector<1x1x80x128xbf16> to vector<80x128xbf16>
    %c1920 = arith.constant 1920 : index
    %c0_86 = arith.constant 0 : index
    %78 = vector.load %arg5[%c1920, %c0_86] : memref<3456x128xbf16, #tpu.memory_space<vmem>>, vector<128x128xbf16>
    %cst_87 = arith.constant dense<0.000000e+00> : vector<80x128xf32>
    %79 = tpu.matmul %77, %78, %cst_87 {dimension_numbers = #tpu.dot_dimension_numbers<[1], [0], [0], [1], [0, 0, 1, 1], [], []>} : vector<80x128xbf16>, vector<128x128xbf16>, vector<80x128xf32> -> vector<80x128xf32>
    %80 = arith.addf %75, %79 : vector<80x128xf32>
    %c0_88 = arith.constant 0 : index
    %c0_89 = arith.constant 0 : index
    %c21_90 = arith.constant 21 : index
    %c0_91 = arith.constant 0 : index
    %81 = vector.load %arg3[%c0_88, %c0_89, %c21_90, %c0_91] : memref<1x1x110x128xbf16, #tpu.memory_space<vmem>>, vector<1x1x80x128xbf16>
    %82 = vector.shape_cast %81 : vector<1x1x80x128xbf16> to vector<80x128xbf16>
    %c2048 = arith.constant 2048 : index
    %c0_92 = arith.constant 0 : index
    %83 = vector.load %arg5[%c2048, %c0_92] : memref<3456x128xbf16, #tpu.memory_space<vmem>>, vector<128x128xbf16>
    %cst_93 = arith.constant dense<0.000000e+00> : vector<80x128xf32>
    %84 = tpu.matmul %82, %83, %cst_93 {dimension_numbers = #tpu.dot_dimension_numbers<[1], [0], [0], [1], [0, 0, 1, 1], [], []>} : vector<80x128xbf16>, vector<128x128xbf16>, vector<80x128xf32> -> vector<80x128xf32>
    %85 = arith.addf %80, %84 : vector<80x128xf32>
    %c0_94 = arith.constant 0 : index
    %c0_95 = arith.constant 0 : index
    %c22_96 = arith.constant 22 : index
    %c0_97 = arith.constant 0 : index
    %86 = vector.load %arg3[%c0_94, %c0_95, %c22_96, %c0_97] : memref<1x1x110x128xbf16, #tpu.memory_space<vmem>>, vector<1x1x80x128xbf16>
    %87 = vector.shape_cast %86 : vector<1x1x80x128xbf16> to vector<80x128xbf16>
    %c2176 = arith.constant 2176 : index
    %c0_98 = arith.constant 0 : index
    %88 = vector.load %arg5[%c2176, %c0_98] : memref<3456x128xbf16, #tpu.memory_space<vmem>>, vector<128x128xbf16>
    %cst_99 = arith.constant dense<0.000000e+00> : vector<80x128xf32>
    %89 = tpu.matmul %87, %88, %cst_99 {dimension_numbers = #tpu.dot_dimension_numbers<[1], [0], [0], [1], [0, 0, 1, 1], [], []>} : vector<80x128xbf16>, vector<128x128xbf16>, vector<80x128xf32> -> vector<80x128xf32>
    %90 = arith.addf %85, %89 : vector<80x128xf32>
    %c0_100 = arith.constant 0 : index
    %c0_101 = arith.constant 0 : index
    %c0_102 = arith.constant 0 : index
    %c0_103 = arith.constant 0 : index
    %91 = vector.load %arg4[%c0_100, %c0_101, %c0_102, %c0_103] : memref<1x1x110x128xbf16, #tpu.memory_space<vmem>>, vector<1x1x80x128xbf16>
    %92 = vector.shape_cast %91 : vector<1x1x80x128xbf16> to vector<80x128xbf16>
    %c2304 = arith.constant 2304 : index
    %c0_104 = arith.constant 0 : index
    %93 = vector.load %arg5[%c2304, %c0_104] : memref<3456x128xbf16, #tpu.memory_space<vmem>>, vector<128x128xbf16>
    %cst_105 = arith.constant dense<0.000000e+00> : vector<80x128xf32>
    %94 = tpu.matmul %92, %93, %cst_105 {dimension_numbers = #tpu.dot_dimension_numbers<[1], [0], [0], [1], [0, 0, 1, 1], [], []>} : vector<80x128xbf16>, vector<128x128xbf16>, vector<80x128xf32> -> vector<80x128xf32>
    %95 = arith.addf %90, %94 : vector<80x128xf32>
    %c0_106 = arith.constant 0 : index
    %c0_107 = arith.constant 0 : index
    %c1_108 = arith.constant 1 : index
    %c0_109 = arith.constant 0 : index
    %96 = vector.load %arg4[%c0_106, %c0_107, %c1_108, %c0_109] : memref<1x1x110x128xbf16, #tpu.memory_space<vmem>>, vector<1x1x80x128xbf16>
    %97 = vector.shape_cast %96 : vector<1x1x80x128xbf16> to vector<80x128xbf16>
    %c2432 = arith.constant 2432 : index
    %c0_110 = arith.constant 0 : index
    %98 = vector.load %arg5[%c2432, %c0_110] : memref<3456x128xbf16, #tpu.memory_space<vmem>>, vector<128x128xbf16>
    %cst_111 = arith.constant dense<0.000000e+00> : vector<80x128xf32>
    %99 = tpu.matmul %97, %98, %cst_111 {dimension_numbers = #tpu.dot_dimension_numbers<[1], [0], [0], [1], [0, 0, 1, 1], [], []>} : vector<80x128xbf16>, vector<128x128xbf16>, vector<80x128xf32> -> vector<80x128xf32>
    %100 = arith.addf %95, %99 : vector<80x128xf32>
    %c0_112 = arith.constant 0 : index
    %c0_113 = arith.constant 0 : index
    %c2_114 = arith.constant 2 : index
    %c0_115 = arith.constant 0 : index
    %101 = vector.load %arg4[%c0_112, %c0_113, %c2_114, %c0_115] : memref<1x1x110x128xbf16, #tpu.memory_space<vmem>>, vector<1x1x80x128xbf16>
    %102 = vector.shape_cast %101 : vector<1x1x80x128xbf16> to vector<80x128xbf16>
    %c2560 = arith.constant 2560 : index
    %c0_116 = arith.constant 0 : index
    %103 = vector.load %arg5[%c2560, %c0_116] : memref<3456x128xbf16, #tpu.memory_space<vmem>>, vector<128x128xbf16>
    %cst_117 = arith.constant dense<0.000000e+00> : vector<80x128xf32>
    %104 = tpu.matmul %102, %103, %cst_117 {dimension_numbers = #tpu.dot_dimension_numbers<[1], [0], [0], [1], [0, 0, 1, 1], [], []>} : vector<80x128xbf16>, vector<128x128xbf16>, vector<80x128xf32> -> vector<80x128xf32>
    %105 = arith.addf %100, %104 : vector<80x128xf32>
    %c0_118 = arith.constant 0 : index
    %c0_119 = arith.constant 0 : index
    %c10_120 = arith.constant 10 : index
    %c0_121 = arith.constant 0 : index
    %106 = vector.load %arg4[%c0_118, %c0_119, %c10_120, %c0_121] : memref<1x1x110x128xbf16, #tpu.memory_space<vmem>>, vector<1x1x80x128xbf16>
    %107 = vector.shape_cast %106 : vector<1x1x80x128xbf16> to vector<80x128xbf16>
    %c2688 = arith.constant 2688 : index
    %c0_122 = arith.constant 0 : index
    %108 = vector.load %arg5[%c2688, %c0_122] : memref<3456x128xbf16, #tpu.memory_space<vmem>>, vector<128x128xbf16>
    %cst_123 = arith.constant dense<0.000000e+00> : vector<80x128xf32>
    %109 = tpu.matmul %107, %108, %cst_123 {dimension_numbers = #tpu.dot_dimension_numbers<[1], [0], [0], [1], [0, 0, 1, 1], [], []>} : vector<80x128xbf16>, vector<128x128xbf16>, vector<80x128xf32> -> vector<80x128xf32>
    %110 = arith.addf %105, %109 : vector<80x128xf32>
    %c0_124 = arith.constant 0 : index
    %c0_125 = arith.constant 0 : index
    %c11_126 = arith.constant 11 : index
    %c0_127 = arith.constant 0 : index
    %111 = vector.load %arg4[%c0_124, %c0_125, %c11_126, %c0_127] : memref<1x1x110x128xbf16, #tpu.memory_space<vmem>>, vector<1x1x80x128xbf16>
    %112 = vector.shape_cast %111 : vector<1x1x80x128xbf16> to vector<80x128xbf16>
    %c2816 = arith.constant 2816 : index
    %c0_128 = arith.constant 0 : index
    %113 = vector.load %arg5[%c2816, %c0_128] : memref<3456x128xbf16, #tpu.memory_space<vmem>>, vector<128x128xbf16>
    %cst_129 = arith.constant dense<0.000000e+00> : vector<80x128xf32>
    %114 = tpu.matmul %112, %113, %cst_129 {dimension_numbers = #tpu.dot_dimension_numbers<[1], [0], [0], [1], [0, 0, 1, 1], [], []>} : vector<80x128xbf16>, vector<128x128xbf16>, vector<80x128xf32> -> vector<80x128xf32>
    %115 = arith.addf %110, %114 : vector<80x128xf32>
    %c0_130 = arith.constant 0 : index
    %c0_131 = arith.constant 0 : index
    %c12_132 = arith.constant 12 : index
    %c0_133 = arith.constant 0 : index
    %116 = vector.load %arg4[%c0_130, %c0_131, %c12_132, %c0_133] : memref<1x1x110x128xbf16, #tpu.memory_space<vmem>>, vector<1x1x80x128xbf16>
    %117 = vector.shape_cast %116 : vector<1x1x80x128xbf16> to vector<80x128xbf16>
    %c2944 = arith.constant 2944 : index
    %c0_134 = arith.constant 0 : index
    %118 = vector.load %arg5[%c2944, %c0_134] : memref<3456x128xbf16, #tpu.memory_space<vmem>>, vector<128x128xbf16>
    %cst_135 = arith.constant dense<0.000000e+00> : vector<80x128xf32>
    %119 = tpu.matmul %117, %118, %cst_135 {dimension_numbers = #tpu.dot_dimension_numbers<[1], [0], [0], [1], [0, 0, 1, 1], [], []>} : vector<80x128xbf16>, vector<128x128xbf16>, vector<80x128xf32> -> vector<80x128xf32>
    %120 = arith.addf %115, %119 : vector<80x128xf32>
    %c0_136 = arith.constant 0 : index
    %c0_137 = arith.constant 0 : index
    %c20_138 = arith.constant 20 : index
    %c0_139 = arith.constant 0 : index
    %121 = vector.load %arg4[%c0_136, %c0_137, %c20_138, %c0_139] : memref<1x1x110x128xbf16, #tpu.memory_space<vmem>>, vector<1x1x80x128xbf16>
    %122 = vector.shape_cast %121 : vector<1x1x80x128xbf16> to vector<80x128xbf16>
    %c3072 = arith.constant 3072 : index
    %c0_140 = arith.constant 0 : index
    %123 = vector.load %arg5[%c3072, %c0_140] : memref<3456x128xbf16, #tpu.memory_space<vmem>>, vector<128x128xbf16>
    %cst_141 = arith.constant dense<0.000000e+00> : vector<80x128xf32>
    %124 = tpu.matmul %122, %123, %cst_141 {dimension_numbers = #tpu.dot_dimension_numbers<[1], [0], [0], [1], [0, 0, 1, 1], [], []>} : vector<80x128xbf16>, vector<128x128xbf16>, vector<80x128xf32> -> vector<80x128xf32>
    %125 = arith.addf %120, %124 : vector<80x128xf32>
    %c0_142 = arith.constant 0 : index
    %c0_143 = arith.constant 0 : index
    %c21_144 = arith.constant 21 : index
    %c0_145 = arith.constant 0 : index
    %126 = vector.load %arg4[%c0_142, %c0_143, %c21_144, %c0_145] : memref<1x1x110x128xbf16, #tpu.memory_space<vmem>>, vector<1x1x80x128xbf16>
    %127 = vector.shape_cast %126 : vector<1x1x80x128xbf16> to vector<80x128xbf16>
    %c3200 = arith.constant 3200 : index
    %c0_146 = arith.constant 0 : index
    %128 = vector.load %arg5[%c3200, %c0_146] : memref<3456x128xbf16, #tpu.memory_space<vmem>>, vector<128x128xbf16>
    %cst_147 = arith.constant dense<0.000000e+00> : vector<80x128xf32>
    %129 = tpu.matmul %127, %128, %cst_147 {dimension_numbers = #tpu.dot_dimension_numbers<[1], [0], [0], [1], [0, 0, 1, 1], [], []>} : vector<80x128xbf16>, vector<128x128xbf16>, vector<80x128xf32> -> vector<80x128xf32>
    %130 = arith.addf %125, %129 : vector<80x128xf32>
    %c0_148 = arith.constant 0 : index
    %c0_149 = arith.constant 0 : index
    %c22_150 = arith.constant 22 : index
    %c0_151 = arith.constant 0 : index
    %131 = vector.load %arg4[%c0_148, %c0_149, %c22_150, %c0_151] : memref<1x1x110x128xbf16, #tpu.memory_space<vmem>>, vector<1x1x80x128xbf16>
    %132 = vector.shape_cast %131 : vector<1x1x80x128xbf16> to vector<80x128xbf16>
    %c3328 = arith.constant 3328 : index
    %c0_152 = arith.constant 0 : index
    %133 = vector.load %arg5[%c3328, %c0_152] : memref<3456x128xbf16, #tpu.memory_space<vmem>>, vector<128x128xbf16>
    %cst_153 = arith.constant dense<0.000000e+00> : vector<80x128xf32>
    %134 = tpu.matmul %132, %133, %cst_153 {dimension_numbers = #tpu.dot_dimension_numbers<[1], [0], [0], [1], [0, 0, 1, 1], [], []>} : vector<80x128xbf16>, vector<128x128xbf16>, vector<80x128xf32> -> vector<80x128xf32>
    %135 = arith.addf %130, %134 : vector<80x128xf32>
    %c0_154 = arith.constant 0 : index
    %c0_155 = arith.constant 0 : index
    %136 = vector.load %arg6[%c0_154, %c0_155] : memref<1x128xf32, #tpu.memory_space<vmem>>, vector<1x128xf32>
    %137 = vector.broadcast %136 : vector<1x128xf32> to vector<80x128xf32>
    %138 = arith.mulf %135, %137 : vector<80x128xf32>
    %c0_156 = arith.constant 0 : index
    %c0_157 = arith.constant 0 : index
    %139 = vector.load %arg7[%c0_156, %c0_157] : memref<1x128xf32, #tpu.memory_space<vmem>>, vector<1x128xf32>
    %140 = vector.broadcast %139 : vector<1x128xf32> to vector<80x128xf32>
    %141 = arith.addf %138, %140 : vector<80x128xf32>
    %cst_158 = arith.constant 0.000000e+00 : f32
    %142 = vector.broadcast %cst_158 : f32 to vector<80x128xf32>
    %143 = arith.maximumf %141, %142 : vector<80x128xf32>
    %144 = arith.truncf %143 : vector<80x128xf32> to vector<80x128xbf16>
    %c0_159 = arith.constant 0 : index
    %c0_160 = arith.constant 0 : index
    %c0_161 = arith.constant 0 : index
    %c0_162 = arith.constant 0 : index
    %145 = vector.load %arg8[%c0_159, %c0_160, %c0_161, %c0_162] : memref<1x1x80x128xbf16, #tpu.memory_space<vmem>>, vector<1x1x80x128xbf16>
    %146 = vector.shape_cast %145 : vector<1x1x80x128xbf16> to vector<80x128xbf16>
    %147 = vector.shape_cast %144 : vector<80x128xbf16> to vector<1x1x80x128xbf16>
    tpu.vector_store %arg8[%c0_159, %c0_160, %c0_161, %c0_162], %147 {strides = array<i32>} : memref<1x1x80x128xbf16, #tpu.memory_space<vmem>>, vector<1x1x80x128xbf16>,
    return
  }
  func.func @transform_0(%arg0: i32, %arg1: i32) -> (i32, i32, i32, i32) {
    %c0_i32 = arith.constant 0 : i32
    %0 = arith.addi %arg1, %c0_i32 : i32
    %c0_i32_0 = arith.constant 0 : i32
    %c0_i32_1 = arith.constant 0 : i32
    %c0_i32_2 = arith.constant 0 : i32
    return %arg0, %0, %c0_i32_0, %c0_i32_1 : i32, i32, i32, i32
  }
  func.func @transform_1(%arg0: i32, %arg1: i32) -> (i32, i32, i32, i32) {
    %c1_i32 = arith.constant 1 : i32
    %0 = arith.addi %arg1, %c1_i32 : i32
    %c0_i32 = arith.constant 0 : i32
    %c0_i32_0 = arith.constant 0 : i32
    %c0_i32_1 = arith.constant 0 : i32
    return %arg0, %0, %c0_i32, %c0_i32_0 : i32, i32, i32, i32
  }
  func.func @transform_2(%arg0: i32, %arg1: i32) -> (i32, i32, i32, i32) {
    %c2_i32 = arith.constant 2 : i32
    %0 = arith.addi %arg1, %c2_i32 : i32
    %c0_i32 = arith.constant 0 : i32
    %c0_i32_0 = arith.constant 0 : i32
    %c0_i32_1 = arith.constant 0 : i32
    return %arg0, %0, %c0_i32, %c0_i32_0 : i32, i32, i32, i32
  }
  func.func @transform_3(%arg0: i32, %arg1: i32) -> (i32, i32) {
    %c0_i32 = arith.constant 0 : i32
    %c0_i32_0 = arith.constant 0 : i32
    %c0_i32_1 = arith.constant 0 : i32
    return %c0_i32, %c0_i32_0 : i32, i32
  }
  func.func @transform_4(%arg0: i32, %arg1: i32) -> (i32, i32) {
    %c0_i32 = arith.constant 0 : i32
    %c0_i32_0 = arith.constant 0 : i32
    %c0_i32_1 = arith.constant 0 : i32
    return %c0_i32, %c0_i32_0 : i32, i32
  }
  func.func @transform_5(%arg0: i32, %arg1: i32) -> (i32, i32) {
    %c0_i32 = arith.constant 0 : i32
    %c0_i32_0 = arith.constant 0 : i32
    %c0_i32_1 = arith.constant 0 : i32
    return %c0_i32, %c0_i32_0 : i32, i32
  }
  func.func @transform_6(%arg0: i32, %arg1: i32) -> (i32, i32, i32, i32) {
    %c0_i32 = arith.constant 0 : i32
    %c0_i32_0 = arith.constant 0 : i32
    %c0_i32_1 = arith.constant 0 : i32
    return %arg0, %arg1, %c0_i32, %c0_i32_0 : i32, i32, i32, i32
  }
}

module attributes {stable_mosaic.version = 11 : i64} {
  func.func @_conv_bn_add_relu_kernel(%arg0: i32, %arg1: i32, %arg2: memref<1x1x110x128xbf16, #tpu.memory_space<vmem>>, %arg3: memref<1x1x110x128xbf16, #tpu.memory_space<vmem>>, %arg4: memref<1x1x110x128xbf16, #tpu.memory_space<vmem>>, %arg5: memref<3456x128xbf16, #tpu.memory_space<vmem>>, %arg6: memref<1x128xf32, #tpu.memory_space<vmem>>, %arg7: memref<1x128xf32, #tpu.memory_space<vmem>>, %arg8: memref<1x1x80x128xbf16, #tpu.memory_space<vmem>>, %arg9: memref<1x1x80x128xf32, #tpu.memory_space<vmem>>) attributes {dimension_semantics = [#tpu.dimension_semantics<parallel>, #tpu.dimension_semantics<parallel>], iteration_bounds = array<i64: 2, 4>, scalar_prefetch = 0 : i64, scratch_operands = 0 : i64, tpu.core_type = #tpu.core_type<tc>, window_params = [{transform_indices = @transform_0, window_bounds = array<i64: 1, 1, 110, 128>}, {transform_indices = @transform_1, window_bounds = array<i64: 1, 1, 110, 128>}, {transform_indices = @transform_2, window_bounds = array<i64: 1, 1, 110, 128>}, {pipeline_mode = #tpu.pipeline_mode<synchronous>, transform_indices = @transform_3, window_bounds = array<i64: 3456, 128>}, {pipeline_mode = #tpu.pipeline_mode<synchronous>, transform_indices = @transform_4, window_bounds = array<i64: 1, 128>}, {pipeline_mode = #tpu.pipeline_mode<synchronous>, transform_indices = @transform_5, window_bounds = array<i64: 1, 128>}, {transform_indices = @transform_6, window_bounds = array<i64: 1, 1, 80, 128>}, {transform_indices = @transform_7, window_bounds = array<i64: 1, 1, 80, 128>}]} {
    %cst = arith.constant 0.000000e+00 : f32
    %0 = vector.broadcast %cst : f32 to vector<80x128xf32>
    %c0 = arith.constant 0 : index
    %c0_0 = arith.constant 0 : index
    %c0_1 = arith.constant 0 : index
    %c0_2 = arith.constant 0 : index
    %1 = vector.load %arg2[%c0, %c0_0, %c0_1, %c0_2] : memref<1x1x110x128xbf16, #tpu.memory_space<vmem>>, vector<1x1x80x128xbf16>
    %2 = vector.shape_cast %1 : vector<1x1x80x128xbf16> to vector<80x128xbf16>
    %c0_3 = arith.constant 0 : index
    %c0_4 = arith.constant 0 : index
    %3 = vector.load %arg5[%c0_3, %c0_4] : memref<3456x128xbf16, #tpu.memory_space<vmem>>, vector<128x128xbf16>
    %cst_5 = arith.constant dense<0.000000e+00> : vector<80x128xf32>
    %4 = tpu.matmul %2, %3, %cst_5 {dimension_numbers = #tpu.dot_dimension_numbers<[1], [0], [0], [1], [0, 0, 1, 1], [], []>} : vector<80x128xbf16>, vector<128x128xbf16>, vector<80x128xf32> -> vector<80x128xf32>
    %5 = arith.addf %0, %4 : vector<80x128xf32>
    %c0_6 = arith.constant 0 : index
    %c0_7 = arith.constant 0 : index
    %c1 = arith.constant 1 : index
    %c0_8 = arith.constant 0 : index
    %6 = vector.load %arg2[%c0_6, %c0_7, %c1, %c0_8] : memref<1x1x110x128xbf16, #tpu.memory_space<vmem>>, vector<1x1x80x128xbf16>
    %7 = vector.shape_cast %6 : vector<1x1x80x128xbf16> to vector<80x128xbf16>
    %c128 = arith.constant 128 : index
    %c0_9 = arith.constant 0 : index
    %8 = vector.load %arg5[%c128, %c0_9] : memref<3456x128xbf16, #tpu.memory_space<vmem>>, vector<128x128xbf16>
    %cst_10 = arith.constant dense<0.000000e+00> : vector<80x128xf32>
    %9 = tpu.matmul %7, %8, %cst_10 {dimension_numbers = #tpu.dot_dimension_numbers<[1], [0], [0], [1], [0, 0, 1, 1], [], []>} : vector<80x128xbf16>, vector<128x128xbf16>, vector<80x128xf32> -> vector<80x128xf32>
    %10 = arith.addf %5, %9 : vector<80x128xf32>
    %c0_11 = arith.constant 0 : index
    %c0_12 = arith.constant 0 : index
    %c2 = arith.constant 2 : index
    %c0_13 = arith.constant 0 : index
    %11 = vector.load %arg2[%c0_11, %c0_12, %c2, %c0_13] : memref<1x1x110x128xbf16, #tpu.memory_space<vmem>>, vector<1x1x80x128xbf16>
    %12 = vector.shape_cast %11 : vector<1x1x80x128xbf16> to vector<80x128xbf16>
    %c256 = arith.constant 256 : index
    %c0_14 = arith.constant 0 : index
    %13 = vector.load %arg5[%c256, %c0_14] : memref<3456x128xbf16, #tpu.memory_space<vmem>>, vector<128x128xbf16>
    %cst_15 = arith.constant dense<0.000000e+00> : vector<80x128xf32>
    %14 = tpu.matmul %12, %13, %cst_15 {dimension_numbers = #tpu.dot_dimension_numbers<[1], [0], [0], [1], [0, 0, 1, 1], [], []>} : vector<80x128xbf16>, vector<128x128xbf16>, vector<80x128xf32> -> vector<80x128xf32>
    %15 = arith.addf %10, %14 : vector<80x128xf32>
    %c0_16 = arith.constant 0 : index
    %c0_17 = arith.constant 0 : index
    %c10 = arith.constant 10 : index
    %c0_18 = arith.constant 0 : index
    %16 = vector.load %arg2[%c0_16, %c0_17, %c10, %c0_18] : memref<1x1x110x128xbf16, #tpu.memory_space<vmem>>, vector<1x1x80x128xbf16>
    %17 = vector.shape_cast %16 : vector<1x1x80x128xbf16> to vector<80x128xbf16>
    %c384 = arith.constant 384 : index
    %c0_19 = arith.constant 0 : index
    %18 = vector.load %arg5[%c384, %c0_19] : memref<3456x128xbf16, #tpu.memory_space<vmem>>, vector<128x128xbf16>
    %cst_20 = arith.constant dense<0.000000e+00> : vector<80x128xf32>
    %19 = tpu.matmul %17, %18, %cst_20 {dimension_numbers = #tpu.dot_dimension_numbers<[1], [0], [0], [1], [0, 0, 1, 1], [], []>} : vector<80x128xbf16>, vector<128x128xbf16>, vector<80x128xf32> -> vector<80x128xf32>
    %20 = arith.addf %15, %19 : vector<80x128xf32>
    %c0_21 = arith.constant 0 : index
    %c0_22 = arith.constant 0 : index
    %c11 = arith.constant 11 : index
    %c0_23 = arith.constant 0 : index
    %21 = vector.load %arg2[%c0_21, %c0_22, %c11, %c0_23] : memref<1x1x110x128xbf16, #tpu.memory_space<vmem>>, vector<1x1x80x128xbf16>
    %22 = vector.shape_cast %21 : vector<1x1x80x128xbf16> to vector<80x128xbf16>
    %c512 = arith.constant 512 : index
    %c0_24 = arith.constant 0 : index
    %23 = vector.load %arg5[%c512, %c0_24] : memref<3456x128xbf16, #tpu.memory_space<vmem>>, vector<128x128xbf16>
    %cst_25 = arith.constant dense<0.000000e+00> : vector<80x128xf32>
    %24 = tpu.matmul %22, %23, %cst_25 {dimension_numbers = #tpu.dot_dimension_numbers<[1], [0], [0], [1], [0, 0, 1, 1], [], []>} : vector<80x128xbf16>, vector<128x128xbf16>, vector<80x128xf32> -> vector<80x128xf32>
    %25 = arith.addf %20, %24 : vector<80x128xf32>
    %c0_26 = arith.constant 0 : index
    %c0_27 = arith.constant 0 : index
    %c12 = arith.constant 12 : index
    %c0_28 = arith.constant 0 : index
    %26 = vector.load %arg2[%c0_26, %c0_27, %c12, %c0_28] : memref<1x1x110x128xbf16, #tpu.memory_space<vmem>>, vector<1x1x80x128xbf16>
    %27 = vector.shape_cast %26 : vector<1x1x80x128xbf16> to vector<80x128xbf16>
    %c640 = arith.constant 640 : index
    %c0_29 = arith.constant 0 : index
    %28 = vector.load %arg5[%c640, %c0_29] : memref<3456x128xbf16, #tpu.memory_space<vmem>>, vector<128x128xbf16>
    %cst_30 = arith.constant dense<0.000000e+00> : vector<80x128xf32>
    %29 = tpu.matmul %27, %28, %cst_30 {dimension_numbers = #tpu.dot_dimension_numbers<[1], [0], [0], [1], [0, 0, 1, 1], [], []>} : vector<80x128xbf16>, vector<128x128xbf16>, vector<80x128xf32> -> vector<80x128xf32>
    %30 = arith.addf %25, %29 : vector<80x128xf32>
    %c0_31 = arith.constant 0 : index
    %c0_32 = arith.constant 0 : index
    %c20 = arith.constant 20 : index
    %c0_33 = arith.constant 0 : index
    %31 = vector.load %arg2[%c0_31, %c0_32, %c20, %c0_33] : memref<1x1x110x128xbf16, #tpu.memory_space<vmem>>, vector<1x1x80x128xbf16>
    %32 = vector.shape_cast %31 : vector<1x1x80x128xbf16> to vector<80x128xbf16>
    %c768 = arith.constant 768 : index
    %c0_34 = arith.constant 0 : index
    %33 = vector.load %arg5[%c768, %c0_34] : memref<3456x128xbf16, #tpu.memory_space<vmem>>, vector<128x128xbf16>
    %cst_35 = arith.constant dense<0.000000e+00> : vector<80x128xf32>
    %34 = tpu.matmul %32, %33, %cst_35 {dimension_numbers = #tpu.dot_dimension_numbers<[1], [0], [0], [1], [0, 0, 1, 1], [], []>} : vector<80x128xbf16>, vector<128x128xbf16>, vector<80x128xf32> -> vector<80x128xf32>
    %35 = arith.addf %30, %34 : vector<80x128xf32>
    %c0_36 = arith.constant 0 : index
    %c0_37 = arith.constant 0 : index
    %c21 = arith.constant 21 : index
    %c0_38 = arith.constant 0 : index
    %36 = vector.load %arg2[%c0_36, %c0_37, %c21, %c0_38] : memref<1x1x110x128xbf16, #tpu.memory_space<vmem>>, vector<1x1x80x128xbf16>
    %37 = vector.shape_cast %36 : vector<1x1x80x128xbf16> to vector<80x128xbf16>
    %c896 = arith.constant 896 : index
    %c0_39 = arith.constant 0 : index
    %38 = vector.load %arg5[%c896, %c0_39] : memref<3456x128xbf16, #tpu.memory_space<vmem>>, vector<128x128xbf16>
    %cst_40 = arith.constant dense<0.000000e+00> : vector<80x128xf32>
    %39 = tpu.matmul %37, %38, %cst_40 {dimension_numbers = #tpu.dot_dimension_numbers<[1], [0], [0], [1], [0, 0, 1, 1], [], []>} : vector<80x128xbf16>, vector<128x128xbf16>, vector<80x128xf32> -> vector<80x128xf32>
    %40 = arith.addf %35, %39 : vector<80x128xf32>
    %c0_41 = arith.constant 0 : index
    %c0_42 = arith.constant 0 : index
    %c22 = arith.constant 22 : index
    %c0_43 = arith.constant 0 : index
    %41 = vector.load %arg2[%c0_41, %c0_42, %c22, %c0_43] : memref<1x1x110x128xbf16, #tpu.memory_space<vmem>>, vector<1x1x80x128xbf16>
    %42 = vector.shape_cast %41 : vector<1x1x80x128xbf16> to vector<80x128xbf16>
    %c1024 = arith.constant 1024 : index
    %c0_44 = arith.constant 0 : index
    %43 = vector.load %arg5[%c1024, %c0_44] : memref<3456x128xbf16, #tpu.memory_space<vmem>>, vector<128x128xbf16>
    %cst_45 = arith.constant dense<0.000000e+00> : vector<80x128xf32>
    %44 = tpu.matmul %42, %43, %cst_45 {dimension_numbers = #tpu.dot_dimension_numbers<[1], [0], [0], [1], [0, 0, 1, 1], [], []>} : vector<80x128xbf16>, vector<128x128xbf16>, vector<80x128xf32> -> vector<80x128xf32>
    %45 = arith.addf %40, %44 : vector<80x128xf32>
    %c0_46 = arith.constant 0 : index
    %c0_47 = arith.constant 0 : index
    %c0_48 = arith.constant 0 : index
    %c0_49 = arith.constant 0 : index
    %46 = vector.load %arg3[%c0_46, %c0_47, %c0_48, %c0_49] : memref<1x1x110x128xbf16, #tpu.memory_space<vmem>>, vector<1x1x80x128xbf16>
    %47 = vector.shape_cast %46 : vector<1x1x80x128xbf16> to vector<80x128xbf16>
    %c1152 = arith.constant 1152 : index
    %c0_50 = arith.constant 0 : index
    %48 = vector.load %arg5[%c1152, %c0_50] : memref<3456x128xbf16, #tpu.memory_space<vmem>>, vector<128x128xbf16>
    %cst_51 = arith.constant dense<0.000000e+00> : vector<80x128xf32>
    %49 = tpu.matmul %47, %48, %cst_51 {dimension_numbers = #tpu.dot_dimension_numbers<[1], [0], [0], [1], [0, 0, 1, 1], [], []>} : vector<80x128xbf16>, vector<128x128xbf16>, vector<80x128xf32> -> vector<80x128xf32>
    %50 = arith.addf %45, %49 : vector<80x128xf32>
    %c0_52 = arith.constant 0 : index
    %c0_53 = arith.constant 0 : index
    %c1_54 = arith.constant 1 : index
    %c0_55 = arith.constant 0 : index
    %51 = vector.load %arg3[%c0_52, %c0_53, %c1_54, %c0_55] : memref<1x1x110x128xbf16, #tpu.memory_space<vmem>>, vector<1x1x80x128xbf16>
    %52 = vector.shape_cast %51 : vector<1x1x80x128xbf16> to vector<80x128xbf16>
    %c1280 = arith.constant 1280 : index
    %c0_56 = arith.constant 0 : index
    %53 = vector.load %arg5[%c1280, %c0_56] : memref<3456x128xbf16, #tpu.memory_space<vmem>>, vector<128x128xbf16>
    %cst_57 = arith.constant dense<0.000000e+00> : vector<80x128xf32>
    %54 = tpu.matmul %52, %53, %cst_57 {dimension_numbers = #tpu.dot_dimension_numbers<[1], [0], [0], [1], [0, 0, 1, 1], [], []>} : vector<80x128xbf16>, vector<128x128xbf16>, vector<80x128xf32> -> vector<80x128xf32>
    %55 = arith.addf %50, %54 : vector<80x128xf32>
    %c0_58 = arith.constant 0 : index
    %c0_59 = arith.constant 0 : index
    %c2_60 = arith.constant 2 : index
    %c0_61 = arith.constant 0 : index
    %56 = vector.load %arg3[%c0_58, %c0_59, %c2_60, %c0_61] : memref<1x1x110x128xbf16, #tpu.memory_space<vmem>>, vector<1x1x80x128xbf16>
    %57 = vector.shape_cast %56 : vector<1x1x80x128xbf16> to vector<80x128xbf16>
    %c1408 = arith.constant 1408 : index
    %c0_62 = arith.constant 0 : index
    %58 = vector.load %arg5[%c1408, %c0_62] : memref<3456x128xbf16, #tpu.memory_space<vmem>>, vector<128x128xbf16>
    %cst_63 = arith.constant dense<0.000000e+00> : vector<80x128xf32>
    %59 = tpu.matmul %57, %58, %cst_63 {dimension_numbers = #tpu.dot_dimension_numbers<[1], [0], [0], [1], [0, 0, 1, 1], [], []>} : vector<80x128xbf16>, vector<128x128xbf16>, vector<80x128xf32> -> vector<80x128xf32>
    %60 = arith.addf %55, %59 : vector<80x128xf32>
    %c0_64 = arith.constant 0 : index
    %c0_65 = arith.constant 0 : index
    %c10_66 = arith.constant 10 : index
    %c0_67 = arith.constant 0 : index
    %61 = vector.load %arg3[%c0_64, %c0_65, %c10_66, %c0_67] : memref<1x1x110x128xbf16, #tpu.memory_space<vmem>>, vector<1x1x80x128xbf16>
    %62 = vector.shape_cast %61 : vector<1x1x80x128xbf16> to vector<80x128xbf16>
    %c1536 = arith.constant 1536 : index
    %c0_68 = arith.constant 0 : index
    %63 = vector.load %arg5[%c1536, %c0_68] : memref<3456x128xbf16, #tpu.memory_space<vmem>>, vector<128x128xbf16>
    %cst_69 = arith.constant dense<0.000000e+00> : vector<80x128xf32>
    %64 = tpu.matmul %62, %63, %cst_69 {dimension_numbers = #tpu.dot_dimension_numbers<[1], [0], [0], [1], [0, 0, 1, 1], [], []>} : vector<80x128xbf16>, vector<128x128xbf16>, vector<80x128xf32> -> vector<80x128xf32>
    %65 = arith.addf %60, %64 : vector<80x128xf32>
    %c0_70 = arith.constant 0 : index
    %c0_71 = arith.constant 0 : index
    %c11_72 = arith.constant 11 : index
    %c0_73 = arith.constant 0 : index
    %66 = vector.load %arg3[%c0_70, %c0_71, %c11_72, %c0_73] : memref<1x1x110x128xbf16, #tpu.memory_space<vmem>>, vector<1x1x80x128xbf16>
    %67 = vector.shape_cast %66 : vector<1x1x80x128xbf16> to vector<80x128xbf16>
    %c1664 = arith.constant 1664 : index
    %c0_74 = arith.constant 0 : index
    %68 = vector.load %arg5[%c1664, %c0_74] : memref<3456x128xbf16, #tpu.memory_space<vmem>>, vector<128x128xbf16>
    %cst_75 = arith.constant dense<0.000000e+00> : vector<80x128xf32>
    %69 = tpu.matmul %67, %68, %cst_75 {dimension_numbers = #tpu.dot_dimension_numbers<[1], [0], [0], [1], [0, 0, 1, 1], [], []>} : vector<80x128xbf16>, vector<128x128xbf16>, vector<80x128xf32> -> vector<80x128xf32>
    %70 = arith.addf %65, %69 : vector<80x128xf32>
    %c0_76 = arith.constant 0 : index
    %c0_77 = arith.constant 0 : index
    %c12_78 = arith.constant 12 : index
    %c0_79 = arith.constant 0 : index
    %71 = vector.load %arg3[%c0_76, %c0_77, %c12_78, %c0_79] : memref<1x1x110x128xbf16, #tpu.memory_space<vmem>>, vector<1x1x80x128xbf16>
    %72 = vector.shape_cast %71 : vector<1x1x80x128xbf16> to vector<80x128xbf16>
    %c1792 = arith.constant 1792 : index
    %c0_80 = arith.constant 0 : index
    %73 = vector.load %arg5[%c1792, %c0_80] : memref<3456x128xbf16, #tpu.memory_space<vmem>>, vector<128x128xbf16>
    %cst_81 = arith.constant dense<0.000000e+00> : vector<80x128xf32>
    %74 = tpu.matmul %72, %73, %cst_81 {dimension_numbers = #tpu.dot_dimension_numbers<[1], [0], [0], [1], [0, 0, 1, 1], [], []>} : vector<80x128xbf16>, vector<128x128xbf16>, vector<80x128xf32> -> vector<80x128xf32>
    %75 = arith.addf %70, %74 : vector<80x128xf32>
    %c0_82 = arith.constant 0 : index
    %c0_83 = arith.constant 0 : index
    %c20_84 = arith.constant 20 : index
    %c0_85 = arith.constant 0 : index
    %76 = vector.load %arg3[%c0_82, %c0_83, %c20_84, %c0_85] : memref<1x1x110x128xbf16, #tpu.memory_space<vmem>>, vector<1x1x80x128xbf16>
    %77 = vector.shape_cast %76 : vector<1x1x80x128xbf16> to vector<80x128xbf16>
    %c1920 = arith.constant 1920 : index
    %c0_86 = arith.constant 0 : index
    %78 = vector.load %arg5[%c1920, %c0_86] : memref<3456x128xbf16, #tpu.memory_space<vmem>>, vector<128x128xbf16>
    %cst_87 = arith.constant dense<0.000000e+00> : vector<80x128xf32>
    %79 = tpu.matmul %77, %78, %cst_87 {dimension_numbers = #tpu.dot_dimension_numbers<[1], [0], [0], [1], [0, 0, 1, 1], [], []>} : vector<80x128xbf16>, vector<128x128xbf16>, vector<80x128xf32> -> vector<80x128xf32>
    %80 = arith.addf %75, %79 : vector<80x128xf32>
    %c0_88 = arith.constant 0 : index
    %c0_89 = arith.constant 0 : index
    %c21_90 = arith.constant 21 : index
    %c0_91 = arith.constant 0 : index
    %81 = vector.load %arg3[%c0_88, %c0_89, %c21_90, %c0_91] : memref<1x1x110x128xbf16, #tpu.memory_space<vmem>>, vector<1x1x80x128xbf16>
    %82 = vector.shape_cast %81 : vector<1x1x80x128xbf16> to vector<80x128xbf16>
    %c2048 = arith.constant 2048 : index
    %c0_92 = arith.constant 0 : index
    %83 = vector.load %arg5[%c2048, %c0_92] : memref<3456x128xbf16, #tpu.memory_space<vmem>>, vector<128x128xbf16>
    %cst_93 = arith.constant dense<0.000000e+00> : vector<80x128xf32>
    %84 = tpu.matmul %82, %83, %cst_93 {dimension_numbers = #tpu.dot_dimension_numbers<[1], [0], [0], [1], [0, 0, 1, 1], [], []>} : vector<80x128xbf16>, vector<128x128xbf16>, vector<80x128xf32> -> vector<80x128xf32>
    %85 = arith.addf %80, %84 : vector<80x128xf32>
    %c0_94 = arith.constant 0 : index
    %c0_95 = arith.constant 0 : index
    %c22_96 = arith.constant 22 : index
    %c0_97 = arith.constant 0 : index
    %86 = vector.load %arg3[%c0_94, %c0_95, %c22_96, %c0_97] : memref<1x1x110x128xbf16, #tpu.memory_space<vmem>>, vector<1x1x80x128xbf16>
    %87 = vector.shape_cast %86 : vector<1x1x80x128xbf16> to vector<80x128xbf16>
    %c2176 = arith.constant 2176 : index
    %c0_98 = arith.constant 0 : index
    %88 = vector.load %arg5[%c2176, %c0_98] : memref<3456x128xbf16, #tpu.memory_space<vmem>>, vector<128x128xbf16>
    %cst_99 = arith.constant dense<0.000000e+00> : vector<80x128xf32>
    %89 = tpu.matmul %87, %88, %cst_99 {dimension_numbers = #tpu.dot_dimension_numbers<[1], [0], [0], [1], [0, 0, 1, 1], [], []>} : vector<80x128xbf16>, vector<128x128xbf16>, vector<80x128xf32> -> vector<80x128xf32>
    %90 = arith.addf %85, %89 : vector<80x128xf32>
    %c0_100 = arith.constant 0 : index
    %c0_101 = arith.constant 0 : index
    %c0_102 = arith.constant 0 : index
    %c0_103 = arith.constant 0 : index
    %91 = vector.load %arg4[%c0_100, %c0_101, %c0_102, %c0_103] : memref<1x1x110x128xbf16, #tpu.memory_space<vmem>>, vector<1x1x80x128xbf16>
    %92 = vector.shape_cast %91 : vector<1x1x80x128xbf16> to vector<80x128xbf16>
    %c2304 = arith.constant 2304 : index
    %c0_104 = arith.constant 0 : index
    %93 = vector.load %arg5[%c2304, %c0_104] : memref<3456x128xbf16, #tpu.memory_space<vmem>>, vector<128x128xbf16>
    %cst_105 = arith.constant dense<0.000000e+00> : vector<80x128xf32>
    %94 = tpu.matmul %92, %93, %cst_105 {dimension_numbers = #tpu.dot_dimension_numbers<[1], [0], [0], [1], [0, 0, 1, 1], [], []>} : vector<80x128xbf16>, vector<128x128xbf16>, vector<80x128xf32> -> vector<80x128xf32>
    %95 = arith.addf %90, %94 : vector<80x128xf32>
    %c0_106 = arith.constant 0 : index
    %c0_107 = arith.constant 0 : index
    %c1_108 = arith.constant 1 : index
    %c0_109 = arith.constant 0 : index
    %96 = vector.load %arg4[%c0_106, %c0_107, %c1_108, %c0_109] : memref<1x1x110x128xbf16, #tpu.memory_space<vmem>>, vector<1x1x80x128xbf16>
    %97 = vector.shape_cast %96 : vector<1x1x80x128xbf16> to vector<80x128xbf16>
    %c2432 = arith.constant 2432 : index
    %c0_110 = arith.constant 0 : index
    %98 = vector.load %arg5[%c2432, %c0_110] : memref<3456x128xbf16, #tpu.memory_space<vmem>>, vector<128x128xbf16>
    %cst_111 = arith.constant dense<0.000000e+00> : vector<80x128xf32>
    %99 = tpu.matmul %97, %98, %cst_111 {dimension_numbers = #tpu.dot_dimension_numbers<[1], [0], [0], [1], [0, 0, 1, 1], [], []>} : vector<80x128xbf16>, vector<128x128xbf16>, vector<80x128xf32> -> vector<80x128xf32>
    %100 = arith.addf %95, %99 : vector<80x128xf32>
    %c0_112 = arith.constant 0 : index
    %c0_113 = arith.constant 0 : index
    %c2_114 = arith.constant 2 : index
    %c0_115 = arith.constant 0 : index
    %101 = vector.load %arg4[%c0_112, %c0_113, %c2_114, %c0_115] : memref<1x1x110x128xbf16, #tpu.memory_space<vmem>>, vector<1x1x80x128xbf16>
    %102 = vector.shape_cast %101 : vector<1x1x80x128xbf16> to vector<80x128xbf16>
    %c2560 = arith.constant 2560 : index
    %c0_116 = arith.constant 0 : index
    %103 = vector.load %arg5[%c2560, %c0_116] : memref<3456x128xbf16, #tpu.memory_space<vmem>>, vector<128x128xbf16>
    %cst_117 = arith.constant dense<0.000000e+00> : vector<80x128xf32>
    %104 = tpu.matmul %102, %103, %cst_117 {dimension_numbers = #tpu.dot_dimension_numbers<[1], [0], [0], [1], [0, 0, 1, 1], [], []>} : vector<80x128xbf16>, vector<128x128xbf16>, vector<80x128xf32> -> vector<80x128xf32>
    %105 = arith.addf %100, %104 : vector<80x128xf32>
    %c0_118 = arith.constant 0 : index
    %c0_119 = arith.constant 0 : index
    %c10_120 = arith.constant 10 : index
    %c0_121 = arith.constant 0 : index
    %106 = vector.load %arg4[%c0_118, %c0_119, %c10_120, %c0_121] : memref<1x1x110x128xbf16, #tpu.memory_space<vmem>>, vector<1x1x80x128xbf16>
    %107 = vector.shape_cast %106 : vector<1x1x80x128xbf16> to vector<80x128xbf16>
    %c2688 = arith.constant 2688 : index
    %c0_122 = arith.constant 0 : index
    %108 = vector.load %arg5[%c2688, %c0_122] : memref<3456x128xbf16, #tpu.memory_space<vmem>>, vector<128x128xbf16>
    %cst_123 = arith.constant dense<0.000000e+00> : vector<80x128xf32>
    %109 = tpu.matmul %107, %108, %cst_123 {dimension_numbers = #tpu.dot_dimension_numbers<[1], [0], [0], [1], [0, 0, 1, 1], [], []>} : vector<80x128xbf16>, vector<128x128xbf16>, vector<80x128xf32> -> vector<80x128xf32>
    %110 = arith.addf %105, %109 : vector<80x128xf32>
    %c0_124 = arith.constant 0 : index
    %c0_125 = arith.constant 0 : index
    %c11_126 = arith.constant 11 : index
    %c0_127 = arith.constant 0 : index
    %111 = vector.load %arg4[%c0_124, %c0_125, %c11_126, %c0_127] : memref<1x1x110x128xbf16, #tpu.memory_space<vmem>>, vector<1x1x80x128xbf16>
    %112 = vector.shape_cast %111 : vector<1x1x80x128xbf16> to vector<80x128xbf16>
    %c2816 = arith.constant 2816 : index
    %c0_128 = arith.constant 0 : index
    %113 = vector.load %arg5[%c2816, %c0_128] : memref<3456x128xbf16, #tpu.memory_space<vmem>>, vector<128x128xbf16>
    %cst_129 = arith.constant dense<0.000000e+00> : vector<80x128xf32>
    %114 = tpu.matmul %112, %113, %cst_129 {dimension_numbers = #tpu.dot_dimension_numbers<[1], [0], [0], [1], [0, 0, 1, 1], [], []>} : vector<80x128xbf16>, vector<128x128xbf16>, vector<80x128xf32> -> vector<80x128xf32>
    %115 = arith.addf %110, %114 : vector<80x128xf32>
    %c0_130 = arith.constant 0 : index
    %c0_131 = arith.constant 0 : index
    %c12_132 = arith.constant 12 : index
    %c0_133 = arith.constant 0 : index
    %116 = vector.load %arg4[%c0_130, %c0_131, %c12_132, %c0_133] : memref<1x1x110x128xbf16, #tpu.memory_space<vmem>>, vector<1x1x80x128xbf16>
    %117 = vector.shape_cast %116 : vector<1x1x80x128xbf16> to vector<80x128xbf16>
    %c2944 = arith.constant 2944 : index
    %c0_134 = arith.constant 0 : index
    %118 = vector.load %arg5[%c2944, %c0_134] : memref<3456x128xbf16, #tpu.memory_space<vmem>>, vector<128x128xbf16>
    %cst_135 = arith.constant dense<0.000000e+00> : vector<80x128xf32>
    %119 = tpu.matmul %117, %118, %cst_135 {dimension_numbers = #tpu.dot_dimension_numbers<[1], [0], [0], [1], [0, 0, 1, 1], [], []>} : vector<80x128xbf16>, vector<128x128xbf16>, vector<80x128xf32> -> vector<80x128xf32>
    %120 = arith.addf %115, %119 : vector<80x128xf32>
    %c0_136 = arith.constant 0 : index
    %c0_137 = arith.constant 0 : index
    %c20_138 = arith.constant 20 : index
    %c0_139 = arith.constant 0 : index
    %121 = vector.load %arg4[%c0_136, %c0_137, %c20_138, %c0_139] : memref<1x1x110x128xbf16, #tpu.memory_space<vmem>>, vector<1x1x80x128xbf16>
    %122 = vector.shape_cast %121 : vector<1x1x80x128xbf16> to vector<80x128xbf16>
    %c3072 = arith.constant 3072 : index
    %c0_140 = arith.constant 0 : index
    %123 = vector.load %arg5[%c3072, %c0_140] : memref<3456x128xbf16, #tpu.memory_space<vmem>>, vector<128x128xbf16>
    %cst_141 = arith.constant dense<0.000000e+00> : vector<80x128xf32>
    %124 = tpu.matmul %122, %123, %cst_141 {dimension_numbers = #tpu.dot_dimension_numbers<[1], [0], [0], [1], [0, 0, 1, 1], [], []>} : vector<80x128xbf16>, vector<128x128xbf16>, vector<80x128xf32> -> vector<80x128xf32>
    %125 = arith.addf %120, %124 : vector<80x128xf32>
    %c0_142 = arith.constant 0 : index
    %c0_143 = arith.constant 0 : index
    %c21_144 = arith.constant 21 : index
    %c0_145 = arith.constant 0 : index
    %126 = vector.load %arg4[%c0_142, %c0_143, %c21_144, %c0_145] : memref<1x1x110x128xbf16, #tpu.memory_space<vmem>>, vector<1x1x80x128xbf16>
    %127 = vector.shape_cast %126 : vector<1x1x80x128xbf16> to vector<80x128xbf16>
    %c3200 = arith.constant 3200 : index
    %c0_146 = arith.constant 0 : index
    %128 = vector.load %arg5[%c3200, %c0_146] : memref<3456x128xbf16, #tpu.memory_space<vmem>>, vector<128x128xbf16>
    %cst_147 = arith.constant dense<0.000000e+00> : vector<80x128xf32>
    %129 = tpu.matmul %127, %128, %cst_147 {dimension_numbers = #tpu.dot_dimension_numbers<[1], [0], [0], [1], [0, 0, 1, 1], [], []>} : vector<80x128xbf16>, vector<128x128xbf16>, vector<80x128xf32> -> vector<80x128xf32>
    %130 = arith.addf %125, %129 : vector<80x128xf32>
    %c0_148 = arith.constant 0 : index
    %c0_149 = arith.constant 0 : index
    %c22_150 = arith.constant 22 : index
    %c0_151 = arith.constant 0 : index
    %131 = vector.load %arg4[%c0_148, %c0_149, %c22_150, %c0_151] : memref<1x1x110x128xbf16, #tpu.memory_space<vmem>>, vector<1x1x80x128xbf16>
    %132 = vector.shape_cast %131 : vector<1x1x80x128xbf16> to vector<80x128xbf16>
    %c3328 = arith.constant 3328 : index
    %c0_152 = arith.constant 0 : index
    %133 = vector.load %arg5[%c3328, %c0_152] : memref<3456x128xbf16, #tpu.memory_space<vmem>>, vector<128x128xbf16>
    %cst_153 = arith.constant dense<0.000000e+00> : vector<80x128xf32>
    %134 = tpu.matmul %132, %133, %cst_153 {dimension_numbers = #tpu.dot_dimension_numbers<[1], [0], [0], [1], [0, 0, 1, 1], [], []>} : vector<80x128xbf16>, vector<128x128xbf16>, vector<80x128xf32> -> vector<80x128xf32>
    %135 = arith.addf %130, %134 : vector<80x128xf32>
    %c0_154 = arith.constant 0 : index
    %c0_155 = arith.constant 0 : index
    %136 = vector.load %arg6[%c0_154, %c0_155] : memref<1x128xf32, #tpu.memory_space<vmem>>, vector<1x128xf32>
    %137 = vector.broadcast %136 : vector<1x128xf32> to vector<80x128xf32>
    %138 = arith.mulf %135, %137 : vector<80x128xf32>
    %c0_156 = arith.constant 0 : index
    %c0_157 = arith.constant 0 : index
    %139 = vector.load %arg7[%c0_156, %c0_157] : memref<1x128xf32, #tpu.memory_space<vmem>>, vector<1x128xf32>
    %140 = vector.broadcast %139 : vector<1x128xf32> to vector<80x128xf32>
    %141 = arith.addf %138, %140 : vector<80x128xf32>
    %c0_158 = arith.constant 0 : index
    %c0_159 = arith.constant 0 : index
    %c0_160 = arith.constant 0 : index
    %c0_161 = arith.constant 0 : index
    %142 = vector.load %arg8[%c0_158, %c0_159, %c0_160, %c0_161] : memref<1x1x80x128xbf16, #tpu.memory_space<vmem>>, vector<1x1x80x128xbf16>
    %143 = vector.shape_cast %142 : vector<1x1x80x128xbf16> to vector<80x128xbf16>
    %144 = arith.extf %143 : vector<80x128xbf16> to vector<80x128xf32>
    %145 = arith.addf %141, %144 : vector<80x128xf32>
    %cst_162 = arith.constant 0.000000e+00 : f32
    %146 = vector.broadcast %cst_162 : f32 to vector<80x128xf32>
    %147 = arith.maximumf %145, %146 : vector<80x128xf32>
    %c0_163 = arith.constant 0 : index
    %c0_164 = arith.constant 0 : index
    %c0_165 = arith.constant 0 : index
    %c0_166 = arith.constant 0 : index
    %148 = vector.load %arg9[%c0_163, %c0_164, %c0_165, %c0_166] : memref<1x1x80x128xf32, #tpu.memory_space<vmem>>, vector<1x1x80x128xf32>
    %149 = vector.shape_cast %148 : vector<1x1x80x128xf32> to vector<80x128xf32>
    %150 = vector.shape_cast %147 : vector<80x128xf32> to vector<1x1x80x128xf32>
    tpu.vector_store %arg9[%c0_163, %c0_164, %c0_165, %c0_166], %150 {strides = array<i32>} : memref<1x1x80x128xf32, #tpu.memory_space<vmem>>, vector<1x1x80x128xf32>,
    return
  }
  func.func @transform_0(%arg0: i32, %arg1: i32) -> (i32, i32, i32, i32) {
    %c0_i32 = arith.constant 0 : i32
    %0 = arith.addi %arg1, %c0_i32 : i32
    %c0_i32_0 = arith.constant 0 : i32
    %c0_i32_1 = arith.constant 0 : i32
    %c0_i32_2 = arith.constant 0 : i32
    return %arg0, %0, %c0_i32_0, %c0_i32_1 : i32, i32, i32, i32
  }
  func.func @transform_1(%arg0: i32, %arg1: i32) -> (i32, i32, i32, i32) {
    %c1_i32 = arith.constant 1 : i32
    %0 = arith.addi %arg1, %c1_i32 : i32
    %c0_i32 = arith.constant 0 : i32
    %c0_i32_0 = arith.constant 0 : i32
    %c0_i32_1 = arith.constant 0 : i32
    return %arg0, %0, %c0_i32, %c0_i32_0 : i32, i32, i32, i32
  }
  func.func @transform_2(%arg0: i32, %arg1: i32) -> (i32, i32, i32, i32) {
    %c2_i32 = arith.constant 2 : i32
    %0 = arith.addi %arg1, %c2_i32 : i32
    %c0_i32 = arith.constant 0 : i32
    %c0_i32_0 = arith.constant 0 : i32
    %c0_i32_1 = arith.constant 0 : i32
    return %arg0, %0, %c0_i32, %c0_i32_0 : i32, i32, i32, i32
  }
  func.func @transform_3(%arg0: i32, %arg1: i32) -> (i32, i32) {
    %c0_i32 = arith.constant 0 : i32
    %c0_i32_0 = arith.constant 0 : i32
    %c0_i32_1 = arith.constant 0 : i32
    return %c0_i32, %c0_i32_0 : i32, i32
  }
  func.func @transform_4(%arg0: i32, %arg1: i32) -> (i32, i32) {
    %c0_i32 = arith.constant 0 : i32
    %c0_i32_0 = arith.constant 0 : i32
    %c0_i32_1 = arith.constant 0 : i32
    return %c0_i32, %c0_i32_0 : i32, i32
  }
  func.func @transform_5(%arg0: i32, %arg1: i32) -> (i32, i32) {
    %c0_i32 = arith.constant 0 : i32
    %c0_i32_0 = arith.constant 0 : i32
    %c0_i32_1 = arith.constant 0 : i32
    return %c0_i32, %c0_i32_0 : i32, i32
  }
  func.func @transform_6(%arg0: i32, %arg1: i32) -> (i32, i32, i32, i32) {
    %c0_i32 = arith.constant 0 : i32
    %c0_i32_0 = arith.constant 0 : i32
    %c0_i32_1 = arith.constant 0 : i32
    return %arg0, %arg1, %c0_i32, %c0_i32_0 : i32, i32, i32, i32
  }
  func.func @transform_7(%arg0: i32, %arg1: i32) -> (i32, i32, i32, i32) {
    %c0_i32 = arith.constant 0 : i32
    %c0_i32_0 = arith.constant 0 : i32
    %c0_i32_1 = arith.constant 0 : i32
    return %arg0, %arg1, %c0_i32, %c0_i32_0 : i32, i32, i32, i32
  }
}

</mosaic_0001>

<llo_original>
// kernel: basic_block_forward.2
$region0: #{basic_block_forward.2}
  #allocation0 [shape = 'u32[]', space=smem, size = 0x4, offset = 0x4, fixed_abs, tag = 'smem constant byte address 0x4 - core index']
  #allocation1 [shape = 'u32[144,128]{1,0:T(1,128)}', space=vmem, size = 0x12000, scoped, tag = 'internal scratch']
  %s0 = inlined_call_operand.vmem [shape: bf16[2,6,110,128], index: 0, kind: input, shape index: {}, may-alias: {0,1,2}]
  %s1 = inlined_call_operand.vmem [shape: bf16[2,6,110,128], index: 1, kind: input, shape index: {}, may-alias: {0,1,2}]
  %s2 = inlined_call_operand.vmem [shape: bf16[2,6,110,128], index: 2, kind: input, shape index: {}, may-alias: {0,1,2}]
  %s3 = inlined_call_operand.vmem [shape: bf16[3456,128], index: 3, kind: input, shape index: {}]
  %s4 = inlined_call_operand.vmem [shape: f32[1,128], index: 4, kind: input, shape index: {}]
  %s5 = inlined_call_operand.vmem [shape: f32[1,128], index: 5, kind: input, shape index: {}]
  %s6 = inlined_call_operand.vmem [shape: bf16[2,4,80,128], index: 6, kind: output, shape index: {}]
  %s7 = sld [smem:[#allocation0]]
  $region57: #{basic_block_forward.2} parent=0
    _
  %s9 = ssub.s32 1, %s7
  %s10 = scalar_select 0, %s9, %s7
  loop: start=0, step=1, limit=10
  $region2: #{basic_block_forward.2} parent=0 // loop_pre_header
    _
  $region3: #{basic_block_forward.2} parent=0 // loop_header
    %s12 = sphi 0, %s16
    %p13 = scmp.ge.s32.totalorder %s12, 10
    %s19 = sphi 0, %s31
    %s20 = sphi 0, %s27
    %s21 = sphi 0, %s19
    %s22 = sphi 0, %s20
    %s23 = sphi 0, %s21
    %s24 = sphi 0, %s22
    %s36 = sphi 0, %s38
    %s39 = sphi 0, %s36
    %s40 = sphi 0, %s39
    %s56 = sphi 0, %s40
    %s66 = sphi 0, %s68
    %s69 = sphi 0, %s66
    %s70 = sphi 0, %s69
    %s86 = sphi 0, %s70
    %s96 = sphi 0, %s98
    %s99 = sphi 0, %s96
    %s100 = sphi 0, %s99
    %s116 = sphi 0, %s100
    %s120 = sphi 0, %s120
    %s122 = sphi 0, %s120
    %s123 = sphi 0, %s122
    %s137 = sphi 0, %s123
    %s141 = sphi 0, %s141
    %s143 = sphi 0, %s141
    %s144 = sphi 0, %s143
    %s158 = sphi 0, %s144
    %s162 = sphi 0, %s162
    %s164 = sphi 0, %s162
    %s165 = sphi 0, %s164
    %s179 = sphi 0, %s165
    %s187 = sphi 0, %s189
    %s190 = sphi 0, %s187
    %s191 = sphi 0, %s190
    %s207 = sphi 0, %s191
  $region4: #{basic_block_forward.2} parent=0 // loop_header_branch
    %15 = sbr.rel (%p13) target = $region8
  $region5: #{basic_block_forward.2} parent=0 // loop_body
    %s17 = ssub.s32 %s12, 1
    %s18 = ssub.s32 %s12, 2
    %s25 = sadd.s32 1, %s20
    %p26 = scmp.ge.s32.totalorder %s25, 4
    %s27 = scalar_select %p26, 0, %s25
    %s28 = sadd.s32 1, %s19
    %s29 = scalar_select %p26, %s28, %s19
    %p30 = scmp.ge.s32.totalorder %s29, 2
    %s31 = scalar_select %p30, 0, %s29
    %s32 = ssub.s32 %s19, %s31
    %s33 = ssub.s32 %s20, %s27
    %s34 = sor.u32 %s32, %s33
    %p35 = scmp.eq.s32.totalorder %s34, 0
    %s37 = sadd.s32 %s36, 1
    %s38 = scalar_select %p35, %s36, %s37
    %p41 = pneg %p35
    %p42 = scmp.eq.s32.totalorder %s12, 7
    %p43 = por %p41, %p42
    %p44 = scmp.ne.s32.totalorder %s36, %s39
    %p45 = scmp.eq.s32.totalorder %s12, 0
    %p46 = por %p44, %p45
    %p47 = scmp.ne.s32.totalorder %s36, %s39
    %p48 = scmp.eq.s32.totalorder %s17, 7
    %p49 = por %p47, %p48
    %p50 = scmp.ne.s32.totalorder %s39, %s40
    %p51 = scmp.eq.s32.totalorder %s17, 0
    %p52 = por %p50, %p51
    %p53 = scmp.ne.s32.totalorder %s39, %s40
    %p54 = scmp.eq.s32.totalorder %s18, 7
    %p55 = por %p53, %p54
    %p57 = scmp.ne.s32.totalorder %s40, %s56
    %p58 = scmp.eq.s32.totalorder %s18, 0
    %p59 = por %p57, %p58
    %s60 = sadd.s32 %s20, 1
    %s61 = sadd.s32 %s27, 1
    %s62 = ssub.s32 %s19, %s31
    %s63 = ssub.s32 %s60, %s61
    %s64 = sor.u32 %s62, %s63
    %p65 = scmp.eq.s32.totalorder %s64, 0
    %s67 = sadd.s32 %s66, 1
    %s68 = scalar_select %p65, %s66, %s67
    %p71 = pneg %p65
    %p72 = scmp.eq.s32.totalorder %s12, 7
    %p73 = por %p71, %p72
    %p74 = scmp.ne.s32.totalorder %s66, %s69
    %p75 = scmp.eq.s32.totalorder %s12, 0
    %p76 = por %p74, %p75
    %p77 = scmp.ne.s32.totalorder %s66, %s69
    %p78 = scmp.eq.s32.totalorder %s17, 7
    %p79 = por %p77, %p78
    %p80 = scmp.ne.s32.totalorder %s69, %s70
    %p81 = scmp.eq.s32.totalorder %s17, 0
    %p82 = por %p80, %p81
    %p83 = scmp.ne.s32.totalorder %s69, %s70
    %p84 = scmp.eq.s32.totalorder %s18, 7
    %p85 = por %p83, %p84
    %p87 = scmp.ne.s32.totalorder %s70, %s86
    %p88 = scmp.eq.s32.totalorder %s18, 0
    %p89 = por %p87, %p88
    %s90 = sadd.s32 %s20, 2
    %s91 = sadd.s32 %s27, 2
    %s92 = ssub.s32 %s19, %s31
    %s93 = ssub.s32 %s90, %s91
    %s94 = sor.u32 %s92, %s93
    %p95 = scmp.eq.s32.totalorder %s94, 0
    %s97 = sadd.s32 %s96, 1
    %s98 = scalar_select %p95, %s96, %s97
    %p101 = pneg %p95
    %p102 = scmp.eq.s32.totalorder %s12, 7
    %p103 = por %p101, %p102
    %p104 = scmp.ne.s32.totalorder %s96, %s99
    %p105 = scmp.eq.s32.totalorder %s12, 0
    %p106 = por %p104, %p105
    %p107 = scmp.ne.s32.totalorder %s96, %s99
    %p108 = scmp.eq.s32.totalorder %s17, 7
    %p109 = por %p107, %p108
    %p110 = scmp.ne.s32.totalorder %s99, %s100
    %p111 = scmp.eq.s32.totalorder %s17, 0
    %p112 = por %p110, %p111
    %p113 = scmp.ne.s32.totalorder %s99, %s100
    %p114 = scmp.eq.s32.totalorder %s18, 7
    %p115 = por %p113, %p114
    %p117 = scmp.ne.s32.totalorder %s100, %s116
    %p118 = scmp.eq.s32.totalorder %s18, 0
    %p119 = por %p117, %p118
    %s121 = sadd.s32 %s120, 1
    %p124 = scmp.eq.s32.totalorder %s12, 7
    %p125 = scmp.ne.s32.totalorder %s120, %s122
    %p126 = scmp.eq.s32.totalorder %s12, 0
    %p127 = por %p125, %p126
    %p128 = scmp.ne.s32.totalorder %s120, %s122
    %p129 = scmp.eq.s32.totalorder %s17, 7
    %p130 = por %p128, %p129
    %p131 = scmp.ne.s32.totalorder %s122, %s123
    %p132 = scmp.eq.s32.totalorder %s17, 0
    %p133 = por %p131, %p132
    %p134 = scmp.ne.s32.totalorder %s122, %s123
    %p135 = scmp.eq.s32.totalorder %s18, 7
    %p136 = por %p134, %p135
    %p138 = scmp.ne.s32.totalorder %s123, %s137
    %p139 = scmp.eq.s32.totalorder %s18, 0
    %p140 = por %p138, %p139
    %s142 = sadd.s32 %s141, 1
    %p145 = scmp.eq.s32.totalorder %s12, 7
    %p146 = scmp.ne.s32.totalorder %s141, %s143
    %p147 = scmp.eq.s32.totalorder %s12, 0
    %p148 = por %p146, %p147
    %p149 = scmp.ne.s32.totalorder %s141, %s143
    %p150 = scmp.eq.s32.totalorder %s17, 7
    %p151 = por %p149, %p150
    %p152 = scmp.ne.s32.totalorder %s143, %s144
    %p153 = scmp.eq.s32.totalorder %s17, 0
    %p154 = por %p152, %p153
    %p155 = scmp.ne.s32.totalorder %s143, %s144
    %p156 = scmp.eq.s32.totalorder %s18, 7
    %p157 = por %p155, %p156
    %p159 = scmp.ne.s32.totalorder %s144, %s158
    %p160 = scmp.eq.s32.totalorder %s18, 0
    %p161 = por %p159, %p160
    %s163 = sadd.s32 %s162, 1
    %p166 = scmp.eq.s32.totalorder %s12, 7
    %p167 = scmp.ne.s32.totalorder %s162, %s164
    %p168 = scmp.eq.s32.totalorder %s12, 0
    %p169 = por %p167, %p168
    %p170 = scmp.ne.s32.totalorder %s162, %s164
    %p171 = scmp.eq.s32.totalorder %s17, 7
    %p172 = por %p170, %p171
    %p173 = scmp.ne.s32.totalorder %s164, %s165
    %p174 = scmp.eq.s32.totalorder %s17, 0
    %p175 = por %p173, %p174
    %p176 = scmp.ne.s32.totalorder %s164, %s165
    %p177 = scmp.eq.s32.totalorder %s18, 7
    %p178 = por %p176, %p177
    %p180 = scmp.ne.s32.totalorder %s165, %s179
    %p181 = scmp.eq.s32.totalorder %s18, 0
    %p182 = por %p180, %p181
    %s183 = ssub.s32 %s19, %s31
    %s184 = ssub.s32 %s20, %s27
    %s185 = sor.u32 %s183, %s184
    %p186 = scmp.eq.s32.totalorder %s185, 0
    %s188 = sadd.s32 %s187, 1
    %s189 = scalar_select %p186, %s187, %s188
    %p192 = pneg %p186
    %p193 = scmp.eq.s32.totalorder %s12, 7
    %p194 = por %p192, %p193
    %p195 = scmp.ne.s32.totalorder %s187, %s190
    %p196 = scmp.eq.s32.totalorder %s12, 0
    %p197 = por %p195, %p196
    %p198 = scmp.ne.s32.totalorder %s187, %s190
    %p199 = scmp.eq.s32.totalorder %s17, 7
    %p200 = por %p198, %p199
    %p201 = scmp.ne.s32.totalorder %s190, %s191
    %p202 = scmp.eq.s32.totalorder %s17, 0
    %p203 = por %p201, %p202
    %p204 = scmp.ne.s32.totalorder %s190, %s191
    %p205 = scmp.eq.s32.totalorder %s18, 7
    %p206 = por %p204, %p205
    %p208 = scmp.ne.s32.totalorder %s191, %s207
    %p209 = scmp.eq.s32.totalorder %s18, 0
    %p210 = por %p208, %p209
    %p211 = scmp.le.s32.totalorder 1, %s12
    %p212 = scmp.lt.s32.totalorder %s12, 9
    %p213 = pnand %p211, %p212
    %p214 = pneg %p213
    // Predicated region
    $region9: #{basic_block_forward.2} parent=5 // pred_check
      _
    $region10: #{basic_block_forward.2} parent=5 // pred_check_branch
      %216 = sbr.rel (%p213) target = $region12
    $region11: #{basic_block_forward.2} parent=5 // pred_region
      %s217 = ssub.s32 %s12, 1
      // Predicated region
      $region13: #{basic_block_forward.2} parent=11 // pred_check
        %p218 = pneg %p133
      $region14: #{basic_block_forward.2} parent=11 // pred_check_branch
        %220 = sbr.rel (%p218) target = $region16
      $region15: #{basic_block_forward.2} parent=11 // pred_region
        _
      $region16: #{basic_block_forward.2} parent=11 // pred_fallthru
        _
      // Predicated region
      $region17: #{basic_block_forward.2} parent=11 // pred_check
        %p221 = pneg %p154
      $region18: #{basic_block_forward.2} parent=11 // pred_check_branch
        %223 = sbr.rel (%p221) target = $region20
      $region19: #{basic_block_forward.2} parent=11 // pred_region
        _
      $region20: #{basic_block_forward.2} parent=11 // pred_fallthru
        _
      // Predicated region
      $region21: #{basic_block_forward.2} parent=11 // pred_check
        %p224 = pneg %p175
      $region22: #{basic_block_forward.2} parent=11 // pred_check_branch
        %226 = sbr.rel (%p224) target = $region24
      $region23: #{basic_block_forward.2} parent=11 // pred_region
        _
      $region24: #{basic_block_forward.2} parent=11 // pred_fallthru
        _
    $region12: #{basic_block_forward.2} parent=5 // pred_fallthru
      _
    %p227 = scmp.lt.s32.totalorder %s12, 8
    // Predicated region
    $region25: #{basic_block_forward.2} parent=5 // pred_check
      %p228 = pneg %p227
    $region26: #{basic_block_forward.2} parent=5 // pred_check_branch
      %230 = sbr.rel (%p228) target = $region28
    $region27: #{basic_block_forward.2} parent=5 // pred_region
      // Predicated region
      $region29: #{basic_block_forward.2} parent=27 // pred_check
        %p231 = pneg %p46
      $region30: #{basic_block_forward.2} parent=27 // pred_check_branch
        %233 = sbr.rel (%p231) target = $region32
      $region31: #{basic_block_forward.2} parent=27 // pred_region
        %p234 = scmp.lt.s32.totalorder %s19, 1
        %s235 = scalar_select %p234, %s19, 1
        %p236 = scmp.lt.s32.totalorder %s20, 5
        %s237 = scalar_select %p236, %s20, 5
        %s238 = smul.addr %s237, 14
        %s239 = smul.addr %s235, 84
        %s240 = sadd.s32 %s238, %s239
        %s241 = smul.addr %s240, 4
        %s242 = scalar_lea.vmem %s0, %s241
      $region32: #{basic_block_forward.2} parent=27 // pred_fallthru
        _
      // Predicated region
      $region33: #{basic_block_forward.2} parent=27 // pred_check
        %p243 = pneg %p76
      $region34: #{basic_block_forward.2} parent=27 // pred_check_branch
        %245 = sbr.rel (%p243) target = $region36
      $region35: #{basic_block_forward.2} parent=27 // pred_region
        %s246 = sadd.s32 %s20, 1
        %p247 = scmp.lt.s32.totalorder %s19, 1
        %s248 = scalar_select %p247, %s19, 1
        %p249 = scmp.lt.s32.totalorder %s246, 5
        %s250 = scalar_select %p249, %s246, 5
        %s251 = smul.addr %s250, 14
        %s252 = smul.addr %s248, 84
        %s253 = sadd.s32 %s251, %s252
        %s254 = smul.addr %s253, 4
        %s255 = scalar_lea.vmem %s1, %s254
        %s256 = sadd.s32 %s20, 1
      $region36: #{basic_block_forward.2} parent=27 // pred_fallthru
        _
      // Predicated region
      $region37: #{basic_block_forward.2} parent=27 // pred_check
        %p257 = pneg %p106
      $region38: #{basic_block_forward.2} parent=27 // pred_check_branch
        %259 = sbr.rel (%p257) target = $region40
      $region39: #{basic_block_forward.2} parent=27 // pred_region
        %s260 = sadd.s32 %s20, 2
        %p261 = scmp.lt.s32.totalorder %s19, 1
        %s262 = scalar_select %p261, %s19, 1
        %p263 = scmp.lt.s32.totalorder %s260, 5
        %s264 = scalar_select %p263, %s260, 5
        %s265 = smul.addr %s264, 14
        %s266 = smul.addr %s262, 84
        %s267 = sadd.s32 %s265, %s266
        %s268 = smul.addr %s267, 4
        %s269 = scalar_lea.vmem %s2, %s268
        %s270 = sadd.s32 %s20, 2
      $region40: #{basic_block_forward.2} parent=27 // pred_fallthru
        _
    $region28: #{basic_block_forward.2} parent=5 // pred_fallthru
      _
    %p271 = scmp.le.s32.totalorder 1, %s12
    %p272 = scmp.lt.s32.totalorder %s12, 9
    %p273 = pnand %p271, %p272
    %p274 = pneg %p273
    // Predicated region
    $region41: #{basic_block_forward.2} parent=5 // pred_check
      _
    $region42: #{basic_block_forward.2} parent=5 // pred_check_branch
      %276 = sbr.rel (%p273) target = $region44
    $region43: #{basic_block_forward.2} parent=5 // pred_region
      %s277 = ssub.s32 %s12, 1
      %p278 = scmp.lt.s32.totalorder %s21, 1
      %s279 = scalar_select %p278, %s21, 1
      %p280 = scmp.lt.s32.totalorder %s22, 5
      %s281 = scalar_select %p280, %s22, 5
      %s282 = smul.addr %s281, 14
      %s283 = smul.addr %s279, 84
      %s284 = sadd.s32 %s282, %s283
      %s285 = smul.addr %s284, 4
      %s286 = scalar_lea.vmem %s0, %s285
      %p287 = pneg %p52
      %p288 = pneg %p49
      %s289 = sadd.s32 %s22, 1
      %p290 = scmp.lt.s32.totalorder %s21, 1
      %s291 = scalar_select %p290, %s21, 1
      %p292 = scmp.lt.s32.totalorder %s289, 5
      %s293 = scalar_select %p292, %s289, 5
      %s294 = smul.addr %s293, 14
      %s295 = smul.addr %s291, 84
      %s296 = sadd.s32 %s294, %s295
      %s297 = smul.addr %s296, 4
      %s298 = scalar_lea.vmem %s1, %s297
      %p299 = pneg %p82
      %p300 = pneg %p79
      %s301 = sadd.s32 %s22, 2
      %p302 = scmp.lt.s32.totalorder %s21, 1
      %s303 = scalar_select %p302, %s21, 1
      %p304 = scmp.lt.s32.totalorder %s301, 5
      %s305 = scalar_select %p304, %s301, 5
      %s306 = smul.addr %s305, 14
      %s307 = smul.addr %s303, 84
      %s308 = sadd.s32 %s306, %s307
      %s309 = smul.addr %s308, 4
      %s310 = scalar_lea.vmem %s2, %s309
      %p311 = pneg %p112
      %p312 = pneg %p109
      %p313 = pneg %p133
      %p314 = pneg %p130
      %p315 = pneg %p154
      %p316 = pneg %p151
      %p317 = pneg %p175
      %p318 = pneg %p172
      %p319 = pneg %p203
      %p320 = pneg %p200
      %p321 = scmp.lt.s32.totalorder %s21, 1
      %s322 = scalar_select %p321, %s21, 1
      %p323 = scmp.lt.s32.totalorder %s22, 3
      %s324 = scalar_select %p323, %s22, 3
      %s325 = smul.addr %s324, 10
      %s326 = smul.addr %s322, 40
      %s327 = sadd.s32 %s325, %s326
      %s328 = smul.addr %s327, 4
      %s329 = scalar_lea.vmem %s6, %s328
      %p330 = scmp.lt.s32.totalorder %s21, 1
      %s331 = scalar_select %p330, %s21, 1
      %p332 = scmp.lt.s32.totalorder %s22, 5
      %s333 = scalar_select %p332, %s22, 5
      %s334 = smul.addr %s333, 14
      %s335 = smul.addr %s331, 84
      %s336 = sadd.s32 %s334, %s335
      %s337 = smul.addr %s336, 4
      %s338 = scalar_lea.vmem %s0, %s337
      %s339 = sadd.s32 %s22, 1
      %p340 = scmp.lt.s32.totalorder %s21, 1
      %s341 = scalar_select %p340, %s21, 1
      %p342 = scmp.lt.s32.totalorder %s339, 5
      %s343 = scalar_select %p342, %s339, 5
      %s344 = smul.addr %s343, 14
      %s345 = smul.addr %s341, 84
      %s346 = sadd.s32 %s344, %s345
      %s347 = smul.addr %s346, 4
      %s348 = scalar_lea.vmem %s1, %s347
      %s349 = sadd.s32 %s22, 1
      %s350 = sadd.s32 %s22, 2
      %p351 = scmp.lt.s32.totalorder %s21, 1
      %s352 = scalar_select %p351, %s21, 1
      %p353 = scmp.lt.s32.totalorder %s350, 5
      %s354 = scalar_select %p353, %s350, 5
      %s355 = smul.addr %s354, 14
      %s356 = smul.addr %s352, 84
      %s357 = sadd.s32 %s355, %s356
      %s358 = smul.addr %s357, 4
      %s359 = scalar_lea.vmem %s2, %s358
      %s360 = sadd.s32 %s22, 2
      %p361 = scmp.lt.s32.totalorder %s21, 1
      %s362 = scalar_select %p361, %s21, 1
      %p363 = scmp.lt.s32.totalorder %s22, 3
      %s364 = scalar_select %p363, %s22, 3
      %s365 = smul.addr %s364, 10
      %s366 = smul.addr %s362, 40
      %s367 = sadd.s32 %s365, %s366
      %s368 = smul.addr %s367, 4
      %s369 = scalar_lea.vmem %s6, %s368
      %v371 = vld [vmem:[%s338] sm:$0xf]
      %v372 = vld [vmem:[%s338 + $0x4] sm:$0xf]
      %v373 = vld [vmem:[%s338 + $0x8] sm:$0xf]
      %v374 = vld [vmem:[%s338 + $0xc] sm:$0xf]
      %v375 = vld [vmem:[%s338 + $0x10] sm:$0xf]
      %v376 = vld [vmem:[%s338 + $0x14] sm:$0xf]
      %v377 = vld [vmem:[%s338 + $0x18] sm:$0xf]
      %v378 = vld [vmem:[%s338 + $0x1c] sm:$0xf]
      %v379 = vld [vmem:[%s338 + $0x20] sm:$0xf]
      %v380 = vld [vmem:[%s338 + $0x24] sm:$0xf]
      %v381 = vld [vmem:[%s3] sm:$0xf]
      %v382 = vld [vmem:[%s3 + $0x4] sm:$0xf]
      %v383 = vld [vmem:[%s3 + $0x8] sm:$0xf]
      %v384 = vld [vmem:[%s3 + $0xc] sm:$0xf]
      %v385 = vld [vmem:[%s3 + $0x10] sm:$0xf]
      %v386 = vld [vmem:[%s3 + $0x14] sm:$0xf]
      %v387 = vld [vmem:[%s3 + $0x18] sm:$0xf]
      %v388 = vld [vmem:[%s3 + $0x1c] sm:$0xf]
      %v389 = vld [vmem:[%s3 + $0x20] sm:$0xf]
      %v390 = vld [vmem:[%s3 + $0x24] sm:$0xf]
      %v391 = vld [vmem:[%s3 + $0x28] sm:$0xf]
      %v392 = vld [vmem:[%s3 + $0x2c] sm:$0xf]
      %v393 = vld [vmem:[%s3 + $0x30] sm:$0xf]
      %v394 = vld [vmem:[%s3 + $0x34] sm:$0xf]
      %v395 = vld [vmem:[%s3 + $0x38] sm:$0xf]
      %v396 = vld [vmem:[%s3 + $0x3c] sm:$0xf]
      %v397 = vld [vmem:[%s338 + $0x28] sm:$0x1]
      %v398 = vld [vmem:[%s3 + $0x40] sm:$0xf]
      %v399 = vld [vmem:[%s3 + $0x44] sm:$0xf]
      %v400 = vld [vmem:[%s3 + $0x48] sm:$0xf]
      %v401 = vld [vmem:[%s3 + $0x4c] sm:$0xf]
      %v402 = vld [vmem:[%s3 + $0x50] sm:$0xf]
      %v403 = vld [vmem:[%s3 + $0x54] sm:$0xf]
      %v404 = vld [vmem:[%s3 + $0x58] sm:$0xf]
      %v405 = vld [vmem:[%s3 + $0x5c] sm:$0xf]
      %v406 = vld [vmem:[%s3 + $0x60] sm:$0xf]
      %v407 = vld [vmem:[%s3 + $0x64] sm:$0xf]
      %v408 = vld [vmem:[%s3 + $0x68] sm:$0xf]
      %v409 = vld [vmem:[%s3 + $0x6c] sm:$0xf]
      %v410 = vld [vmem:[%s3 + $0x70] sm:$0xf]
      %v411 = vld [vmem:[%s3 + $0x74] sm:$0xf]
      %v412 = vld [vmem:[%s3 + $0x78] sm:$0xf]
      %v413 = vld [vmem:[%s3 + $0x7c] sm:$0xf]
      %v425 = vunpack.c.l.b16 %v371
      %v426 = vunpack.c.l.b16 %v372
      %v427 = vunpack.c.l.b16 %v373
      %v428 = vunpack.c.l.b16 %v374
      %v429 = vunpack.c.l.b16 %v375
      %v430 = vunpack.c.l.b16 %v376
      %v431 = vunpack.c.l.b16 %v377
      %v432 = vunpack.c.l.b16 %v378
      %v433 = vunpack.c.l.b16 %v379
      %v434 = vunpack.c.l.b16 %v380
      %v435 = vunpack.c.l.b16 %v397
      %v436 = vpack.c.b16 %v426, %v425
      %v437 = vpack.c.b16 %v428, %v427
      %v438 = vpack.c.b16 %v430, %v429
      %v439 = vpack.c.b16 %v432, %v431
      %v440 = vpack.c.b16 %v434, %v433
      %v441 = vpack.c.b16 %v435, %v435
      %vm442 = vsmask.f32 7424
      %v444 = vshrl.u32 %v436, 16
      %v446 = vshll.u32 %v436, 16
      %v448 = vrot.slane %v446, 1
      %v449 = vor.u32 %v444, %v448
      %v451 = vshll.u32 %v437, 16
      %v453 = vrot.slane %v451, 1
      %v454 = vsel %vm442, %v449, %v453
      %v455 = vshrl.u32 %v437, 16
      %v457 = vor.u32 %v455, %v453
      %v459 = vshll.u32 %v438, 16
      %v461 = vrot.slane %v459, 1
      %v462 = vsel %vm442, %v457, %v461
      %v463 = vshrl.u32 %v438, 16
      %v465 = vor.u32 %v463, %v461
      %v467 = vshll.u32 %v439, 16
      %v469 = vrot.slane %v467, 1
      %v470 = vsel %vm442, %v465, %v469
      %v471 = vshrl.u32 %v439, 16
      %v473 = vor.u32 %v471, %v469
      %v475 = vshll.u32 %v440, 16
      %v477 = vrot.slane %v475, 1
      %v478 = vsel %vm442, %v473, %v477
      %v479 = vshrl.u32 %v440, 16
      %v481 = vor.u32 %v479, %v477
      %v483 = vshll.u32 %v441, 16
      %v485 = vrot.slane %v483, 1
      %v486 = vsel %vm442, %v481, %v485
      %v508 = vunpack.c.l.b16 %v398
      %v509 = vunpack.c.l.b16 %v399
      %v510 = vunpack.c.l.b16 %v400
      %v511 = vunpack.c.l.b16 %v401
      %v512 = vunpack.c.l.b16 %v402
      %v513 = vunpack.c.l.b16 %v403
      %v514 = vunpack.c.l.b16 %v404
      %v515 = vunpack.c.l.b16 %v405
      %v516 = vunpack.c.l.b16 %v406
      %v517 = vunpack.c.l.b16 %v407
      %v518 = vunpack.c.l.b16 %v408
      %v519 = vunpack.c.l.b16 %v409
      %v520 = vunpack.c.l.b16 %v410
      %v521 = vunpack.c.l.b16 %v411
      %v522 = vunpack.c.l.b16 %v412
      %v523 = vunpack.c.l.b16 %v413
      %v524 = vpack.c.b16 %v509, %v508
      %v525 = vpack.c.b16 %v511, %v510
      %v526 = vpack.c.b16 %v513, %v512
      %v527 = vpack.c.b16 %v515, %v514
      %v528 = vpack.c.b16 %v517, %v516
      %v529 = vpack.c.b16 %v519, %v518
      %v530 = vpack.c.b16 %v521, %v520
      %v531 = vpack.c.b16 %v523, %v522
      %540 = vmatprep.subr.bf16.mxu0 0
      %541 = vmatpush1.bf16.msra.mxu0 %v531
      %542 = vmatprep.subr.bf16.mxu0 0
      %543 = vmatpush1.bf16.msra.mxu0 %v530
      %544 = vmatprep.subr.bf16.mxu0 0
      %545 = vmatpush1.bf16.msra.mxu0 %v529
      %546 = vmatprep.subr.bf16.mxu0 0
      %547 = vmatpush1.bf16.msra.mxu0 %v528
      %548 = vmatprep.subr.bf16.mxu0 0
      %549 = vmatpush1.bf16.msra.mxu0 %v527
      %550 = vmatprep.subr.bf16.mxu0 0
      %551 = vmatpush1.bf16.msra.mxu0 %v526
      %552 = vmatprep.subr.bf16.mxu0 0
      %553 = vmatpush1.bf16.msra.mxu0 %v525
      %554 = vmatprep.subr.bf16.mxu0 0
      %555 = vmatpush1.bf16.msra.mxu0 %v524
      %556 = vmatprep.subr.bf16.mxu0 0
      %557 = vmatpush2.bf16.msra.mxu0 0
      %558 = vmatprep.subr.bf16.mxu0 0
      %559 = vmatpush2.bf16.msra.mxu0 0
      %560 = vmatprep.subr.bf16.mxu0 0
      %561 = vmatpush2.bf16.msra.mxu0 0
      %562 = vmatprep.subr.bf16.mxu0 0
      %563 = vmatpush2.bf16.msra.mxu0 0
      %564 = vmatprep.subr.bf16.mxu0 0
      %565 = vmatpush2.bf16.msra.mxu0 0
      %566 = vmatprep.subr.bf16.mxu0 0
      %567 = vmatpush2.bf16.msra.mxu0 0
      %568 = vmatprep.subr.bf16.mxu0 0
      %569 = vmatpush2.bf16.msra.mxu0 0
      %570 = vmatprep.subr.bf16.mxu0 0
      %571 = vmatpush2.bf16.msra.mxu0 0
      %572 = vmatprep.mubr.bf16.mxu0 0
      %573 = vmatmul.mubr.bf16.gmra.mxu0 %v454
      %v574 = vpop.f32.mrf.mxu0
      %v575 = vadd.f32 0.0, %v574
      %v576 = vpop.f32.mrf.mxu0
      %v577 = vpop.f32.mrf.mxu0
      %v578 = vadd.f32 0.0, %v577
      %v579 = vpop.f32.mrf.mxu0
      %580 = vmatprep.mubr.bf16.mxu0 0
      %581 = vmatmul.mubr.bf16.gmra.mxu0 %v462
      %v582 = vpop.f32.mrf.mxu0
      %v583 = vadd.f32 0.0, %v582
      %v584 = vpop.f32.mrf.mxu0
      %v585 = vpop.f32.mrf.mxu0
      %v586 = vadd.f32 0.0, %v585
      %v587 = vpop.f32.mrf.mxu0
      %588 = vmatprep.mubr.bf16.mxu0 0
      %589 = vmatmul.mubr.bf16.gmra.mxu0 %v470
      %v590 = vpop.f32.mrf.mxu0
      %v591 = vadd.f32 0.0, %v590
      %v592 = vpop.f32.mrf.mxu0
      %v593 = vpop.f32.mrf.mxu0
      %v594 = vadd.f32 0.0, %v593
      %v595 = vpop.f32.mrf.mxu0
      %596 = vmatprep.mubr.bf16.mxu0 0
      %597 = vmatmul.mubr.bf16.gmra.mxu0 %v478
      %v598 = vpop.f32.mrf.mxu0
      %v599 = vadd.f32 0.0, %v598
      %v600 = vpop.f32.mrf.mxu0
      %v601 = vpop.f32.mrf.mxu0
      %v602 = vadd.f32 0.0, %v601
      %v603 = vpop.f32.mrf.mxu0
      %604 = vmatprep.mubr.bf16.mxu0 0
      %605 = vmatmul.mubr.bf16.gmra.mxu0 %v486
      %v606 = vpop.f32.mrf.mxu0
      %v607 = vadd.f32 0.0, %v606
      %v608 = vpop.f32.mrf.mxu0
      %v609 = vpop.f32.mrf.mxu0
      %v610 = vadd.f32 0.0, %v609
      %v611 = vpop.f32.mrf.mxu0
      %612 = vdwg.mxu0
      %v634 = vunpack.c.l.b16 %v381
      %v635 = vunpack.c.l.b16 %v382
      %v636 = vunpack.c.l.b16 %v383
      %v637 = vunpack.c.l.b16 %v384
      %v638 = vunpack.c.l.b16 %v385
      %v639 = vunpack.c.l.b16 %v386
      %v640 = vunpack.c.l.b16 %v387
      %v641 = vunpack.c.l.b16 %v388
      %v642 = vunpack.c.l.b16 %v389
      %v643 = vunpack.c.l.b16 %v390
      %v644 = vunpack.c.l.b16 %v391
      %v645 = vunpack.c.l.b16 %v392
      %v646 = vunpack.c.l.b16 %v393
      %v647 = vunpack.c.l.b16 %v394
      %v648 = vunpack.c.l.b16 %v395
      %v649 = vunpack.c.l.b16 %v396
      %v650 = vpack.c.b16 %v635, %v634
      %v651 = vpack.c.b16 %v637, %v636
      %v652 = vpack.c.b16 %v639, %v638
      %v653 = vpack.c.b16 %v641, %v640
      %v654 = vpack.c.b16 %v643, %v642
      %v655 = vpack.c.b16 %v645, %v644
      %v656 = vpack.c.b16 %v647, %v646
      %v657 = vpack.c.b16 %v649, %v648
      %666 = vmatprep.subr.bf16.mxu0 0
      %667 = vmatpush1.bf16.msra.mxu0 %v657
      %668 = vmatprep.subr.bf16.mxu0 0
      %669 = vmatpush1.bf16.msra.mxu0 %v656
      %670 = vmatprep.subr.bf16.mxu0 0
      %671 = vmatpush1.bf16.msra.mxu0 %v655
      %672 = vmatprep.subr.bf16.mxu0 0
      %673 = vmatpush1.bf16.msra.mxu0 %v654
      %674 = vmatprep.subr.bf16.mxu0 0
      %675 = vmatpush1.bf16.msra.mxu0 %v653
      %676 = vmatprep.subr.bf16.mxu0 0
      %677 = vmatpush1.bf16.msra.mxu0 %v652
      %678 = vmatprep.subr.bf16.mxu0 0
      %679 = vmatpush1.bf16.msra.mxu0 %v651
      %680 = vmatprep.subr.bf16.mxu0 0
      %681 = vmatpush1.bf16.msra.mxu0 %v650
      %682 = vmatprep.subr.bf16.mxu0 0
      %683 = vmatpush2.bf16.msra.mxu0 0
      %684 = vmatprep.subr.bf16.mxu0 0
      %685 = vmatpush2.bf16.msra.mxu0 0
      %686 = vmatprep.subr.bf16.mxu0 0
      %687 = vmatpush2.bf16.msra.mxu0 0
      %688 = vmatprep.subr.bf16.mxu0 0
      %689 = vmatpush2.bf16.msra.mxu0 0
      %690 = vmatprep.subr.bf16.mxu0 0
      %691 = vmatpush2.bf16.msra.mxu0 0
      %692 = vmatprep.subr.bf16.mxu0 0
      %693 = vmatpush2.bf16.msra.mxu0 0
      %694 = vmatprep.subr.bf16.mxu0 0
      %695 = vmatpush2.bf16.msra.mxu0 0
      %696 = vmatprep.subr.bf16.mxu0 0
      %697 = vmatpush2.bf16.msra.mxu0 0
      %698 = vmatprep.mubr.bf16.mxu0 0
      %699 = vmatmul.mubr.bf16.gmra.mxu0 %v436
      %v700 = vpop.f32.mrf.mxu0
      %v701 = vadd.f32 %v575, %v700
      %v702 = vpop.f32.mrf.mxu0
      %v703 = vpop.f32.mrf.mxu0
      %v704 = vadd.f32 %v578, %v703
      %v705 = vpop.f32.mrf.mxu0
      %706 = vmatprep.mubr.bf16.mxu0 0
      %707 = vmatmul.mubr.bf16.gmra.mxu0 %v437
      %v708 = vpop.f32.mrf.mxu0
      %v709 = vadd.f32 %v583, %v708
      %v710 = vpop.f32.mrf.mxu0
      %v711 = vpop.f32.mrf.mxu0
      %v712 = vadd.f32 %v586, %v711
      %v713 = vpop.f32.mrf.mxu0
      %714 = vmatprep.mubr.bf16.mxu0 0
      %715 = vmatmul.mubr.bf16.gmra.mxu0 %v438
      %v716 = vpop.f32.mrf.mxu0
      %v717 = vadd.f32 %v591, %v716
      %v718 = vpop.f32.mrf.mxu0
      %v719 = vpop.f32.mrf.mxu0
      %v720 = vadd.f32 %v594, %v719
      %v721 = vpop.f32.mrf.mxu0
      %722 = vmatprep.mubr.bf16.mxu0 0
      %723 = vmatmul.mubr.bf16.gmra.mxu0 %v439
      %v724 = vpop.f32.mrf.mxu0
      %v725 = vadd.f32 %v599, %v724
      %v726 = vpop.f32.mrf.mxu0
      %v727 = vpop.f32.mrf.mxu0
      %v728 = vadd.f32 %v602, %v727
      %v729 = vpop.f32.mrf.mxu0
      %730 = vmatprep.mubr.bf16.mxu0 0
      %731 = vmatmul.mubr.bf16.gmra.mxu0 %v440
      %v732 = vpop.f32.mrf.mxu0
      %v733 = vadd.f32 %v607, %v732
      %v734 = vpop.f32.mrf.mxu0
      %v735 = vpop.f32.mrf.mxu0
      %v736 = vadd.f32 %v610, %v735
      %v737 = vpop.f32.mrf.mxu0
      %738 = vdwg.mxu0
      %v739 = vld [vmem:[%s338] sm:$0xe]
      %v740 = vld [vmem:[%s3 + $0x80] sm:$0xf]
      %v741 = vld [vmem:[%s3 + $0x84] sm:$0xf]
      %v742 = vld [vmem:[%s3 + $0x88] sm:$0xf]
      %v743 = vld [vmem:[%s3 + $0x8c] sm:$0xf]
      %v744 = vld [vmem:[%s3 + $0x90] sm:$0xf]
      %v745 = vld [vmem:[%s3 + $0x94] sm:$0xf]
      %v746 = vld [vmem:[%s3 + $0x98] sm:$0xf]
      %v747 = vld [vmem:[%s3 + $0x9c] sm:$0xf]
      %v748 = vld [vmem:[%s3 + $0xa0] sm:$0xf]
      %v749 = vld [vmem:[%s3 + $0xa4] sm:$0xf]
      %v750 = vld [vmem:[%s3 + $0xa8] sm:$0xf]
      %v751 = vld [vmem:[%s3 + $0xac] sm:$0xf]
      %v752 = vld [vmem:[%s3 + $0xb0] sm:$0xf]
      %v753 = vld [vmem:[%s3 + $0xb4] sm:$0xf]
      %v754 = vld [vmem:[%s3 + $0xb8] sm:$0xf]
      %v755 = vld [vmem:[%s3 + $0xbc] sm:$0xf]
      %v757 = vunpack.c.l.b16 %v739
      %v758 = vpack.c.b16 %v426, %v757
      %vm759 = vcmask 1046528
      %v760 = vrot.slane %v758, 1
      %v761 = vrot.slane %v437, 1
      %v762 = vsel %vm759, %v760, %v761
      %v763 = vrot.slane %v438, 1
      %v764 = vsel %vm759, %v761, %v763
      %v765 = vrot.slane %v439, 1
      %v766 = vsel %vm759, %v763, %v765
      %v767 = vrot.slane %v440, 1
      %v768 = vsel %vm759, %v765, %v767
      %v769 = vrot.slane %v441, 1
      %v770 = vsel %vm759, %v767, %v769
      %v792 = vunpack.c.l.b16 %v740
      %v793 = vunpack.c.l.b16 %v741
      %v794 = vunpack.c.l.b16 %v742
      %v795 = vunpack.c.l.b16 %v743
      %v796 = vunpack.c.l.b16 %v744
      %v797 = vunpack.c.l.b16 %v745
      %v798 = vunpack.c.l.b16 %v746
      %v799 = vunpack.c.l.b16 %v747
      %v800 = vunpack.c.l.b16 %v748
      %v801 = vunpack.c.l.b16 %v749
      %v802 = vunpack.c.l.b16 %v750
      %v803 = vunpack.c.l.b16 %v751
      %v804 = vunpack.c.l.b16 %v752
      %v805 = vunpack.c.l.b16 %v753
      %v806 = vunpack.c.l.b16 %v754
      %v807 = vunpack.c.l.b16 %v755
      %v808 = vpack.c.b16 %v793, %v792
      %v809 = vpack.c.b16 %v795, %v794
      %v810 = vpack.c.b16 %v797, %v796
      %v811 = vpack.c.b16 %v799, %v798
      %v812 = vpack.c.b16 %v801, %v800
      %v813 = vpack.c.b16 %v803, %v802
      %v814 = vpack.c.b16 %v805, %v804
      %v815 = vpack.c.b16 %v807, %v806
      %824 = vmatprep.subr.bf16.mxu0 0
      %825 = vmatpush1.bf16.msra.mxu0 %v815
      %826 = vmatprep.subr.bf16.mxu0 0
      %827 = vmatpush1.bf16.msra.mxu0 %v814
      %828 = vmatprep.subr.bf16.mxu0 0
      %829 = vmatpush1.bf16.msra.mxu0 %v813
      %830 = vmatprep.subr.bf16.mxu0 0
      %831 = vmatpush1.bf16.msra.mxu0 %v812
      %832 = vmatprep.subr.bf16.mxu0 0
      %833 = vmatpush1.bf16.msra.mxu0 %v811
      %834 = vmatprep.subr.bf16.mxu0 0
      %835 = vmatpush1.bf16.msra.mxu0 %v810
      %836 = vmatprep.subr.bf16.mxu0 0
      %837 = vmatpush1.bf16.msra.mxu0 %v809
      %838 = vmatprep.subr.bf16.mxu0 0
      %839 = vmatpush1.bf16.msra.mxu0 %v808
      %840 = vmatprep.subr.bf16.mxu0 0
      %841 = vmatpush2.bf16.msra.mxu0 0
      %842 = vmatprep.subr.bf16.mxu0 0
      %843 = vmatpush2.bf16.msra.mxu0 0
      %844 = vmatprep.subr.bf16.mxu0 0
      %845 = vmatpush2.bf16.msra.mxu0 0
      %846 = vmatprep.subr.bf16.mxu0 0
      %847 = vmatpush2.bf16.msra.mxu0 0
      %848 = vmatprep.subr.bf16.mxu0 0
      %849 = vmatpush2.bf16.msra.mxu0 0
      %850 = vmatprep.subr.bf16.mxu0 0
      %851 = vmatpush2.bf16.msra.mxu0 0
      %852 = vmatprep.subr.bf16.mxu0 0
      %853 = vmatpush2.bf16.msra.mxu0 0
      %854 = vmatprep.subr.bf16.mxu0 0
      %855 = vmatpush2.bf16.msra.mxu0 0
      %856 = vmatprep.mubr.bf16.mxu0 0
      %857 = vmatmul.mubr.bf16.gmra.mxu0 %v762
      %v858 = vpop.f32.mrf.mxu0
      %v859 = vadd.f32 0.0, %v858
      %v860 = vpop.f32.mrf.mxu0
      %v861 = vpop.f32.mrf.mxu0
      %v862 = vadd.f32 0.0, %v861
      %v863 = vpop.f32.mrf.mxu0
      %864 = vmatprep.mubr.bf16.mxu0 0
      %865 = vmatmul.mubr.bf16.gmra.mxu0 %v764
      %v866 = vpop.f32.mrf.mxu0
      %v867 = vadd.f32 0.0, %v866
      %v868 = vpop.f32.mrf.mxu0
      %v869 = vpop.f32.mrf.mxu0
      %v870 = vadd.f32 0.0, %v869
      %v871 = vpop.f32.mrf.mxu0
      %872 = vmatprep.mubr.bf16.mxu0 0
      %873 = vmatmul.mubr.bf16.gmra.mxu0 %v766
      %v874 = vpop.f32.mrf.mxu0
      %v875 = vadd.f32 0.0, %v874
      %v876 = vpop.f32.mrf.mxu0
      %v877 = vpop.f32.mrf.mxu0
      %v878 = vadd.f32 0.0, %v877
      %v879 = vpop.f32.mrf.mxu0
      %880 = vmatprep.mubr.bf16.mxu0 0
      %881 = vmatmul.mubr.bf16.gmra.mxu0 %v768
      %v882 = vpop.f32.mrf.mxu0
      %v883 = vadd.f32 0.0, %v882
      %v884 = vpop.f32.mrf.mxu0
      %v885 = vpop.f32.mrf.mxu0
      %v886 = vadd.f32 0.0, %v885
      %v887 = vpop.f32.mrf.mxu0
      %888 = vmatprep.mubr.bf16.mxu0 0
      %889 = vmatmul.mubr.bf16.gmra.mxu0 %v770
      %v890 = vpop.f32.mrf.mxu0
      %v891 = vadd.f32 0.0, %v890
      %v892 = vpop.f32.mrf.mxu0
      %v893 = vpop.f32.mrf.mxu0
      %v894 = vadd.f32 0.0, %v893
      %v895 = vpop.f32.mrf.mxu0
      %896 = vdwg.mxu0
      %v897 = vadd.f32 %v701, %v859
      %v898 = vadd.f32 %v704, %v862
      %v899 = vadd.f32 %v709, %v867
      %v900 = vadd.f32 %v712, %v870
      %v901 = vadd.f32 %v717, %v875
      %v902 = vadd.f32 %v720, %v878
      %v903 = vadd.f32 %v725, %v883
      %v904 = vadd.f32 %v728, %v886
      %v905 = vadd.f32 %v733, %v891
      %v906 = vadd.f32 %v736, %v894
      %v907 = vld [vmem:[%s338 + $0x4] sm:$0xe]
      %v908 = vld [vmem:[%s338 + $0x8] sm:$0xf]
      %v909 = vld [vmem:[%s338 + $0xc] sm:$0xf]
      %v910 = vld [vmem:[%s338 + $0x10] sm:$0xf]
      %v911 = vld [vmem:[%s338 + $0x14] sm:$0xf]
      %v912 = vld [vmem:[%s338 + $0x18] sm:$0xf]
      %v913 = vld [vmem:[%s338 + $0x1c] sm:$0xf]
      %v914 = vld [vmem:[%s338 + $0x20] sm:$0xf]
      %v915 = vld [vmem:[%s338 + $0x24] sm:$0xf]
      %v916 = vld [vmem:[%s338 + $0x28] sm:$0xf]
      %v917 = vld [vmem:[%s338 + $0x2c] sm:$0x1]
      %v918 = vld [vmem:[%s3 + $0xc0] sm:$0xf]
      %v919 = vld [vmem:[%s3 + $0xc4] sm:$0xf]
      %v920 = vld [vmem:[%s3 + $0xc8] sm:$0xf]
      %v921 = vld [vmem:[%s3 + $0xcc] sm:$0xf]
      %v922 = vld [vmem:[%s3 + $0xd0] sm:$0xf]
      %v923 = vld [vmem:[%s3 + $0xd4] sm:$0xf]
      %v924 = vld [vmem:[%s3 + $0xd8] sm:$0xf]
      %v925 = vld [vmem:[%s3 + $0xdc] sm:$0xf]
      %v926 = vld [vmem:[%s3 + $0xe0] sm:$0xf]
      %v927 = vld [vmem:[%s3 + $0xe4] sm:$0xf]
      %v928 = vld [vmem:[%s3 + $0xe8] sm:$0xf]
      %v929 = vld [vmem:[%s3 + $0xec] sm:$0xf]
      %v930 = vld [vmem:[%s3 + $0xf0] sm:$0xf]
      %v931 = vld [vmem:[%s3 + $0xf4] sm:$0xf]
      %v932 = vld [vmem:[%s3 + $0xf8] sm:$0xf]
      %v933 = vld [vmem:[%s3 + $0xfc] sm:$0xf]
      %v945 = vunpack.c.l.b16 %v907
      %v946 = vunpack.c.l.b16 %v908
      %v947 = vunpack.c.l.b16 %v909
      %v948 = vunpack.c.l.b16 %v910
      %v949 = vunpack.c.l.b16 %v911
      %v950 = vunpack.c.l.b16 %v912
      %v951 = vunpack.c.l.b16 %v913
      %v952 = vunpack.c.l.b16 %v914
      %v953 = vunpack.c.l.b16 %v915
      %v954 = vunpack.c.l.b16 %v916
      %v955 = vunpack.c.l.b16 %v917
      %v956 = vpack.c.b16 %v946, %v945
      %v957 = vpack.c.b16 %v948, %v947
      %v958 = vpack.c.b16 %v950, %v949
      %v959 = vpack.c.b16 %v952, %v951
      %v960 = vpack.c.b16 %v954, %v953
      %v961 = vpack.c.b16 %v955, %v955
      %v962 = vrot.slane %v956, 1
      %v963 = vrot.slane %v957, 1
      %v964 = vsel %vm759, %v962, %v963
      %v965 = vrot.slane %v958, 1
      %v966 = vsel %vm759, %v963, %v965
      %v967 = vrot.slane %v959, 1
      %v968 = vsel %vm759, %v965, %v967
      %v969 = vrot.slane %v960, 1
      %v970 = vsel %vm759, %v967, %v969
      %v971 = vrot.slane %v961, 1
      %v972 = vsel %vm759, %v969, %v971
      %v994 = vunpack.c.l.b16 %v918
      %v995 = vunpack.c.l.b16 %v919
      %v996 = vunpack.c.l.b16 %v920
      %v997 = vunpack.c.l.b16 %v921
      %v998 = vunpack.c.l.b16 %v922
      %v999 = vunpack.c.l.b16 %v923
      %v1000 = vunpack.c.l.b16 %v924
      %v1001 = vunpack.c.l.b16 %v925
      %v1002 = vunpack.c.l.b16 %v926
      %v1003 = vunpack.c.l.b16 %v927
      %v1004 = vunpack.c.l.b16 %v928
      %v1005 = vunpack.c.l.b16 %v929
      %v1006 = vunpack.c.l.b16 %v930
      %v1007 = vunpack.c.l.b16 %v931
      %v1008 = vunpack.c.l.b16 %v932
      %v1009 = vunpack.c.l.b16 %v933
      %v1010 = vpack.c.b16 %v995, %v994
      %v1011 = vpack.c.b16 %v997, %v996
      %v1012 = vpack.c.b16 %v999, %v998
      %v1013 = vpack.c.b16 %v1001, %v1000
      %v1014 = vpack.c.b16 %v1003, %v1002
      %v1015 = vpack.c.b16 %v1005, %v1004
      %v1016 = vpack.c.b16 %v1007, %v1006
      %v1017 = vpack.c.b16 %v1009, %v1008
      %1026 = vmatprep.subr.bf16.mxu0 0
      %1027 = vmatpush1.bf16.msra.mxu0 %v1017
      %1028 = vmatprep.subr.bf16.mxu0 0
      %1029 = vmatpush1.bf16.msra.mxu0 %v1016
      %1030 = vmatprep.subr.bf16.mxu0 0
      %1031 = vmatpush1.bf16.msra.mxu0 %v1015
      %1032 = vmatprep.subr.bf16.mxu0 0
      %1033 = vmatpush1.bf16.msra.mxu0 %v1014
      %1034 = vmatprep.subr.bf16.mxu0 0
      %1035 = vmatpush1.bf16.msra.mxu0 %v1013
      %1036 = vmatprep.subr.bf16.mxu0 0
      %1037 = vmatpush1.bf16.msra.mxu0 %v1012
      %1038 = vmatprep.subr.bf16.mxu0 0
      %1039 = vmatpush1.bf16.msra.mxu0 %v1011
      %1040 = vmatprep.subr.bf16.mxu0 0
      %1041 = vmatpush1.bf16.msra.mxu0 %v1010
      %1042 = vmatprep.subr.bf16.mxu0 0
      %1043 = vmatpush2.bf16.msra.mxu0 0
      %1044 = vmatprep.subr.bf16.mxu0 0
      %1045 = vmatpush2.bf16.msra.mxu0 0
      %1046 = vmatprep.subr.bf16.mxu0 0
      %1047 = vmatpush2.bf16.msra.mxu0 0
      %1048 = vmatprep.subr.bf16.mxu0 0
      %1049 = vmatpush2.bf16.msra.mxu0 0
      %1050 = vmatprep.subr.bf16.mxu0 0
      %1051 = vmatpush2.bf16.msra.mxu0 0
      %1052 = vmatprep.subr.bf16.mxu0 0
      %1053 = vmatpush2.bf16.msra.mxu0 0
      %1054 = vmatprep.subr.bf16.mxu0 0
      %1055 = vmatpush2.bf16.msra.mxu0 0
      %1056 = vmatprep.subr.bf16.mxu0 0
      %1057 = vmatpush2.bf16.msra.mxu0 0
      %1058 = vmatprep.mubr.bf16.mxu0 0
      %1059 = vmatmul.mubr.bf16.gmra.mxu0 %v964
      %v1060 = vpop.f32.mrf.mxu0
      %v1061 = vadd.f32 0.0, %v1060
      %v1062 = vpop.f32.mrf.mxu0
      %v1063 = vpop.f32.mrf.mxu0
      %v1064 = vadd.f32 0.0, %v1063
      %v1065 = vpop.f32.mrf.mxu0
      %1066 = vmatprep.mubr.bf16.mxu0 0
      %1067 = vmatmul.mubr.bf16.gmra.mxu0 %v966
      %v1068 = vpop.f32.mrf.mxu0
      %v1069 = vadd.f32 0.0, %v1068
      %v1070 = vpop.f32.mrf.mxu0
      %v1071 = vpop.f32.mrf.mxu0
      %v1072 = vadd.f32 0.0, %v1071
      %v1073 = vpop.f32.mrf.mxu0
      %1074 = vmatprep.mubr.bf16.mxu0 0
      %1075 = vmatmul.mubr.bf16.gmra.mxu0 %v968
      %v1076 = vpop.f32.mrf.mxu0
      %v1077 = vadd.f32 0.0, %v1076
      %v1078 = vpop.f32.mrf.mxu0
      %v1079 = vpop.f32.mrf.mxu0
      %v1080 = vadd.f32 0.0, %v1079
      %v1081 = vpop.f32.mrf.mxu0
      %1082 = vmatprep.mubr.bf16.mxu0 0
      %1083 = vmatmul.mubr.bf16.gmra.mxu0 %v970
      %v1084 = vpop.f32.mrf.mxu0
      %v1085 = vadd.f32 0.0, %v1084
      %v1086 = vpop.f32.mrf.mxu0
      %v1087 = vpop.f32.mrf.mxu0
      %v1088 = vadd.f32 0.0, %v1087
      %v1089 = vpop.f32.mrf.mxu0
      %1090 = vmatprep.mubr.bf16.mxu0 0
      %1091 = vmatmul.mubr.bf16.gmra.mxu0 %v972
      %v1092 = vpop.f32.mrf.mxu0
      %v1093 = vadd.f32 0.0, %v1092
      %v1094 = vpop.f32.mrf.mxu0
      %v1095 = vpop.f32.mrf.mxu0
      %v1096 = vadd.f32 0.0, %v1095
      %v1097 = vpop.f32.mrf.mxu0
      %1098 = vdwg.mxu0
      %v1099 = vadd.f32 %v897, %v1061
      %v1100 = vadd.f32 %v898, %v1064
      %v1101 = vadd.f32 %v899, %v1069
      %v1102 = vadd.f32 %v900, %v1072
      %v1103 = vadd.f32 %v901, %v1077
      %v1104 = vadd.f32 %v902, %v1080
      %v1105 = vadd.f32 %v903, %v1085
      %v1106 = vadd.f32 %v904, %v1088
      %v1107 = vadd.f32 %v905, %v1093
      %v1108 = vadd.f32 %v906, %v1096
      %v1109 = vld [vmem:[%s338 + $0x2c] sm:$0x3]
      %v1110 = vld [vmem:[%s3 + $0x100] sm:$0xf]
      %v1111 = vld [vmem:[%s3 + $0x104] sm:$0xf]
      %v1112 = vld [vmem:[%s3 + $0x108] sm:$0xf]
      %v1113 = vld [vmem:[%s3 + $0x10c] sm:$0xf]
      %v1114 = vld [vmem:[%s3 + $0x110] sm:$0xf]
      %v1115 = vld [vmem:[%s3 + $0x114] sm:$0xf]
      %v1116 = vld [vmem:[%s3 + $0x118] sm:$0xf]
      %v1117 = vld [vmem:[%s3 + $0x11c] sm:$0xf]
      %v1118 = vld [vmem:[%s3 + $0x120] sm:$0xf]
      %v1119 = vld [vmem:[%s3 + $0x124] sm:$0xf]
      %v1120 = vld [vmem:[%s3 + $0x128] sm:$0xf]
      %v1121 = vld [vmem:[%s3 + $0x12c] sm:$0xf]
      %v1122 = vld [vmem:[%s3 + $0x130] sm:$0xf]
      %v1123 = vld [vmem:[%s3 + $0x134] sm:$0xf]
      %v1124 = vld [vmem:[%s3 + $0x138] sm:$0xf]
      %v1125 = vld [vmem:[%s3 + $0x13c] sm:$0xf]
      %v1127 = vunpack.c.l.b16 %v1109
      %v1128 = vpack.c.b16 %v1127, %v1127
      %vm1129 = vsmask.f32 6400
      %v1131 = vshrl.u32 %v956, 16
      %v1133 = vrot.slane %v1131, 1
      %v1134 = vshll.u32 %v956, 16
      %v1136 = vrot.slane %v1134, 2
      %v1137 = vor.u32 %v1133, %v1136
      %v1139 = vshrl.u32 %v957, 16
      %v1141 = vrot.slane %v1139, 1
      %v1142 = vshll.u32 %v957, 16
      %v1144 = vrot.slane %v1142, 2
      %v1145 = vor.u32 %v1141, %v1144
      %v1146 = vsel %vm1129, %v1137, %v1145
      %v1148 = vshrl.u32 %v958, 16
      %v1150 = vrot.slane %v1148, 1
      %v1151 = vshll.u32 %v958, 16
      %v1153 = vrot.slane %v1151, 2
      %v1154 = vor.u32 %v1150, %v1153
      %v1155 = vsel %vm1129, %v1145, %v1154
      %v1157 = vshrl.u32 %v959, 16
      %v1159 = vrot.slane %v1157, 1
      %v1160 = vshll.u32 %v959, 16
      %v1162 = vrot.slane %v1160, 2
      %v1163 = vor.u32 %v1159, %v1162
      %v1164 = vsel %vm1129, %v1154, %v1163
      %v1166 = vshrl.u32 %v960, 16
      %v1168 = vrot.slane %v1166, 1
      %v1169 = vshll.u32 %v960, 16
      %v1171 = vrot.slane %v1169, 2
      %v1172 = vor.u32 %v1168, %v1171
      %v1173 = vsel %vm1129, %v1163, %v1172
      %v1175 = vshrl.u32 %v1128, 16
      %v1177 = vrot.slane %v1175, 1
      %v1178 = vshll.u32 %v1128, 16
      %v1180 = vrot.slane %v1178, 2
      %v1181 = vor.u32 %v1177, %v1180
      %v1182 = vsel %vm1129, %v1172, %v1181
      %v1204 = vunpack.c.l.b16 %v1110
      %v1205 = vunpack.c.l.b16 %v1111
      %v1206 = vunpack.c.l.b16 %v1112
      %v1207 = vunpack.c.l.b16 %v1113
      %v1208 = vunpack.c.l.b16 %v1114
      %v1209 = vunpack.c.l.b16 %v1115
      %v1210 = vunpack.c.l.b16 %v1116
      %v1211 = vunpack.c.l.b16 %v1117
      %v1212 = vunpack.c.l.b16 %v1118
      %v1213 = vunpack.c.l.b16 %v1119
      %v1214 = vunpack.c.l.b16 %v1120
      %v1215 = vunpack.c.l.b16 %v1121
      %v1216 = vunpack.c.l.b16 %v1122
      %v1217 = vunpack.c.l.b16 %v1123
      %v1218 = vunpack.c.l.b16 %v1124
      %v1219 = vunpack.c.l.b16 %v1125
      %v1220 = vpack.c.b16 %v1205, %v1204
      %v1221 = vpack.c.b16 %v1207, %v1206
      %v1222 = vpack.c.b16 %v1209, %v1208
      %v1223 = vpack.c.b16 %v1211, %v1210
      %v1224 = vpack.c.b16 %v1213, %v1212
      %v1225 = vpack.c.b16 %v1215, %v1214
      %v1226 = vpack.c.b16 %v1217, %v1216
      %v1227 = vpack.c.b16 %v1219, %v1218
      %1236 = vmatprep.subr.bf16.mxu0 0
      %1237 = vmatpush1.bf16.msra.mxu0 %v1227
      %1238 = vmatprep.subr.bf16.mxu0 0
      %1239 = vmatpush1.bf16.msra.mxu0 %v1226
      %1240 = vmatprep.subr.bf16.mxu0 0
      %1241 = vmatpush1.bf16.msra.mxu0 %v1225
      %1242 = vmatprep.subr.bf16.mxu0 0
      %1243 = vmatpush1.bf16.msra.mxu0 %v1224
      %1244 = vmatprep.subr.bf16.mxu0 0
      %1245 = vmatpush1.bf16.msra.mxu0 %v1223
      %1246 = vmatprep.subr.bf16.mxu0 0
      %1247 = vmatpush1.bf16.msra.mxu0 %v1222
      %1248 = vmatprep.subr.bf16.mxu0 0
      %1249 = vmatpush1.bf16.msra.mxu0 %v1221
      %1250 = vmatprep.subr.bf16.mxu0 0
      %1251 = vmatpush1.bf16.msra.mxu0 %v1220
      %1252 = vmatprep.subr.bf16.mxu0 0
      %1253 = vmatpush2.bf16.msra.mxu0 0
      %1254 = vmatprep.subr.bf16.mxu0 0
      %1255 = vmatpush2.bf16.msra.mxu0 0
      %1256 = vmatprep.subr.bf16.mxu0 0
      %1257 = vmatpush2.bf16.msra.mxu0 0
      %1258 = vmatprep.subr.bf16.mxu0 0
      %1259 = vmatpush2.bf16.msra.mxu0 0
      %1260 = vmatprep.subr.bf16.mxu0 0
      %1261 = vmatpush2.bf16.msra.mxu0 0
      %1262 = vmatprep.subr.bf16.mxu0 0
      %1263 = vmatpush2.bf16.msra.mxu0 0
      %1264 = vmatprep.subr.bf16.mxu0 0
      %1265 = vmatpush2.bf16.msra.mxu0 0
      %1266 = vmatprep.subr.bf16.mxu0 0
      %1267 = vmatpush2.bf16.msra.mxu0 0
      %1268 = vmatprep.mubr.bf16.mxu0 0
      %1269 = vmatmul.mubr.bf16.gmra.mxu0 %v1146
      %v1270 = vpop.f32.mrf.mxu0
      %v1271 = vadd.f32 0.0, %v1270
      %v1272 = vpop.f32.mrf.mxu0
      %v1273 = vpop.f32.mrf.mxu0
      %v1274 = vadd.f32 0.0, %v1273
      %v1275 = vpop.f32.mrf.mxu0
      %1276 = vmatprep.mubr.bf16.mxu0 0
      %1277 = vmatmul.mubr.bf16.gmra.mxu0 %v1155
      %v1278 = vpop.f32.mrf.mxu0
      %v1279 = vadd.f32 0.0, %v1278
      %v1280 = vpop.f32.mrf.mxu0
      %v1281 = vpop.f32.mrf.mxu0
      %v1282 = vadd.f32 0.0, %v1281
      %v1283 = vpop.f32.mrf.mxu0
      %1284 = vmatprep.mubr.bf16.mxu0 0
      %1285 = vmatmul.mubr.bf16.gmra.mxu0 %v1164
      %v1286 = vpop.f32.mrf.mxu0
      %v1287 = vadd.f32 0.0, %v1286
      %v1288 = vpop.f32.mrf.mxu0
      %v1289 = vpop.f32.mrf.mxu0
      %v1290 = vadd.f32 0.0, %v1289
      %v1291 = vpop.f32.mrf.mxu0
      %1292 = vmatprep.mubr.bf16.mxu0 0
      %1293 = vmatmul.mubr.bf16.gmra.mxu0 %v1173
      %v1294 = vpop.f32.mrf.mxu0
      %v1295 = vadd.f32 0.0, %v1294
      %v1296 = vpop.f32.mrf.mxu0
      %v1297 = vpop.f32.mrf.mxu0
      %v1298 = vadd.f32 0.0, %v1297
      %v1299 = vpop.f32.mrf.mxu0
      %1300 = vmatprep.mubr.bf16.mxu0 0
      %1301 = vmatmul.mubr.bf16.gmra.mxu0 %v1182
      %v1302 = vpop.f32.mrf.mxu0
      %v1303 = vadd.f32 0.0, %v1302
      %v1304 = vpop.f32.mrf.mxu0
      %v1305 = vpop.f32.mrf.mxu0
      %v1306 = vadd.f32 0.0, %v1305
      %v1307 = vpop.f32.mrf.mxu0
      %1308 = vdwg.mxu0
      %v1309 = vadd.f32 %v1099, %v1271
      %v1310 = vadd.f32 %v1100, %v1274
      %v1311 = vadd.f32 %v1101, %v1279
      %v1312 = vadd.f32 %v1102, %v1282
      %v1313 = vadd.f32 %v1103, %v1287
      %v1314 = vadd.f32 %v1104, %v1290
      %v1315 = vadd.f32 %v1105, %v1295
      %v1316 = vadd.f32 %v1106, %v1298
      %v1317 = vadd.f32 %v1107, %v1303
      %v1318 = vadd.f32 %v1108, %v1306
      %v1319 = vld [vmem:[%s338 + $0x4] sm:$0xc]
      %v1320 = vld [vmem:[%s3 + $0x140] sm:$0xf]
      %v1321 = vld [vmem:[%s3 + $0x144] sm:$0xf]
      %v1322 = vld [vmem:[%s3 + $0x148] sm:$0xf]
      %v1323 = vld [vmem:[%s3 + $0x14c] sm:$0xf]
      %v1324 = vld [vmem:[%s3 + $0x150] sm:$0xf]
      %v1325 = vld [vmem:[%s3 + $0x154] sm:$0xf]
      %v1326 = vld [vmem:[%s3 + $0x158] sm:$0xf]
      %v1327 = vld [vmem:[%s3 + $0x15c] sm:$0xf]
      %v1328 = vld [vmem:[%s3 + $0x160] sm:$0xf]
      %v1329 = vld [vmem:[%s3 + $0x164] sm:$0xf]
      %v1330 = vld [vmem:[%s3 + $0x168] sm:$0xf]
      %v1331 = vld [vmem:[%s3 + $0x16c] sm:$0xf]
      %v1332 = vld [vmem:[%s3 + $0x170] sm:$0xf]
      %v1333 = vld [vmem:[%s3 + $0x174] sm:$0xf]
      %v1334 = vld [vmem:[%s3 + $0x178] sm:$0xf]
      %v1335 = vld [vmem:[%s3 + $0x17c] sm:$0xf]
      %v1337 = vunpack.c.l.b16 %v1319
      %v1338 = vpack.c.b16 %v946, %v1337
      %vm1339 = vcmask 1045504
      %v1340 = vrot.slane %v1338, 2
      %v1341 = vrot.slane %v957, 2
      %v1342 = vsel %vm1339, %v1340, %v1341
      %v1343 = vrot.slane %v958, 2
      %v1344 = vsel %vm1339, %v1341, %v1343
      %v1345 = vrot.slane %v959, 2
      %v1346 = vsel %vm1339, %v1343, %v1345
      %v1347 = vrot.slane %v960, 2
      %v1348 = vsel %vm1339, %v1345, %v1347
      %v1349 = vrot.slane %v1128, 2
      %v1350 = vsel %vm1339, %v1347, %v1349
      %v1372 = vunpack.c.l.b16 %v1320
      %v1373 = vunpack.c.l.b16 %v1321
      %v1374 = vunpack.c.l.b16 %v1322
      %v1375 = vunpack.c.l.b16 %v1323
      %v1376 = vunpack.c.l.b16 %v1324
      %v1377 = vunpack.c.l.b16 %v1325
      %v1378 = vunpack.c.l.b16 %v1326
      %v1379 = vunpack.c.l.b16 %v1327
      %v1380 = vunpack.c.l.b16 %v1328
      %v1381 = vunpack.c.l.b16 %v1329
      %v1382 = vunpack.c.l.b16 %v1330
      %v1383 = vunpack.c.l.b16 %v1331
      %v1384 = vunpack.c.l.b16 %v1332
      %v1385 = vunpack.c.l.b16 %v1333
      %v1386 = vunpack.c.l.b16 %v1334
      %v1387 = vunpack.c.l.b16 %v1335
      %v1388 = vpack.c.b16 %v1373, %v1372
      %v1389 = vpack.c.b16 %v1375, %v1374
      %v1390 = vpack.c.b16 %v1377, %v1376
      %v1391 = vpack.c.b16 %v1379, %v1378
      %v1392 = vpack.c.b16 %v1381, %v1380
      %v1393 = vpack.c.b16 %v1383, %v1382
      %v1394 = vpack.c.b16 %v1385, %v1384
      %v1395 = vpack.c.b16 %v1387, %v1386
      %1404 = vmatprep.subr.bf16.mxu0 0
      %1405 = vmatpush1.bf16.msra.mxu0 %v1395
      %1406 = vmatprep.subr.bf16.mxu0 0
      %1407 = vmatpush1.bf16.msra.mxu0 %v1394
      %1408 = vmatprep.subr.bf16.mxu0 0
      %1409 = vmatpush1.bf16.msra.mxu0 %v1393
      %1410 = vmatprep.subr.bf16.mxu0 0
      %1411 = vmatpush1.bf16.msra.mxu0 %v1392
      %1412 = vmatprep.subr.bf16.mxu0 0
      %1413 = vmatpush1.bf16.msra.mxu0 %v1391
      %1414 = vmatprep.subr.bf16.mxu0 0
      %1415 = vmatpush1.bf16.msra.mxu0 %v1390
      %1416 = vmatprep.subr.bf16.mxu0 0
      %1417 = vmatpush1.bf16.msra.mxu0 %v1389
      %1418 = vmatprep.subr.bf16.mxu0 0
      %1419 = vmatpush1.bf16.msra.mxu0 %v1388
      %1420 = vmatprep.subr.bf16.mxu0 0
      %1421 = vmatpush2.bf16.msra.mxu0 0
      %1422 = vmatprep.subr.bf16.mxu0 0
      %1423 = vmatpush2.bf16.msra.mxu0 0
      %1424 = vmatprep.subr.bf16.mxu0 0
      %1425 = vmatpush2.bf16.msra.mxu0 0
      %1426 = vmatprep.subr.bf16.mxu0 0
      %1427 = vmatpush2.bf16.msra.mxu0 0
      %1428 = vmatprep.subr.bf16.mxu0 0
      %1429 = vmatpush2.bf16.msra.mxu0 0
      %1430 = vmatprep.subr.bf16.mxu0 0
      %1431 = vmatpush2.bf16.msra.mxu0 0
      %1432 = vmatprep.subr.bf16.mxu0 0
      %1433 = vmatpush2.bf16.msra.mxu0 0
      %1434 = vmatprep.subr.bf16.mxu0 0
      %1435 = vmatpush2.bf16.msra.mxu0 0
      %1436 = vmatprep.mubr.bf16.mxu0 0
      %1437 = vmatmul.mubr.bf16.gmra.mxu0 %v1342
      %v1438 = vpop.f32.mrf.mxu0
      %v1439 = vadd.f32 0.0, %v1438
      %v1440 = vpop.f32.mrf.mxu0
      %v1441 = vpop.f32.mrf.mxu0
      %v1442 = vadd.f32 0.0, %v1441
      %v1443 = vpop.f32.mrf.mxu0
      %1444 = vmatprep.mubr.bf16.mxu0 0
      %1445 = vmatmul.mubr.bf16.gmra.mxu0 %v1344
      %v1446 = vpop.f32.mrf.mxu0
      %v1447 = vadd.f32 0.0, %v1446
      %v1448 = vpop.f32.mrf.mxu0
      %v1449 = vpop.f32.mrf.mxu0
      %v1450 = vadd.f32 0.0, %v1449
      %v1451 = vpop.f32.mrf.mxu0
      %1452 = vmatprep.mubr.bf16.mxu0 0
      %1453 = vmatmul.mubr.bf16.gmra.mxu0 %v1346
      %v1454 = vpop.f32.mrf.mxu0
      %v1455 = vadd.f32 0.0, %v1454
      %v1456 = vpop.f32.mrf.mxu0
      %v1457 = vpop.f32.mrf.mxu0
      %v1458 = vadd.f32 0.0, %v1457
      %v1459 = vpop.f32.mrf.mxu0
      %1460 = vmatprep.mubr.bf16.mxu0 0
      %1461 = vmatmul.mubr.bf16.gmra.mxu0 %v1348
      %v1462 = vpop.f32.mrf.mxu0
      %v1463 = vadd.f32 0.0, %v1462
      %v1464 = vpop.f32.mrf.mxu0
      %v1465 = vpop.f32.mrf.mxu0
      %v1466 = vadd.f32 0.0, %v1465
      %v1467 = vpop.f32.mrf.mxu0
      %1468 = vmatprep.mubr.bf16.mxu0 0
      %1469 = vmatmul.mubr.bf16.gmra.mxu0 %v1350
      %v1470 = vpop.f32.mrf.mxu0
      %v1471 = vadd.f32 0.0, %v1470
      %v1472 = vpop.f32.mrf.mxu0
      %v1473 = vpop.f32.mrf.mxu0
      %v1474 = vadd.f32 0.0, %v1473
      %v1475 = vpop.f32.mrf.mxu0
      %1476 = vdwg.mxu0
      %v1477 = vadd.f32 %v1309, %v1439
      %v1478 = vadd.f32 %v1310, %v1442
      %v1479 = vadd.f32 %v1311, %v1447
      %v1480 = vadd.f32 %v1312, %v1450
      %v1481 = vadd.f32 %v1313, %v1455
      %v1482 = vadd.f32 %v1314, %v1458
      %v1483 = vadd.f32 %v1315, %v1463
      %v1484 = vadd.f32 %v1316, %v1466
      %v1485 = vadd.f32 %v1317, %v1471
      %v1486 = vadd.f32 %v1318, %v1474
      %v1487 = vld [vmem:[%s338 + $0x8] sm:$0xc]
      %v1488 = vld [vmem:[%s338 + $0xc] sm:$0xf]
      %v1489 = vld [vmem:[%s338 + $0x10] sm:$0xf]
      %v1490 = vld [vmem:[%s338 + $0x14] sm:$0xf]
      %v1491 = vld [vmem:[%s338 + $0x18] sm:$0xf]
      %v1492 = vld [vmem:[%s338 + $0x1c] sm:$0xf]
      %v1493 = vld [vmem:[%s338 + $0x20] sm:$0xf]
      %v1494 = vld [vmem:[%s338 + $0x24] sm:$0xf]
      %v1495 = vld [vmem:[%s338 + $0x28] sm:$0xf]
      %v1496 = vld [vmem:[%s338 + $0x2c] sm:$0xf]
      %v1497 = vld [vmem:[%s338 + $0x30] sm:$0x3]
      %v1498 = vld [vmem:[%s3 + $0x180] sm:$0xf]
      %v1499 = vld [vmem:[%s3 + $0x184] sm:$0xf]
      %v1500 = vld [vmem:[%s3 + $0x188] sm:$0xf]
      %v1501 = vld [vmem:[%s3 + $0x18c] sm:$0xf]
      %v1502 = vld [vmem:[%s3 + $0x190] sm:$0xf]
      %v1503 = vld [vmem:[%s3 + $0x194] sm:$0xf]
      %v1504 = vld [vmem:[%s3 + $0x198] sm:$0xf]
      %v1505 = vld [vmem:[%s3 + $0x19c] sm:$0xf]
      %v1506 = vld [vmem:[%s3 + $0x1a0] sm:$0xf]
      %v1507 = vld [vmem:[%s3 + $0x1a4] sm:$0xf]
      %v1508 = vld [vmem:[%s3 + $0x1a8] sm:$0xf]
      %v1509 = vld [vmem:[%s3 + $0x1ac] sm:$0xf]
      %v1510 = vld [vmem:[%s3 + $0x1b0] sm:$0xf]
      %v1511 = vld [vmem:[%s3 + $0x1b4] sm:$0xf]
      %v1512 = vld [vmem:[%s3 + $0x1b8] sm:$0xf]
      %v1513 = vld [vmem:[%s3 + $0x1bc] sm:$0xf]
      %v1525 = vunpack.c.l.b16 %v1487
      %v1526 = vunpack.c.l.b16 %v1488
      %v1527 = vunpack.c.l.b16 %v1489
      %v1528 = vunpack.c.l.b16 %v1490
      %v1529 = vunpack.c.l.b16 %v1491
      %v1530 = vunpack.c.l.b16 %v1492
      %v1531 = vunpack.c.l.b16 %v1493
      %v1532 = vunpack.c.l.b16 %v1494
      %v1533 = vunpack.c.l.b16 %v1495
      %v1534 = vunpack.c.l.b16 %v1496
      %v1535 = vunpack.c.l.b16 %v1497
      %v1536 = vpack.c.b16 %v1526, %v1525
      %v1537 = vpack.c.b16 %v1528, %v1527
      %v1538 = vpack.c.b16 %v1530, %v1529
      %v1539 = vpack.c.b16 %v1532, %v1531
      %v1540 = vpack.c.b16 %v1534, %v1533
      %v1541 = vpack.c.b16 %v1535, %v1535
      %v1542 = vrot.slane %v1536, 2
      %v1543 = vrot.slane %v1537, 2
      %v1544 = vsel %vm1339, %v1542, %v1543
      %v1545 = vrot.slane %v1538, 2
      %v1546 = vsel %vm1339, %v1543, %v1545
      %v1547 = vrot.slane %v1539, 2
      %v1548 = vsel %vm1339, %v1545, %v1547
      %v1549 = vrot.slane %v1540, 2
      %v1550 = vsel %vm1339, %v1547, %v1549
      %v1551 = vrot.slane %v1541, 2
      %v1552 = vsel %vm1339, %v1549, %v1551
      %v1574 = vunpack.c.l.b16 %v1498
      %v1575 = vunpack.c.l.b16 %v1499
      %v1576 = vunpack.c.l.b16 %v1500
      %v1577 = vunpack.c.l.b16 %v1501
      %v1578 = vunpack.c.l.b16 %v1502
      %v1579 = vunpack.c.l.b16 %v1503
      %v1580 = vunpack.c.l.b16 %v1504
      %v1581 = vunpack.c.l.b16 %v1505
      %v1582 = vunpack.c.l.b16 %v1506
      %v1583 = vunpack.c.l.b16 %v1507
      %v1584 = vunpack.c.l.b16 %v1508
      %v1585 = vunpack.c.l.b16 %v1509
      %v1586 = vunpack.c.l.b16 %v1510
      %v1587 = vunpack.c.l.b16 %v1511
      %v1588 = vunpack.c.l.b16 %v1512
      %v1589 = vunpack.c.l.b16 %v1513
      %v1590 = vpack.c.b16 %v1575, %v1574
      %v1591 = vpack.c.b16 %v1577, %v1576
      %v1592 = vpack.c.b16 %v1579, %v1578
      %v1593 = vpack.c.b16 %v1581, %v1580
      %v1594 = vpack.c.b16 %v1583, %v1582
      %v1595 = vpack.c.b16 %v1585, %v1584
      %v1596 = vpack.c.b16 %v1587, %v1586
      %v1597 = vpack.c.b16 %v1589, %v1588
      %1606 = vmatprep.subr.bf16.mxu0 0
      %1607 = vmatpush1.bf16.msra.mxu0 %v1597
      %1608 = vmatprep.subr.bf16.mxu0 0
      %1609 = vmatpush1.bf16.msra.mxu0 %v1596
      %1610 = vmatprep.subr.bf16.mxu0 0
      %1611 = vmatpush1.bf16.msra.mxu0 %v1595
      %1612 = vmatprep.subr.bf16.mxu0 0
      %1613 = vmatpush1.bf16.msra.mxu0 %v1594
      %1614 = vmatprep.subr.bf16.mxu0 0
      %1615 = vmatpush1.bf16.msra.mxu0 %v1593
      %1616 = vmatprep.subr.bf16.mxu0 0
      %1617 = vmatpush1.bf16.msra.mxu0 %v1592
      %1618 = vmatprep.subr.bf16.mxu0 0
      %1619 = vmatpush1.bf16.msra.mxu0 %v1591
      %1620 = vmatprep.subr.bf16.mxu0 0
      %1621 = vmatpush1.bf16.msra.mxu0 %v1590
      %1622 = vmatprep.subr.bf16.mxu0 0
      %1623 = vmatpush2.bf16.msra.mxu0 0
      %1624 = vmatprep.subr.bf16.mxu0 0
      %1625 = vmatpush2.bf16.msra.mxu0 0
      %1626 = vmatprep.subr.bf16.mxu0 0
      %1627 = vmatpush2.bf16.msra.mxu0 0
      %1628 = vmatprep.subr.bf16.mxu0 0
      %1629 = vmatpush2.bf16.msra.mxu0 0
      %1630 = vmatprep.subr.bf16.mxu0 0
      %1631 = vmatpush2.bf16.msra.mxu0 0
      %1632 = vmatprep.subr.bf16.mxu0 0
      %1633 = vmatpush2.bf16.msra.mxu0 0
      %1634 = vmatprep.subr.bf16.mxu0 0
      %1635 = vmatpush2.bf16.msra.mxu0 0
      %1636 = vmatprep.subr.bf16.mxu0 0
      %1637 = vmatpush2.bf16.msra.mxu0 0
      %1638 = vmatprep.mubr.bf16.mxu0 0
      %1639 = vmatmul.mubr.bf16.gmra.mxu0 %v1544
      %v1640 = vpop.f32.mrf.mxu0
      %v1641 = vadd.f32 0.0, %v1640
      %v1642 = vpop.f32.mrf.mxu0
      %v1643 = vpop.f32.mrf.mxu0
      %v1644 = vadd.f32 0.0, %v1643
      %v1645 = vpop.f32.mrf.mxu0
      %1646 = vmatprep.mubr.bf16.mxu0 0
      %1647 = vmatmul.mubr.bf16.gmra.mxu0 %v1546
      %v1648 = vpop.f32.mrf.mxu0
      %v1649 = vadd.f32 0.0, %v1648
      %v1650 = vpop.f32.mrf.mxu0
      %v1651 = vpop.f32.mrf.mxu0
      %v1652 = vadd.f32 0.0, %v1651
      %v1653 = vpop.f32.mrf.mxu0
      %1654 = vmatprep.mubr.bf16.mxu0 0
      %1655 = vmatmul.mubr.bf16.gmra.mxu0 %v1548
      %v1656 = vpop.f32.mrf.mxu0
      %v1657 = vadd.f32 0.0, %v1656
      %v1658 = vpop.f32.mrf.mxu0
      %v1659 = vpop.f32.mrf.mxu0
      %v1660 = vadd.f32 0.0, %v1659
      %v1661 = vpop.f32.mrf.mxu0
      %1662 = vmatprep.mubr.bf16.mxu0 0
      %1663 = vmatmul.mubr.bf16.gmra.mxu0 %v1550
      %v1664 = vpop.f32.mrf.mxu0
      %v1665 = vadd.f32 0.0, %v1664
      %v1666 = vpop.f32.mrf.mxu0
      %v1667 = vpop.f32.mrf.mxu0
      %v1668 = vadd.f32 0.0, %v1667
      %v1669 = vpop.f32.mrf.mxu0
      %1670 = vmatprep.mubr.bf16.mxu0 0
      %1671 = vmatmul.mubr.bf16.gmra.mxu0 %v1552
      %v1672 = vpop.f32.mrf.mxu0
      %v1673 = vadd.f32 0.0, %v1672
      %v1674 = vpop.f32.mrf.mxu0
      %v1675 = vpop.f32.mrf.mxu0
      %v1676 = vadd.f32 0.0, %v1675
      %v1677 = vpop.f32.mrf.mxu0
      %1678 = vdwg.mxu0
      %v1679 = vadd.f32 %v1477, %v1641
      %v1680 = vadd.f32 %v1478, %v1644
      %v1681 = vadd.f32 %v1479, %v1649
      %v1682 = vadd.f32 %v1480, %v1652
      %v1683 = vadd.f32 %v1481, %v1657
      %v1684 = vadd.f32 %v1482, %v1660
      %v1685 = vadd.f32 %v1483, %v1665
      %v1686 = vadd.f32 %v1484, %v1668
      %v1687 = vadd.f32 %v1485, %v1673
      %v1688 = vadd.f32 %v1486, %v1676
      %v1689 = vld [vmem:[%s338 + $0x30] sm:$0x7]
      %v1690 = vld [vmem:[%s3 + $0x1c0] sm:$0xf]
      %v1691 = vld [vmem:[%s3 + $0x1c4] sm:$0xf]
      %v1692 = vld [vmem:[%s3 + $0x1c8] sm:$0xf]
      %v1693 = vld [vmem:[%s3 + $0x1cc] sm:$0xf]
      %v1694 = vld [vmem:[%s3 + $0x1d0] sm:$0xf]
      %v1695 = vld [vmem:[%s3 + $0x1d4] sm:$0xf]
      %v1696 = vld [vmem:[%s3 + $0x1d8] sm:$0xf]
      %v1697 = vld [vmem:[%s3 + $0x1dc] sm:$0xf]
      %v1698 = vld [vmem:[%s3 + $0x1e0] sm:$0xf]
      %v1699 = vld [vmem:[%s3 + $0x1e4] sm:$0xf]
      %v1700 = vld [vmem:[%s3 + $0x1e8] sm:$0xf]
      %v1701 = vld [vmem:[%s3 + $0x1ec] sm:$0xf]
      %v1702 = vld [vmem:[%s3 + $0x1f0] sm:$0xf]
      %v1703 = vld [vmem:[%s3 + $0x1f4] sm:$0xf]
      %v1704 = vld [vmem:[%s3 + $0x1f8] sm:$0xf]
      %v1705 = vld [vmem:[%s3 + $0x1fc] sm:$0xf]
      %v1707 = vunpack.c.l.b16 %v1689
      %v1708 = vpack.c.b16 %v1707, %v1707
      %vm1709 = vsmask.f32 5376
      %v1711 = vshrl.u32 %v1536, 16
      %v1713 = vrot.slane %v1711, 2
      %v1714 = vshll.u32 %v1536, 16
      %v1716 = vrot.slane %v1714, 3
      %v1717 = vor.u32 %v1713, %v1716
      %v1719 = vshrl.u32 %v1537, 16
      %v1721 = vrot.slane %v1719, 2
      %v1722 = vshll.u32 %v1537, 16
      %v1724 = vrot.slane %v1722, 3
      %v1725 = vor.u32 %v1721, %v1724
      %v1726 = vsel %vm1709, %v1717, %v1725
      %v1728 = vshrl.u32 %v1538, 16
      %v1730 = vrot.slane %v1728, 2
      %v1731 = vshll.u32 %v1538, 16
      %v1733 = vrot.slane %v1731, 3
      %v1734 = vor.u32 %v1730, %v1733
      %v1735 = vsel %vm1709, %v1725, %v1734
      %v1737 = vshrl.u32 %v1539, 16
      %v1739 = vrot.slane %v1737, 2
      %v1740 = vshll.u32 %v1539, 16
      %v1742 = vrot.slane %v1740, 3
      %v1743 = vor.u32 %v1739, %v1742
      %v1744 = vsel %vm1709, %v1734, %v1743
      %v1746 = vshrl.u32 %v1540, 16
      %v1748 = vrot.slane %v1746, 2
      %v1749 = vshll.u32 %v1540, 16
      %v1751 = vrot.slane %v1749, 3
      %v1752 = vor.u32 %v1748, %v1751
      %v1753 = vsel %vm1709, %v1743, %v1752
      %v1755 = vshrl.u32 %v1708, 16
      %v1757 = vrot.slane %v1755, 2
      %v1758 = vshll.u32 %v1708, 16
      %v1760 = vrot.slane %v1758, 3
      %v1761 = vor.u32 %v1757, %v1760
      %v1762 = vsel %vm1709, %v1752, %v1761
      %v1784 = vunpack.c.l.b16 %v1690
      %v1785 = vunpack.c.l.b16 %v1691
      %v1786 = vunpack.c.l.b16 %v1692
      %v1787 = vunpack.c.l.b16 %v1693
      %v1788 = vunpack.c.l.b16 %v1694
      %v1789 = vunpack.c.l.b16 %v1695
      %v1790 = vunpack.c.l.b16 %v1696
      %v1791 = vunpack.c.l.b16 %v1697
      %v1792 = vunpack.c.l.b16 %v1698
      %v1793 = vunpack.c.l.b16 %v1699
      %v1794 = vunpack.c.l.b16 %v1700
      %v1795 = vunpack.c.l.b16 %v1701
      %v1796 = vunpack.c.l.b16 %v1702
      %v1797 = vunpack.c.l.b16 %v1703
      %v1798 = vunpack.c.l.b16 %v1704
      %v1799 = vunpack.c.l.b16 %v1705
      %v1800 = vpack.c.b16 %v1785, %v1784
      %v1801 = vpack.c.b16 %v1787, %v1786
      %v1802 = vpack.c.b16 %v1789, %v1788
      %v1803 = vpack.c.b16 %v1791, %v1790
      %v1804 = vpack.c.b16 %v1793, %v1792
      %v1805 = vpack.c.b16 %v1795, %v1794
      %v1806 = vpack.c.b16 %v1797, %v1796
      %v1807 = vpack.c.b16 %v1799, %v1798
      %1816 = vmatprep.subr.bf16.mxu0 0
      %1817 = vmatpush1.bf16.msra.mxu0 %v1807
      %1818 = vmatprep.subr.bf16.mxu0 0
      %1819 = vmatpush1.bf16.msra.mxu0 %v1806
      %1820 = vmatprep.subr.bf16.mxu0 0
      %1821 = vmatpush1.bf16.msra.mxu0 %v1805
      %1822 = vmatprep.subr.bf16.mxu0 0
      %1823 = vmatpush1.bf16.msra.mxu0 %v1804
      %1824 = vmatprep.subr.bf16.mxu0 0
      %1825 = vmatpush1.bf16.msra.mxu0 %v1803
      %1826 = vmatprep.subr.bf16.mxu0 0
      %1827 = vmatpush1.bf16.msra.mxu0 %v1802
      %1828 = vmatprep.subr.bf16.mxu0 0
      %1829 = vmatpush1.bf16.msra.mxu0 %v1801
      %1830 = vmatprep.subr.bf16.mxu0 0
      %1831 = vmatpush1.bf16.msra.mxu0 %v1800
      %1832 = vmatprep.subr.bf16.mxu0 0
      %1833 = vmatpush2.bf16.msra.mxu0 0
      %1834 = vmatprep.subr.bf16.mxu0 0
      %1835 = vmatpush2.bf16.msra.mxu0 0
      %1836 = vmatprep.subr.bf16.mxu0 0
      %1837 = vmatpush2.bf16.msra.mxu0 0
      %1838 = vmatprep.subr.bf16.mxu0 0
      %1839 = vmatpush2.bf16.msra.mxu0 0
      %1840 = vmatprep.subr.bf16.mxu0 0
      %1841 = vmatpush2.bf16.msra.mxu0 0
      %1842 = vmatprep.subr.bf16.mxu0 0
      %1843 = vmatpush2.bf16.msra.mxu0 0
      %1844 = vmatprep.subr.bf16.mxu0 0
      %1845 = vmatpush2.bf16.msra.mxu0 0
      %1846 = vmatprep.subr.bf16.mxu0 0
      %1847 = vmatpush2.bf16.msra.mxu0 0
      %1848 = vmatprep.mubr.bf16.mxu0 0
      %1849 = vmatmul.mubr.bf16.gmra.mxu0 %v1726
      %v1850 = vpop.f32.mrf.mxu0
      %v1851 = vadd.f32 0.0, %v1850
      %v1852 = vpop.f32.mrf.mxu0
      %v1853 = vpop.f32.mrf.mxu0
      %v1854 = vadd.f32 0.0, %v1853
      %v1855 = vpop.f32.mrf.mxu0
      %1856 = vmatprep.mubr.bf16.mxu0 0
      %1857 = vmatmul.mubr.bf16.gmra.mxu0 %v1735
      %v1858 = vpop.f32.mrf.mxu0
      %v1859 = vadd.f32 0.0, %v1858
      %v1860 = vpop.f32.mrf.mxu0
      %v1861 = vpop.f32.mrf.mxu0
      %v1862 = vadd.f32 0.0, %v1861
      %v1863 = vpop.f32.mrf.mxu0
      %1864 = vmatprep.mubr.bf16.mxu0 0
      %1865 = vmatmul.mubr.bf16.gmra.mxu0 %v1744
      %v1866 = vpop.f32.mrf.mxu0
      %v1867 = vadd.f32 0.0, %v1866
      %v1868 = vpop.f32.mrf.mxu0
      %v1869 = vpop.f32.mrf.mxu0
      %v1870 = vadd.f32 0.0, %v1869
      %v1871 = vpop.f32.mrf.mxu0
      %1872 = vmatprep.mubr.bf16.mxu0 0
      %1873 = vmatmul.mubr.bf16.gmra.mxu0 %v1753
      %v1874 = vpop.f32.mrf.mxu0
      %v1875 = vadd.f32 0.0, %v1874
      %v1876 = vpop.f32.mrf.mxu0
      %v1877 = vpop.f32.mrf.mxu0
      %v1878 = vadd.f32 0.0, %v1877
      %v1879 = vpop.f32.mrf.mxu0
      %1880 = vmatprep.mubr.bf16.mxu0 0
      %1881 = vmatmul.mubr.bf16.gmra.mxu0 %v1762
      %v1882 = vpop.f32.mrf.mxu0
      %v1883 = vadd.f32 0.0, %v1882
      %v1884 = vpop.f32.mrf.mxu0
      %v1885 = vpop.f32.mrf.mxu0
      %v1886 = vadd.f32 0.0, %v1885
      %v1887 = vpop.f32.mrf.mxu0
      %1888 = vdwg.mxu0
      %v1889 = vadd.f32 %v1679, %v1851
      %v1890 = vadd.f32 %v1680, %v1854
      %v1891 = vadd.f32 %v1681, %v1859
      %v1892 = vadd.f32 %v1682, %v1862
      %v1893 = vadd.f32 %v1683, %v1867
      %v1894 = vadd.f32 %v1684, %v1870
      %v1895 = vadd.f32 %v1685, %v1875
      %v1896 = vadd.f32 %v1686, %v1878
      %v1897 = vadd.f32 %v1687, %v1883
      %v1898 = vadd.f32 %v1688, %v1886
      %v1899 = vld [vmem:[%s338 + $0x8] sm:$0x8]
      %v1900 = vld [vmem:[%s3 + $0x200] sm:$0xf]
      %v1901 = vld [vmem:[%s3 + $0x204] sm:$0xf]
      %v1902 = vld [vmem:[%s3 + $0x208] sm:$0xf]
      %v1903 = vld [vmem:[%s3 + $0x20c] sm:$0xf]
      %v1904 = vld [vmem:[%s3 + $0x210] sm:$0xf]
      %v1905 = vld [vmem:[%s3 + $0x214] sm:$0xf]
      %v1906 = vld [vmem:[%s3 + $0x218] sm:$0xf]
      %v1907 = vld [vmem:[%s3 + $0x21c] sm:$0xf]
      %v1908 = vld [vmem:[%s3 + $0x220] sm:$0xf]
      %v1909 = vld [vmem:[%s3 + $0x224] sm:$0xf]
      %v1910 = vld [vmem:[%s3 + $0x228] sm:$0xf]
      %v1911 = vld [vmem:[%s3 + $0x22c] sm:$0xf]
      %v1912 = vld [vmem:[%s3 + $0x230] sm:$0xf]
      %v1913 = vld [vmem:[%s3 + $0x234] sm:$0xf]
      %v1914 = vld [vmem:[%s3 + $0x238] sm:$0xf]
      %v1915 = vld [vmem:[%s3 + $0x23c] sm:$0xf]
      %v1917 = vunpack.c.l.b16 %v1899
      %v1918 = vpack.c.b16 %v1526, %v1917
      %vm1919 = vcmask 1044480
      %v1920 = vrot.slane %v1918, 3
      %v1921 = vrot.slane %v1537, 3
      %v1922 = vsel %vm1919, %v1920, %v1921
      %v1923 = vrot.slane %v1538, 3
      %v1924 = vsel %vm1919, %v1921, %v1923
      %v1925 = vrot.slane %v1539, 3
      %v1926 = vsel %vm1919, %v1923, %v1925
      %v1927 = vrot.slane %v1540, 3
      %v1928 = vsel %vm1919, %v1925, %v1927
      %v1929 = vrot.slane %v1708, 3
      %v1930 = vsel %vm1919, %v1927, %v1929
      %v1952 = vunpack.c.l.b16 %v1900
      %v1953 = vunpack.c.l.b16 %v1901
      %v1954 = vunpack.c.l.b16 %v1902
      %v1955 = vunpack.c.l.b16 %v1903
      %v1956 = vunpack.c.l.b16 %v1904
      %v1957 = vunpack.c.l.b16 %v1905
      %v1958 = vunpack.c.l.b16 %v1906
      %v1959 = vunpack.c.l.b16 %v1907
      %v1960 = vunpack.c.l.b16 %v1908
      %v1961 = vunpack.c.l.b16 %v1909
      %v1962 = vunpack.c.l.b16 %v1910
      %v1963 = vunpack.c.l.b16 %v1911
      %v1964 = vunpack.c.l.b16 %v1912
      %v1965 = vunpack.c.l.b16 %v1913
      %v1966 = vunpack.c.l.b16 %v1914
      %v1967 = vunpack.c.l.b16 %v1915
      %v1968 = vpack.c.b16 %v1953, %v1952
      %v1969 = vpack.c.b16 %v1955, %v1954
      %v1970 = vpack.c.b16 %v1957, %v1956
      %v1971 = vpack.c.b16 %v1959, %v1958
      %v1972 = vpack.c.b16 %v1961, %v1960
      %v1973 = vpack.c.b16 %v1963, %v1962
      %v1974 = vpack.c.b16 %v1965, %v1964
      %v1975 = vpack.c.b16 %v1967, %v1966
      %1984 = vmatprep.subr.bf16.mxu0 0
      %1985 = vmatpush1.bf16.msra.mxu0 %v1975
      %1986 = vmatprep.subr.bf16.mxu0 0
      %1987 = vmatpush1.bf16.msra.mxu0 %v1974
      %1988 = vmatprep.subr.bf16.mxu0 0
      %1989 = vmatpush1.bf16.msra.mxu0 %v1973
      %1990 = vmatprep.subr.bf16.mxu0 0
      %1991 = vmatpush1.bf16.msra.mxu0 %v1972
      %1992 = vmatprep.subr.bf16.mxu0 0
      %1993 = vmatpush1.bf16.msra.mxu0 %v1971
      %1994 = vmatprep.subr.bf16.mxu0 0
      %1995 = vmatpush1.bf16.msra.mxu0 %v1970
      %1996 = vmatprep.subr.bf16.mxu0 0
      %1997 = vmatpush1.bf16.msra.mxu0 %v1969
      %1998 = vmatprep.subr.bf16.mxu0 0
      %1999 = vmatpush1.bf16.msra.mxu0 %v1968
      %2000 = vmatprep.subr.bf16.mxu0 0
      %2001 = vmatpush2.bf16.msra.mxu0 0
      %2002 = vmatprep.subr.bf16.mxu0 0
      %2003 = vmatpush2.bf16.msra.mxu0 0
      %2004 = vmatprep.subr.bf16.mxu0 0
      %2005 = vmatpush2.bf16.msra.mxu0 0
      %2006 = vmatprep.subr.bf16.mxu0 0
      %2007 = vmatpush2.bf16.msra.mxu0 0
      %2008 = vmatprep.subr.bf16.mxu0 0
      %2009 = vmatpush2.bf16.msra.mxu0 0
      %2010 = vmatprep.subr.bf16.mxu0 0
      %2011 = vmatpush2.bf16.msra.mxu0 0
      %2012 = vmatprep.subr.bf16.mxu0 0
      %2013 = vmatpush2.bf16.msra.mxu0 0
      %2014 = vmatprep.subr.bf16.mxu0 0
      %2015 = vmatpush2.bf16.msra.mxu0 0
      %2016 = vmatprep.mubr.bf16.mxu0 0
      %2017 = vmatmul.mubr.bf16.gmra.mxu0 %v1922
      %v2018 = vpop.f32.mrf.mxu0
      %v2019 = vadd.f32 0.0, %v2018
      %v2020 = vpop.f32.mrf.mxu0
      %v2021 = vpop.f32.mrf.mxu0
      %v2022 = vadd.f32 0.0, %v2021
      %v2023 = vpop.f32.mrf.mxu0
      %2024 = vmatprep.mubr.bf16.mxu0 0
      %2025 = vmatmul.mubr.bf16.gmra.mxu0 %v1924
      %v2026 = vpop.f32.mrf.mxu0
      %v2027 = vadd.f32 0.0, %v2026
      %v2028 = vpop.f32.mrf.mxu0
      %v2029 = vpop.f32.mrf.mxu0
      %v2030 = vadd.f32 0.0, %v2029
      %v2031 = vpop.f32.mrf.mxu0
      %2032 = vmatprep.mubr.bf16.mxu0 0
      %2033 = vmatmul.mubr.bf16.gmra.mxu0 %v1926
      %v2034 = vpop.f32.mrf.mxu0
      %v2035 = vadd.f32 0.0, %v2034
      %v2036 = vpop.f32.mrf.mxu0
      %v2037 = vpop.f32.mrf.mxu0
      %v2038 = vadd.f32 0.0, %v2037
      %v2039 = vpop.f32.mrf.mxu0
      %2040 = vmatprep.mubr.bf16.mxu0 0
      %2041 = vmatmul.mubr.bf16.gmra.mxu0 %v1928
      %v2042 = vpop.f32.mrf.mxu0
      %v2043 = vadd.f32 0.0, %v2042
      %v2044 = vpop.f32.mrf.mxu0
      %v2045 = vpop.f32.mrf.mxu0
      %v2046 = vadd.f32 0.0, %v2045
      %v2047 = vpop.f32.mrf.mxu0
      %2048 = vmatprep.mubr.bf16.mxu0 0
      %2049 = vmatmul.mubr.bf16.gmra.mxu0 %v1930
      %v2050 = vpop.f32.mrf.mxu0
      %v2051 = vadd.f32 0.0, %v2050
      %v2052 = vpop.f32.mrf.mxu0
      %v2053 = vpop.f32.mrf.mxu0
      %v2054 = vadd.f32 0.0, %v2053
      %v2055 = vpop.f32.mrf.mxu0
      %2056 = vdwg.mxu0
      %v2057 = vadd.f32 %v1889, %v2019
      %v2058 = vadd.f32 %v1890, %v2022
      %v2059 = vadd.f32 %v1891, %v2027
      %v2060 = vadd.f32 %v1892, %v2030
      %v2061 = vadd.f32 %v1893, %v2035
      %v2062 = vadd.f32 %v1894, %v2038
      %v2063 = vadd.f32 %v1895, %v2043
      %v2064 = vadd.f32 %v1896, %v2046
      %v2065 = vadd.f32 %v1897, %v2051
      %v2066 = vadd.f32 %v1898, %v2054
      %v2067 = vld [vmem:[%s348] sm:$0xf]
      %v2068 = vld [vmem:[%s348 + $0x4] sm:$0xf]
      %v2069 = vld [vmem:[%s348 + $0x8] sm:$0xf]
      %v2070 = vld [vmem:[%s348 + $0xc] sm:$0xf]
      %v2071 = vld [vmem:[%s348 + $0x10] sm:$0xf]
      %v2072 = vld [vmem:[%s348 + $0x14] sm:$0xf]
      %v2073 = vld [vmem:[%s348 + $0x18] sm:$0xf]
      %v2074 = vld [vmem:[%s348 + $0x1c] sm:$0xf]
      %v2075 = vld [vmem:[%s348 + $0x20] sm:$0xf]
      %v2076 = vld [vmem:[%s348 + $0x24] sm:$0xf]
      %v2077 = vld [vmem:[%s3 + $0x240] sm:$0xf]
      %v2078 = vld [vmem:[%s3 + $0x244] sm:$0xf]
      %v2079 = vld [vmem:[%s3 + $0x248] sm:$0xf]
      %v2080 = vld [vmem:[%s3 + $0x24c] sm:$0xf]
      %v2081 = vld [vmem:[%s3 + $0x250] sm:$0xf]
      %v2082 = vld [vmem:[%s3 + $0x254] sm:$0xf]
      %v2083 = vld [vmem:[%s3 + $0x258] sm:$0xf]
      %v2084 = vld [vmem:[%s3 + $0x25c] sm:$0xf]
      %v2085 = vld [vmem:[%s3 + $0x260] sm:$0xf]
      %v2086 = vld [vmem:[%s3 + $0x264] sm:$0xf]
      %v2087 = vld [vmem:[%s3 + $0x268] sm:$0xf]
      %v2088 = vld [vmem:[%s3 + $0x26c] sm:$0xf]
      %v2089 = vld [vmem:[%s3 + $0x270] sm:$0xf]
      %v2090 = vld [vmem:[%s3 + $0x274] sm:$0xf]
      %v2091 = vld [vmem:[%s3 + $0x278] sm:$0xf]
      %v2092 = vld [vmem:[%s3 + $0x27c] sm:$0xf]
      %v2103 = vunpack.c.l.b16 %v2067
      %v2104 = vunpack.c.l.b16 %v2068
      %v2105 = vunpack.c.l.b16 %v2069
      %v2106 = vunpack.c.l.b16 %v2070
      %v2107 = vunpack.c.l.b16 %v2071
      %v2108 = vunpack.c.l.b16 %v2072
      %v2109 = vunpack.c.l.b16 %v2073
      %v2110 = vunpack.c.l.b16 %v2074
      %v2111 = vunpack.c.l.b16 %v2075
      %v2112 = vunpack.c.l.b16 %v2076
      %v2113 = vpack.c.b16 %v2104, %v2103
      %v2114 = vpack.c.b16 %v2106, %v2105
      %v2115 = vpack.c.b16 %v2108, %v2107
      %v2116 = vpack.c.b16 %v2110, %v2109
      %v2117 = vpack.c.b16 %v2112, %v2111
      %v2139 = vunpack.c.l.b16 %v2077
      %v2140 = vunpack.c.l.b16 %v2078
      %v2141 = vunpack.c.l.b16 %v2079
      %v2142 = vunpack.c.l.b16 %v2080
      %v2143 = vunpack.c.l.b16 %v2081
      %v2144 = vunpack.c.l.b16 %v2082
      %v2145 = vunpack.c.l.b16 %v2083
      %v2146 = vunpack.c.l.b16 %v2084
      %v2147 = vunpack.c.l.b16 %v2085
      %v2148 = vunpack.c.l.b16 %v2086
      %v2149 = vunpack.c.l.b16 %v2087
      %v2150 = vunpack.c.l.b16 %v2088
      %v2151 = vunpack.c.l.b16 %v2089
      %v2152 = vunpack.c.l.b16 %v2090
      %v2153 = vunpack.c.l.b16 %v2091
      %v2154 = vunpack.c.l.b16 %v2092
      %v2155 = vpack.c.b16 %v2140, %v2139
      %v2156 = vpack.c.b16 %v2142, %v2141
      %v2157 = vpack.c.b16 %v2144, %v2143
      %v2158 = vpack.c.b16 %v2146, %v2145
      %v2159 = vpack.c.b16 %v2148, %v2147
      %v2160 = vpack.c.b16 %v2150, %v2149
      %v2161 = vpack.c.b16 %v2152, %v2151
      %v2162 = vpack.c.b16 %v2154, %v2153
      %2171 = vmatprep.subr.bf16.mxu0 0
      %2172 = vmatpush1.bf16.msra.mxu0 %v2162
      %2173 = vmatprep.subr.bf16.mxu0 0
      %2174 = vmatpush1.bf16.msra.mxu0 %v2161
      %2175 = vmatprep.subr.bf16.mxu0 0
      %2176 = vmatpush1.bf16.msra.mxu0 %v2160
      %2177 = vmatprep.subr.bf16.mxu0 0
      %2178 = vmatpush1.bf16.msra.mxu0 %v2159
      %2179 = vmatprep.subr.bf16.mxu0 0
      %2180 = vmatpush1.bf16.msra.mxu0 %v2158
      %2181 = vmatprep.subr.bf16.mxu0 0
      %2182 = vmatpush1.bf16.msra.mxu0 %v2157
      %2183 = vmatprep.subr.bf16.mxu0 0
      %2184 = vmatpush1.bf16.msra.mxu0 %v2156
      %2185 = vmatprep.subr.bf16.mxu0 0
      %2186 = vmatpush1.bf16.msra.mxu0 %v2155
      %2187 = vmatprep.subr.bf16.mxu0 0
      %2188 = vmatpush2.bf16.msra.mxu0 0
      %2189 = vmatprep.subr.bf16.mxu0 0
      %2190 = vmatpush2.bf16.msra.mxu0 0
      %2191 = vmatprep.subr.bf16.mxu0 0
      %2192 = vmatpush2.bf16.msra.mxu0 0
      %2193 = vmatprep.subr.bf16.mxu0 0
      %2194 = vmatpush2.bf16.msra.mxu0 0
      %2195 = vmatprep.subr.bf16.mxu0 0
      %2196 = vmatpush2.bf16.msra.mxu0 0
      %2197 = vmatprep.subr.bf16.mxu0 0
      %2198 = vmatpush2.bf16.msra.mxu0 0
      %2199 = vmatprep.subr.bf16.mxu0 0
      %2200 = vmatpush2.bf16.msra.mxu0 0
      %2201 = vmatprep.subr.bf16.mxu0 0
      %2202 = vmatpush2.bf16.msra.mxu0 0
      %2203 = vmatprep.mubr.bf16.mxu0 0
      %2204 = vmatmul.mubr.bf16.gmra.mxu0 %v2113
      %v2205 = vpop.f32.mrf.mxu0
      %v2206 = vadd.f32 0.0, %v2205
      %v2207 = vpop.f32.mrf.mxu0
      %v2208 = vpop.f32.mrf.mxu0
      %v2209 = vadd.f32 0.0, %v2208
      %v2210 = vpop.f32.mrf.mxu0
      %2211 = vmatprep.mubr.bf16.mxu0 0
      %2212 = vmatmul.mubr.bf16.gmra.mxu0 %v2114
      %v2213 = vpop.f32.mrf.mxu0
      %v2214 = vadd.f32 0.0, %v2213
      %v2215 = vpop.f32.mrf.mxu0
      %v2216 = vpop.f32.mrf.mxu0
      %v2217 = vadd.f32 0.0, %v2216
      %v2218 = vpop.f32.mrf.mxu0
      %2219 = vmatprep.mubr.bf16.mxu0 0
      %2220 = vmatmul.mubr.bf16.gmra.mxu0 %v2115
      %v2221 = vpop.f32.mrf.mxu0
      %v2222 = vadd.f32 0.0, %v2221
      %v2223 = vpop.f32.mrf.mxu0
      %v2224 = vpop.f32.mrf.mxu0
      %v2225 = vadd.f32 0.0, %v2224
      %v2226 = vpop.f32.mrf.mxu0
      %2227 = vmatprep.mubr.bf16.mxu0 0
      %2228 = vmatmul.mubr.bf16.gmra.mxu0 %v2116
      %v2229 = vpop.f32.mrf.mxu0
      %v2230 = vadd.f32 0.0, %v2229
      %v2231 = vpop.f32.mrf.mxu0
      %v2232 = vpop.f32.mrf.mxu0
      %v2233 = vadd.f32 0.0, %v2232
      %v2234 = vpop.f32.mrf.mxu0
      %2235 = vmatprep.mubr.bf16.mxu0 0
      %2236 = vmatmul.mubr.bf16.gmra.mxu0 %v2117
      %v2237 = vpop.f32.mrf.mxu0
      %v2238 = vadd.f32 0.0, %v2237
      %v2239 = vpop.f32.mrf.mxu0
      %v2240 = vpop.f32.mrf.mxu0
      %v2241 = vadd.f32 0.0, %v2240
      %v2242 = vpop.f32.mrf.mxu0
      %2243 = vdwg.mxu0
      %v2244 = vadd.f32 %v2057, %v2206
      %v2245 = vadd.f32 %v2058, %v2209
      %v2246 = vadd.f32 %v2059, %v2214
      %v2247 = vadd.f32 %v2060, %v2217
      %v2248 = vadd.f32 %v2061, %v2222
      %v2249 = vadd.f32 %v2062, %v2225
      %v2250 = vadd.f32 %v2063, %v2230
      %v2251 = vadd.f32 %v2064, %v2233
      %v2252 = vadd.f32 %v2065, %v2238
      %v2253 = vadd.f32 %v2066, %v2241
      %v2254 = vld [vmem:[%s348] sm:$0xf]
      %v2255 = vld [vmem:[%s348 + $0x4] sm:$0xf]
      %v2256 = vld [vmem:[%s348 + $0x8] sm:$0xf]
      %v2257 = vld [vmem:[%s348 + $0xc] sm:$0xf]
      %v2258 = vld [vmem:[%s348 + $0x10] sm:$0xf]
      %v2259 = vld [vmem:[%s348 + $0x14] sm:$0xf]
      %v2260 = vld [vmem:[%s348 + $0x18] sm:$0xf]
      %v2261 = vld [vmem:[%s348 + $0x1c] sm:$0xf]
      %v2262 = vld [vmem:[%s348 + $0x20] sm:$0xf]
      %v2263 = vld [vmem:[%s348 + $0x24] sm:$0xf]
      %v2264 = vld [vmem:[%s348 + $0x28] sm:$0x1]
      %v2265 = vld [vmem:[%s3 + $0x280] sm:$0xf]
      %v2266 = vld [vmem:[%s3 + $0x284] sm:$0xf]
      %v2267 = vld [vmem:[%s3 + $0x288] sm:$0xf]
      %v2268 = vld [vmem:[%s3 + $0x28c] sm:$0xf]
      %v2269 = vld [vmem:[%s3 + $0x290] sm:$0xf]
      %v2270 = vld [vmem:[%s3 + $0x294] sm:$0xf]
      %v2271 = vld [vmem:[%s3 + $0x298] sm:$0xf]
      %v2272 = vld [vmem:[%s3 + $0x29c] sm:$0xf]
      %v2273 = vld [vmem:[%s3 + $0x2a0] sm:$0xf]
      %v2274 = vld [vmem:[%s3 + $0x2a4] sm:$0xf]
      %v2275 = vld [vmem:[%s3 + $0x2a8] sm:$0xf]
      %v2276 = vld [vmem:[%s3 + $0x2ac] sm:$0xf]
      %v2277 = vld [vmem:[%s3 + $0x2b0] sm:$0xf]
      %v2278 = vld [vmem:[%s3 + $0x2b4] sm:$0xf]
      %v2279 = vld [vmem:[%s3 + $0x2b8] sm:$0xf]
      %v2280 = vld [vmem:[%s3 + $0x2bc] sm:$0xf]
      %v2292 = vunpack.c.l.b16 %v2254
      %v2293 = vunpack.c.l.b16 %v2255
      %v2294 = vunpack.c.l.b16 %v2256
      %v2295 = vunpack.c.l.b16 %v2257
      %v2296 = vunpack.c.l.b16 %v2258
      %v2297 = vunpack.c.l.b16 %v2259
      %v2298 = vunpack.c.l.b16 %v2260
      %v2299 = vunpack.c.l.b16 %v2261
      %v2300 = vunpack.c.l.b16 %v2262
      %v2301 = vunpack.c.l.b16 %v2263
      %v2302 = vunpack.c.l.b16 %v2264
      %v2303 = vpack.c.b16 %v2293, %v2292
      %v2304 = vpack.c.b16 %v2295, %v2294
      %v2305 = vpack.c.b16 %v2297, %v2296
      %v2306 = vpack.c.b16 %v2299, %v2298
      %v2307 = vpack.c.b16 %v2301, %v2300
      %v2308 = vpack.c.b16 %v2302, %v2302
      %v2310 = vshrl.u32 %v2303, 16
      %v2312 = vshll.u32 %v2303, 16
      %v2314 = vrot.slane %v2312, 1
      %v2315 = vor.u32 %v2310, %v2314
      %v2317 = vshll.u32 %v2304, 16
      %v2319 = vrot.slane %v2317, 1
      %v2320 = vsel %vm442, %v2315, %v2319
      %v2321 = vshrl.u32 %v2304, 16
      %v2323 = vor.u32 %v2321, %v2319
      %v2325 = vshll.u32 %v2305, 16
      %v2327 = vrot.slane %v2325, 1
      %v2328 = vsel %vm442, %v2323, %v2327
      %v2329 = vshrl.u32 %v2305, 16
      %v2331 = vor.u32 %v2329, %v2327
      %v2333 = vshll.u32 %v2306, 16
      %v2335 = vrot.slane %v2333, 1
      %v2336 = vsel %vm442, %v2331, %v2335
      %v2337 = vshrl.u32 %v2306, 16
      %v2339 = vor.u32 %v2337, %v2335
      %v2341 = vshll.u32 %v2307, 16
      %v2343 = vrot.slane %v2341, 1
      %v2344 = vsel %vm442, %v2339, %v2343
      %v2345 = vshrl.u32 %v2307, 16
      %v2347 = vor.u32 %v2345, %v2343
      %v2349 = vshll.u32 %v2308, 16
      %v2351 = vrot.slane %v2349, 1
      %v2352 = vsel %vm442, %v2347, %v2351
      %v2374 = vunpack.c.l.b16 %v2265
      %v2375 = vunpack.c.l.b16 %v2266
      %v2376 = vunpack.c.l.b16 %v2267
      %v2377 = vunpack.c.l.b16 %v2268
      %v2378 = vunpack.c.l.b16 %v2269
      %v2379 = vunpack.c.l.b16 %v2270
      %v2380 = vunpack.c.l.b16 %v2271
      %v2381 = vunpack.c.l.b16 %v2272
      %v2382 = vunpack.c.l.b16 %v2273
      %v2383 = vunpack.c.l.b16 %v2274
      %v2384 = vunpack.c.l.b16 %v2275
      %v2385 = vunpack.c.l.b16 %v2276
      %v2386 = vunpack.c.l.b16 %v2277
      %v2387 = vunpack.c.l.b16 %v2278
      %v2388 = vunpack.c.l.b16 %v2279
      %v2389 = vunpack.c.l.b16 %v2280
      %v2390 = vpack.c.b16 %v2375, %v2374
      %v2391 = vpack.c.b16 %v2377, %v2376
      %v2392 = vpack.c.b16 %v2379, %v2378
      %v2393 = vpack.c.b16 %v2381, %v2380
      %v2394 = vpack.c.b16 %v2383, %v2382
      %v2395 = vpack.c.b16 %v2385, %v2384
      %v2396 = vpack.c.b16 %v2387, %v2386
      %v2397 = vpack.c.b16 %v2389, %v2388
      %2406 = vmatprep.subr.bf16.mxu0 0
      %2407 = vmatpush1.bf16.msra.mxu0 %v2397
      %2408 = vmatprep.subr.bf16.mxu0 0
      %2409 = vmatpush1.bf16.msra.mxu0 %v2396
      %2410 = vmatprep.subr.bf16.mxu0 0
      %2411 = vmatpush1.bf16.msra.mxu0 %v2395
      %2412 = vmatprep.subr.bf16.mxu0 0
      %2413 = vmatpush1.bf16.msra.mxu0 %v2394
      %2414 = vmatprep.subr.bf16.mxu0 0
      %2415 = vmatpush1.bf16.msra.mxu0 %v2393
      %2416 = vmatprep.subr.bf16.mxu0 0
      %2417 = vmatpush1.bf16.msra.mxu0 %v2392
      %2418 = vmatprep.subr.bf16.mxu0 0
      %2419 = vmatpush1.bf16.msra.mxu0 %v2391
      %2420 = vmatprep.subr.bf16.mxu0 0
      %2421 = vmatpush1.bf16.msra.mxu0 %v2390
      %2422 = vmatprep.subr.bf16.mxu0 0
      %2423 = vmatpush2.bf16.msra.mxu0 0
      %2424 = vmatprep.subr.bf16.mxu0 0
      %2425 = vmatpush2.bf16.msra.mxu0 0
      %2426 = vmatprep.subr.bf16.mxu0 0
      %2427 = vmatpush2.bf16.msra.mxu0 0
      %2428 = vmatprep.subr.bf16.mxu0 0
      %2429 = vmatpush2.bf16.msra.mxu0 0
      %2430 = vmatprep.subr.bf16.mxu0 0
      %2431 = vmatpush2.bf16.msra.mxu0 0
      %2432 = vmatprep.subr.bf16.mxu0 0
      %2433 = vmatpush2.bf16.msra.mxu0 0
      %2434 = vmatprep.subr.bf16.mxu0 0
      %2435 = vmatpush2.bf16.msra.mxu0 0
      %2436 = vmatprep.subr.bf16.mxu0 0
      %2437 = vmatpush2.bf16.msra.mxu0 0
      %2438 = vmatprep.mubr.bf16.mxu0 0
      %2439 = vmatmul.mubr.bf16.gmra.mxu0 %v2320
      %v2440 = vpop.f32.mrf.mxu0
      %v2441 = vadd.f32 0.0, %v2440
      %v2442 = vpop.f32.mrf.mxu0
      %v2443 = vpop.f32.mrf.mxu0
      %v2444 = vadd.f32 0.0, %v2443
      %v2445 = vpop.f32.mrf.mxu0
      %2446 = vmatprep.mubr.bf16.mxu0 0
      %2447 = vmatmul.mubr.bf16.gmra.mxu0 %v2328
      %v2448 = vpop.f32.mrf.mxu0
      %v2449 = vadd.f32 0.0, %v2448
      %v2450 = vpop.f32.mrf.mxu0
      %v2451 = vpop.f32.mrf.mxu0
      %v2452 = vadd.f32 0.0, %v2451
      %v2453 = vpop.f32.mrf.mxu0
      %2454 = vmatprep.mubr.bf16.mxu0 0
      %2455 = vmatmul.mubr.bf16.gmra.mxu0 %v2336
      %v2456 = vpop.f32.mrf.mxu0
      %v2457 = vadd.f32 0.0, %v2456
      %v2458 = vpop.f32.mrf.mxu0
      %v2459 = vpop.f32.mrf.mxu0
      %v2460 = vadd.f32 0.0, %v2459
      %v2461 = vpop.f32.mrf.mxu0
      %2462 = vmatprep.mubr.bf16.mxu0 0
      %2463 = vmatmul.mubr.bf16.gmra.mxu0 %v2344
      %v2464 = vpop.f32.mrf.mxu0
      %v2465 = vadd.f32 0.0, %v2464
      %v2466 = vpop.f32.mrf.mxu0
      %v2467 = vpop.f32.mrf.mxu0
      %v2468 = vadd.f32 0.0, %v2467
      %v2469 = vpop.f32.mrf.mxu0
      %2470 = vmatprep.mubr.bf16.mxu0 0
      %2471 = vmatmul.mubr.bf16.gmra.mxu0 %v2352
      %v2472 = vpop.f32.mrf.mxu0
      %v2473 = vadd.f32 0.0, %v2472
      %v2474 = vpop.f32.mrf.mxu0
      %v2475 = vpop.f32.mrf.mxu0
      %v2476 = vadd.f32 0.0, %v2475
      %v2477 = vpop.f32.mrf.mxu0
      %2478 = vdwg.mxu0
      %v2479 = vadd.f32 %v2244, %v2441
      %v2480 = vadd.f32 %v2245, %v2444
      %v2481 = vadd.f32 %v2246, %v2449
      %v2482 = vadd.f32 %v2247, %v2452
      %v2483 = vadd.f32 %v2248, %v2457
      %v2484 = vadd.f32 %v2249, %v2460
      %v2485 = vadd.f32 %v2250, %v2465
      %v2486 = vadd.f32 %v2251, %v2468
      %v2487 = vadd.f32 %v2252, %v2473
      %v2488 = vadd.f32 %v2253, %v2476
      %v2489 = vld [vmem:[%s348] sm:$0xe]
      %v2490 = vld [vmem:[%s3 + $0x2c0] sm:$0xf]
      %v2491 = vld [vmem:[%s3 + $0x2c4] sm:$0xf]
      %v2492 = vld [vmem:[%s3 + $0x2c8] sm:$0xf]
      %v2493 = vld [vmem:[%s3 + $0x2cc] sm:$0xf]
      %v2494 = vld [vmem:[%s3 + $0x2d0] sm:$0xf]
      %v2495 = vld [vmem:[%s3 + $0x2d4] sm:$0xf]
      %v2496 = vld [vmem:[%s3 + $0x2d8] sm:$0xf]
      %v2497 = vld [vmem:[%s3 + $0x2dc] sm:$0xf]
      %v2498 = vld [vmem:[%s3 + $0x2e0] sm:$0xf]
      %v2499 = vld [vmem:[%s3 + $0x2e4] sm:$0xf]
      %v2500 = vld [vmem:[%s3 + $0x2e8] sm:$0xf]
      %v2501 = vld [vmem:[%s3 + $0x2ec] sm:$0xf]
      %v2502 = vld [vmem:[%s3 + $0x2f0] sm:$0xf]
      %v2503 = vld [vmem:[%s3 + $0x2f4] sm:$0xf]
      %v2504 = vld [vmem:[%s3 + $0x2f8] sm:$0xf]
      %v2505 = vld [vmem:[%s3 + $0x2fc] sm:$0xf]
      %v2507 = vunpack.c.l.b16 %v2489
      %v2508 = vpack.c.b16 %v2293, %v2507
      %v2509 = vrot.slane %v2508, 1
      %v2510 = vrot.slane %v2304, 1
      %v2511 = vsel %vm759, %v2509, %v2510
      %v2512 = vrot.slane %v2305, 1
      %v2513 = vsel %vm759, %v2510, %v2512
      %v2514 = vrot.slane %v2306, 1
      %v2515 = vsel %vm759, %v2512, %v2514
      %v2516 = vrot.slane %v2307, 1
      %v2517 = vsel %vm759, %v2514, %v2516
      %v2518 = vrot.slane %v2308, 1
      %v2519 = vsel %vm759, %v2516, %v2518
      %v2541 = vunpack.c.l.b16 %v2490
      %v2542 = vunpack.c.l.b16 %v2491
      %v2543 = vunpack.c.l.b16 %v2492
      %v2544 = vunpack.c.l.b16 %v2493
      %v2545 = vunpack.c.l.b16 %v2494
      %v2546 = vunpack.c.l.b16 %v2495
      %v2547 = vunpack.c.l.b16 %v2496
      %v2548 = vunpack.c.l.b16 %v2497
      %v2549 = vunpack.c.l.b16 %v2498
      %v2550 = vunpack.c.l.b16 %v2499
      %v2551 = vunpack.c.l.b16 %v2500
      %v2552 = vunpack.c.l.b16 %v2501
      %v2553 = vunpack.c.l.b16 %v2502
      %v2554 = vunpack.c.l.b16 %v2503
      %v2555 = vunpack.c.l.b16 %v2504
      %v2556 = vunpack.c.l.b16 %v2505
      %v2557 = vpack.c.b16 %v2542, %v2541
      %v2558 = vpack.c.b16 %v2544, %v2543
      %v2559 = vpack.c.b16 %v2546, %v2545
      %v2560 = vpack.c.b16 %v2548, %v2547
      %v2561 = vpack.c.b16 %v2550, %v2549
      %v2562 = vpack.c.b16 %v2552, %v2551
      %v2563 = vpack.c.b16 %v2554, %v2553
      %v2564 = vpack.c.b16 %v2556, %v2555
      %2573 = vmatprep.subr.bf16.mxu0 0
      %2574 = vmatpush1.bf16.msra.mxu0 %v2564
      %2575 = vmatprep.subr.bf16.mxu0 0
      %2576 = vmatpush1.bf16.msra.mxu0 %v2563
      %2577 = vmatprep.subr.bf16.mxu0 0
      %2578 = vmatpush1.bf16.msra.mxu0 %v2562
      %2579 = vmatprep.subr.bf16.mxu0 0
      %2580 = vmatpush1.bf16.msra.mxu0 %v2561
      %2581 = vmatprep.subr.bf16.mxu0 0
      %2582 = vmatpush1.bf16.msra.mxu0 %v2560
      %2583 = vmatprep.subr.bf16.mxu0 0
      %2584 = vmatpush1.bf16.msra.mxu0 %v2559
      %2585 = vmatprep.subr.bf16.mxu0 0
      %2586 = vmatpush1.bf16.msra.mxu0 %v2558
      %2587 = vmatprep.subr.bf16.mxu0 0
      %2588 = vmatpush1.bf16.msra.mxu0 %v2557
      %2589 = vmatprep.subr.bf16.mxu0 0
      %2590 = vmatpush2.bf16.msra.mxu0 0
      %2591 = vmatprep.subr.bf16.mxu0 0
      %2592 = vmatpush2.bf16.msra.mxu0 0
      %2593 = vmatprep.subr.bf16.mxu0 0
      %2594 = vmatpush2.bf16.msra.mxu0 0
      %2595 = vmatprep.subr.bf16.mxu0 0
      %2596 = vmatpush2.bf16.msra.mxu0 0
      %2597 = vmatprep.subr.bf16.mxu0 0
      %2598 = vmatpush2.bf16.msra.mxu0 0
      %2599 = vmatprep.subr.bf16.mxu0 0
      %2600 = vmatpush2.bf16.msra.mxu0 0
      %2601 = vmatprep.subr.bf16.mxu0 0
      %2602 = vmatpush2.bf16.msra.mxu0 0
      %2603 = vmatprep.subr.bf16.mxu0 0
      %2604 = vmatpush2.bf16.msra.mxu0 0
      %2605 = vmatprep.mubr.bf16.mxu0 0
      %2606 = vmatmul.mubr.bf16.gmra.mxu0 %v2511
      %v2607 = vpop.f32.mrf.mxu0
      %v2608 = vadd.f32 0.0, %v2607
      %v2609 = vpop.f32.mrf.mxu0
      %v2610 = vpop.f32.mrf.mxu0
      %v2611 = vadd.f32 0.0, %v2610
      %v2612 = vpop.f32.mrf.mxu0
      %2613 = vmatprep.mubr.bf16.mxu0 0
      %2614 = vmatmul.mubr.bf16.gmra.mxu0 %v2513
      %v2615 = vpop.f32.mrf.mxu0
      %v2616 = vadd.f32 0.0, %v2615
      %v2617 = vpop.f32.mrf.mxu0
      %v2618 = vpop.f32.mrf.mxu0
      %v2619 = vadd.f32 0.0, %v2618
      %v2620 = vpop.f32.mrf.mxu0
      %2621 = vmatprep.mubr.bf16.mxu0 0
      %2622 = vmatmul.mubr.bf16.gmra.mxu0 %v2515
      %v2623 = vpop.f32.mrf.mxu0
      %v2624 = vadd.f32 0.0, %v2623
      %v2625 = vpop.f32.mrf.mxu0
      %v2626 = vpop.f32.mrf.mxu0
      %v2627 = vadd.f32 0.0, %v2626
      %v2628 = vpop.f32.mrf.mxu0
      %2629 = vmatprep.mubr.bf16.mxu0 0
      %2630 = vmatmul.mubr.bf16.gmra.mxu0 %v2517
      %v2631 = vpop.f32.mrf.mxu0
      %v2632 = vadd.f32 0.0, %v2631
      %v2633 = vpop.f32.mrf.mxu0
      %v2634 = vpop.f32.mrf.mxu0
      %v2635 = vadd.f32 0.0, %v2634
      %v2636 = vpop.f32.mrf.mxu0
      %2637 = vmatprep.mubr.bf16.mxu0 0
      %2638 = vmatmul.mubr.bf16.gmra.mxu0 %v2519
      %v2639 = vpop.f32.mrf.mxu0
      %v2640 = vadd.f32 0.0, %v2639
      %v2641 = vpop.f32.mrf.mxu0
      %v2642 = vpop.f32.mrf.mxu0
      %v2643 = vadd.f32 0.0, %v2642
      %v2644 = vpop.f32.mrf.mxu0
      %2645 = vdwg.mxu0
      %v2646 = vadd.f32 %v2479, %v2608
      %v2647 = vadd.f32 %v2480, %v2611
      %v2648 = vadd.f32 %v2481, %v2616
      %v2649 = vadd.f32 %v2482, %v2619
      %v2650 = vadd.f32 %v2483, %v2624
      %v2651 = vadd.f32 %v2484, %v2627
      %v2652 = vadd.f32 %v2485, %v2632
      %v2653 = vadd.f32 %v2486, %v2635
      %v2654 = vadd.f32 %v2487, %v2640
      %v2655 = vadd.f32 %v2488, %v2643
      %v2656 = vld [vmem:[%s348 + $0x4] sm:$0xe]
      %v2657 = vld [vmem:[%s348 + $0x8] sm:$0xf]
      %v2658 = vld [vmem:[%s348 + $0xc] sm:$0xf]
      %v2659 = vld [vmem:[%s348 + $0x10] sm:$0xf]
      %v2660 = vld [vmem:[%s348 + $0x14] sm:$0xf]
      %v2661 = vld [vmem:[%s348 + $0x18] sm:$0xf]
      %v2662 = vld [vmem:[%s348 + $0x1c] sm:$0xf]
      %v2663 = vld [vmem:[%s348 + $0x20] sm:$0xf]
      %v2664 = vld [vmem:[%s348 + $0x24] sm:$0xf]
      %v2665 = vld [vmem:[%s348 + $0x28] sm:$0xf]
      %v2666 = vld [vmem:[%s348 + $0x2c] sm:$0x1]
      %v2667 = vld [vmem:[%s3 + $0x300] sm:$0xf]
      %v2668 = vld [vmem:[%s3 + $0x304] sm:$0xf]
      %v2669 = vld [vmem:[%s3 + $0x308] sm:$0xf]
      %v2670 = vld [vmem:[%s3 + $0x30c] sm:$0xf]
      %v2671 = vld [vmem:[%s3 + $0x310] sm:$0xf]
      %v2672 = vld [vmem:[%s3 + $0x314] sm:$0xf]
      %v2673 = vld [vmem:[%s3 + $0x318] sm:$0xf]
      %v2674 = vld [vmem:[%s3 + $0x31c] sm:$0xf]
      %v2675 = vld [vmem:[%s3 + $0x320] sm:$0xf]
      %v2676 = vld [vmem:[%s3 + $0x324] sm:$0xf]
      %v2677 = vld [vmem:[%s3 + $0x328] sm:$0xf]
      %v2678 = vld [vmem:[%s3 + $0x32c] sm:$0xf]
      %v2679 = vld [vmem:[%s3 + $0x330] sm:$0xf]
      %v2680 = vld [vmem:[%s3 + $0x334] sm:$0xf]
      %v2681 = vld [vmem:[%s3 + $0x338] sm:$0xf]
      %v2682 = vld [vmem:[%s3 + $0x33c] sm:$0xf]
      %v2694 = vunpack.c.l.b16 %v2656
      %v2695 = vunpack.c.l.b16 %v2657
      %v2696 = vunpack.c.l.b16 %v2658
      %v2697 = vunpack.c.l.b16 %v2659
      %v2698 = vunpack.c.l.b16 %v2660
      %v2699 = vunpack.c.l.b16 %v2661
      %v2700 = vunpack.c.l.b16 %v2662
      %v2701 = vunpack.c.l.b16 %v2663
      %v2702 = vunpack.c.l.b16 %v2664
      %v2703 = vunpack.c.l.b16 %v2665
      %v2704 = vunpack.c.l.b16 %v2666
      %v2705 = vpack.c.b16 %v2695, %v2694
      %v2706 = vpack.c.b16 %v2697, %v2696
      %v2707 = vpack.c.b16 %v2699, %v2698
      %v2708 = vpack.c.b16 %v2701, %v2700
      %v2709 = vpack.c.b16 %v2703, %v2702
      %v2710 = vpack.c.b16 %v2704, %v2704
      %v2711 = vrot.slane %v2705, 1
      %v2712 = vrot.slane %v2706, 1
      %v2713 = vsel %vm759, %v2711, %v2712
      %v2714 = vrot.slane %v2707, 1
      %v2715 = vsel %vm759, %v2712, %v2714
      %v2716 = vrot.slane %v2708, 1
      %v2717 = vsel %vm759, %v2714, %v2716
      %v2718 = vrot.slane %v2709, 1
      %v2719 = vsel %vm759, %v2716, %v2718
      %v2720 = vrot.slane %v2710, 1
      %v2721 = vsel %vm759, %v2718, %v2720
      %v2743 = vunpack.c.l.b16 %v2667
      %v2744 = vunpack.c.l.b16 %v2668
      %v2745 = vunpack.c.l.b16 %v2669
      %v2746 = vunpack.c.l.b16 %v2670
      %v2747 = vunpack.c.l.b16 %v2671
      %v2748 = vunpack.c.l.b16 %v2672
      %v2749 = vunpack.c.l.b16 %v2673
      %v2750 = vunpack.c.l.b16 %v2674
      %v2751 = vunpack.c.l.b16 %v2675
      %v2752 = vunpack.c.l.b16 %v2676
      %v2753 = vunpack.c.l.b16 %v2677
      %v2754 = vunpack.c.l.b16 %v2678
      %v2755 = vunpack.c.l.b16 %v2679
      %v2756 = vunpack.c.l.b16 %v2680
      %v2757 = vunpack.c.l.b16 %v2681
      %v2758 = vunpack.c.l.b16 %v2682
      %v2759 = vpack.c.b16 %v2744, %v2743
      %v2760 = vpack.c.b16 %v2746, %v2745
      %v2761 = vpack.c.b16 %v2748, %v2747
      %v2762 = vpack.c.b16 %v2750, %v2749
      %v2763 = vpack.c.b16 %v2752, %v2751
      %v2764 = vpack.c.b16 %v2754, %v2753
      %v2765 = vpack.c.b16 %v2756, %v2755
      %v2766 = vpack.c.b16 %v2758, %v2757
      %2775 = vmatprep.subr.bf16.mxu0 0
      %2776 = vmatpush1.bf16.msra.mxu0 %v2766
      %2777 = vmatprep.subr.bf16.mxu0 0
      %2778 = vmatpush1.bf16.msra.mxu0 %v2765
      %2779 = vmatprep.subr.bf16.mxu0 0
      %2780 = vmatpush1.bf16.msra.mxu0 %v2764
      %2781 = vmatprep.subr.bf16.mxu0 0
      %2782 = vmatpush1.bf16.msra.mxu0 %v2763
      %2783 = vmatprep.subr.bf16.mxu0 0
      %2784 = vmatpush1.bf16.msra.mxu0 %v2762
      %2785 = vmatprep.subr.bf16.mxu0 0
      %2786 = vmatpush1.bf16.msra.mxu0 %v2761
      %2787 = vmatprep.subr.bf16.mxu0 0
      %2788 = vmatpush1.bf16.msra.mxu0 %v2760
      %2789 = vmatprep.subr.bf16.mxu0 0
      %2790 = vmatpush1.bf16.msra.mxu0 %v2759
      %2791 = vmatprep.subr.bf16.mxu0 0
      %2792 = vmatpush2.bf16.msra.mxu0 0
      %2793 = vmatprep.subr.bf16.mxu0 0
      %2794 = vmatpush2.bf16.msra.mxu0 0
      %2795 = vmatprep.subr.bf16.mxu0 0
      %2796 = vmatpush2.bf16.msra.mxu0 0
      %2797 = vmatprep.subr.bf16.mxu0 0
      %2798 = vmatpush2.bf16.msra.mxu0 0
      %2799 = vmatprep.subr.bf16.mxu0 0
      %2800 = vmatpush2.bf16.msra.mxu0 0
      %2801 = vmatprep.subr.bf16.mxu0 0
      %2802 = vmatpush2.bf16.msra.mxu0 0
      %2803 = vmatprep.subr.bf16.mxu0 0
      %2804 = vmatpush2.bf16.msra.mxu0 0
      %2805 = vmatprep.subr.bf16.mxu0 0
      %2806 = vmatpush2.bf16.msra.mxu0 0
      %2807 = vmatprep.mubr.bf16.mxu0 0
      %2808 = vmatmul.mubr.bf16.gmra.mxu0 %v2713
      %v2809 = vpop.f32.mrf.mxu0
      %v2810 = vadd.f32 0.0, %v2809
      %v2811 = vpop.f32.mrf.mxu0
      %v2812 = vpop.f32.mrf.mxu0
      %v2813 = vadd.f32 0.0, %v2812
      %v2814 = vpop.f32.mrf.mxu0
      %2815 = vmatprep.mubr.bf16.mxu0 0
      %2816 = vmatmul.mubr.bf16.gmra.mxu0 %v2715
      %v2817 = vpop.f32.mrf.mxu0
      %v2818 = vadd.f32 0.0, %v2817
      %v2819 = vpop.f32.mrf.mxu0
      %v2820 = vpop.f32.mrf.mxu0
      %v2821 = vadd.f32 0.0, %v2820
      %v2822 = vpop.f32.mrf.mxu0
      %2823 = vmatprep.mubr.bf16.mxu0 0
      %2824 = vmatmul.mubr.bf16.gmra.mxu0 %v2717
      %v2825 = vpop.f32.mrf.mxu0
      %v2826 = vadd.f32 0.0, %v2825
      %v2827 = vpop.f32.mrf.mxu0
      %v2828 = vpop.f32.mrf.mxu0
      %v2829 = vadd.f32 0.0, %v2828
      %v2830 = vpop.f32.mrf.mxu0
      %2831 = vmatprep.mubr.bf16.mxu0 0
      %2832 = vmatmul.mubr.bf16.gmra.mxu0 %v2719
      %v2833 = vpop.f32.mrf.mxu0
      %v2834 = vadd.f32 0.0, %v2833
      %v2835 = vpop.f32.mrf.mxu0
      %v2836 = vpop.f32.mrf.mxu0
      %v2837 = vadd.f32 0.0, %v2836
      %v2838 = vpop.f32.mrf.mxu0
      %2839 = vmatprep.mubr.bf16.mxu0 0
      %2840 = vmatmul.mubr.bf16.gmra.mxu0 %v2721
      %v2841 = vpop.f32.mrf.mxu0
      %v2842 = vadd.f32 0.0, %v2841
      %v2843 = vpop.f32.mrf.mxu0
      %v2844 = vpop.f32.mrf.mxu0
      %v2845 = vadd.f32 0.0, %v2844
      %v2846 = vpop.f32.mrf.mxu0
      %2847 = vdwg.mxu0
      %v2848 = vadd.f32 %v2646, %v2810
      %v2849 = vadd.f32 %v2647, %v2813
      %v2850 = vadd.f32 %v2648, %v2818
      %v2851 = vadd.f32 %v2649, %v2821
      %v2852 = vadd.f32 %v2650, %v2826
      %v2853 = vadd.f32 %v2651, %v2829
      %v2854 = vadd.f32 %v2652, %v2834
      %v2855 = vadd.f32 %v2653, %v2837
      %v2856 = vadd.f32 %v2654, %v2842
      %v2857 = vadd.f32 %v2655, %v2845
      %v2858 = vld [vmem:[%s348 + $0x2c] sm:$0x3]
      %v2859 = vld [vmem:[%s3 + $0x340] sm:$0xf]
      %v2860 = vld [vmem:[%s3 + $0x344] sm:$0xf]
      %v2861 = vld [vmem:[%s3 + $0x348] sm:$0xf]
      %v2862 = vld [vmem:[%s3 + $0x34c] sm:$0xf]
      %v2863 = vld [vmem:[%s3 + $0x350] sm:$0xf]
      %v2864 = vld [vmem:[%s3 + $0x354] sm:$0xf]
      %v2865 = vld [vmem:[%s3 + $0x358] sm:$0xf]
      %v2866 = vld [vmem:[%s3 + $0x35c] sm:$0xf]
      %v2867 = vld [vmem:[%s3 + $0x360] sm:$0xf]
      %v2868 = vld [vmem:[%s3 + $0x364] sm:$0xf]
      %v2869 = vld [vmem:[%s3 + $0x368] sm:$0xf]
      %v2870 = vld [vmem:[%s3 + $0x36c] sm:$0xf]
      %v2871 = vld [vmem:[%s3 + $0x370] sm:$0xf]
      %v2872 = vld [vmem:[%s3 + $0x374] sm:$0xf]
      %v2873 = vld [vmem:[%s3 + $0x378] sm:$0xf]
      %v2874 = vld [vmem:[%s3 + $0x37c] sm:$0xf]
      %v2876 = vunpack.c.l.b16 %v2858
      %v2877 = vpack.c.b16 %v2876, %v2876
      %v2879 = vshrl.u32 %v2705, 16
      %v2881 = vrot.slane %v2879, 1
      %v2882 = vshll.u32 %v2705, 16
      %v2884 = vrot.slane %v2882, 2
      %v2885 = vor.u32 %v2881, %v2884
      %v2887 = vshrl.u32 %v2706, 16
      %v2889 = vrot.slane %v2887, 1
      %v2890 = vshll.u32 %v2706, 16
      %v2892 = vrot.slane %v2890, 2
      %v2893 = vor.u32 %v2889, %v2892
      %v2894 = vsel %vm1129, %v2885, %v2893
      %v2896 = vshrl.u32 %v2707, 16
      %v2898 = vrot.slane %v2896, 1
      %v2899 = vshll.u32 %v2707, 16
      %v2901 = vrot.slane %v2899, 2
      %v2902 = vor.u32 %v2898, %v2901
      %v2903 = vsel %vm1129, %v2893, %v2902
      %v2905 = vshrl.u32 %v2708, 16
      %v2907 = vrot.slane %v2905, 1
      %v2908 = vshll.u32 %v2708, 16
      %v2910 = vrot.slane %v2908, 2
      %v2911 = vor.u32 %v2907, %v2910
      %v2912 = vsel %vm1129, %v2902, %v2911
      %v2914 = vshrl.u32 %v2709, 16
      %v2916 = vrot.slane %v2914, 1
      %v2917 = vshll.u32 %v2709, 16
      %v2919 = vrot.slane %v2917, 2
      %v2920 = vor.u32 %v2916, %v2919
      %v2921 = vsel %vm1129, %v2911, %v2920
      %v2923 = vshrl.u32 %v2877, 16
      %v2925 = vrot.slane %v2923, 1
      %v2926 = vshll.u32 %v2877, 16
      %v2928 = vrot.slane %v2926, 2
      %v2929 = vor.u32 %v2925, %v2928
      %v2930 = vsel %vm1129, %v2920, %v2929
      %v2952 = vunpack.c.l.b16 %v2859
      %v2953 = vunpack.c.l.b16 %v2860
      %v2954 = vunpack.c.l.b16 %v2861
      %v2955 = vunpack.c.l.b16 %v2862
      %v2956 = vunpack.c.l.b16 %v2863
      %v2957 = vunpack.c.l.b16 %v2864
      %v2958 = vunpack.c.l.b16 %v2865
      %v2959 = vunpack.c.l.b16 %v2866
      %v2960 = vunpack.c.l.b16 %v2867
      %v2961 = vunpack.c.l.b16 %v2868
      %v2962 = vunpack.c.l.b16 %v2869
      %v2963 = vunpack.c.l.b16 %v2870
      %v2964 = vunpack.c.l.b16 %v2871
      %v2965 = vunpack.c.l.b16 %v2872
      %v2966 = vunpack.c.l.b16 %v2873
      %v2967 = vunpack.c.l.b16 %v2874
      %v2968 = vpack.c.b16 %v2953, %v2952
      %v2969 = vpack.c.b16 %v2955, %v2954
      %v2970 = vpack.c.b16 %v2957, %v2956
      %v2971 = vpack.c.b16 %v2959, %v2958
      %v2972 = vpack.c.b16 %v2961, %v2960
      %v2973 = vpack.c.b16 %v2963, %v2962
      %v2974 = vpack.c.b16 %v2965, %v2964
      %v2975 = vpack.c.b16 %v2967, %v2966
      %2984 = vmatprep.subr.bf16.mxu0 0
      %2985 = vmatpush1.bf16.msra.mxu0 %v2975
      %2986 = vmatprep.subr.bf16.mxu0 0
      %2987 = vmatpush1.bf16.msra.mxu0 %v2974
      %2988 = vmatprep.subr.bf16.mxu0 0
      %2989 = vmatpush1.bf16.msra.mxu0 %v2973
      %2990 = vmatprep.subr.bf16.mxu0 0
      %2991 = vmatpush1.bf16.msra.mxu0 %v2972
      %2992 = vmatprep.subr.bf16.mxu0 0
      %2993 = vmatpush1.bf16.msra.mxu0 %v2971
      %2994 = vmatprep.subr.bf16.mxu0 0
      %2995 = vmatpush1.bf16.msra.mxu0 %v2970
      %2996 = vmatprep.subr.bf16.mxu0 0
      %2997 = vmatpush1.bf16.msra.mxu0 %v2969
      %2998 = vmatprep.subr.bf16.mxu0 0
      %2999 = vmatpush1.bf16.msra.mxu0 %v2968
      %3000 = vmatprep.subr.bf16.mxu0 0
      %3001 = vmatpush2.bf16.msra.mxu0 0
      %3002 = vmatprep.subr.bf16.mxu0 0
      %3003 = vmatpush2.bf16.msra.mxu0 0
      %3004 = vmatprep.subr.bf16.mxu0 0
      %3005 = vmatpush2.bf16.msra.mxu0 0
      %3006 = vmatprep.subr.bf16.mxu0 0
      %3007 = vmatpush2.bf16.msra.mxu0 0
      %3008 = vmatprep.subr.bf16.mxu0 0
      %3009 = vmatpush2.bf16.msra.mxu0 0
      %3010 = vmatprep.subr.bf16.mxu0 0
      %3011 = vmatpush2.bf16.msra.mxu0 0
      %3012 = vmatprep.subr.bf16.mxu0 0
      %3013 = vmatpush2.bf16.msra.mxu0 0
      %3014 = vmatprep.subr.bf16.mxu0 0
      %3015 = vmatpush2.bf16.msra.mxu0 0
      %3016 = vmatprep.mubr.bf16.mxu0 0
      %3017 = vmatmul.mubr.bf16.gmra.mxu0 %v2894
      %v3018 = vpop.f32.mrf.mxu0
      %v3019 = vadd.f32 0.0, %v3018
      %v3020 = vpop.f32.mrf.mxu0
      %v3021 = vpop.f32.mrf.mxu0
      %v3022 = vadd.f32 0.0, %v3021
      %v3023 = vpop.f32.mrf.mxu0
      %3024 = vmatprep.mubr.bf16.mxu0 0
      %3025 = vmatmul.mubr.bf16.gmra.mxu0 %v2903
      %v3026 = vpop.f32.mrf.mxu0
      %v3027 = vadd.f32 0.0, %v3026
      %v3028 = vpop.f32.mrf.mxu0
      %v3029 = vpop.f32.mrf.mxu0
      %v3030 = vadd.f32 0.0, %v3029
      %v3031 = vpop.f32.mrf.mxu0
      %3032 = vmatprep.mubr.bf16.mxu0 0
      %3033 = vmatmul.mubr.bf16.gmra.mxu0 %v2912
      %v3034 = vpop.f32.mrf.mxu0
      %v3035 = vadd.f32 0.0, %v3034
      %v3036 = vpop.f32.mrf.mxu0
      %v3037 = vpop.f32.mrf.mxu0
      %v3038 = vadd.f32 0.0, %v3037
      %v3039 = vpop.f32.mrf.mxu0
      %3040 = vmatprep.mubr.bf16.mxu0 0
      %3041 = vmatmul.mubr.bf16.gmra.mxu0 %v2921
      %v3042 = vpop.f32.mrf.mxu0
      %v3043 = vadd.f32 0.0, %v3042
      %v3044 = vpop.f32.mrf.mxu0
      %v3045 = vpop.f32.mrf.mxu0
      %v3046 = vadd.f32 0.0, %v3045
      %v3047 = vpop.f32.mrf.mxu0
      %3048 = vmatprep.mubr.bf16.mxu0 0
      %3049 = vmatmul.mubr.bf16.gmra.mxu0 %v2930
      %v3050 = vpop.f32.mrf.mxu0
      %v3051 = vadd.f32 0.0, %v3050
      %v3052 = vpop.f32.mrf.mxu0
      %v3053 = vpop.f32.mrf.mxu0
      %v3054 = vadd.f32 0.0, %v3053
      %v3055 = vpop.f32.mrf.mxu0
      %3056 = vdwg.mxu0
      %v3057 = vadd.f32 %v2848, %v3019
      %v3058 = vadd.f32 %v2849, %v3022
      %v3059 = vadd.f32 %v2850, %v3027
      %v3060 = vadd.f32 %v2851, %v3030
      %v3061 = vadd.f32 %v2852, %v3035
      %v3062 = vadd.f32 %v2853, %v3038
      %v3063 = vadd.f32 %v2854, %v3043
      %v3064 = vadd.f32 %v2855, %v3046
      %v3065 = vadd.f32 %v2856, %v3051
      %v3066 = vadd.f32 %v2857, %v3054
      %v3067 = vld [vmem:[%s348 + $0x4] sm:$0xc]
      %v3068 = vld [vmem:[%s3 + $0x380] sm:$0xf]
      %v3069 = vld [vmem:[%s3 + $0x384] sm:$0xf]
      %v3070 = vld [vmem:[%s3 + $0x388] sm:$0xf]
      %v3071 = vld [vmem:[%s3 + $0x38c] sm:$0xf]
      %v3072 = vld [vmem:[%s3 + $0x390] sm:$0xf]
      %v3073 = vld [vmem:[%s3 + $0x394] sm:$0xf]
      %v3074 = vld [vmem:[%s3 + $0x398] sm:$0xf]
      %v3075 = vld [vmem:[%s3 + $0x39c] sm:$0xf]
      %v3076 = vld [vmem:[%s3 + $0x3a0] sm:$0xf]
      %v3077 = vld [vmem:[%s3 + $0x3a4] sm:$0xf]
      %v3078 = vld [vmem:[%s3 + $0x3a8] sm:$0xf]
      %v3079 = vld [vmem:[%s3 + $0x3ac] sm:$0xf]
      %v3080 = vld [vmem:[%s3 + $0x3b0] sm:$0xf]
      %v3081 = vld [vmem:[%s3 + $0x3b4] sm:$0xf]
      %v3082 = vld [vmem:[%s3 + $0x3b8] sm:$0xf]
      %v3083 = vld [vmem:[%s3 + $0x3bc] sm:$0xf]
      %v3085 = vunpack.c.l.b16 %v3067
      %v3086 = vpack.c.b16 %v2695, %v3085
      %v3087 = vrot.slane %v3086, 2
      %v3088 = vrot.slane %v2706, 2
      %v3089 = vsel %vm1339, %v3087, %v3088
      %v3090 = vrot.slane %v2707, 2
      %v3091 = vsel %vm1339, %v3088, %v3090
      %v3092 = vrot.slane %v2708, 2
      %v3093 = vsel %vm1339, %v3090, %v3092
      %v3094 = vrot.slane %v2709, 2
      %v3095 = vsel %vm1339, %v3092, %v3094
      %v3096 = vrot.slane %v2877, 2
      %v3097 = vsel %vm1339, %v3094, %v3096
      %v3119 = vunpack.c.l.b16 %v3068
      %v3120 = vunpack.c.l.b16 %v3069
      %v3121 = vunpack.c.l.b16 %v3070
      %v3122 = vunpack.c.l.b16 %v3071
      %v3123 = vunpack.c.l.b16 %v3072
      %v3124 = vunpack.c.l.b16 %v3073
      %v3125 = vunpack.c.l.b16 %v3074
      %v3126 = vunpack.c.l.b16 %v3075
      %v3127 = vunpack.c.l.b16 %v3076
      %v3128 = vunpack.c.l.b16 %v3077
      %v3129 = vunpack.c.l.b16 %v3078
      %v3130 = vunpack.c.l.b16 %v3079
      %v3131 = vunpack.c.l.b16 %v3080
      %v3132 = vunpack.c.l.b16 %v3081
      %v3133 = vunpack.c.l.b16 %v3082
      %v3134 = vunpack.c.l.b16 %v3083
      %v3135 = vpack.c.b16 %v3120, %v3119
      %v3136 = vpack.c.b16 %v3122, %v3121
      %v3137 = vpack.c.b16 %v3124, %v3123
      %v3138 = vpack.c.b16 %v3126, %v3125
      %v3139 = vpack.c.b16 %v3128, %v3127
      %v3140 = vpack.c.b16 %v3130, %v3129
      %v3141 = vpack.c.b16 %v3132, %v3131
      %v3142 = vpack.c.b16 %v3134, %v3133
      %3151 = vmatprep.subr.bf16.mxu0 0
      %3152 = vmatpush1.bf16.msra.mxu0 %v3142
      %3153 = vmatprep.subr.bf16.mxu0 0
      %3154 = vmatpush1.bf16.msra.mxu0 %v3141
      %3155 = vmatprep.subr.bf16.mxu0 0
      %3156 = vmatpush1.bf16.msra.mxu0 %v3140
      %3157 = vmatprep.subr.bf16.mxu0 0
      %3158 = vmatpush1.bf16.msra.mxu0 %v3139
      %3159 = vmatprep.subr.bf16.mxu0 0
      %3160 = vmatpush1.bf16.msra.mxu0 %v3138
      %3161 = vmatprep.subr.bf16.mxu0 0
      %3162 = vmatpush1.bf16.msra.mxu0 %v3137
      %3163 = vmatprep.subr.bf16.mxu0 0
      %3164 = vmatpush1.bf16.msra.mxu0 %v3136
      %3165 = vmatprep.subr.bf16.mxu0 0
      %3166 = vmatpush1.bf16.msra.mxu0 %v3135
      %3167 = vmatprep.subr.bf16.mxu0 0
      %3168 = vmatpush2.bf16.msra.mxu0 0
      %3169 = vmatprep.subr.bf16.mxu0 0
      %3170 = vmatpush2.bf16.msra.mxu0 0
      %3171 = vmatprep.subr.bf16.mxu0 0
      %3172 = vmatpush2.bf16.msra.mxu0 0
      %3173 = vmatprep.subr.bf16.mxu0 0
      %3174 = vmatpush2.bf16.msra.mxu0 0
      %3175 = vmatprep.subr.bf16.mxu0 0
      %3176 = vmatpush2.bf16.msra.mxu0 0
      %3177 = vmatprep.subr.bf16.mxu0 0
      %3178 = vmatpush2.bf16.msra.mxu0 0
      %3179 = vmatprep.subr.bf16.mxu0 0
      %3180 = vmatpush2.bf16.msra.mxu0 0
      %3181 = vmatprep.subr.bf16.mxu0 0
      %3182 = vmatpush2.bf16.msra.mxu0 0
      %3183 = vmatprep.mubr.bf16.mxu0 0
      %3184 = vmatmul.mubr.bf16.gmra.mxu0 %v3089
      %v3185 = vpop.f32.mrf.mxu0
      %v3186 = vadd.f32 0.0, %v3185
      %v3187 = vpop.f32.mrf.mxu0
      %v3188 = vpop.f32.mrf.mxu0
      %v3189 = vadd.f32 0.0, %v3188
      %v3190 = vpop.f32.mrf.mxu0
      %3191 = vmatprep.mubr.bf16.mxu0 0
      %3192 = vmatmul.mubr.bf16.gmra.mxu0 %v3091
      %v3193 = vpop.f32.mrf.mxu0
      %v3194 = vadd.f32 0.0, %v3193
      %v3195 = vpop.f32.mrf.mxu0
      %v3196 = vpop.f32.mrf.mxu0
      %v3197 = vadd.f32 0.0, %v3196
      %v3198 = vpop.f32.mrf.mxu0
      %3199 = vmatprep.mubr.bf16.mxu0 0
      %3200 = vmatmul.mubr.bf16.gmra.mxu0 %v3093
      %v3201 = vpop.f32.mrf.mxu0
      %v3202 = vadd.f32 0.0, %v3201
      %v3203 = vpop.f32.mrf.mxu0
      %v3204 = vpop.f32.mrf.mxu0
      %v3205 = vadd.f32 0.0, %v3204
      %v3206 = vpop.f32.mrf.mxu0
      %3207 = vmatprep.mubr.bf16.mxu0 0
      %3208 = vmatmul.mubr.bf16.gmra.mxu0 %v3095
      %v3209 = vpop.f32.mrf.mxu0
      %v3210 = vadd.f32 0.0, %v3209
      %v3211 = vpop.f32.mrf.mxu0
      %v3212 = vpop.f32.mrf.mxu0
      %v3213 = vadd.f32 0.0, %v3212
      %v3214 = vpop.f32.mrf.mxu0
      %3215 = vmatprep.mubr.bf16.mxu0 0
      %3216 = vmatmul.mubr.bf16.gmra.mxu0 %v3097
      %v3217 = vpop.f32.mrf.mxu0
      %v3218 = vadd.f32 0.0, %v3217
      %v3219 = vpop.f32.mrf.mxu0
      %v3220 = vpop.f32.mrf.mxu0
      %v3221 = vadd.f32 0.0, %v3220
      %v3222 = vpop.f32.mrf.mxu0
      %3223 = vdwg.mxu0
      %v3224 = vadd.f32 %v3057, %v3186
      %v3225 = vadd.f32 %v3058, %v3189
      %v3226 = vadd.f32 %v3059, %v3194
      %v3227 = vadd.f32 %v3060, %v3197
      %v3228 = vadd.f32 %v3061, %v3202
      %v3229 = vadd.f32 %v3062, %v3205
      %v3230 = vadd.f32 %v3063, %v3210
      %v3231 = vadd.f32 %v3064, %v3213
      %v3232 = vadd.f32 %v3065, %v3218
      %v3233 = vadd.f32 %v3066, %v3221
      %v3234 = vld [vmem:[%s348 + $0x8] sm:$0xc]
      %v3235 = vld [vmem:[%s348 + $0xc] sm:$0xf]
      %v3236 = vld [vmem:[%s348 + $0x10] sm:$0xf]
      %v3237 = vld [vmem:[%s348 + $0x14] sm:$0xf]
      %v3238 = vld [vmem:[%s348 + $0x18] sm:$0xf]
      %v3239 = vld [vmem:[%s348 + $0x1c] sm:$0xf]
      %v3240 = vld [vmem:[%s348 + $0x20] sm:$0xf]
      %v3241 = vld [vmem:[%s348 + $0x24] sm:$0xf]
      %v3242 = vld [vmem:[%s348 + $0x28] sm:$0xf]
      %v3243 = vld [vmem:[%s348 + $0x2c] sm:$0xf]
      %v3244 = vld [vmem:[%s348 + $0x30] sm:$0x3]
      %v3245 = vld [vmem:[%s3 + $0x3c0] sm:$0xf]
      %v3246 = vld [vmem:[%s3 + $0x3c4] sm:$0xf]
      %v3247 = vld [vmem:[%s3 + $0x3c8] sm:$0xf]
      %v3248 = vld [vmem:[%s3 + $0x3cc] sm:$0xf]
      %v3249 = vld [vmem:[%s3 + $0x3d0] sm:$0xf]
      %v3250 = vld [vmem:[%s3 + $0x3d4] sm:$0xf]
      %v3251 = vld [vmem:[%s3 + $0x3d8] sm:$0xf]
      %v3252 = vld [vmem:[%s3 + $0x3dc] sm:$0xf]
      %v3253 = vld [vmem:[%s3 + $0x3e0] sm:$0xf]
      %v3254 = vld [vmem:[%s3 + $0x3e4] sm:$0xf]
      %v3255 = vld [vmem:[%s3 + $0x3e8] sm:$0xf]
      %v3256 = vld [vmem:[%s3 + $0x3ec] sm:$0xf]
      %v3257 = vld [vmem:[%s3 + $0x3f0] sm:$0xf]
      %v3258 = vld [vmem:[%s3 + $0x3f4] sm:$0xf]
      %v3259 = vld [vmem:[%s3 + $0x3f8] sm:$0xf]
      %v3260 = vld [vmem:[%s3 + $0x3fc] sm:$0xf]
      %v3272 = vunpack.c.l.b16 %v3234
      %v3273 = vunpack.c.l.b16 %v3235
      %v3274 = vunpack.c.l.b16 %v3236
      %v3275 = vunpack.c.l.b16 %v3237
      %v3276 = vunpack.c.l.b16 %v3238
      %v3277 = vunpack.c.l.b16 %v3239
      %v3278 = vunpack.c.l.b16 %v3240
      %v3279 = vunpack.c.l.b16 %v3241
      %v3280 = vunpack.c.l.b16 %v3242
      %v3281 = vunpack.c.l.b16 %v3243
      %v3282 = vunpack.c.l.b16 %v3244
      %v3283 = vpack.c.b16 %v3273, %v3272
      %v3284 = vpack.c.b16 %v3275, %v3274
      %v3285 = vpack.c.b16 %v3277, %v3276
      %v3286 = vpack.c.b16 %v3279, %v3278
      %v3287 = vpack.c.b16 %v3281, %v3280
      %v3288 = vpack.c.b16 %v3282, %v3282
      %v3289 = vrot.slane %v3283, 2
      %v3290 = vrot.slane %v3284, 2
      %v3291 = vsel %vm1339, %v3289, %v3290
      %v3292 = vrot.slane %v3285, 2
      %v3293 = vsel %vm1339, %v3290, %v3292
      %v3294 = vrot.slane %v3286, 2
      %v3295 = vsel %vm1339, %v3292, %v3294
      %v3296 = vrot.slane %v3287, 2
      %v3297 = vsel %vm1339, %v3294, %v3296
      %v3298 = vrot.slane %v3288, 2
      %v3299 = vsel %vm1339, %v3296, %v3298
      %v3321 = vunpack.c.l.b16 %v3245
      %v3322 = vunpack.c.l.b16 %v3246
      %v3323 = vunpack.c.l.b16 %v3247
      %v3324 = vunpack.c.l.b16 %v3248
      %v3325 = vunpack.c.l.b16 %v3249
      %v3326 = vunpack.c.l.b16 %v3250
      %v3327 = vunpack.c.l.b16 %v3251
      %v3328 = vunpack.c.l.b16 %v3252
      %v3329 = vunpack.c.l.b16 %v3253
      %v3330 = vunpack.c.l.b16 %v3254
      %v3331 = vunpack.c.l.b16 %v3255
      %v3332 = vunpack.c.l.b16 %v3256
      %v3333 = vunpack.c.l.b16 %v3257
      %v3334 = vunpack.c.l.b16 %v3258
      %v3335 = vunpack.c.l.b16 %v3259
      %v3336 = vunpack.c.l.b16 %v3260
      %v3337 = vpack.c.b16 %v3322, %v3321
      %v3338 = vpack.c.b16 %v3324, %v3323
      %v3339 = vpack.c.b16 %v3326, %v3325
      %v3340 = vpack.c.b16 %v3328, %v3327
      %v3341 = vpack.c.b16 %v3330, %v3329
      %v3342 = vpack.c.b16 %v3332, %v3331
      %v3343 = vpack.c.b16 %v3334, %v3333
      %v3344 = vpack.c.b16 %v3336, %v3335
      %3353 = vmatprep.subr.bf16.mxu0 0
      %3354 = vmatpush1.bf16.msra.mxu0 %v3344
      %3355 = vmatprep.subr.bf16.mxu0 0
      %3356 = vmatpush1.bf16.msra.mxu0 %v3343
      %3357 = vmatprep.subr.bf16.mxu0 0
      %3358 = vmatpush1.bf16.msra.mxu0 %v3342
      %3359 = vmatprep.subr.bf16.mxu0 0
      %3360 = vmatpush1.bf16.msra.mxu0 %v3341
      %3361 = vmatprep.subr.bf16.mxu0 0
      %3362 = vmatpush1.bf16.msra.mxu0 %v3340
      %3363 = vmatprep.subr.bf16.mxu0 0
      %3364 = vmatpush1.bf16.msra.mxu0 %v3339
      %3365 = vmatprep.subr.bf16.mxu0 0
      %3366 = vmatpush1.bf16.msra.mxu0 %v3338
      %3367 = vmatprep.subr.bf16.mxu0 0
      %3368 = vmatpush1.bf16.msra.mxu0 %v3337
      %3369 = vmatprep.subr.bf16.mxu0 0
      %3370 = vmatpush2.bf16.msra.mxu0 0
      %3371 = vmatprep.subr.bf16.mxu0 0
      %3372 = vmatpush2.bf16.msra.mxu0 0
      %3373 = vmatprep.subr.bf16.mxu0 0
      %3374 = vmatpush2.bf16.msra.mxu0 0
      %3375 = vmatprep.subr.bf16.mxu0 0
      %3376 = vmatpush2.bf16.msra.mxu0 0
      %3377 = vmatprep.subr.bf16.mxu0 0
      %3378 = vmatpush2.bf16.msra.mxu0 0
      %3379 = vmatprep.subr.bf16.mxu0 0
      %3380 = vmatpush2.bf16.msra.mxu0 0
      %3381 = vmatprep.subr.bf16.mxu0 0
      %3382 = vmatpush2.bf16.msra.mxu0 0
      %3383 = vmatprep.subr.bf16.mxu0 0
      %3384 = vmatpush2.bf16.msra.mxu0 0
      %3385 = vmatprep.mubr.bf16.mxu0 0
      %3386 = vmatmul.mubr.bf16.gmra.mxu0 %v3291
      %v3387 = vpop.f32.mrf.mxu0
      %v3388 = vadd.f32 0.0, %v3387
      %v3389 = vpop.f32.mrf.mxu0
      %v3390 = vpop.f32.mrf.mxu0
      %v3391 = vadd.f32 0.0, %v3390
      %v3392 = vpop.f32.mrf.mxu0
      %3393 = vmatprep.mubr.bf16.mxu0 0
      %3394 = vmatmul.mubr.bf16.gmra.mxu0 %v3293
      %v3395 = vpop.f32.mrf.mxu0
      %v3396 = vadd.f32 0.0, %v3395
      %v3397 = vpop.f32.mrf.mxu0
      %v3398 = vpop.f32.mrf.mxu0
      %v3399 = vadd.f32 0.0, %v3398
      %v3400 = vpop.f32.mrf.mxu0
      %3401 = vmatprep.mubr.bf16.mxu0 0
      %3402 = vmatmul.mubr.bf16.gmra.mxu0 %v3295
      %v3403 = vpop.f32.mrf.mxu0
      %v3404 = vadd.f32 0.0, %v3403
      %v3405 = vpop.f32.mrf.mxu0
      %v3406 = vpop.f32.mrf.mxu0
      %v3407 = vadd.f32 0.0, %v3406
      %v3408 = vpop.f32.mrf.mxu0
      %3409 = vmatprep.mubr.bf16.mxu0 0
      %3410 = vmatmul.mubr.bf16.gmra.mxu0 %v3297
      %v3411 = vpop.f32.mrf.mxu0
      %v3412 = vadd.f32 0.0, %v3411
      %v3413 = vpop.f32.mrf.mxu0
      %v3414 = vpop.f32.mrf.mxu0
      %v3415 = vadd.f32 0.0, %v3414
      %v3416 = vpop.f32.mrf.mxu0
      %3417 = vmatprep.mubr.bf16.mxu0 0
      %3418 = vmatmul.mubr.bf16.gmra.mxu0 %v3299
      %v3419 = vpop.f32.mrf.mxu0
      %v3420 = vadd.f32 0.0, %v3419
      %v3421 = vpop.f32.mrf.mxu0
      %v3422 = vpop.f32.mrf.mxu0
      %v3423 = vadd.f32 0.0, %v3422
      %v3424 = vpop.f32.mrf.mxu0
      %3425 = vdwg.mxu0
      %v3426 = vadd.f32 %v3224, %v3388
      %v3427 = vadd.f32 %v3225, %v3391
      %v3428 = vadd.f32 %v3226, %v3396
      %v3429 = vadd.f32 %v3227, %v3399
      %v3430 = vadd.f32 %v3228, %v3404
      %v3431 = vadd.f32 %v3229, %v3407
      %v3432 = vadd.f32 %v3230, %v3412
      %v3433 = vadd.f32 %v3231, %v3415
      %v3434 = vadd.f32 %v3232, %v3420
      %v3435 = vadd.f32 %v3233, %v3423
      %v3436 = vld [vmem:[%s348 + $0x30] sm:$0x7]
      %v3437 = vld [vmem:[%s3 + $0x400] sm:$0xf]
      %v3438 = vld [vmem:[%s3 + $0x404] sm:$0xf]
      %v3439 = vld [vmem:[%s3 + $0x408] sm:$0xf]
      %v3440 = vld [vmem:[%s3 + $0x40c] sm:$0xf]
      %v3441 = vld [vmem:[%s3 + $0x410] sm:$0xf]
      %v3442 = vld [vmem:[%s3 + $0x414] sm:$0xf]
      %v3443 = vld [vmem:[%s3 + $0x418] sm:$0xf]
      %v3444 = vld [vmem:[%s3 + $0x41c] sm:$0xf]
      %v3445 = vld [vmem:[%s3 + $0x420] sm:$0xf]
      %v3446 = vld [vmem:[%s3 + $0x424] sm:$0xf]
      %v3447 = vld [vmem:[%s3 + $0x428] sm:$0xf]
      %v3448 = vld [vmem:[%s3 + $0x42c] sm:$0xf]
      %v3449 = vld [vmem:[%s3 + $0x430] sm:$0xf]
      %v3450 = vld [vmem:[%s3 + $0x434] sm:$0xf]
      %v3451 = vld [vmem:[%s3 + $0x438] sm:$0xf]
      %v3452 = vld [vmem:[%s3 + $0x43c] sm:$0xf]
      %v3454 = vunpack.c.l.b16 %v3436
      %v3455 = vpack.c.b16 %v3454, %v3454
      %v3457 = vshrl.u32 %v3283, 16
      %v3459 = vrot.slane %v3457, 2
      %v3460 = vshll.u32 %v3283, 16
      %v3462 = vrot.slane %v3460, 3
      %v3463 = vor.u32 %v3459, %v3462
      %v3465 = vshrl.u32 %v3284, 16
      %v3467 = vrot.slane %v3465, 2
      %v3468 = vshll.u32 %v3284, 16
      %v3470 = vrot.slane %v3468, 3
      %v3471 = vor.u32 %v3467, %v3470
      %v3472 = vsel %vm1709, %v3463, %v3471
      %v3474 = vshrl.u32 %v3285, 16
      %v3476 = vrot.slane %v3474, 2
      %v3477 = vshll.u32 %v3285, 16
      %v3479 = vrot.slane %v3477, 3
      %v3480 = vor.u32 %v3476, %v3479
      %v3481 = vsel %vm1709, %v3471, %v3480
      %v3483 = vshrl.u32 %v3286, 16
      %v3485 = vrot.slane %v3483, 2
      %v3486 = vshll.u32 %v3286, 16
      %v3488 = vrot.slane %v3486, 3
      %v3489 = vor.u32 %v3485, %v3488
      %v3490 = vsel %vm1709, %v3480, %v3489
      %v3492 = vshrl.u32 %v3287, 16
      %v3494 = vrot.slane %v3492, 2
      %v3495 = vshll.u32 %v3287, 16
      %v3497 = vrot.slane %v3495, 3
      %v3498 = vor.u32 %v3494, %v3497
      %v3499 = vsel %vm1709, %v3489, %v3498
      %v3501 = vshrl.u32 %v3455, 16
      %v3503 = vrot.slane %v3501, 2
      %v3504 = vshll.u32 %v3455, 16
      %v3506 = vrot.slane %v3504, 3
      %v3507 = vor.u32 %v3503, %v3506
      %v3508 = vsel %vm1709, %v3498, %v3507
      %v3530 = vunpack.c.l.b16 %v3437
      %v3531 = vunpack.c.l.b16 %v3438
      %v3532 = vunpack.c.l.b16 %v3439
      %v3533 = vunpack.c.l.b16 %v3440
      %v3534 = vunpack.c.l.b16 %v3441
      %v3535 = vunpack.c.l.b16 %v3442
      %v3536 = vunpack.c.l.b16 %v3443
      %v3537 = vunpack.c.l.b16 %v3444
      %v3538 = vunpack.c.l.b16 %v3445
      %v3539 = vunpack.c.l.b16 %v3446
      %v3540 = vunpack.c.l.b16 %v3447
      %v3541 = vunpack.c.l.b16 %v3448
      %v3542 = vunpack.c.l.b16 %v3449
      %v3543 = vunpack.c.l.b16 %v3450
      %v3544 = vunpack.c.l.b16 %v3451
      %v3545 = vunpack.c.l.b16 %v3452
      %v3546 = vpack.c.b16 %v3531, %v3530
      %v3547 = vpack.c.b16 %v3533, %v3532
      %v3548 = vpack.c.b16 %v3535, %v3534
      %v3549 = vpack.c.b16 %v3537, %v3536
      %v3550 = vpack.c.b16 %v3539, %v3538
      %v3551 = vpack.c.b16 %v3541, %v3540
      %v3552 = vpack.c.b16 %v3543, %v3542
      %v3553 = vpack.c.b16 %v3545, %v3544
      %3562 = vmatprep.subr.bf16.mxu0 0
      %3563 = vmatpush1.bf16.msra.mxu0 %v3553
      %3564 = vmatprep.subr.bf16.mxu0 0
      %3565 = vmatpush1.bf16.msra.mxu0 %v3552
      %3566 = vmatprep.subr.bf16.mxu0 0
      %3567 = vmatpush1.bf16.msra.mxu0 %v3551
      %3568 = vmatprep.subr.bf16.mxu0 0
      %3569 = vmatpush1.bf16.msra.mxu0 %v3550
      %3570 = vmatprep.subr.bf16.mxu0 0
      %3571 = vmatpush1.bf16.msra.mxu0 %v3549
      %3572 = vmatprep.subr.bf16.mxu0 0
      %3573 = vmatpush1.bf16.msra.mxu0 %v3548
      %3574 = vmatprep.subr.bf16.mxu0 0
      %3575 = vmatpush1.bf16.msra.mxu0 %v3547
      %3576 = vmatprep.subr.bf16.mxu0 0
      %3577 = vmatpush1.bf16.msra.mxu0 %v3546
      %3578 = vmatprep.subr.bf16.mxu0 0
      %3579 = vmatpush2.bf16.msra.mxu0 0
      %3580 = vmatprep.subr.bf16.mxu0 0
      %3581 = vmatpush2.bf16.msra.mxu0 0
      %3582 = vmatprep.subr.bf16.mxu0 0
      %3583 = vmatpush2.bf16.msra.mxu0 0
      %3584 = vmatprep.subr.bf16.mxu0 0
      %3585 = vmatpush2.bf16.msra.mxu0 0
      %3586 = vmatprep.subr.bf16.mxu0 0
      %3587 = vmatpush2.bf16.msra.mxu0 0
      %3588 = vmatprep.subr.bf16.mxu0 0
      %3589 = vmatpush2.bf16.msra.mxu0 0
      %3590 = vmatprep.subr.bf16.mxu0 0
      %3591 = vmatpush2.bf16.msra.mxu0 0
      %3592 = vmatprep.subr.bf16.mxu0 0
      %3593 = vmatpush2.bf16.msra.mxu0 0
      %3594 = vmatprep.mubr.bf16.mxu0 0
      %3595 = vmatmul.mubr.bf16.gmra.mxu0 %v3472
      %v3596 = vpop.f32.mrf.mxu0
      %v3597 = vadd.f32 0.0, %v3596
      %v3598 = vpop.f32.mrf.mxu0
      %v3599 = vpop.f32.mrf.mxu0
      %v3600 = vadd.f32 0.0, %v3599
      %v3601 = vpop.f32.mrf.mxu0
      %3602 = vmatprep.mubr.bf16.mxu0 0
      %3603 = vmatmul.mubr.bf16.gmra.mxu0 %v3481
      %v3604 = vpop.f32.mrf.mxu0
      %v3605 = vadd.f32 0.0, %v3604
      %v3606 = vpop.f32.mrf.mxu0
      %v3607 = vpop.f32.mrf.mxu0
      %v3608 = vadd.f32 0.0, %v3607
      %v3609 = vpop.f32.mrf.mxu0
      %3610 = vmatprep.mubr.bf16.mxu0 0
      %3611 = vmatmul.mubr.bf16.gmra.mxu0 %v3490
      %v3612 = vpop.f32.mrf.mxu0
      %v3613 = vadd.f32 0.0, %v3612
      %v3614 = vpop.f32.mrf.mxu0
      %v3615 = vpop.f32.mrf.mxu0
      %v3616 = vadd.f32 0.0, %v3615
      %v3617 = vpop.f32.mrf.mxu0
      %3618 = vmatprep.mubr.bf16.mxu0 0
      %3619 = vmatmul.mubr.bf16.gmra.mxu0 %v3499
      %v3620 = vpop.f32.mrf.mxu0
      %v3621 = vadd.f32 0.0, %v3620
      %v3622 = vpop.f32.mrf.mxu0
      %v3623 = vpop.f32.mrf.mxu0
      %v3624 = vadd.f32 0.0, %v3623
      %v3625 = vpop.f32.mrf.mxu0
      %3626 = vmatprep.mubr.bf16.mxu0 0
      %3627 = vmatmul.mubr.bf16.gmra.mxu0 %v3508
      %v3628 = vpop.f32.mrf.mxu0
      %v3629 = vadd.f32 0.0, %v3628
      %v3630 = vpop.f32.mrf.mxu0
      %v3631 = vpop.f32.mrf.mxu0
      %v3632 = vadd.f32 0.0, %v3631
      %v3633 = vpop.f32.mrf.mxu0
      %3634 = vdwg.mxu0
      %v3635 = vadd.f32 %v3426, %v3597
      %v3636 = vadd.f32 %v3427, %v3600
      %v3637 = vadd.f32 %v3428, %v3605
      %v3638 = vadd.f32 %v3429, %v3608
      %v3639 = vadd.f32 %v3430, %v3613
      %v3640 = vadd.f32 %v3431, %v3616
      %v3641 = vadd.f32 %v3432, %v3621
      %v3642 = vadd.f32 %v3433, %v3624
      %v3643 = vadd.f32 %v3434, %v3629
      %v3644 = vadd.f32 %v3435, %v3632
      %v3645 = vld [vmem:[%s348 + $0x8] sm:$0x8]
      %v3646 = vld [vmem:[%s3 + $0x440] sm:$0xf]
      %v3647 = vld [vmem:[%s3 + $0x444] sm:$0xf]
      %v3648 = vld [vmem:[%s3 + $0x448] sm:$0xf]
      %v3649 = vld [vmem:[%s3 + $0x44c] sm:$0xf]
      %v3650 = vld [vmem:[%s3 + $0x450] sm:$0xf]
      %v3651 = vld [vmem:[%s3 + $0x454] sm:$0xf]
      %v3652 = vld [vmem:[%s3 + $0x458] sm:$0xf]
      %v3653 = vld [vmem:[%s3 + $0x45c] sm:$0xf]
      %v3654 = vld [vmem:[%s3 + $0x460] sm:$0xf]
      %v3655 = vld [vmem:[%s3 + $0x464] sm:$0xf]
      %v3656 = vld [vmem:[%s3 + $0x468] sm:$0xf]
      %v3657 = vld [vmem:[%s3 + $0x46c] sm:$0xf]
      %v3658 = vld [vmem:[%s3 + $0x470] sm:$0xf]
      %v3659 = vld [vmem:[%s3 + $0x474] sm:$0xf]
      %v3660 = vld [vmem:[%s3 + $0x478] sm:$0xf]
      %v3661 = vld [vmem:[%s3 + $0x47c] sm:$0xf]
      %v3663 = vunpack.c.l.b16 %v3645
      %v3664 = vpack.c.b16 %v3273, %v3663
      %v3665 = vrot.slane %v3664, 3
      %v3666 = vrot.slane %v3284, 3
      %v3667 = vsel %vm1919, %v3665, %v3666
      %v3668 = vrot.slane %v3285, 3
      %v3669 = vsel %vm1919, %v3666, %v3668
      %v3670 = vrot.slane %v3286, 3
      %v3671 = vsel %vm1919, %v3668, %v3670
      %v3672 = vrot.slane %v3287, 3
      %v3673 = vsel %vm1919, %v3670, %v3672
      %v3674 = vrot.slane %v3455, 3
      %v3675 = vsel %vm1919, %v3672, %v3674
      %v3697 = vunpack.c.l.b16 %v3646
      %v3698 = vunpack.c.l.b16 %v3647
      %v3699 = vunpack.c.l.b16 %v3648
      %v3700 = vunpack.c.l.b16 %v3649
      %v3701 = vunpack.c.l.b16 %v3650
      %v3702 = vunpack.c.l.b16 %v3651
      %v3703 = vunpack.c.l.b16 %v3652
      %v3704 = vunpack.c.l.b16 %v3653
      %v3705 = vunpack.c.l.b16 %v3654
      %v3706 = vunpack.c.l.b16 %v3655
      %v3707 = vunpack.c.l.b16 %v3656
      %v3708 = vunpack.c.l.b16 %v3657
      %v3709 = vunpack.c.l.b16 %v3658
      %v3710 = vunpack.c.l.b16 %v3659
      %v3711 = vunpack.c.l.b16 %v3660
      %v3712 = vunpack.c.l.b16 %v3661
      %v3713 = vpack.c.b16 %v3698, %v3697
      %v3714 = vpack.c.b16 %v3700, %v3699
      %v3715 = vpack.c.b16 %v3702, %v3701
      %v3716 = vpack.c.b16 %v3704, %v3703
      %v3717 = vpack.c.b16 %v3706, %v3705
      %v3718 = vpack.c.b16 %v3708, %v3707
      %v3719 = vpack.c.b16 %v3710, %v3709
      %v3720 = vpack.c.b16 %v3712, %v3711
      %3729 = vmatprep.subr.bf16.mxu0 0
      %3730 = vmatpush1.bf16.msra.mxu0 %v3720
      %3731 = vmatprep.subr.bf16.mxu0 0
      %3732 = vmatpush1.bf16.msra.mxu0 %v3719
      %3733 = vmatprep.subr.bf16.mxu0 0
      %3734 = vmatpush1.bf16.msra.mxu0 %v3718
      %3735 = vmatprep.subr.bf16.mxu0 0
      %3736 = vmatpush1.bf16.msra.mxu0 %v3717
      %3737 = vmatprep.subr.bf16.mxu0 0
      %3738 = vmatpush1.bf16.msra.mxu0 %v3716
      %3739 = vmatprep.subr.bf16.mxu0 0
      %3740 = vmatpush1.bf16.msra.mxu0 %v3715
      %3741 = vmatprep.subr.bf16.mxu0 0
      %3742 = vmatpush1.bf16.msra.mxu0 %v3714
      %3743 = vmatprep.subr.bf16.mxu0 0
      %3744 = vmatpush1.bf16.msra.mxu0 %v3713
      %3745 = vmatprep.subr.bf16.mxu0 0
      %3746 = vmatpush2.bf16.msra.mxu0 0
      %3747 = vmatprep.subr.bf16.mxu0 0
      %3748 = vmatpush2.bf16.msra.mxu0 0
      %3749 = vmatprep.subr.bf16.mxu0 0
      %3750 = vmatpush2.bf16.msra.mxu0 0
      %3751 = vmatprep.subr.bf16.mxu0 0
      %3752 = vmatpush2.bf16.msra.mxu0 0
      %3753 = vmatprep.subr.bf16.mxu0 0
      %3754 = vmatpush2.bf16.msra.mxu0 0
      %3755 = vmatprep.subr.bf16.mxu0 0
      %3756 = vmatpush2.bf16.msra.mxu0 0
      %3757 = vmatprep.subr.bf16.mxu0 0
      %3758 = vmatpush2.bf16.msra.mxu0 0
      %3759 = vmatprep.subr.bf16.mxu0 0
      %3760 = vmatpush2.bf16.msra.mxu0 0
      %3761 = vmatprep.mubr.bf16.mxu0 0
      %3762 = vmatmul.mubr.bf16.gmra.mxu0 %v3667
      %v3763 = vpop.f32.mrf.mxu0
      %v3764 = vadd.f32 0.0, %v3763
      %v3765 = vpop.f32.mrf.mxu0
      %v3766 = vpop.f32.mrf.mxu0
      %v3767 = vadd.f32 0.0, %v3766
      %v3768 = vpop.f32.mrf.mxu0
      %3769 = vmatprep.mubr.bf16.mxu0 0
      %3770 = vmatmul.mubr.bf16.gmra.mxu0 %v3669
      %v3771 = vpop.f32.mrf.mxu0
      %v3772 = vadd.f32 0.0, %v3771
      %v3773 = vpop.f32.mrf.mxu0
      %v3774 = vpop.f32.mrf.mxu0
      %v3775 = vadd.f32 0.0, %v3774
      %v3776 = vpop.f32.mrf.mxu0
      %3777 = vmatprep.mubr.bf16.mxu0 0
      %3778 = vmatmul.mubr.bf16.gmra.mxu0 %v3671
      %v3779 = vpop.f32.mrf.mxu0
      %v3780 = vadd.f32 0.0, %v3779
      %v3781 = vpop.f32.mrf.mxu0
      %v3782 = vpop.f32.mrf.mxu0
      %v3783 = vadd.f32 0.0, %v3782
      %v3784 = vpop.f32.mrf.mxu0
      %3785 = vmatprep.mubr.bf16.mxu0 0
      %3786 = vmatmul.mubr.bf16.gmra.mxu0 %v3673
      %v3787 = vpop.f32.mrf.mxu0
      %v3788 = vadd.f32 0.0, %v3787
      %v3789 = vpop.f32.mrf.mxu0
      %v3790 = vpop.f32.mrf.mxu0
      %v3791 = vadd.f32 0.0, %v3790
      %v3792 = vpop.f32.mrf.mxu0
      %3793 = vmatprep.mubr.bf16.mxu0 0
      %3794 = vmatmul.mubr.bf16.gmra.mxu0 %v3675
      %v3795 = vpop.f32.mrf.mxu0
      %v3796 = vadd.f32 0.0, %v3795
      %v3797 = vpop.f32.mrf.mxu0
      %v3798 = vpop.f32.mrf.mxu0
      %v3799 = vadd.f32 0.0, %v3798
      %v3800 = vpop.f32.mrf.mxu0
      %3801 = vdwg.mxu0
      %v3802 = vadd.f32 %v3635, %v3764
      %v3803 = vadd.f32 %v3636, %v3767
      %v3804 = vadd.f32 %v3637, %v3772
      %v3805 = vadd.f32 %v3638, %v3775
      %v3806 = vadd.f32 %v3639, %v3780
      %v3807 = vadd.f32 %v3640, %v3783
      %v3808 = vadd.f32 %v3641, %v3788
      %v3809 = vadd.f32 %v3642, %v3791
      %v3810 = vadd.f32 %v3643, %v3796
      %v3811 = vadd.f32 %v3644, %v3799
      %v3812 = vld [vmem:[%s359] sm:$0xf]
      %v3813 = vld [vmem:[%s359 + $0x4] sm:$0xf]
      %v3814 = vld [vmem:[%s359 + $0x8] sm:$0xf]
      %v3815 = vld [vmem:[%s359 + $0xc] sm:$0xf]
      %v3816 = vld [vmem:[%s359 + $0x10] sm:$0xf]
      %v3817 = vld [vmem:[%s359 + $0x14] sm:$0xf]
      %v3818 = vld [vmem:[%s359 + $0x18] sm:$0xf]
      %v3819 = vld [vmem:[%s359 + $0x1c] sm:$0xf]
      %v3820 = vld [vmem:[%s359 + $0x20] sm:$0xf]
      %v3821 = vld [vmem:[%s359 + $0x24] sm:$0xf]
      %v3822 = vld [vmem:[%s3 + $0x480] sm:$0xf]
      %v3823 = vld [vmem:[%s3 + $0x484] sm:$0xf]
      %v3824 = vld [vmem:[%s3 + $0x488] sm:$0xf]
      %v3825 = vld [vmem:[%s3 + $0x48c] sm:$0xf]
      %v3826 = vld [vmem:[%s3 + $0x490] sm:$0xf]
      %v3827 = vld [vmem:[%s3 + $0x494] sm:$0xf]
      %v3828 = vld [vmem:[%s3 + $0x498] sm:$0xf]
      %v3829 = vld [vmem:[%s3 + $0x49c] sm:$0xf]
      %v3830 = vld [vmem:[%s3 + $0x4a0] sm:$0xf]
      %v3831 = vld [vmem:[%s3 + $0x4a4] sm:$0xf]
      %v3832 = vld [vmem:[%s3 + $0x4a8] sm:$0xf]
      %v3833 = vld [vmem:[%s3 + $0x4ac] sm:$0xf]
      %v3834 = vld [vmem:[%s3 + $0x4b0] sm:$0xf]
      %v3835 = vld [vmem:[%s3 + $0x4b4] sm:$0xf]
      %v3836 = vld [vmem:[%s3 + $0x4b8] sm:$0xf]
      %v3837 = vld [vmem:[%s3 + $0x4bc] sm:$0xf]
      %v3848 = vunpack.c.l.b16 %v3812
      %v3849 = vunpack.c.l.b16 %v3813
      %v3850 = vunpack.c.l.b16 %v3814
      %v3851 = vunpack.c.l.b16 %v3815
      %v3852 = vunpack.c.l.b16 %v3816
      %v3853 = vunpack.c.l.b16 %v3817
      %v3854 = vunpack.c.l.b16 %v3818
      %v3855 = vunpack.c.l.b16 %v3819
      %v3856 = vunpack.c.l.b16 %v3820
      %v3857 = vunpack.c.l.b16 %v3821
      %v3858 = vpack.c.b16 %v3849, %v3848
      %v3859 = vpack.c.b16 %v3851, %v3850
      %v3860 = vpack.c.b16 %v3853, %v3852
      %v3861 = vpack.c.b16 %v3855, %v3854
      %v3862 = vpack.c.b16 %v3857, %v3856
      %v3884 = vunpack.c.l.b16 %v3822
      %v3885 = vunpack.c.l.b16 %v3823
      %v3886 = vunpack.c.l.b16 %v3824
      %v3887 = vunpack.c.l.b16 %v3825
      %v3888 = vunpack.c.l.b16 %v3826
      %v3889 = vunpack.c.l.b16 %v3827
      %v3890 = vunpack.c.l.b16 %v3828
      %v3891 = vunpack.c.l.b16 %v3829
      %v3892 = vunpack.c.l.b16 %v3830
      %v3893 = vunpack.c.l.b16 %v3831
      %v3894 = vunpack.c.l.b16 %v3832
      %v3895 = vunpack.c.l.b16 %v3833
      %v3896 = vunpack.c.l.b16 %v3834
      %v3897 = vunpack.c.l.b16 %v3835
      %v3898 = vunpack.c.l.b16 %v3836
      %v3899 = vunpack.c.l.b16 %v3837
      %v3900 = vpack.c.b16 %v3885, %v3884
      %v3901 = vpack.c.b16 %v3887, %v3886
      %v3902 = vpack.c.b16 %v3889, %v3888
      %v3903 = vpack.c.b16 %v3891, %v3890
      %v3904 = vpack.c.b16 %v3893, %v3892
      %v3905 = vpack.c.b16 %v3895, %v3894
      %v3906 = vpack.c.b16 %v3897, %v3896
      %v3907 = vpack.c.b16 %v3899, %v3898
      %3916 = vmatprep.subr.bf16.mxu0 0
      %3917 = vmatpush1.bf16.msra.mxu0 %v3907
      %3918 = vmatprep.subr.bf16.mxu0 0
      %3919 = vmatpush1.bf16.msra.mxu0 %v3906
      %3920 = vmatprep.subr.bf16.mxu0 0
      %3921 = vmatpush1.bf16.msra.mxu0 %v3905
      %3922 = vmatprep.subr.bf16.mxu0 0
      %3923 = vmatpush1.bf16.msra.mxu0 %v3904
      %3924 = vmatprep.subr.bf16.mxu0 0
      %3925 = vmatpush1.bf16.msra.mxu0 %v3903
      %3926 = vmatprep.subr.bf16.mxu0 0
      %3927 = vmatpush1.bf16.msra.mxu0 %v3902
      %3928 = vmatprep.subr.bf16.mxu0 0
      %3929 = vmatpush1.bf16.msra.mxu0 %v3901
      %3930 = vmatprep.subr.bf16.mxu0 0
      %3931 = vmatpush1.bf16.msra.mxu0 %v3900
      %3932 = vmatprep.subr.bf16.mxu0 0
      %3933 = vmatpush2.bf16.msra.mxu0 0
      %3934 = vmatprep.subr.bf16.mxu0 0
      %3935 = vmatpush2.bf16.msra.mxu0 0
      %3936 = vmatprep.subr.bf16.mxu0 0
      %3937 = vmatpush2.bf16.msra.mxu0 0
      %3938 = vmatprep.subr.bf16.mxu0 0
      %3939 = vmatpush2.bf16.msra.mxu0 0
      %3940 = vmatprep.subr.bf16.mxu0 0
      %3941 = vmatpush2.bf16.msra.mxu0 0
      %3942 = vmatprep.subr.bf16.mxu0 0
      %3943 = vmatpush2.bf16.msra.mxu0 0
      %3944 = vmatprep.subr.bf16.mxu0 0
      %3945 = vmatpush2.bf16.msra.mxu0 0
      %3946 = vmatprep.subr.bf16.mxu0 0
      %3947 = vmatpush2.bf16.msra.mxu0 0
      %3948 = vmatprep.mubr.bf16.mxu0 0
      %3949 = vmatmul.mubr.bf16.gmra.mxu0 %v3858
      %v3950 = vpop.f32.mrf.mxu0
      %v3951 = vadd.f32 0.0, %v3950
      %v3952 = vpop.f32.mrf.mxu0
      %v3953 = vpop.f32.mrf.mxu0
      %v3954 = vadd.f32 0.0, %v3953
      %v3955 = vpop.f32.mrf.mxu0
      %3956 = vmatprep.mubr.bf16.mxu0 0
      %3957 = vmatmul.mubr.bf16.gmra.mxu0 %v3859
      %v3958 = vpop.f32.mrf.mxu0
      %v3959 = vadd.f32 0.0, %v3958
      %v3960 = vpop.f32.mrf.mxu0
      %v3961 = vpop.f32.mrf.mxu0
      %v3962 = vadd.f32 0.0, %v3961
      %v3963 = vpop.f32.mrf.mxu0
      %3964 = vmatprep.mubr.bf16.mxu0 0
      %3965 = vmatmul.mubr.bf16.gmra.mxu0 %v3860
      %v3966 = vpop.f32.mrf.mxu0
      %v3967 = vadd.f32 0.0, %v3966
      %v3968 = vpop.f32.mrf.mxu0
      %v3969 = vpop.f32.mrf.mxu0
      %v3970 = vadd.f32 0.0, %v3969
      %v3971 = vpop.f32.mrf.mxu0
      %3972 = vmatprep.mubr.bf16.mxu0 0
      %3973 = vmatmul.mubr.bf16.gmra.mxu0 %v3861
      %v3974 = vpop.f32.mrf.mxu0
      %v3975 = vadd.f32 0.0, %v3974
      %v3976 = vpop.f32.mrf.mxu0
      %v3977 = vpop.f32.mrf.mxu0
      %v3978 = vadd.f32 0.0, %v3977
      %v3979 = vpop.f32.mrf.mxu0
      %3980 = vmatprep.mubr.bf16.mxu0 0
      %3981 = vmatmul.mubr.bf16.gmra.mxu0 %v3862
      %v3982 = vpop.f32.mrf.mxu0
      %v3983 = vadd.f32 0.0, %v3982
      %v3984 = vpop.f32.mrf.mxu0
      %v3985 = vpop.f32.mrf.mxu0
      %v3986 = vadd.f32 0.0, %v3985
      %v3987 = vpop.f32.mrf.mxu0
      %3988 = vdwg.mxu0
      %v3989 = vadd.f32 %v3802, %v3951
      %v3990 = vadd.f32 %v3803, %v3954
      %v3991 = vadd.f32 %v3804, %v3959
      %v3992 = vadd.f32 %v3805, %v3962
      %v3993 = vadd.f32 %v3806, %v3967
      %v3994 = vadd.f32 %v3807, %v3970
      %v3995 = vadd.f32 %v3808, %v3975
      %v3996 = vadd.f32 %v3809, %v3978
      %v3997 = vadd.f32 %v3810, %v3983
      %v3998 = vadd.f32 %v3811, %v3986
      %v3999 = vld [vmem:[%s359] sm:$0xf]
      %v4000 = vld [vmem:[%s359 + $0x4] sm:$0xf]
      %v4001 = vld [vmem:[%s359 + $0x8] sm:$0xf]
      %v4002 = vld [vmem:[%s359 + $0xc] sm:$0xf]
      %v4003 = vld [vmem:[%s359 + $0x10] sm:$0xf]
      %v4004 = vld [vmem:[%s359 + $0x14] sm:$0xf]
      %v4005 = vld [vmem:[%s359 + $0x18] sm:$0xf]
      %v4006 = vld [vmem:[%s359 + $0x1c] sm:$0xf]
      %v4007 = vld [vmem:[%s359 + $0x20] sm:$0xf]
      %v4008 = vld [vmem:[%s359 + $0x24] sm:$0xf]
      %v4009 = vld [vmem:[%s359 + $0x28] sm:$0x1]
      %v4010 = vld [vmem:[%s3 + $0x4c0] sm:$0xf]
      %v4011 = vld [vmem:[%s3 + $0x4c4] sm:$0xf]
      %v4012 = vld [vmem:[%s3 + $0x4c8] sm:$0xf]
      %v4013 = vld [vmem:[%s3 + $0x4cc] sm:$0xf]
      %v4014 = vld [vmem:[%s3 + $0x4d0] sm:$0xf]
      %v4015 = vld [vmem:[%s3 + $0x4d4] sm:$0xf]
      %v4016 = vld [vmem:[%s3 + $0x4d8] sm:$0xf]
      %v4017 = vld [vmem:[%s3 + $0x4dc] sm:$0xf]
      %v4018 = vld [vmem:[%s3 + $0x4e0] sm:$0xf]
      %v4019 = vld [vmem:[%s3 + $0x4e4] sm:$0xf]
      %v4020 = vld [vmem:[%s3 + $0x4e8] sm:$0xf]
      %v4021 = vld [vmem:[%s3 + $0x4ec] sm:$0xf]
      %v4022 = vld [vmem:[%s3 + $0x4f0] sm:$0xf]
      %v4023 = vld [vmem:[%s3 + $0x4f4] sm:$0xf]
      %v4024 = vld [vmem:[%s3 + $0x4f8] sm:$0xf]
      %v4025 = vld [vmem:[%s3 + $0x4fc] sm:$0xf]
      %v4037 = vunpack.c.l.b16 %v3999
      %v4038 = vunpack.c.l.b16 %v4000
      %v4039 = vunpack.c.l.b16 %v4001
      %v4040 = vunpack.c.l.b16 %v4002
      %v4041 = vunpack.c.l.b16 %v4003
      %v4042 = vunpack.c.l.b16 %v4004
      %v4043 = vunpack.c.l.b16 %v4005
      %v4044 = vunpack.c.l.b16 %v4006
      %v4045 = vunpack.c.l.b16 %v4007
      %v4046 = vunpack.c.l.b16 %v4008
      %v4047 = vunpack.c.l.b16 %v4009
      %v4048 = vpack.c.b16 %v4038, %v4037
      %v4049 = vpack.c.b16 %v4040, %v4039
      %v4050 = vpack.c.b16 %v4042, %v4041
      %v4051 = vpack.c.b16 %v4044, %v4043
      %v4052 = vpack.c.b16 %v4046, %v4045
      %v4053 = vpack.c.b16 %v4047, %v4047
      %v4055 = vshrl.u32 %v4048, 16
      %v4057 = vshll.u32 %v4048, 16
      %v4059 = vrot.slane %v4057, 1
      %v4060 = vor.u32 %v4055, %v4059
      %v4062 = vshll.u32 %v4049, 16
      %v4064 = vrot.slane %v4062, 1
      %v4065 = vsel %vm442, %v4060, %v4064
      %v4066 = vshrl.u32 %v4049, 16
      %v4068 = vor.u32 %v4066, %v4064
      %v4070 = vshll.u32 %v4050, 16
      %v4072 = vrot.slane %v4070, 1
      %v4073 = vsel %vm442, %v4068, %v4072
      %v4074 = vshrl.u32 %v4050, 16
      %v4076 = vor.u32 %v4074, %v4072
      %v4078 = vshll.u32 %v4051, 16
      %v4080 = vrot.slane %v4078, 1
      %v4081 = vsel %vm442, %v4076, %v4080
      %v4082 = vshrl.u32 %v4051, 16
      %v4084 = vor.u32 %v4082, %v4080
      %v4086 = vshll.u32 %v4052, 16
      %v4088 = vrot.slane %v4086, 1
      %v4089 = vsel %vm442, %v4084, %v4088
      %v4090 = vshrl.u32 %v4052, 16
      %v4092 = vor.u32 %v4090, %v4088
      %v4094 = vshll.u32 %v4053, 16
      %v4096 = vrot.slane %v4094, 1
      %v4097 = vsel %vm442, %v4092, %v4096
      %v4119 = vunpack.c.l.b16 %v4010
      %v4120 = vunpack.c.l.b16 %v4011
      %v4121 = vunpack.c.l.b16 %v4012
      %v4122 = vunpack.c.l.b16 %v4013
      %v4123 = vunpack.c.l.b16 %v4014
      %v4124 = vunpack.c.l.b16 %v4015
      %v4125 = vunpack.c.l.b16 %v4016
      %v4126 = vunpack.c.l.b16 %v4017
      %v4127 = vunpack.c.l.b16 %v4018
      %v4128 = vunpack.c.l.b16 %v4019
      %v4129 = vunpack.c.l.b16 %v4020
      %v4130 = vunpack.c.l.b16 %v4021
      %v4131 = vunpack.c.l.b16 %v4022
      %v4132 = vunpack.c.l.b16 %v4023
      %v4133 = vunpack.c.l.b16 %v4024
      %v4134 = vunpack.c.l.b16 %v4025
      %v4135 = vpack.c.b16 %v4120, %v4119
      %v4136 = vpack.c.b16 %v4122, %v4121
      %v4137 = vpack.c.b16 %v4124, %v4123
      %v4138 = vpack.c.b16 %v4126, %v4125
      %v4139 = vpack.c.b16 %v4128, %v4127
      %v4140 = vpack.c.b16 %v4130, %v4129
      %v4141 = vpack.c.b16 %v4132, %v4131
      %v4142 = vpack.c.b16 %v4134, %v4133
      %4151 = vmatprep.subr.bf16.mxu0 0
      %4152 = vmatpush1.bf16.msra.mxu0 %v4142
      %4153 = vmatprep.subr.bf16.mxu0 0
      %4154 = vmatpush1.bf16.msra.mxu0 %v4141
      %4155 = vmatprep.subr.bf16.mxu0 0
      %4156 = vmatpush1.bf16.msra.mxu0 %v4140
      %4157 = vmatprep.subr.bf16.mxu0 0
      %4158 = vmatpush1.bf16.msra.mxu0 %v4139
      %4159 = vmatprep.subr.bf16.mxu0 0
      %4160 = vmatpush1.bf16.msra.mxu0 %v4138
      %4161 = vmatprep.subr.bf16.mxu0 0
      %4162 = vmatpush1.bf16.msra.mxu0 %v4137
      %4163 = vmatprep.subr.bf16.mxu0 0
      %4164 = vmatpush1.bf16.msra.mxu0 %v4136
      %4165 = vmatprep.subr.bf16.mxu0 0
      %4166 = vmatpush1.bf16.msra.mxu0 %v4135
      %4167 = vmatprep.subr.bf16.mxu0 0
      %4168 = vmatpush2.bf16.msra.mxu0 0
      %4169 = vmatprep.subr.bf16.mxu0 0
      %4170 = vmatpush2.bf16.msra.mxu0 0
      %4171 = vmatprep.subr.bf16.mxu0 0
      %4172 = vmatpush2.bf16.msra.mxu0 0
      %4173 = vmatprep.subr.bf16.mxu0 0
      %4174 = vmatpush2.bf16.msra.mxu0 0
      %4175 = vmatprep.subr.bf16.mxu0 0
      %4176 = vmatpush2.bf16.msra.mxu0 0
      %4177 = vmatprep.subr.bf16.mxu0 0
      %4178 = vmatpush2.bf16.msra.mxu0 0
      %4179 = vmatprep.subr.bf16.mxu0 0
      %4180 = vmatpush2.bf16.msra.mxu0 0
      %4181 = vmatprep.subr.bf16.mxu0 0
      %4182 = vmatpush2.bf16.msra.mxu0 0
      %4183 = vmatprep.mubr.bf16.mxu0 0
      %4184 = vmatmul.mubr.bf16.gmra.mxu0 %v4065
      %v4185 = vpop.f32.mrf.mxu0
      %v4186 = vadd.f32 0.0, %v4185
      %v4187 = vpop.f32.mrf.mxu0
      %v4188 = vpop.f32.mrf.mxu0
      %v4189 = vadd.f32 0.0, %v4188
      %v4190 = vpop.f32.mrf.mxu0
      %4191 = vmatprep.mubr.bf16.mxu0 0
      %4192 = vmatmul.mubr.bf16.gmra.mxu0 %v4073
      %v4193 = vpop.f32.mrf.mxu0
      %v4194 = vadd.f32 0.0, %v4193
      %v4195 = vpop.f32.mrf.mxu0
      %v4196 = vpop.f32.mrf.mxu0
      %v4197 = vadd.f32 0.0, %v4196
      %v4198 = vpop.f32.mrf.mxu0
      %4199 = vmatprep.mubr.bf16.mxu0 0
      %4200 = vmatmul.mubr.bf16.gmra.mxu0 %v4081
      %v4201 = vpop.f32.mrf.mxu0
      %v4202 = vadd.f32 0.0, %v4201
      %v4203 = vpop.f32.mrf.mxu0
      %v4204 = vpop.f32.mrf.mxu0
      %v4205 = vadd.f32 0.0, %v4204
      %v4206 = vpop.f32.mrf.mxu0
      %4207 = vmatprep.mubr.bf16.mxu0 0
      %4208 = vmatmul.mubr.bf16.gmra.mxu0 %v4089
      %v4209 = vpop.f32.mrf.mxu0
      %v4210 = vadd.f32 0.0, %v4209
      %v4211 = vpop.f32.mrf.mxu0
      %v4212 = vpop.f32.mrf.mxu0
      %v4213 = vadd.f32 0.0, %v4212
      %v4214 = vpop.f32.mrf.mxu0
      %4215 = vmatprep.mubr.bf16.mxu0 0
      %4216 = vmatmul.mubr.bf16.gmra.mxu0 %v4097
      %v4217 = vpop.f32.mrf.mxu0
      %v4218 = vadd.f32 0.0, %v4217
      %v4219 = vpop.f32.mrf.mxu0
      %v4220 = vpop.f32.mrf.mxu0
      %v4221 = vadd.f32 0.0, %v4220
      %v4222 = vpop.f32.mrf.mxu0
      %4223 = vdwg.mxu0
      %v4224 = vadd.f32 %v3989, %v4186
      %v4225 = vadd.f32 %v3990, %v4189
      %v4226 = vadd.f32 %v3991, %v4194
      %v4227 = vadd.f32 %v3992, %v4197
      %v4228 = vadd.f32 %v3993, %v4202
      %v4229 = vadd.f32 %v3994, %v4205
      %v4230 = vadd.f32 %v3995, %v4210
      %v4231 = vadd.f32 %v3996, %v4213
      %v4232 = vadd.f32 %v3997, %v4218
      %v4233 = vadd.f32 %v3998, %v4221
      %v4234 = vld [vmem:[%s359] sm:$0xe]
      %v4235 = vld [vmem:[%s3 + $0x500] sm:$0xf]
      %v4236 = vld [vmem:[%s3 + $0x504] sm:$0xf]
      %v4237 = vld [vmem:[%s3 + $0x508] sm:$0xf]
      %v4238 = vld [vmem:[%s3 + $0x50c] sm:$0xf]
      %v4239 = vld [vmem:[%s3 + $0x510] sm:$0xf]
      %v4240 = vld [vmem:[%s3 + $0x514] sm:$0xf]
      %v4241 = vld [vmem:[%s3 + $0x518] sm:$0xf]
      %v4242 = vld [vmem:[%s3 + $0x51c] sm:$0xf]
      %v4243 = vld [vmem:[%s3 + $0x520] sm:$0xf]
      %v4244 = vld [vmem:[%s3 + $0x524] sm:$0xf]
      %v4245 = vld [vmem:[%s3 + $0x528] sm:$0xf]
      %v4246 = vld [vmem:[%s3 + $0x52c] sm:$0xf]
      %v4247 = vld [vmem:[%s3 + $0x530] sm:$0xf]
      %v4248 = vld [vmem:[%s3 + $0x534] sm:$0xf]
      %v4249 = vld [vmem:[%s3 + $0x538] sm:$0xf]
      %v4250 = vld [vmem:[%s3 + $0x53c] sm:$0xf]
      %v4252 = vunpack.c.l.b16 %v4234
      %v4253 = vpack.c.b16 %v4038, %v4252
      %v4254 = vrot.slane %v4253, 1
      %v4255 = vrot.slane %v4049, 1
      %v4256 = vsel %vm759, %v4254, %v4255
      %v4257 = vrot.slane %v4050, 1
      %v4258 = vsel %vm759, %v4255, %v4257
      %v4259 = vrot.slane %v4051, 1
      %v4260 = vsel %vm759, %v4257, %v4259
      %v4261 = vrot.slane %v4052, 1
      %v4262 = vsel %vm759, %v4259, %v4261
      %v4263 = vrot.slane %v4053, 1
      %v4264 = vsel %vm759, %v4261, %v4263
      %v4286 = vunpack.c.l.b16 %v4235
      %v4287 = vunpack.c.l.b16 %v4236
      %v4288 = vunpack.c.l.b16 %v4237
      %v4289 = vunpack.c.l.b16 %v4238
      %v4290 = vunpack.c.l.b16 %v4239
      %v4291 = vunpack.c.l.b16 %v4240
      %v4292 = vunpack.c.l.b16 %v4241
      %v4293 = vunpack.c.l.b16 %v4242
      %v4294 = vunpack.c.l.b16 %v4243
      %v4295 = vunpack.c.l.b16 %v4244
      %v4296 = vunpack.c.l.b16 %v4245
      %v4297 = vunpack.c.l.b16 %v4246
      %v4298 = vunpack.c.l.b16 %v4247
      %v4299 = vunpack.c.l.b16 %v4248
      %v4300 = vunpack.c.l.b16 %v4249
      %v4301 = vunpack.c.l.b16 %v4250
      %v4302 = vpack.c.b16 %v4287, %v4286
      %v4303 = vpack.c.b16 %v4289, %v4288
      %v4304 = vpack.c.b16 %v4291, %v4290
      %v4305 = vpack.c.b16 %v4293, %v4292
      %v4306 = vpack.c.b16 %v4295, %v4294
      %v4307 = vpack.c.b16 %v4297, %v4296
      %v4308 = vpack.c.b16 %v4299, %v4298
      %v4309 = vpack.c.b16 %v4301, %v4300
      %4318 = vmatprep.subr.bf16.mxu0 0
      %4319 = vmatpush1.bf16.msra.mxu0 %v4309
      %4320 = vmatprep.subr.bf16.mxu0 0
      %4321 = vmatpush1.bf16.msra.mxu0 %v4308
      %4322 = vmatprep.subr.bf16.mxu0 0
      %4323 = vmatpush1.bf16.msra.mxu0 %v4307
      %4324 = vmatprep.subr.bf16.mxu0 0
      %4325 = vmatpush1.bf16.msra.mxu0 %v4306
      %4326 = vmatprep.subr.bf16.mxu0 0
      %4327 = vmatpush1.bf16.msra.mxu0 %v4305
      %4328 = vmatprep.subr.bf16.mxu0 0
      %4329 = vmatpush1.bf16.msra.mxu0 %v4304
      %4330 = vmatprep.subr.bf16.mxu0 0
      %4331 = vmatpush1.bf16.msra.mxu0 %v4303
      %4332 = vmatprep.subr.bf16.mxu0 0
      %4333 = vmatpush1.bf16.msra.mxu0 %v4302
      %4334 = vmatprep.subr.bf16.mxu0 0
      %4335 = vmatpush2.bf16.msra.mxu0 0
      %4336 = vmatprep.subr.bf16.mxu0 0
      %4337 = vmatpush2.bf16.msra.mxu0 0
      %4338 = vmatprep.subr.bf16.mxu0 0
      %4339 = vmatpush2.bf16.msra.mxu0 0
      %4340 = vmatprep.subr.bf16.mxu0 0
      %4341 = vmatpush2.bf16.msra.mxu0 0
      %4342 = vmatprep.subr.bf16.mxu0 0
      %4343 = vmatpush2.bf16.msra.mxu0 0
      %4344 = vmatprep.subr.bf16.mxu0 0
      %4345 = vmatpush2.bf16.msra.mxu0 0
      %4346 = vmatprep.subr.bf16.mxu0 0
      %4347 = vmatpush2.bf16.msra.mxu0 0
      %4348 = vmatprep.subr.bf16.mxu0 0
      %4349 = vmatpush2.bf16.msra.mxu0 0
      %4350 = vmatprep.mubr.bf16.mxu0 0
      %4351 = vmatmul.mubr.bf16.gmra.mxu0 %v4256
      %v4352 = vpop.f32.mrf.mxu0
      %v4353 = vadd.f32 0.0, %v4352
      %v4354 = vpop.f32.mrf.mxu0
      %v4355 = vpop.f32.mrf.mxu0
      %v4356 = vadd.f32 0.0, %v4355
      %v4357 = vpop.f32.mrf.mxu0
      %4358 = vmatprep.mubr.bf16.mxu0 0
      %4359 = vmatmul.mubr.bf16.gmra.mxu0 %v4258
      %v4360 = vpop.f32.mrf.mxu0
      %v4361 = vadd.f32 0.0, %v4360
      %v4362 = vpop.f32.mrf.mxu0
      %v4363 = vpop.f32.mrf.mxu0
      %v4364 = vadd.f32 0.0, %v4363
      %v4365 = vpop.f32.mrf.mxu0
      %4366 = vmatprep.mubr.bf16.mxu0 0
      %4367 = vmatmul.mubr.bf16.gmra.mxu0 %v4260
      %v4368 = vpop.f32.mrf.mxu0
      %v4369 = vadd.f32 0.0, %v4368
      %v4370 = vpop.f32.mrf.mxu0
      %v4371 = vpop.f32.mrf.mxu0
      %v4372 = vadd.f32 0.0, %v4371
      %v4373 = vpop.f32.mrf.mxu0
      %4374 = vmatprep.mubr.bf16.mxu0 0
      %4375 = vmatmul.mubr.bf16.gmra.mxu0 %v4262
      %v4376 = vpop.f32.mrf.mxu0
      %v4377 = vadd.f32 0.0, %v4376
      %v4378 = vpop.f32.mrf.mxu0
      %v4379 = vpop.f32.mrf.mxu0
      %v4380 = vadd.f32 0.0, %v4379
      %v4381 = vpop.f32.mrf.mxu0
      %4382 = vmatprep.mubr.bf16.mxu0 0
      %4383 = vmatmul.mubr.bf16.gmra.mxu0 %v4264
      %v4384 = vpop.f32.mrf.mxu0
      %v4385 = vadd.f32 0.0, %v4384
      %v4386 = vpop.f32.mrf.mxu0
      %v4387 = vpop.f32.mrf.mxu0
      %v4388 = vadd.f32 0.0, %v4387
      %v4389 = vpop.f32.mrf.mxu0
      %4390 = vdwg.mxu0
      %v4391 = vadd.f32 %v4224, %v4353
      %v4392 = vadd.f32 %v4225, %v4356
      %v4393 = vadd.f32 %v4226, %v4361
      %v4394 = vadd.f32 %v4227, %v4364
      %v4395 = vadd.f32 %v4228, %v4369
      %v4396 = vadd.f32 %v4229, %v4372
      %v4397 = vadd.f32 %v4230, %v4377
      %v4398 = vadd.f32 %v4231, %v4380
      %v4399 = vadd.f32 %v4232, %v4385
      %v4400 = vadd.f32 %v4233, %v4388
      %v4401 = vld [vmem:[%s359 + $0x4] sm:$0xe]
      %v4402 = vld [vmem:[%s359 + $0x8] sm:$0xf]
      %v4403 = vld [vmem:[%s359 + $0xc] sm:$0xf]
      %v4404 = vld [vmem:[%s359 + $0x10] sm:$0xf]
      %v4405 = vld [vmem:[%s359 + $0x14] sm:$0xf]
      %v4406 = vld [vmem:[%s359 + $0x18] sm:$0xf]
      %v4407 = vld [vmem:[%s359 + $0x1c] sm:$0xf]
      %v4408 = vld [vmem:[%s359 + $0x20] sm:$0xf]
      %v4409 = vld [vmem:[%s359 + $0x24] sm:$0xf]
      %v4410 = vld [vmem:[%s359 + $0x28] sm:$0xf]
      %v4411 = vld [vmem:[%s359 + $0x2c] sm:$0x1]
      %v4412 = vld [vmem:[%s3 + $0x540] sm:$0xf]
      %v4413 = vld [vmem:[%s3 + $0x544] sm:$0xf]
      %v4414 = vld [vmem:[%s3 + $0x548] sm:$0xf]
      %v4415 = vld [vmem:[%s3 + $0x54c] sm:$0xf]
      %v4416 = vld [vmem:[%s3 + $0x550] sm:$0xf]
      %v4417 = vld [vmem:[%s3 + $0x554] sm:$0xf]
      %v4418 = vld [vmem:[%s3 + $0x558] sm:$0xf]
      %v4419 = vld [vmem:[%s3 + $0x55c] sm:$0xf]
      %v4420 = vld [vmem:[%s3 + $0x560] sm:$0xf]
      %v4421 = vld [vmem:[%s3 + $0x564] sm:$0xf]
      %v4422 = vld [vmem:[%s3 + $0x568] sm:$0xf]
      %v4423 = vld [vmem:[%s3 + $0x56c] sm:$0xf]
      %v4424 = vld [vmem:[%s3 + $0x570] sm:$0xf]
      %v4425 = vld [vmem:[%s3 + $0x574] sm:$0xf]
      %v4426 = vld [vmem:[%s3 + $0x578] sm:$0xf]
      %v4427 = vld [vmem:[%s3 + $0x57c] sm:$0xf]
      %v4439 = vunpack.c.l.b16 %v4401
      %v4440 = vunpack.c.l.b16 %v4402
      %v4441 = vunpack.c.l.b16 %v4403
      %v4442 = vunpack.c.l.b16 %v4404
      %v4443 = vunpack.c.l.b16 %v4405
      %v4444 = vunpack.c.l.b16 %v4406
      %v4445 = vunpack.c.l.b16 %v4407
      %v4446 = vunpack.c.l.b16 %v4408
      %v4447 = vunpack.c.l.b16 %v4409
      %v4448 = vunpack.c.l.b16 %v4410
      %v4449 = vunpack.c.l.b16 %v4411
      %v4450 = vpack.c.b16 %v4440, %v4439
      %v4451 = vpack.c.b16 %v4442, %v4441
      %v4452 = vpack.c.b16 %v4444, %v4443
      %v4453 = vpack.c.b16 %v4446, %v4445
      %v4454 = vpack.c.b16 %v4448, %v4447
      %v4455 = vpack.c.b16 %v4449, %v4449
      %v4456 = vrot.slane %v4450, 1
      %v4457 = vrot.slane %v4451, 1
      %v4458 = vsel %vm759, %v4456, %v4457
      %v4459 = vrot.slane %v4452, 1
      %v4460 = vsel %vm759, %v4457, %v4459
      %v4461 = vrot.slane %v4453, 1
      %v4462 = vsel %vm759, %v4459, %v4461
      %v4463 = vrot.slane %v4454, 1
      %v4464 = vsel %vm759, %v4461, %v4463
      %v4465 = vrot.slane %v4455, 1
      %v4466 = vsel %vm759, %v4463, %v4465
      %v4488 = vunpack.c.l.b16 %v4412
      %v4489 = vunpack.c.l.b16 %v4413
      %v4490 = vunpack.c.l.b16 %v4414
      %v4491 = vunpack.c.l.b16 %v4415
      %v4492 = vunpack.c.l.b16 %v4416
      %v4493 = vunpack.c.l.b16 %v4417
      %v4494 = vunpack.c.l.b16 %v4418
      %v4495 = vunpack.c.l.b16 %v4419
      %v4496 = vunpack.c.l.b16 %v4420
      %v4497 = vunpack.c.l.b16 %v4421
      %v4498 = vunpack.c.l.b16 %v4422
      %v4499 = vunpack.c.l.b16 %v4423
      %v4500 = vunpack.c.l.b16 %v4424
      %v4501 = vunpack.c.l.b16 %v4425
      %v4502 = vunpack.c.l.b16 %v4426
      %v4503 = vunpack.c.l.b16 %v4427
      %v4504 = vpack.c.b16 %v4489, %v4488
      %v4505 = vpack.c.b16 %v4491, %v4490
      %v4506 = vpack.c.b16 %v4493, %v4492
      %v4507 = vpack.c.b16 %v4495, %v4494
      %v4508 = vpack.c.b16 %v4497, %v4496
      %v4509 = vpack.c.b16 %v4499, %v4498
      %v4510 = vpack.c.b16 %v4501, %v4500
      %v4511 = vpack.c.b16 %v4503, %v4502
      %4520 = vmatprep.subr.bf16.mxu0 0
      %4521 = vmatpush1.bf16.msra.mxu0 %v4511
      %4522 = vmatprep.subr.bf16.mxu0 0
      %4523 = vmatpush1.bf16.msra.mxu0 %v4510
      %4524 = vmatprep.subr.bf16.mxu0 0
      %4525 = vmatpush1.bf16.msra.mxu0 %v4509
      %4526 = vmatprep.subr.bf16.mxu0 0
      %4527 = vmatpush1.bf16.msra.mxu0 %v4508
      %4528 = vmatprep.subr.bf16.mxu0 0
      %4529 = vmatpush1.bf16.msra.mxu0 %v4507
      %4530 = vmatprep.subr.bf16.mxu0 0
      %4531 = vmatpush1.bf16.msra.mxu0 %v4506
      %4532 = vmatprep.subr.bf16.mxu0 0
      %4533 = vmatpush1.bf16.msra.mxu0 %v4505
      %4534 = vmatprep.subr.bf16.mxu0 0
      %4535 = vmatpush1.bf16.msra.mxu0 %v4504
      %4536 = vmatprep.subr.bf16.mxu0 0
      %4537 = vmatpush2.bf16.msra.mxu0 0
      %4538 = vmatprep.subr.bf16.mxu0 0
      %4539 = vmatpush2.bf16.msra.mxu0 0
      %4540 = vmatprep.subr.bf16.mxu0 0
      %4541 = vmatpush2.bf16.msra.mxu0 0
      %4542 = vmatprep.subr.bf16.mxu0 0
      %4543 = vmatpush2.bf16.msra.mxu0 0
      %4544 = vmatprep.subr.bf16.mxu0 0
      %4545 = vmatpush2.bf16.msra.mxu0 0
      %4546 = vmatprep.subr.bf16.mxu0 0
      %4547 = vmatpush2.bf16.msra.mxu0 0
      %4548 = vmatprep.subr.bf16.mxu0 0
      %4549 = vmatpush2.bf16.msra.mxu0 0
      %4550 = vmatprep.subr.bf16.mxu0 0
      %4551 = vmatpush2.bf16.msra.mxu0 0
      %4552 = vmatprep.mubr.bf16.mxu0 0
      %4553 = vmatmul.mubr.bf16.gmra.mxu0 %v4458
      %v4554 = vpop.f32.mrf.mxu0
      %v4555 = vadd.f32 0.0, %v4554
      %v4556 = vpop.f32.mrf.mxu0
      %v4557 = vpop.f32.mrf.mxu0
      %v4558 = vadd.f32 0.0, %v4557
      %v4559 = vpop.f32.mrf.mxu0
      %4560 = vmatprep.mubr.bf16.mxu0 0
      %4561 = vmatmul.mubr.bf16.gmra.mxu0 %v4460
      %v4562 = vpop.f32.mrf.mxu0
      %v4563 = vadd.f32 0.0, %v4562
      %v4564 = vpop.f32.mrf.mxu0
      %v4565 = vpop.f32.mrf.mxu0
      %v4566 = vadd.f32 0.0, %v4565
      %v4567 = vpop.f32.mrf.mxu0
      %4568 = vmatprep.mubr.bf16.mxu0 0
      %4569 = vmatmul.mubr.bf16.gmra.mxu0 %v4462
      %v4570 = vpop.f32.mrf.mxu0
      %v4571 = vadd.f32 0.0, %v4570
      %v4572 = vpop.f32.mrf.mxu0
      %v4573 = vpop.f32.mrf.mxu0
      %v4574 = vadd.f32 0.0, %v4573
      %v4575 = vpop.f32.mrf.mxu0
      %4576 = vmatprep.mubr.bf16.mxu0 0
      %4577 = vmatmul.mubr.bf16.gmra.mxu0 %v4464
      %v4578 = vpop.f32.mrf.mxu0
      %v4579 = vadd.f32 0.0, %v4578
      %v4580 = vpop.f32.mrf.mxu0
      %v4581 = vpop.f32.mrf.mxu0
      %v4582 = vadd.f32 0.0, %v4581
      %v4583 = vpop.f32.mrf.mxu0
      %4584 = vmatprep.mubr.bf16.mxu0 0
      %4585 = vmatmul.mubr.bf16.gmra.mxu0 %v4466
      %v4586 = vpop.f32.mrf.mxu0
      %v4587 = vadd.f32 0.0, %v4586
      %v4588 = vpop.f32.mrf.mxu0
      %v4589 = vpop.f32.mrf.mxu0
      %v4590 = vadd.f32 0.0, %v4589
      %v4591 = vpop.f32.mrf.mxu0
      %4592 = vdwg.mxu0
      %v4593 = vadd.f32 %v4391, %v4555
      %v4594 = vadd.f32 %v4392, %v4558
      %v4595 = vadd.f32 %v4393, %v4563
      %v4596 = vadd.f32 %v4394, %v4566
      %v4597 = vadd.f32 %v4395, %v4571
      %v4598 = vadd.f32 %v4396, %v4574
      %v4599 = vadd.f32 %v4397, %v4579
      %v4600 = vadd.f32 %v4398, %v4582
      %v4601 = vadd.f32 %v4399, %v4587
      %v4602 = vadd.f32 %v4400, %v4590
      %v4603 = vld [vmem:[%s359 + $0x2c] sm:$0x3]
      %v4604 = vld [vmem:[%s3 + $0x580] sm:$0xf]
      %v4605 = vld [vmem:[%s3 + $0x584] sm:$0xf]
      %v4606 = vld [vmem:[%s3 + $0x588] sm:$0xf]
      %v4607 = vld [vmem:[%s3 + $0x58c] sm:$0xf]
      %v4608 = vld [vmem:[%s3 + $0x590] sm:$0xf]
      %v4609 = vld [vmem:[%s3 + $0x594] sm:$0xf]
      %v4610 = vld [vmem:[%s3 + $0x598] sm:$0xf]
      %v4611 = vld [vmem:[%s3 + $0x59c] sm:$0xf]
      %v4612 = vld [vmem:[%s3 + $0x5a0] sm:$0xf]
      %v4613 = vld [vmem:[%s3 + $0x5a4] sm:$0xf]
      %v4614 = vld [vmem:[%s3 + $0x5a8] sm:$0xf]
      %v4615 = vld [vmem:[%s3 + $0x5ac] sm:$0xf]
      %v4616 = vld [vmem:[%s3 + $0x5b0] sm:$0xf]
      %v4617 = vld [vmem:[%s3 + $0x5b4] sm:$0xf]
      %v4618 = vld [vmem:[%s3 + $0x5b8] sm:$0xf]
      %v4619 = vld [vmem:[%s3 + $0x5bc] sm:$0xf]
      %v4621 = vunpack.c.l.b16 %v4603
      %v4622 = vpack.c.b16 %v4621, %v4621
      %v4624 = vshrl.u32 %v4450, 16
      %v4626 = vrot.slane %v4624, 1
      %v4627 = vshll.u32 %v4450, 16
      %v4629 = vrot.slane %v4627, 2
      %v4630 = vor.u32 %v4626, %v4629
      %v4632 = vshrl.u32 %v4451, 16
      %v4634 = vrot.slane %v4632, 1
      %v4635 = vshll.u32 %v4451, 16
      %v4637 = vrot.slane %v4635, 2
      %v4638 = vor.u32 %v4634, %v4637
      %v4639 = vsel %vm1129, %v4630, %v4638
      %v4641 = vshrl.u32 %v4452, 16
      %v4643 = vrot.slane %v4641, 1
      %v4644 = vshll.u32 %v4452, 16
      %v4646 = vrot.slane %v4644, 2
      %v4647 = vor.u32 %v4643, %v4646
      %v4648 = vsel %vm1129, %v4638, %v4647
      %v4650 = vshrl.u32 %v4453, 16
      %v4652 = vrot.slane %v4650, 1
      %v4653 = vshll.u32 %v4453, 16
      %v4655 = vrot.slane %v4653, 2
      %v4656 = vor.u32 %v4652, %v4655
      %v4657 = vsel %vm1129, %v4647, %v4656
      %v4659 = vshrl.u32 %v4454, 16
      %v4661 = vrot.slane %v4659, 1
      %v4662 = vshll.u32 %v4454, 16
      %v4664 = vrot.slane %v4662, 2
      %v4665 = vor.u32 %v4661, %v4664
      %v4666 = vsel %vm1129, %v4656, %v4665
      %v4668 = vshrl.u32 %v4622, 16
      %v4670 = vrot.slane %v4668, 1
      %v4671 = vshll.u32 %v4622, 16
      %v4673 = vrot.slane %v4671, 2
      %v4674 = vor.u32 %v4670, %v4673
      %v4675 = vsel %vm1129, %v4665, %v4674
      %v4697 = vunpack.c.l.b16 %v4604
      %v4698 = vunpack.c.l.b16 %v4605
      %v4699 = vunpack.c.l.b16 %v4606
      %v4700 = vunpack.c.l.b16 %v4607
      %v4701 = vunpack.c.l.b16 %v4608
      %v4702 = vunpack.c.l.b16 %v4609
      %v4703 = vunpack.c.l.b16 %v4610
      %v4704 = vunpack.c.l.b16 %v4611
      %v4705 = vunpack.c.l.b16 %v4612
      %v4706 = vunpack.c.l.b16 %v4613
      %v4707 = vunpack.c.l.b16 %v4614
      %v4708 = vunpack.c.l.b16 %v4615
      %v4709 = vunpack.c.l.b16 %v4616
      %v4710 = vunpack.c.l.b16 %v4617
      %v4711 = vunpack.c.l.b16 %v4618
      %v4712 = vunpack.c.l.b16 %v4619
      %v4713 = vpack.c.b16 %v4698, %v4697
      %v4714 = vpack.c.b16 %v4700, %v4699
      %v4715 = vpack.c.b16 %v4702, %v4701
      %v4716 = vpack.c.b16 %v4704, %v4703
      %v4717 = vpack.c.b16 %v4706, %v4705
      %v4718 = vpack.c.b16 %v4708, %v4707
      %v4719 = vpack.c.b16 %v4710, %v4709
      %v4720 = vpack.c.b16 %v4712, %v4711
      %4729 = vmatprep.subr.bf16.mxu0 0
      %4730 = vmatpush1.bf16.msra.mxu0 %v4720
      %4731 = vmatprep.subr.bf16.mxu0 0
      %4732 = vmatpush1.bf16.msra.mxu0 %v4719
      %4733 = vmatprep.subr.bf16.mxu0 0
      %4734 = vmatpush1.bf16.msra.mxu0 %v4718
      %4735 = vmatprep.subr.bf16.mxu0 0
      %4736 = vmatpush1.bf16.msra.mxu0 %v4717
      %4737 = vmatprep.subr.bf16.mxu0 0
      %4738 = vmatpush1.bf16.msra.mxu0 %v4716
      %4739 = vmatprep.subr.bf16.mxu0 0
      %4740 = vmatpush1.bf16.msra.mxu0 %v4715
      %4741 = vmatprep.subr.bf16.mxu0 0
      %4742 = vmatpush1.bf16.msra.mxu0 %v4714
      %4743 = vmatprep.subr.bf16.mxu0 0
      %4744 = vmatpush1.bf16.msra.mxu0 %v4713
      %4745 = vmatprep.subr.bf16.mxu0 0
      %4746 = vmatpush2.bf16.msra.mxu0 0
      %4747 = vmatprep.subr.bf16.mxu0 0
      %4748 = vmatpush2.bf16.msra.mxu0 0
      %4749 = vmatprep.subr.bf16.mxu0 0
      %4750 = vmatpush2.bf16.msra.mxu0 0
      %4751 = vmatprep.subr.bf16.mxu0 0
      %4752 = vmatpush2.bf16.msra.mxu0 0
      %4753 = vmatprep.subr.bf16.mxu0 0
      %4754 = vmatpush2.bf16.msra.mxu0 0
      %4755 = vmatprep.subr.bf16.mxu0 0
      %4756 = vmatpush2.bf16.msra.mxu0 0
      %4757 = vmatprep.subr.bf16.mxu0 0
      %4758 = vmatpush2.bf16.msra.mxu0 0
      %4759 = vmatprep.subr.bf16.mxu0 0
      %4760 = vmatpush2.bf16.msra.mxu0 0
      %4761 = vmatprep.mubr.bf16.mxu0 0
      %4762 = vmatmul.mubr.bf16.gmra.mxu0 %v4639
      %v4763 = vpop.f32.mrf.mxu0
      %v4764 = vadd.f32 0.0, %v4763
      %v4765 = vpop.f32.mrf.mxu0
      %v4766 = vpop.f32.mrf.mxu0
      %v4767 = vadd.f32 0.0, %v4766
      %v4768 = vpop.f32.mrf.mxu0
      %4769 = vmatprep.mubr.bf16.mxu0 0
      %4770 = vmatmul.mubr.bf16.gmra.mxu0 %v4648
      %v4771 = vpop.f32.mrf.mxu0
      %v4772 = vadd.f32 0.0, %v4771
      %v4773 = vpop.f32.mrf.mxu0
      %v4774 = vpop.f32.mrf.mxu0
      %v4775 = vadd.f32 0.0, %v4774
      %v4776 = vpop.f32.mrf.mxu0
      %4777 = vmatprep.mubr.bf16.mxu0 0
      %4778 = vmatmul.mubr.bf16.gmra.mxu0 %v4657
      %v4779 = vpop.f32.mrf.mxu0
      %v4780 = vadd.f32 0.0, %v4779
      %v4781 = vpop.f32.mrf.mxu0
      %v4782 = vpop.f32.mrf.mxu0
      %v4783 = vadd.f32 0.0, %v4782
      %v4784 = vpop.f32.mrf.mxu0
      %4785 = vmatprep.mubr.bf16.mxu0 0
      %4786 = vmatmul.mubr.bf16.gmra.mxu0 %v4666
      %v4787 = vpop.f32.mrf.mxu0
      %v4788 = vadd.f32 0.0, %v4787
      %v4789 = vpop.f32.mrf.mxu0
      %v4790 = vpop.f32.mrf.mxu0
      %v4791 = vadd.f32 0.0, %v4790
      %v4792 = vpop.f32.mrf.mxu0
      %4793 = vmatprep.mubr.bf16.mxu0 0
      %4794 = vmatmul.mubr.bf16.gmra.mxu0 %v4675
      %v4795 = vpop.f32.mrf.mxu0
      %v4796 = vadd.f32 0.0, %v4795
      %v4797 = vpop.f32.mrf.mxu0
      %v4798 = vpop.f32.mrf.mxu0
      %v4799 = vadd.f32 0.0, %v4798
      %v4800 = vpop.f32.mrf.mxu0
      %4801 = vdwg.mxu0
      %v4802 = vadd.f32 %v4593, %v4764
      %v4803 = vadd.f32 %v4594, %v4767
      %v4804 = vadd.f32 %v4595, %v4772
      %v4805 = vadd.f32 %v4596, %v4775
      %v4806 = vadd.f32 %v4597, %v4780
      %v4807 = vadd.f32 %v4598, %v4783
      %v4808 = vadd.f32 %v4599, %v4788
      %v4809 = vadd.f32 %v4600, %v4791
      %v4810 = vadd.f32 %v4601, %v4796
      %v4811 = vadd.f32 %v4602, %v4799
      %v4812 = vld [vmem:[%s359 + $0x4] sm:$0xc]
      %v4813 = vld [vmem:[%s3 + $0x5c0] sm:$0xf]
      %v4814 = vld [vmem:[%s3 + $0x5c4] sm:$0xf]
      %v4815 = vld [vmem:[%s3 + $0x5c8] sm:$0xf]
      %v4816 = vld [vmem:[%s3 + $0x5cc] sm:$0xf]
      %v4817 = vld [vmem:[%s3 + $0x5d0] sm:$0xf]
      %v4818 = vld [vmem:[%s3 + $0x5d4] sm:$0xf]
      %v4819 = vld [vmem:[%s3 + $0x5d8] sm:$0xf]
      %v4820 = vld [vmem:[%s3 + $0x5dc] sm:$0xf]
      %v4821 = vld [vmem:[%s3 + $0x5e0] sm:$0xf]
      %v4822 = vld [vmem:[%s3 + $0x5e4] sm:$0xf]
      %v4823 = vld [vmem:[%s3 + $0x5e8] sm:$0xf]
      %v4824 = vld [vmem:[%s3 + $0x5ec] sm:$0xf]
      %v4825 = vld [vmem:[%s3 + $0x5f0] sm:$0xf]
      %v4826 = vld [vmem:[%s3 + $0x5f4] sm:$0xf]
      %v4827 = vld [vmem:[%s3 + $0x5f8] sm:$0xf]
      %v4828 = vld [vmem:[%s3 + $0x5fc] sm:$0xf]
      %v4830 = vunpack.c.l.b16 %v4812
      %v4831 = vpack.c.b16 %v4440, %v4830
      %v4832 = vrot.slane %v4831, 2
      %v4833 = vrot.slane %v4451, 2
      %v4834 = vsel %vm1339, %v4832, %v4833
      %v4835 = vrot.slane %v4452, 2
      %v4836 = vsel %vm1339, %v4833, %v4835
      %v4837 = vrot.slane %v4453, 2
      %v4838 = vsel %vm1339, %v4835, %v4837
      %v4839 = vrot.slane %v4454, 2
      %v4840 = vsel %vm1339, %v4837, %v4839
      %v4841 = vrot.slane %v4622, 2
      %v4842 = vsel %vm1339, %v4839, %v4841
      %v4864 = vunpack.c.l.b16 %v4813
      %v4865 = vunpack.c.l.b16 %v4814
      %v4866 = vunpack.c.l.b16 %v4815
      %v4867 = vunpack.c.l.b16 %v4816
      %v4868 = vunpack.c.l.b16 %v4817
      %v4869 = vunpack.c.l.b16 %v4818
      %v4870 = vunpack.c.l.b16 %v4819
      %v4871 = vunpack.c.l.b16 %v4820
      %v4872 = vunpack.c.l.b16 %v4821
      %v4873 = vunpack.c.l.b16 %v4822
      %v4874 = vunpack.c.l.b16 %v4823
      %v4875 = vunpack.c.l.b16 %v4824
      %v4876 = vunpack.c.l.b16 %v4825
      %v4877 = vunpack.c.l.b16 %v4826
      %v4878 = vunpack.c.l.b16 %v4827
      %v4879 = vunpack.c.l.b16 %v4828
      %v4880 = vpack.c.b16 %v4865, %v4864
      %v4881 = vpack.c.b16 %v4867, %v4866
      %v4882 = vpack.c.b16 %v4869, %v4868
      %v4883 = vpack.c.b16 %v4871, %v4870
      %v4884 = vpack.c.b16 %v4873, %v4872
      %v4885 = vpack.c.b16 %v4875, %v4874
      %v4886 = vpack.c.b16 %v4877, %v4876
      %v4887 = vpack.c.b16 %v4879, %v4878
      %4896 = vmatprep.subr.bf16.mxu0 0
      %4897 = vmatpush1.bf16.msra.mxu0 %v4887
      %4898 = vmatprep.subr.bf16.mxu0 0
      %4899 = vmatpush1.bf16.msra.mxu0 %v4886
      %4900 = vmatprep.subr.bf16.mxu0 0
      %4901 = vmatpush1.bf16.msra.mxu0 %v4885
      %4902 = vmatprep.subr.bf16.mxu0 0
      %4903 = vmatpush1.bf16.msra.mxu0 %v4884
      %4904 = vmatprep.subr.bf16.mxu0 0
      %4905 = vmatpush1.bf16.msra.mxu0 %v4883
      %4906 = vmatprep.subr.bf16.mxu0 0
      %4907 = vmatpush1.bf16.msra.mxu0 %v4882
      %4908 = vmatprep.subr.bf16.mxu0 0
      %4909 = vmatpush1.bf16.msra.mxu0 %v4881
      %4910 = vmatprep.subr.bf16.mxu0 0
      %4911 = vmatpush1.bf16.msra.mxu0 %v4880
      %4912 = vmatprep.subr.bf16.mxu0 0
      %4913 = vmatpush2.bf16.msra.mxu0 0
      %4914 = vmatprep.subr.bf16.mxu0 0
      %4915 = vmatpush2.bf16.msra.mxu0 0
      %4916 = vmatprep.subr.bf16.mxu0 0
      %4917 = vmatpush2.bf16.msra.mxu0 0
      %4918 = vmatprep.subr.bf16.mxu0 0
      %4919 = vmatpush2.bf16.msra.mxu0 0
      %4920 = vmatprep.subr.bf16.mxu0 0
      %4921 = vmatpush2.bf16.msra.mxu0 0
      %4922 = vmatprep.subr.bf16.mxu0 0
      %4923 = vmatpush2.bf16.msra.mxu0 0
      %4924 = vmatprep.subr.bf16.mxu0 0
      %4925 = vmatpush2.bf16.msra.mxu0 0
      %4926 = vmatprep.subr.bf16.mxu0 0
      %4927 = vmatpush2.bf16.msra.mxu0 0
      %4928 = vmatprep.mubr.bf16.mxu0 0
      %4929 = vmatmul.mubr.bf16.gmra.mxu0 %v4834
      %v4930 = vpop.f32.mrf.mxu0
      %v4931 = vadd.f32 0.0, %v4930
      %v4932 = vpop.f32.mrf.mxu0
      %v4933 = vpop.f32.mrf.mxu0
      %v4934 = vadd.f32 0.0, %v4933
      %v4935 = vpop.f32.mrf.mxu0
      %4936 = vmatprep.mubr.bf16.mxu0 0
      %4937 = vmatmul.mubr.bf16.gmra.mxu0 %v4836
      %v4938 = vpop.f32.mrf.mxu0
      %v4939 = vadd.f32 0.0, %v4938
      %v4940 = vpop.f32.mrf.mxu0
      %v4941 = vpop.f32.mrf.mxu0
      %v4942 = vadd.f32 0.0, %v4941
      %v4943 = vpop.f32.mrf.mxu0
      %4944 = vmatprep.mubr.bf16.mxu0 0
      %4945 = vmatmul.mubr.bf16.gmra.mxu0 %v4838
      %v4946 = vpop.f32.mrf.mxu0
      %v4947 = vadd.f32 0.0, %v4946
      %v4948 = vpop.f32.mrf.mxu0
      %v4949 = vpop.f32.mrf.mxu0
      %v4950 = vadd.f32 0.0, %v4949
      %v4951 = vpop.f32.mrf.mxu0
      %4952 = vmatprep.mubr.bf16.mxu0 0
      %4953 = vmatmul.mubr.bf16.gmra.mxu0 %v4840
      %v4954 = vpop.f32.mrf.mxu0
      %v4955 = vadd.f32 0.0, %v4954
      %v4956 = vpop.f32.mrf.mxu0
      %v4957 = vpop.f32.mrf.mxu0
      %v4958 = vadd.f32 0.0, %v4957
      %v4959 = vpop.f32.mrf.mxu0
      %4960 = vmatprep.mubr.bf16.mxu0 0
      %4961 = vmatmul.mubr.bf16.gmra.mxu0 %v4842
      %v4962 = vpop.f32.mrf.mxu0
      %v4963 = vadd.f32 0.0, %v4962
      %v4964 = vpop.f32.mrf.mxu0
      %v4965 = vpop.f32.mrf.mxu0
      %v4966 = vadd.f32 0.0, %v4965
      %v4967 = vpop.f32.mrf.mxu0
      %4968 = vdwg.mxu0
      %v4969 = vadd.f32 %v4802, %v4931
      %v4970 = vadd.f32 %v4803, %v4934
      %v4971 = vadd.f32 %v4804, %v4939
      %v4972 = vadd.f32 %v4805, %v4942
      %v4973 = vadd.f32 %v4806, %v4947
      %v4974 = vadd.f32 %v4807, %v4950
      %v4975 = vadd.f32 %v4808, %v4955
      %v4976 = vadd.f32 %v4809, %v4958
      %v4977 = vadd.f32 %v4810, %v4963
      %v4978 = vadd.f32 %v4811, %v4966
      %v4979 = vld [vmem:[%s359 + $0x8] sm:$0xc]
      %v4980 = vld [vmem:[%s359 + $0xc] sm:$0xf]
      %v4981 = vld [vmem:[%s359 + $0x10] sm:$0xf]
      %v4982 = vld [vmem:[%s359 + $0x14] sm:$0xf]
      %v4983 = vld [vmem:[%s359 + $0x18] sm:$0xf]
      %v4984 = vld [vmem:[%s359 + $0x1c] sm:$0xf]
      %v4985 = vld [vmem:[%s359 + $0x20] sm:$0xf]
      %v4986 = vld [vmem:[%s359 + $0x24] sm:$0xf]
      %v4987 = vld [vmem:[%s359 + $0x28] sm:$0xf]
      %v4988 = vld [vmem:[%s359 + $0x2c] sm:$0xf]
      %v4989 = vld [vmem:[%s359 + $0x30] sm:$0x3]
      %v4990 = vld [vmem:[%s3 + $0x600] sm:$0xf]
      %v4991 = vld [vmem:[%s3 + $0x604] sm:$0xf]
      %v4992 = vld [vmem:[%s3 + $0x608] sm:$0xf]
      %v4993 = vld [vmem:[%s3 + $0x60c] sm:$0xf]
      %v4994 = vld [vmem:[%s3 + $0x610] sm:$0xf]
      %v4995 = vld [vmem:[%s3 + $0x614] sm:$0xf]
      %v4996 = vld [vmem:[%s3 + $0x618] sm:$0xf]
      %v4997 = vld [vmem:[%s3 + $0x61c] sm:$0xf]
      %v4998 = vld [vmem:[%s3 + $0x620] sm:$0xf]
      %v4999 = vld [vmem:[%s3 + $0x624] sm:$0xf]
      %v5000 = vld [vmem:[%s3 + $0x628] sm:$0xf]
      %v5001 = vld [vmem:[%s3 + $0x62c] sm:$0xf]
      %v5002 = vld [vmem:[%s3 + $0x630] sm:$0xf]
      %v5003 = vld [vmem:[%s3 + $0x634] sm:$0xf]
      %v5004 = vld [vmem:[%s3 + $0x638] sm:$0xf]
      %v5005 = vld [vmem:[%s3 + $0x63c] sm:$0xf]
      %v5017 = vunpack.c.l.b16 %v4979
      %v5018 = vunpack.c.l.b16 %v4980
      %v5019 = vunpack.c.l.b16 %v4981
      %v5020 = vunpack.c.l.b16 %v4982
      %v5021 = vunpack.c.l.b16 %v4983
      %v5022 = vunpack.c.l.b16 %v4984
      %v5023 = vunpack.c.l.b16 %v4985
      %v5024 = vunpack.c.l.b16 %v4986
      %v5025 = vunpack.c.l.b16 %v4987
      %v5026 = vunpack.c.l.b16 %v4988
      %v5027 = vunpack.c.l.b16 %v4989
      %v5028 = vpack.c.b16 %v5018, %v5017
      %v5029 = vpack.c.b16 %v5020, %v5019
      %v5030 = vpack.c.b16 %v5022, %v5021
      %v5031 = vpack.c.b16 %v5024, %v5023
      %v5032 = vpack.c.b16 %v5026, %v5025
      %v5033 = vpack.c.b16 %v5027, %v5027
      %v5034 = vrot.slane %v5028, 2
      %v5035 = vrot.slane %v5029, 2
      %v5036 = vsel %vm1339, %v5034, %v5035
      %v5037 = vrot.slane %v5030, 2
      %v5038 = vsel %vm1339, %v5035, %v5037
      %v5039 = vrot.slane %v5031, 2
      %v5040 = vsel %vm1339, %v5037, %v5039
      %v5041 = vrot.slane %v5032, 2
      %v5042 = vsel %vm1339, %v5039, %v5041
      %v5043 = vrot.slane %v5033, 2
      %v5044 = vsel %vm1339, %v5041, %v5043
      %v5066 = vunpack.c.l.b16 %v4990
      %v5067 = vunpack.c.l.b16 %v4991
      %v5068 = vunpack.c.l.b16 %v4992
      %v5069 = vunpack.c.l.b16 %v4993
      %v5070 = vunpack.c.l.b16 %v4994
      %v5071 = vunpack.c.l.b16 %v4995
      %v5072 = vunpack.c.l.b16 %v4996
      %v5073 = vunpack.c.l.b16 %v4997
      %v5074 = vunpack.c.l.b16 %v4998
      %v5075 = vunpack.c.l.b16 %v4999
      %v5076 = vunpack.c.l.b16 %v5000
      %v5077 = vunpack.c.l.b16 %v5001
      %v5078 = vunpack.c.l.b16 %v5002
      %v5079 = vunpack.c.l.b16 %v5003
      %v5080 = vunpack.c.l.b16 %v5004
      %v5081 = vunpack.c.l.b16 %v5005
      %v5082 = vpack.c.b16 %v5067, %v5066
      %v5083 = vpack.c.b16 %v5069, %v5068
      %v5084 = vpack.c.b16 %v5071, %v5070
      %v5085 = vpack.c.b16 %v5073, %v5072
      %v5086 = vpack.c.b16 %v5075, %v5074
      %v5087 = vpack.c.b16 %v5077, %v5076
      %v5088 = vpack.c.b16 %v5079, %v5078
      %v5089 = vpack.c.b16 %v5081, %v5080
      %5098 = vmatprep.subr.bf16.mxu0 0
      %5099 = vmatpush1.bf16.msra.mxu0 %v5089
      %5100 = vmatprep.subr.bf16.mxu0 0
      %5101 = vmatpush1.bf16.msra.mxu0 %v5088
      %5102 = vmatprep.subr.bf16.mxu0 0
      %5103 = vmatpush1.bf16.msra.mxu0 %v5087
      %5104 = vmatprep.subr.bf16.mxu0 0
      %5105 = vmatpush1.bf16.msra.mxu0 %v5086
      %5106 = vmatprep.subr.bf16.mxu0 0
      %5107 = vmatpush1.bf16.msra.mxu0 %v5085
      %5108 = vmatprep.subr.bf16.mxu0 0
      %5109 = vmatpush1.bf16.msra.mxu0 %v5084
      %5110 = vmatprep.subr.bf16.mxu0 0
      %5111 = vmatpush1.bf16.msra.mxu0 %v5083
      %5112 = vmatprep.subr.bf16.mxu0 0
      %5113 = vmatpush1.bf16.msra.mxu0 %v5082
      %5114 = vmatprep.subr.bf16.mxu0 0
      %5115 = vmatpush2.bf16.msra.mxu0 0
      %5116 = vmatprep.subr.bf16.mxu0 0
      %5117 = vmatpush2.bf16.msra.mxu0 0
      %5118 = vmatprep.subr.bf16.mxu0 0
      %5119 = vmatpush2.bf16.msra.mxu0 0
      %5120 = vmatprep.subr.bf16.mxu0 0
      %5121 = vmatpush2.bf16.msra.mxu0 0
      %5122 = vmatprep.subr.bf16.mxu0 0
      %5123 = vmatpush2.bf16.msra.mxu0 0
      %5124 = vmatprep.subr.bf16.mxu0 0
      %5125 = vmatpush2.bf16.msra.mxu0 0
      %5126 = vmatprep.subr.bf16.mxu0 0
      %5127 = vmatpush2.bf16.msra.mxu0 0
      %5128 = vmatprep.subr.bf16.mxu0 0
      %5129 = vmatpush2.bf16.msra.mxu0 0
      %5130 = vmatprep.mubr.bf16.mxu0 0
      %5131 = vmatmul.mubr.bf16.gmra.mxu0 %v5036
      %v5132 = vpop.f32.mrf.mxu0
      %v5133 = vadd.f32 0.0, %v5132
      %v5134 = vpop.f32.mrf.mxu0
      %v5135 = vpop.f32.mrf.mxu0
      %v5136 = vadd.f32 0.0, %v5135
      %v5137 = vpop.f32.mrf.mxu0
      %5138 = vmatprep.mubr.bf16.mxu0 0
      %5139 = vmatmul.mubr.bf16.gmra.mxu0 %v5038
      %v5140 = vpop.f32.mrf.mxu0
      %v5141 = vadd.f32 0.0, %v5140
      %v5142 = vpop.f32.mrf.mxu0
      %v5143 = vpop.f32.mrf.mxu0
      %v5144 = vadd.f32 0.0, %v5143
      %v5145 = vpop.f32.mrf.mxu0
      %5146 = vmatprep.mubr.bf16.mxu0 0
      %5147 = vmatmul.mubr.bf16.gmra.mxu0 %v5040
      %v5148 = vpop.f32.mrf.mxu0
      %v5149 = vadd.f32 0.0, %v5148
      %v5150 = vpop.f32.mrf.mxu0
      %v5151 = vpop.f32.mrf.mxu0
      %v5152 = vadd.f32 0.0, %v5151
      %v5153 = vpop.f32.mrf.mxu0
      %5154 = vmatprep.mubr.bf16.mxu0 0
      %5155 = vmatmul.mubr.bf16.gmra.mxu0 %v5042
      %v5156 = vpop.f32.mrf.mxu0
      %v5157 = vadd.f32 0.0, %v5156
      %v5158 = vpop.f32.mrf.mxu0
      %v5159 = vpop.f32.mrf.mxu0
      %v5160 = vadd.f32 0.0, %v5159
      %v5161 = vpop.f32.mrf.mxu0
      %5162 = vmatprep.mubr.bf16.mxu0 0
      %5163 = vmatmul.mubr.bf16.gmra.mxu0 %v5044
      %v5164 = vpop.f32.mrf.mxu0
      %v5165 = vadd.f32 0.0, %v5164
      %v5166 = vpop.f32.mrf.mxu0
      %v5167 = vpop.f32.mrf.mxu0
      %v5168 = vadd.f32 0.0, %v5167
      %v5169 = vpop.f32.mrf.mxu0
      %5170 = vdwg.mxu0
      %v5171 = vadd.f32 %v4969, %v5133
      %v5172 = vadd.f32 %v4970, %v5136
      %v5173 = vadd.f32 %v4971, %v5141
      %v5174 = vadd.f32 %v4972, %v5144
      %v5175 = vadd.f32 %v4973, %v5149
      %v5176 = vadd.f32 %v4974, %v5152
      %v5177 = vadd.f32 %v4975, %v5157
      %v5178 = vadd.f32 %v4976, %v5160
      %v5179 = vadd.f32 %v4977, %v5165
      %v5180 = vadd.f32 %v4978, %v5168
      %v5181 = vld [vmem:[%s359 + $0x30] sm:$0x7]
      %v5182 = vld [vmem:[%s3 + $0x640] sm:$0xf]
      %v5183 = vld [vmem:[%s3 + $0x644] sm:$0xf]
      %v5184 = vld [vmem:[%s3 + $0x648] sm:$0xf]
      %v5185 = vld [vmem:[%s3 + $0x64c] sm:$0xf]
      %v5186 = vld [vmem:[%s3 + $0x650] sm:$0xf]
      %v5187 = vld [vmem:[%s3 + $0x654] sm:$0xf]
      %v5188 = vld [vmem:[%s3 + $0x658] sm:$0xf]
      %v5189 = vld [vmem:[%s3 + $0x65c] sm:$0xf]
      %v5190 = vld [vmem:[%s3 + $0x660] sm:$0xf]
      %v5191 = vld [vmem:[%s3 + $0x664] sm:$0xf]
      %v5192 = vld [vmem:[%s3 + $0x668] sm:$0xf]
      %v5193 = vld [vmem:[%s3 + $0x66c] sm:$0xf]
      %v5194 = vld [vmem:[%s3 + $0x670] sm:$0xf]
      %v5195 = vld [vmem:[%s3 + $0x674] sm:$0xf]
      %v5196 = vld [vmem:[%s3 + $0x678] sm:$0xf]
      %v5197 = vld [vmem:[%s3 + $0x67c] sm:$0xf]
      %v5199 = vunpack.c.l.b16 %v5181
      %v5200 = vpack.c.b16 %v5199, %v5199
      %v5202 = vshrl.u32 %v5028, 16
      %v5204 = vrot.slane %v5202, 2
      %v5205 = vshll.u32 %v5028, 16
      %v5207 = vrot.slane %v5205, 3
      %v5208 = vor.u32 %v5204, %v5207
      %v5210 = vshrl.u32 %v5029, 16
      %v5212 = vrot.slane %v5210, 2
      %v5213 = vshll.u32 %v5029, 16
      %v5215 = vrot.slane %v5213, 3
      %v5216 = vor.u32 %v5212, %v5215
      %v5217 = vsel %vm1709, %v5208, %v5216
      %v5219 = vshrl.u32 %v5030, 16
      %v5221 = vrot.slane %v5219, 2
      %v5222 = vshll.u32 %v5030, 16
      %v5224 = vrot.slane %v5222, 3
      %v5225 = vor.u32 %v5221, %v5224
      %v5226 = vsel %vm1709, %v5216, %v5225
      %v5228 = vshrl.u32 %v5031, 16
      %v5230 = vrot.slane %v5228, 2
      %v5231 = vshll.u32 %v5031, 16
      %v5233 = vrot.slane %v5231, 3
      %v5234 = vor.u32 %v5230, %v5233
      %v5235 = vsel %vm1709, %v5225, %v5234
      %v5237 = vshrl.u32 %v5032, 16
      %v5239 = vrot.slane %v5237, 2
      %v5240 = vshll.u32 %v5032, 16
      %v5242 = vrot.slane %v5240, 3
      %v5243 = vor.u32 %v5239, %v5242
      %v5244 = vsel %vm1709, %v5234, %v5243
      %v5246 = vshrl.u32 %v5200, 16
      %v5248 = vrot.slane %v5246, 2
      %v5249 = vshll.u32 %v5200, 16
      %v5251 = vrot.slane %v5249, 3
      %v5252 = vor.u32 %v5248, %v5251
      %v5253 = vsel %vm1709, %v5243, %v5252
      %v5275 = vunpack.c.l.b16 %v5182
      %v5276 = vunpack.c.l.b16 %v5183
      %v5277 = vunpack.c.l.b16 %v5184
      %v5278 = vunpack.c.l.b16 %v5185
      %v5279 = vunpack.c.l.b16 %v5186
      %v5280 = vunpack.c.l.b16 %v5187
      %v5281 = vunpack.c.l.b16 %v5188
      %v5282 = vunpack.c.l.b16 %v5189
      %v5283 = vunpack.c.l.b16 %v5190
      %v5284 = vunpack.c.l.b16 %v5191
      %v5285 = vunpack.c.l.b16 %v5192
      %v5286 = vunpack.c.l.b16 %v5193
      %v5287 = vunpack.c.l.b16 %v5194
      %v5288 = vunpack.c.l.b16 %v5195
      %v5289 = vunpack.c.l.b16 %v5196
      %v5290 = vunpack.c.l.b16 %v5197
      %v5291 = vpack.c.b16 %v5276, %v5275
      %v5292 = vpack.c.b16 %v5278, %v5277
      %v5293 = vpack.c.b16 %v5280, %v5279
      %v5294 = vpack.c.b16 %v5282, %v5281
      %v5295 = vpack.c.b16 %v5284, %v5283
      %v5296 = vpack.c.b16 %v5286, %v5285
      %v5297 = vpack.c.b16 %v5288, %v5287
      %v5298 = vpack.c.b16 %v5290, %v5289
      %5307 = vmatprep.subr.bf16.mxu0 0
      %5308 = vmatpush1.bf16.msra.mxu0 %v5298
      %5309 = vmatprep.subr.bf16.mxu0 0
      %5310 = vmatpush1.bf16.msra.mxu0 %v5297
      %5311 = vmatprep.subr.bf16.mxu0 0
      %5312 = vmatpush1.bf16.msra.mxu0 %v5296
      %5313 = vmatprep.subr.bf16.mxu0 0
      %5314 = vmatpush1.bf16.msra.mxu0 %v5295
      %5315 = vmatprep.subr.bf16.mxu0 0
      %5316 = vmatpush1.bf16.msra.mxu0 %v5294
      %5317 = vmatprep.subr.bf16.mxu0 0
      %5318 = vmatpush1.bf16.msra.mxu0 %v5293
      %5319 = vmatprep.subr.bf16.mxu0 0
      %5320 = vmatpush1.bf16.msra.mxu0 %v5292
      %5321 = vmatprep.subr.bf16.mxu0 0
      %5322 = vmatpush1.bf16.msra.mxu0 %v5291
      %5323 = vmatprep.subr.bf16.mxu0 0
      %5324 = vmatpush2.bf16.msra.mxu0 0
      %5325 = vmatprep.subr.bf16.mxu0 0
      %5326 = vmatpush2.bf16.msra.mxu0 0
      %5327 = vmatprep.subr.bf16.mxu0 0
      %5328 = vmatpush2.bf16.msra.mxu0 0
      %5329 = vmatprep.subr.bf16.mxu0 0
      %5330 = vmatpush2.bf16.msra.mxu0 0
      %5331 = vmatprep.subr.bf16.mxu0 0
      %5332 = vmatpush2.bf16.msra.mxu0 0
      %5333 = vmatprep.subr.bf16.mxu0 0
      %5334 = vmatpush2.bf16.msra.mxu0 0
      %5335 = vmatprep.subr.bf16.mxu0 0
      %5336 = vmatpush2.bf16.msra.mxu0 0
      %5337 = vmatprep.subr.bf16.mxu0 0
      %5338 = vmatpush2.bf16.msra.mxu0 0
      %5339 = vmatprep.mubr.bf16.mxu0 0
      %5340 = vmatmul.mubr.bf16.gmra.mxu0 %v5217
      %v5341 = vpop.f32.mrf.mxu0
      %v5342 = vadd.f32 0.0, %v5341
      %v5343 = vpop.f32.mrf.mxu0
      %v5344 = vpop.f32.mrf.mxu0
      %v5345 = vadd.f32 0.0, %v5344
      %v5346 = vpop.f32.mrf.mxu0
      %5347 = vmatprep.mubr.bf16.mxu0 0
      %5348 = vmatmul.mubr.bf16.gmra.mxu0 %v5226
      %v5349 = vpop.f32.mrf.mxu0
      %v5350 = vadd.f32 0.0, %v5349
      %v5351 = vpop.f32.mrf.mxu0
      %v5352 = vpop.f32.mrf.mxu0
      %v5353 = vadd.f32 0.0, %v5352
      %v5354 = vpop.f32.mrf.mxu0
      %5355 = vmatprep.mubr.bf16.mxu0 0
      %5356 = vmatmul.mubr.bf16.gmra.mxu0 %v5235
      %v5357 = vpop.f32.mrf.mxu0
      %v5358 = vadd.f32 0.0, %v5357
      %v5359 = vpop.f32.mrf.mxu0
      %v5360 = vpop.f32.mrf.mxu0
      %v5361 = vadd.f32 0.0, %v5360
      %v5362 = vpop.f32.mrf.mxu0
      %5363 = vmatprep.mubr.bf16.mxu0 0
      %5364 = vmatmul.mubr.bf16.gmra.mxu0 %v5244
      %v5365 = vpop.f32.mrf.mxu0
      %v5366 = vadd.f32 0.0, %v5365
      %v5367 = vpop.f32.mrf.mxu0
      %v5368 = vpop.f32.mrf.mxu0
      %v5369 = vadd.f32 0.0, %v5368
      %v5370 = vpop.f32.mrf.mxu0
      %5371 = vmatprep.mubr.bf16.mxu0 0
      %5372 = vmatmul.mubr.bf16.gmra.mxu0 %v5253
      %v5373 = vpop.f32.mrf.mxu0
      %v5374 = vadd.f32 0.0, %v5373
      %v5375 = vpop.f32.mrf.mxu0
      %v5376 = vpop.f32.mrf.mxu0
      %v5377 = vadd.f32 0.0, %v5376
      %v5378 = vpop.f32.mrf.mxu0
      %5379 = vdwg.mxu0
      %v5380 = vadd.f32 %v5171, %v5342
      %v5381 = vadd.f32 %v5172, %v5345
      %v5382 = vadd.f32 %v5173, %v5350
      %v5383 = vadd.f32 %v5174, %v5353
      %v5384 = vadd.f32 %v5175, %v5358
      %v5385 = vadd.f32 %v5176, %v5361
      %v5386 = vadd.f32 %v5177, %v5366
      %v5387 = vadd.f32 %v5178, %v5369
      %v5388 = vadd.f32 %v5179, %v5374
      %v5389 = vadd.f32 %v5180, %v5377
      %v5390 = vld [vmem:[%s359 + $0x8] sm:$0x8]
      %v5391 = vld [vmem:[%s3 + $0x680] sm:$0xf]
      %v5392 = vld [vmem:[%s3 + $0x684] sm:$0xf]
      %v5393 = vld [vmem:[%s3 + $0x688] sm:$0xf]
      %v5394 = vld [vmem:[%s3 + $0x68c] sm:$0xf]
      %v5395 = vld [vmem:[%s3 + $0x690] sm:$0xf]
      %v5396 = vld [vmem:[%s3 + $0x694] sm:$0xf]
      %v5397 = vld [vmem:[%s3 + $0x698] sm:$0xf]
      %v5398 = vld [vmem:[%s3 + $0x69c] sm:$0xf]
      %v5399 = vld [vmem:[%s3 + $0x6a0] sm:$0xf]
      %v5400 = vld [vmem:[%s3 + $0x6a4] sm:$0xf]
      %v5401 = vld [vmem:[%s3 + $0x6a8] sm:$0xf]
      %v5402 = vld [vmem:[%s3 + $0x6ac] sm:$0xf]
      %v5403 = vld [vmem:[%s3 + $0x6b0] sm:$0xf]
      %v5404 = vld [vmem:[%s3 + $0x6b4] sm:$0xf]
      %v5405 = vld [vmem:[%s3 + $0x6b8] sm:$0xf]
      %v5406 = vld [vmem:[%s3 + $0x6bc] sm:$0xf]
      %v5408 = vunpack.c.l.b16 %v5390
      %v5409 = vpack.c.b16 %v5018, %v5408
      %v5410 = vrot.slane %v5409, 3
      %v5411 = vrot.slane %v5029, 3
      %v5412 = vsel %vm1919, %v5410, %v5411
      %v5413 = vrot.slane %v5030, 3
      %v5414 = vsel %vm1919, %v5411, %v5413
      %v5415 = vrot.slane %v5031, 3
      %v5416 = vsel %vm1919, %v5413, %v5415
      %v5417 = vrot.slane %v5032, 3
      %v5418 = vsel %vm1919, %v5415, %v5417
      %v5419 = vrot.slane %v5200, 3
      %v5420 = vsel %vm1919, %v5417, %v5419
      %v5442 = vunpack.c.l.b16 %v5391
      %v5443 = vunpack.c.l.b16 %v5392
      %v5444 = vunpack.c.l.b16 %v5393
      %v5445 = vunpack.c.l.b16 %v5394
      %v5446 = vunpack.c.l.b16 %v5395
      %v5447 = vunpack.c.l.b16 %v5396
      %v5448 = vunpack.c.l.b16 %v5397
      %v5449 = vunpack.c.l.b16 %v5398
      %v5450 = vunpack.c.l.b16 %v5399
      %v5451 = vunpack.c.l.b16 %v5400
      %v5452 = vunpack.c.l.b16 %v5401
      %v5453 = vunpack.c.l.b16 %v5402
      %v5454 = vunpack.c.l.b16 %v5403
      %v5455 = vunpack.c.l.b16 %v5404
      %v5456 = vunpack.c.l.b16 %v5405
      %v5457 = vunpack.c.l.b16 %v5406
      %v5458 = vpack.c.b16 %v5443, %v5442
      %v5459 = vpack.c.b16 %v5445, %v5444
      %v5460 = vpack.c.b16 %v5447, %v5446
      %v5461 = vpack.c.b16 %v5449, %v5448
      %v5462 = vpack.c.b16 %v5451, %v5450
      %v5463 = vpack.c.b16 %v5453, %v5452
      %v5464 = vpack.c.b16 %v5455, %v5454
      %v5465 = vpack.c.b16 %v5457, %v5456
      %5474 = vmatprep.subr.bf16.mxu0 0
      %5475 = vmatpush1.bf16.msra.mxu0 %v5465
      %5476 = vmatprep.subr.bf16.mxu0 0
      %5477 = vmatpush1.bf16.msra.mxu0 %v5464
      %5478 = vmatprep.subr.bf16.mxu0 0
      %5479 = vmatpush1.bf16.msra.mxu0 %v5463
      %5480 = vmatprep.subr.bf16.mxu0 0
      %5481 = vmatpush1.bf16.msra.mxu0 %v5462
      %5482 = vmatprep.subr.bf16.mxu0 0
      %5483 = vmatpush1.bf16.msra.mxu0 %v5461
      %5484 = vmatprep.subr.bf16.mxu0 0
      %5485 = vmatpush1.bf16.msra.mxu0 %v5460
      %5486 = vmatprep.subr.bf16.mxu0 0
      %5487 = vmatpush1.bf16.msra.mxu0 %v5459
      %5488 = vmatprep.subr.bf16.mxu0 0
      %5489 = vmatpush1.bf16.msra.mxu0 %v5458
      %5490 = vmatprep.subr.bf16.mxu0 0
      %5491 = vmatpush2.bf16.msra.mxu0 0
      %5492 = vmatprep.subr.bf16.mxu0 0
      %5493 = vmatpush2.bf16.msra.mxu0 0
      %5494 = vmatprep.subr.bf16.mxu0 0
      %5495 = vmatpush2.bf16.msra.mxu0 0
      %5496 = vmatprep.subr.bf16.mxu0 0
      %5497 = vmatpush2.bf16.msra.mxu0 0
      %5498 = vmatprep.subr.bf16.mxu0 0
      %5499 = vmatpush2.bf16.msra.mxu0 0
      %5500 = vmatprep.subr.bf16.mxu0 0
      %5501 = vmatpush2.bf16.msra.mxu0 0
      %5502 = vmatprep.subr.bf16.mxu0 0
      %5503 = vmatpush2.bf16.msra.mxu0 0
      %5504 = vmatprep.subr.bf16.mxu0 0
      %5505 = vmatpush2.bf16.msra.mxu0 0
      %5506 = vmatprep.mubr.bf16.mxu0 0
      %5507 = vmatmul.mubr.bf16.gmra.mxu0 %v5412
      %v5508 = vpop.f32.mrf.mxu0
      %v5509 = vadd.f32 0.0, %v5508
      %v5510 = vpop.f32.mrf.mxu0
      %v5511 = vpop.f32.mrf.mxu0
      %v5512 = vadd.f32 0.0, %v5511
      %v5513 = vpop.f32.mrf.mxu0
      %5514 = vmatprep.mubr.bf16.mxu0 0
      %5515 = vmatmul.mubr.bf16.gmra.mxu0 %v5414
      %v5516 = vpop.f32.mrf.mxu0
      %v5517 = vadd.f32 0.0, %v5516
      %v5518 = vpop.f32.mrf.mxu0
      %v5519 = vpop.f32.mrf.mxu0
      %v5520 = vadd.f32 0.0, %v5519
      %v5521 = vpop.f32.mrf.mxu0
      %5522 = vmatprep.mubr.bf16.mxu0 0
      %5523 = vmatmul.mubr.bf16.gmra.mxu0 %v5416
      %v5524 = vpop.f32.mrf.mxu0
      %v5525 = vadd.f32 0.0, %v5524
      %v5526 = vpop.f32.mrf.mxu0
      %v5527 = vpop.f32.mrf.mxu0
      %v5528 = vadd.f32 0.0, %v5527
      %v5529 = vpop.f32.mrf.mxu0
      %5530 = vmatprep.mubr.bf16.mxu0 0
      %5531 = vmatmul.mubr.bf16.gmra.mxu0 %v5418
      %v5532 = vpop.f32.mrf.mxu0
      %v5533 = vadd.f32 0.0, %v5532
      %v5534 = vpop.f32.mrf.mxu0
      %v5535 = vpop.f32.mrf.mxu0
      %v5536 = vadd.f32 0.0, %v5535
      %v5537 = vpop.f32.mrf.mxu0
      %5538 = vmatprep.mubr.bf16.mxu0 0
      %5539 = vmatmul.mubr.bf16.gmra.mxu0 %v5420
      %v5540 = vpop.f32.mrf.mxu0
      %v5541 = vadd.f32 0.0, %v5540
      %v5542 = vpop.f32.mrf.mxu0
      %v5543 = vpop.f32.mrf.mxu0
      %v5544 = vadd.f32 0.0, %v5543
      %v5545 = vpop.f32.mrf.mxu0
      %5546 = vdwg.mxu0
      %v5547 = vadd.f32 %v5380, %v5509
      %v5548 = vadd.f32 %v5381, %v5512
      %v5549 = vadd.f32 %v5382, %v5517
      %v5550 = vadd.f32 %v5383, %v5520
      %v5551 = vadd.f32 %v5384, %v5525
      %v5552 = vadd.f32 %v5385, %v5528
      %v5553 = vadd.f32 %v5386, %v5533
      %v5554 = vadd.f32 %v5387, %v5536
      %v5555 = vadd.f32 %v5388, %v5541
      %v5556 = vadd.f32 %v5389, %v5544
      %v5557 = vld [vmem:[%s4] sm:$0x1]
      %v5559 = vlaneseq
      %v5560 = vshrl.u32 %v5559, 7
      %v5561 = vsub.s32 0, %v5560
      %v5562 = vrot.slane %v5557, %v5561
      %v5564 = vmul.f32 %v5547, %v5562
      %v5565 = vmul.f32 %v5548, %v5562
      %v5566 = vmul.f32 %v5549, %v5562
      %v5567 = vmul.f32 %v5550, %v5562
      %v5568 = vmul.f32 %v5551, %v5562
      %v5569 = vmul.f32 %v5552, %v5562
      %v5570 = vmul.f32 %v5553, %v5562
      %v5571 = vmul.f32 %v5554, %v5562
      %v5572 = vmul.f32 %v5555, %v5562
      %v5573 = vmul.f32 %v5556, %v5562
      %v5574 = vld [vmem:[%s5] sm:$0x1]
      %v5576 = vlaneseq
      %v5577 = vshrl.u32 %v5576, 7
      %v5578 = vsub.s32 0, %v5577
      %v5579 = vrot.slane %v5574, %v5578
      %v5581 = vadd.f32 %v5564, %v5579
      %v5582 = vadd.f32 %v5565, %v5579
      %v5583 = vadd.f32 %v5566, %v5579
      %v5584 = vadd.f32 %v5567, %v5579
      %v5585 = vadd.f32 %v5568, %v5579
      %v5586 = vadd.f32 %v5569, %v5579
      %v5587 = vadd.f32 %v5570, %v5579
      %v5588 = vadd.f32 %v5571, %v5579
      %v5589 = vadd.f32 %v5572, %v5579
      %v5590 = vadd.f32 %v5573, %v5579
      %v5591 = vmax.f32 %v5581, 0.0
      %v5592 = vmax.f32 %v5582, 0.0
      %v5593 = vmax.f32 %v5583, 0.0
      %v5594 = vmax.f32 %v5584, 0.0
      %v5595 = vmax.f32 %v5585, 0.0
      %v5596 = vmax.f32 %v5586, 0.0
      %v5597 = vmax.f32 %v5587, 0.0
      %v5598 = vmax.f32 %v5588, 0.0
      %v5599 = vmax.f32 %v5589, 0.0
      %v5600 = vmax.f32 %v5590, 0.0
      %v5601 = vpack.c.bf16 %v5592, %v5591
      %v5602 = vpack.c.bf16 %v5594, %v5593
      %v5603 = vpack.c.bf16 %v5596, %v5595
      %v5604 = vpack.c.bf16 %v5598, %v5597
      %v5605 = vpack.c.bf16 %v5600, %v5599
      %v5611 = vunpack.c.l.b16 %v5601
      %v5612 = vunpack.c.h.b16 %v5601
      %v5613 = vunpack.c.l.b16 %v5602
      %v5614 = vunpack.c.h.b16 %v5602
      %v5615 = vunpack.c.l.b16 %v5603
      %v5616 = vunpack.c.h.b16 %v5603
      %v5617 = vunpack.c.l.b16 %v5604
      %v5618 = vunpack.c.h.b16 %v5604
      %v5619 = vunpack.c.l.b16 %v5605
      %v5620 = vunpack.c.h.b16 %v5605
      %v5621 = vpack.c.b16 %v5611, %v5611
      %v5622 = vpack.c.b16 %v5612, %v5612
      %v5623 = vpack.c.b16 %v5613, %v5613
      %v5624 = vpack.c.b16 %v5614, %v5614
      %v5625 = vpack.c.b16 %v5615, %v5615
      %v5626 = vpack.c.b16 %v5616, %v5616
      %v5627 = vpack.c.b16 %v5617, %v5617
      %v5628 = vpack.c.b16 %v5618, %v5618
      %v5629 = vpack.c.b16 %v5619, %v5619
      %v5630 = vpack.c.b16 %v5620, %v5620
      %5641 = vst [vmem:[%s369] sm:$0xf] %v5621
      %5642 = vst [vmem:[%s369 + $0x4] sm:$0xf] %v5622
      %5643 = vst [vmem:[%s369 + $0x8] sm:$0xf] %v5623
      %5644 = vst [vmem:[%s369 + $0xc] sm:$0xf] %v5624
      %5645 = vst [vmem:[%s369 + $0x10] sm:$0xf] %v5625
      %5646 = vst [vmem:[%s369 + $0x14] sm:$0xf] %v5626
      %5647 = vst [vmem:[%s369 + $0x18] sm:$0xf] %v5627
      %5648 = vst [vmem:[%s369 + $0x1c] sm:$0xf] %v5628
      %5649 = vst [vmem:[%s369 + $0x20] sm:$0xf] %v5629
      %5650 = vst [vmem:[%s369 + $0x24] sm:$0xf] %v5630
      %p5651 = scmp.lt.s32.totalorder %s21, 1
      %s5652 = scalar_select %p5651, %s21, 1
      %p5653 = scmp.lt.s32.totalorder %s22, 3
      %s5654 = scalar_select %p5653, %s22, 3
      %s5655 = smul.addr %s5654, 10
      %s5656 = smul.addr %s5652, 40
      %s5657 = sadd.s32 %s5655, %s5656
      %s5658 = smul.addr %s5657, 4
      %s5659 = scalar_lea.vmem %s6, %s5658
      // Predicated region
      $region45: #{basic_block_forward.2} parent=43 // pred_check
        %p5660 = pneg %p200
      $region46: #{basic_block_forward.2} parent=43 // pred_check_branch
        %5662 = sbr.rel (%p5660) target = $region48
      $region47: #{basic_block_forward.2} parent=43 // pred_region
        _
      $region48: #{basic_block_forward.2} parent=43 // pred_fallthru
        _
    $region44: #{basic_block_forward.2} parent=5 // pred_fallthru
      _
    %p5663 = scmp.le.s32.totalorder 2, %s12
    // Predicated region
    $region49: #{basic_block_forward.2} parent=5 // pred_check
      %p5664 = pneg %p5663
    $region50: #{basic_block_forward.2} parent=5 // pred_check_branch
      %5666 = sbr.rel (%p5664) target = $region52
    $region51: #{basic_block_forward.2} parent=5 // pred_region
      %s5667 = ssub.s32 %s12, 2
      // Predicated region
      $region53: #{basic_block_forward.2} parent=51 // pred_check
        %p5668 = pneg %p206
      $region54: #{basic_block_forward.2} parent=51 // pred_check_branch
        %5670 = sbr.rel (%p5668) target = $region56
      $region55: #{basic_block_forward.2} parent=51 // pred_region
        %p5671 = scmp.lt.s32.totalorder %s23, 1
        %s5672 = scalar_select %p5671, %s23, 1
        %p5673 = scmp.lt.s32.totalorder %s24, 3
        %s5674 = scalar_select %p5673, %s24, 3
        %s5675 = smul.addr %s5674, 10
        %s5676 = smul.addr %s5672, 40
        %s5677 = sadd.s32 %s5675, %s5676
        %s5678 = smul.addr %s5677, 4
        %s5679 = scalar_lea.vmem %s6, %s5678
      $region56: #{basic_block_forward.2} parent=51 // pred_fallthru
        _
    $region52: #{basic_block_forward.2} parent=5 // pred_fallthru
      _
  $region6: #{basic_block_forward.2} parent=0 // loop_footer
    %s16 = sadd.s32 1, %s12
  $region7: #{basic_block_forward.2} parent=0 // loop_footer_branch
    %11 = sbr.rel target = $region3
  $region8: #{basic_block_forward.2} parent=0 // loop_exit
    _

// kernel: basic_block_forward.3
$region0: #{basic_block_forward.3}
  #allocation0 [shape = 'u32[]', space=smem, size = 0x4, offset = 0x4, fixed_abs, tag = 'smem constant byte address 0x4 - core index']
  #allocation1 [shape = 'u32[144,128]{1,0:T(1,128)}', space=vmem, size = 0x12000, scoped, tag = 'internal scratch']
  %s0 = inlined_call_operand.vmem [shape: bf16[2,6,110,128], index: 0, kind: input, shape index: {}, may-alias: {0,1,2}]
  %s1 = inlined_call_operand.vmem [shape: bf16[2,6,110,128], index: 1, kind: input, shape index: {}, may-alias: {0,1,2}]
  %s2 = inlined_call_operand.vmem [shape: bf16[2,6,110,128], index: 2, kind: input, shape index: {}, may-alias: {0,1,2}]
  %s3 = inlined_call_operand.vmem [shape: bf16[3456,128], index: 3, kind: input, shape index: {}]
  %s4 = inlined_call_operand.vmem [shape: f32[1,128], index: 4, kind: input, shape index: {}]
  %s5 = inlined_call_operand.vmem [shape: f32[1,128], index: 5, kind: input, shape index: {}]
  %s6 = inlined_call_operand.vmem [shape: bf16[2,4,80,128], index: 6, kind: input, shape index: {}]
  %s7 = inlined_call_operand.vmem [shape: f32[2,4,80,128], index: 7, kind: output, shape index: {}]
  %s8 = sld [smem:[#allocation0]]
  $region61: #{basic_block_forward.3} parent=0
    _
  %s10 = ssub.s32 1, %s8
  %s11 = scalar_select 0, %s10, %s8
  loop: start=0, step=1, limit=10
  $region2: #{basic_block_forward.3} parent=0 // loop_pre_header
    _
  $region3: #{basic_block_forward.3} parent=0 // loop_header
    %s13 = sphi 0, %s17
    %p14 = scmp.ge.s32.totalorder %s13, 10
    %s20 = sphi 0, %s32
    %s21 = sphi 0, %s28
    %s22 = sphi 0, %s20
    %s23 = sphi 0, %s21
    %s24 = sphi 0, %s22
    %s25 = sphi 0, %s23
    %s37 = sphi 0, %s39
    %s40 = sphi 0, %s37
    %s41 = sphi 0, %s40
    %s57 = sphi 0, %s41
    %s67 = sphi 0, %s69
    %s70 = sphi 0, %s67
    %s71 = sphi 0, %s70
    %s87 = sphi 0, %s71
    %s97 = sphi 0, %s99
    %s100 = sphi 0, %s97
    %s101 = sphi 0, %s100
    %s117 = sphi 0, %s101
    %s121 = sphi 0, %s121
    %s123 = sphi 0, %s121
    %s124 = sphi 0, %s123
    %s138 = sphi 0, %s124
    %s142 = sphi 0, %s142
    %s144 = sphi 0, %s142
    %s145 = sphi 0, %s144
    %s159 = sphi 0, %s145
    %s163 = sphi 0, %s163
    %s165 = sphi 0, %s163
    %s166 = sphi 0, %s165
    %s180 = sphi 0, %s166
    %s188 = sphi 0, %s190
    %s191 = sphi 0, %s188
    %s192 = sphi 0, %s191
    %s208 = sphi 0, %s192
    %s216 = sphi 0, %s218
    %s219 = sphi 0, %s216
    %s220 = sphi 0, %s219
    %s236 = sphi 0, %s220
  $region4: #{basic_block_forward.3} parent=0 // loop_header_branch
    %16 = sbr.rel (%p14) target = $region8
  $region5: #{basic_block_forward.3} parent=0 // loop_body
    %s18 = ssub.s32 %s13, 1
    %s19 = ssub.s32 %s13, 2
    %s26 = sadd.s32 1, %s21
    %p27 = scmp.ge.s32.totalorder %s26, 4
    %s28 = scalar_select %p27, 0, %s26
    %s29 = sadd.s32 1, %s20
    %s30 = scalar_select %p27, %s29, %s20
    %p31 = scmp.ge.s32.totalorder %s30, 2
    %s32 = scalar_select %p31, 0, %s30
    %s33 = ssub.s32 %s20, %s32
    %s34 = ssub.s32 %s21, %s28
    %s35 = sor.u32 %s33, %s34
    %p36 = scmp.eq.s32.totalorder %s35, 0
    %s38 = sadd.s32 %s37, 1
    %s39 = scalar_select %p36, %s37, %s38
    %p42 = pneg %p36
    %p43 = scmp.eq.s32.totalorder %s13, 7
    %p44 = por %p42, %p43
    %p45 = scmp.ne.s32.totalorder %s37, %s40
    %p46 = scmp.eq.s32.totalorder %s13, 0
    %p47 = por %p45, %p46
    %p48 = scmp.ne.s32.totalorder %s37, %s40
    %p49 = scmp.eq.s32.totalorder %s18, 7
    %p50 = por %p48, %p49
    %p51 = scmp.ne.s32.totalorder %s40, %s41
    %p52 = scmp.eq.s32.totalorder %s18, 0
    %p53 = por %p51, %p52
    %p54 = scmp.ne.s32.totalorder %s40, %s41
    %p55 = scmp.eq.s32.totalorder %s19, 7
    %p56 = por %p54, %p55
    %p58 = scmp.ne.s32.totalorder %s41, %s57
    %p59 = scmp.eq.s32.totalorder %s19, 0
    %p60 = por %p58, %p59
    %s61 = sadd.s32 %s21, 1
    %s62 = sadd.s32 %s28, 1
    %s63 = ssub.s32 %s20, %s32
    %s64 = ssub.s32 %s61, %s62
    %s65 = sor.u32 %s63, %s64
    %p66 = scmp.eq.s32.totalorder %s65, 0
    %s68 = sadd.s32 %s67, 1
    %s69 = scalar_select %p66, %s67, %s68
    %p72 = pneg %p66
    %p73 = scmp.eq.s32.totalorder %s13, 7
    %p74 = por %p72, %p73
    %p75 = scmp.ne.s32.totalorder %s67, %s70
    %p76 = scmp.eq.s32.totalorder %s13, 0
    %p77 = por %p75, %p76
    %p78 = scmp.ne.s32.totalorder %s67, %s70
    %p79 = scmp.eq.s32.totalorder %s18, 7
    %p80 = por %p78, %p79
    %p81 = scmp.ne.s32.totalorder %s70, %s71
    %p82 = scmp.eq.s32.totalorder %s18, 0
    %p83 = por %p81, %p82
    %p84 = scmp.ne.s32.totalorder %s70, %s71
    %p85 = scmp.eq.s32.totalorder %s19, 7
    %p86 = por %p84, %p85
    %p88 = scmp.ne.s32.totalorder %s71, %s87
    %p89 = scmp.eq.s32.totalorder %s19, 0
    %p90 = por %p88, %p89
    %s91 = sadd.s32 %s21, 2
    %s92 = sadd.s32 %s28, 2
    %s93 = ssub.s32 %s20, %s32
    %s94 = ssub.s32 %s91, %s92
    %s95 = sor.u32 %s93, %s94
    %p96 = scmp.eq.s32.totalorder %s95, 0
    %s98 = sadd.s32 %s97, 1
    %s99 = scalar_select %p96, %s97, %s98
    %p102 = pneg %p96
    %p103 = scmp.eq.s32.totalorder %s13, 7
    %p104 = por %p102, %p103
    %p105 = scmp.ne.s32.totalorder %s97, %s100
    %p106 = scmp.eq.s32.totalorder %s13, 0
    %p107 = por %p105, %p106
    %p108 = scmp.ne.s32.totalorder %s97, %s100
    %p109 = scmp.eq.s32.totalorder %s18, 7
    %p110 = por %p108, %p109
    %p111 = scmp.ne.s32.totalorder %s100, %s101
    %p112 = scmp.eq.s32.totalorder %s18, 0
    %p113 = por %p111, %p112
    %p114 = scmp.ne.s32.totalorder %s100, %s101
    %p115 = scmp.eq.s32.totalorder %s19, 7
    %p116 = por %p114, %p115
    %p118 = scmp.ne.s32.totalorder %s101, %s117
    %p119 = scmp.eq.s32.totalorder %s19, 0
    %p120 = por %p118, %p119
    %s122 = sadd.s32 %s121, 1
    %p125 = scmp.eq.s32.totalorder %s13, 7
    %p126 = scmp.ne.s32.totalorder %s121, %s123
    %p127 = scmp.eq.s32.totalorder %s13, 0
    %p128 = por %p126, %p127
    %p129 = scmp.ne.s32.totalorder %s121, %s123
    %p130 = scmp.eq.s32.totalorder %s18, 7
    %p131 = por %p129, %p130
    %p132 = scmp.ne.s32.totalorder %s123, %s124
    %p133 = scmp.eq.s32.totalorder %s18, 0
    %p134 = por %p132, %p133
    %p135 = scmp.ne.s32.totalorder %s123, %s124
    %p136 = scmp.eq.s32.totalorder %s19, 7
    %p137 = por %p135, %p136
    %p139 = scmp.ne.s32.totalorder %s124, %s138
    %p140 = scmp.eq.s32.totalorder %s19, 0
    %p141 = por %p139, %p140
    %s143 = sadd.s32 %s142, 1
    %p146 = scmp.eq.s32.totalorder %s13, 7
    %p147 = scmp.ne.s32.totalorder %s142, %s144
    %p148 = scmp.eq.s32.totalorder %s13, 0
    %p149 = por %p147, %p148
    %p150 = scmp.ne.s32.totalorder %s142, %s144
    %p151 = scmp.eq.s32.totalorder %s18, 7
    %p152 = por %p150, %p151
    %p153 = scmp.ne.s32.totalorder %s144, %s145
    %p154 = scmp.eq.s32.totalorder %s18, 0
    %p155 = por %p153, %p154
    %p156 = scmp.ne.s32.totalorder %s144, %s145
    %p157 = scmp.eq.s32.totalorder %s19, 7
    %p158 = por %p156, %p157
    %p160 = scmp.ne.s32.totalorder %s145, %s159
    %p161 = scmp.eq.s32.totalorder %s19, 0
    %p162 = por %p160, %p161
    %s164 = sadd.s32 %s163, 1
    %p167 = scmp.eq.s32.totalorder %s13, 7
    %p168 = scmp.ne.s32.totalorder %s163, %s165
    %p169 = scmp.eq.s32.totalorder %s13, 0
    %p170 = por %p168, %p169
    %p171 = scmp.ne.s32.totalorder %s163, %s165
    %p172 = scmp.eq.s32.totalorder %s18, 7
    %p173 = por %p171, %p172
    %p174 = scmp.ne.s32.totalorder %s165, %s166
    %p175 = scmp.eq.s32.totalorder %s18, 0
    %p176 = por %p174, %p175
    %p177 = scmp.ne.s32.totalorder %s165, %s166
    %p178 = scmp.eq.s32.totalorder %s19, 7
    %p179 = por %p177, %p178
    %p181 = scmp.ne.s32.totalorder %s166, %s180
    %p182 = scmp.eq.s32.totalorder %s19, 0
    %p183 = por %p181, %p182
    %s184 = ssub.s32 %s20, %s32
    %s185 = ssub.s32 %s21, %s28
    %s186 = sor.u32 %s184, %s185
    %p187 = scmp.eq.s32.totalorder %s186, 0
    %s189 = sadd.s32 %s188, 1
    %s190 = scalar_select %p187, %s188, %s189
    %p193 = pneg %p187
    %p194 = scmp.eq.s32.totalorder %s13, 7
    %p195 = por %p193, %p194
    %p196 = scmp.ne.s32.totalorder %s188, %s191
    %p197 = scmp.eq.s32.totalorder %s13, 0
    %p198 = por %p196, %p197
    %p199 = scmp.ne.s32.totalorder %s188, %s191
    %p200 = scmp.eq.s32.totalorder %s18, 7
    %p201 = por %p199, %p200
    %p202 = scmp.ne.s32.totalorder %s191, %s192
    %p203 = scmp.eq.s32.totalorder %s18, 0
    %p204 = por %p202, %p203
    %p205 = scmp.ne.s32.totalorder %s191, %s192
    %p206 = scmp.eq.s32.totalorder %s19, 7
    %p207 = por %p205, %p206
    %p209 = scmp.ne.s32.totalorder %s192, %s208
    %p210 = scmp.eq.s32.totalorder %s19, 0
    %p211 = por %p209, %p210
    %s212 = ssub.s32 %s20, %s32
    %s213 = ssub.s32 %s21, %s28
    %s214 = sor.u32 %s212, %s213
    %p215 = scmp.eq.s32.totalorder %s214, 0
    %s217 = sadd.s32 %s216, 1
    %s218 = scalar_select %p215, %s216, %s217
    %p221 = pneg %p215
    %p222 = scmp.eq.s32.totalorder %s13, 7
    %p223 = por %p221, %p222
    %p224 = scmp.ne.s32.totalorder %s216, %s219
    %p225 = scmp.eq.s32.totalorder %s13, 0
    %p226 = por %p224, %p225
    %p227 = scmp.ne.s32.totalorder %s216, %s219
    %p228 = scmp.eq.s32.totalorder %s18, 7
    %p229 = por %p227, %p228
    %p230 = scmp.ne.s32.totalorder %s219, %s220
    %p231 = scmp.eq.s32.totalorder %s18, 0
    %p232 = por %p230, %p231
    %p233 = scmp.ne.s32.totalorder %s219, %s220
    %p234 = scmp.eq.s32.totalorder %s19, 7
    %p235 = por %p233, %p234
    %p237 = scmp.ne.s32.totalorder %s220, %s236
    %p238 = scmp.eq.s32.totalorder %s19, 0
    %p239 = por %p237, %p238
    %p240 = scmp.le.s32.totalorder 1, %s13
    %p241 = scmp.lt.s32.totalorder %s13, 9
    %p242 = pnand %p240, %p241
    %p243 = pneg %p242
    // Predicated region
    $region9: #{basic_block_forward.3} parent=5 // pred_check
      _
    $region10: #{basic_block_forward.3} parent=5 // pred_check_branch
      %245 = sbr.rel (%p242) target = $region12
    $region11: #{basic_block_forward.3} parent=5 // pred_region
      %s246 = ssub.s32 %s13, 1
      // Predicated region
      $region13: #{basic_block_forward.3} parent=11 // pred_check
        %p247 = pneg %p134
      $region14: #{basic_block_forward.3} parent=11 // pred_check_branch
        %249 = sbr.rel (%p247) target = $region16
      $region15: #{basic_block_forward.3} parent=11 // pred_region
        _
      $region16: #{basic_block_forward.3} parent=11 // pred_fallthru
        _
      // Predicated region
      $region17: #{basic_block_forward.3} parent=11 // pred_check
        %p250 = pneg %p155
      $region18: #{basic_block_forward.3} parent=11 // pred_check_branch
        %252 = sbr.rel (%p250) target = $region20
      $region19: #{basic_block_forward.3} parent=11 // pred_region
        _
      $region20: #{basic_block_forward.3} parent=11 // pred_fallthru
        _
      // Predicated region
      $region21: #{basic_block_forward.3} parent=11 // pred_check
        %p253 = pneg %p176
      $region22: #{basic_block_forward.3} parent=11 // pred_check_branch
        %255 = sbr.rel (%p253) target = $region24
      $region23: #{basic_block_forward.3} parent=11 // pred_region
        _
      $region24: #{basic_block_forward.3} parent=11 // pred_fallthru
        _
    $region12: #{basic_block_forward.3} parent=5 // pred_fallthru
      _
    %p256 = scmp.lt.s32.totalorder %s13, 8
    // Predicated region
    $region25: #{basic_block_forward.3} parent=5 // pred_check
      %p257 = pneg %p256
    $region26: #{basic_block_forward.3} parent=5 // pred_check_branch
      %259 = sbr.rel (%p257) target = $region28
    $region27: #{basic_block_forward.3} parent=5 // pred_region
      // Predicated region
      $region29: #{basic_block_forward.3} parent=27 // pred_check
        %p260 = pneg %p47
      $region30: #{basic_block_forward.3} parent=27 // pred_check_branch
        %262 = sbr.rel (%p260) target = $region32
      $region31: #{basic_block_forward.3} parent=27 // pred_region
        %p263 = scmp.lt.s32.totalorder %s20, 1
        %s264 = scalar_select %p263, %s20, 1
        %p265 = scmp.lt.s32.totalorder %s21, 5
        %s266 = scalar_select %p265, %s21, 5
        %s267 = smul.addr %s266, 14
        %s268 = smul.addr %s264, 84
        %s269 = sadd.s32 %s267, %s268
        %s270 = smul.addr %s269, 4
        %s271 = scalar_lea.vmem %s0, %s270
      $region32: #{basic_block_forward.3} parent=27 // pred_fallthru
        _
      // Predicated region
      $region33: #{basic_block_forward.3} parent=27 // pred_check
        %p272 = pneg %p77
      $region34: #{basic_block_forward.3} parent=27 // pred_check_branch
        %274 = sbr.rel (%p272) target = $region36
      $region35: #{basic_block_forward.3} parent=27 // pred_region
        %s275 = sadd.s32 %s21, 1
        %p276 = scmp.lt.s32.totalorder %s20, 1
        %s277 = scalar_select %p276, %s20, 1
        %p278 = scmp.lt.s32.totalorder %s275, 5
        %s279 = scalar_select %p278, %s275, 5
        %s280 = smul.addr %s279, 14
        %s281 = smul.addr %s277, 84
        %s282 = sadd.s32 %s280, %s281
        %s283 = smul.addr %s282, 4
        %s284 = scalar_lea.vmem %s1, %s283
        %s285 = sadd.s32 %s21, 1
      $region36: #{basic_block_forward.3} parent=27 // pred_fallthru
        _
      // Predicated region
      $region37: #{basic_block_forward.3} parent=27 // pred_check
        %p286 = pneg %p107
      $region38: #{basic_block_forward.3} parent=27 // pred_check_branch
        %288 = sbr.rel (%p286) target = $region40
      $region39: #{basic_block_forward.3} parent=27 // pred_region
        %s289 = sadd.s32 %s21, 2
        %p290 = scmp.lt.s32.totalorder %s20, 1
        %s291 = scalar_select %p290, %s20, 1
        %p292 = scmp.lt.s32.totalorder %s289, 5
        %s293 = scalar_select %p292, %s289, 5
        %s294 = smul.addr %s293, 14
        %s295 = smul.addr %s291, 84
        %s296 = sadd.s32 %s294, %s295
        %s297 = smul.addr %s296, 4
        %s298 = scalar_lea.vmem %s2, %s297
        %s299 = sadd.s32 %s21, 2
      $region40: #{basic_block_forward.3} parent=27 // pred_fallthru
        _
      // Predicated region
      $region41: #{basic_block_forward.3} parent=27 // pred_check
        %p300 = pneg %p198
      $region42: #{basic_block_forward.3} parent=27 // pred_check_branch
        %302 = sbr.rel (%p300) target = $region44
      $region43: #{basic_block_forward.3} parent=27 // pred_region
        %p303 = scmp.lt.s32.totalorder %s20, 1
        %s304 = scalar_select %p303, %s20, 1
        %p305 = scmp.lt.s32.totalorder %s21, 3
        %s306 = scalar_select %p305, %s21, 3
        %s307 = smul.addr %s306, 10
        %s308 = smul.addr %s304, 40
        %s309 = sadd.s32 %s307, %s308
        %s310 = smul.addr %s309, 4
        %s311 = scalar_lea.vmem %s6, %s310
      $region44: #{basic_block_forward.3} parent=27 // pred_fallthru
        _
    $region28: #{basic_block_forward.3} parent=5 // pred_fallthru
      _
    %p312 = scmp.le.s32.totalorder 1, %s13
    %p313 = scmp.lt.s32.totalorder %s13, 9
    %p314 = pnand %p312, %p313
    %p315 = pneg %p314
    // Predicated region
    $region45: #{basic_block_forward.3} parent=5 // pred_check
      _
    $region46: #{basic_block_forward.3} parent=5 // pred_check_branch
      %317 = sbr.rel (%p314) target = $region48
    $region47: #{basic_block_forward.3} parent=5 // pred_region
      %s318 = ssub.s32 %s13, 1
      %p319 = scmp.lt.s32.totalorder %s22, 1
      %s320 = scalar_select %p319, %s22, 1
      %p321 = scmp.lt.s32.totalorder %s23, 5
      %s322 = scalar_select %p321, %s23, 5
      %s323 = smul.addr %s322, 14
      %s324 = smul.addr %s320, 84
      %s325 = sadd.s32 %s323, %s324
      %s326 = smul.addr %s325, 4
      %s327 = scalar_lea.vmem %s0, %s326
      %p328 = pneg %p53
      %p329 = pneg %p50
      %s330 = sadd.s32 %s23, 1
      %p331 = scmp.lt.s32.totalorder %s22, 1
      %s332 = scalar_select %p331, %s22, 1
      %p333 = scmp.lt.s32.totalorder %s330, 5
      %s334 = scalar_select %p333, %s330, 5
      %s335 = smul.addr %s334, 14
      %s336 = smul.addr %s332, 84
      %s337 = sadd.s32 %s335, %s336
      %s338 = smul.addr %s337, 4
      %s339 = scalar_lea.vmem %s1, %s338
      %p340 = pneg %p83
      %p341 = pneg %p80
      %s342 = sadd.s32 %s23, 2
      %p343 = scmp.lt.s32.totalorder %s22, 1
      %s344 = scalar_select %p343, %s22, 1
      %p345 = scmp.lt.s32.totalorder %s342, 5
      %s346 = scalar_select %p345, %s342, 5
      %s347 = smul.addr %s346, 14
      %s348 = smul.addr %s344, 84
      %s349 = sadd.s32 %s347, %s348
      %s350 = smul.addr %s349, 4
      %s351 = scalar_lea.vmem %s2, %s350
      %p352 = pneg %p113
      %p353 = pneg %p110
      %p354 = pneg %p134
      %p355 = pneg %p131
      %p356 = pneg %p155
      %p357 = pneg %p152
      %p358 = pneg %p176
      %p359 = pneg %p173
      %p360 = scmp.lt.s32.totalorder %s22, 1
      %s361 = scalar_select %p360, %s22, 1
      %p362 = scmp.lt.s32.totalorder %s23, 3
      %s363 = scalar_select %p362, %s23, 3
      %s364 = smul.addr %s363, 10
      %s365 = smul.addr %s361, 40
      %s366 = sadd.s32 %s364, %s365
      %s367 = smul.addr %s366, 4
      %s368 = scalar_lea.vmem %s6, %s367
      %p369 = pneg %p204
      %p370 = pneg %p201
      %p371 = pneg %p232
      %p372 = pneg %p229
      %p373 = scmp.lt.s32.totalorder %s22, 1
      %s374 = scalar_select %p373, %s22, 1
      %p375 = scmp.lt.s32.totalorder %s23, 3
      %s376 = scalar_select %p375, %s23, 3
      %s377 = smul.addr %s376, 10
      %s378 = smul.addr %s374, 40
      %s379 = sadd.s32 %s377, %s378
      %s380 = smul.addr %s379, 8
      %s381 = scalar_lea.vmem %s7, %s380
      %p382 = scmp.lt.s32.totalorder %s22, 1
      %s383 = scalar_select %p382, %s22, 1
      %p384 = scmp.lt.s32.totalorder %s23, 5
      %s385 = scalar_select %p384, %s23, 5
      %s386 = smul.addr %s385, 14
      %s387 = smul.addr %s383, 84
      %s388 = sadd.s32 %s386, %s387
      %s389 = smul.addr %s388, 4
      %s390 = scalar_lea.vmem %s0, %s389
      %s391 = sadd.s32 %s23, 1
      %p392 = scmp.lt.s32.totalorder %s22, 1
      %s393 = scalar_select %p392, %s22, 1
      %p394 = scmp.lt.s32.totalorder %s391, 5
      %s395 = scalar_select %p394, %s391, 5
      %s396 = smul.addr %s395, 14
      %s397 = smul.addr %s393, 84
      %s398 = sadd.s32 %s396, %s397
      %s399 = smul.addr %s398, 4
      %s400 = scalar_lea.vmem %s1, %s399
      %s401 = sadd.s32 %s23, 1
      %s402 = sadd.s32 %s23, 2
      %p403 = scmp.lt.s32.totalorder %s22, 1
      %s404 = scalar_select %p403, %s22, 1
      %p405 = scmp.lt.s32.totalorder %s402, 5
      %s406 = scalar_select %p405, %s402, 5
      %s407 = smul.addr %s406, 14
      %s408 = smul.addr %s404, 84
      %s409 = sadd.s32 %s407, %s408
      %s410 = smul.addr %s409, 4
      %s411 = scalar_lea.vmem %s2, %s410
      %s412 = sadd.s32 %s23, 2
      %p413 = scmp.lt.s32.totalorder %s22, 1
      %s414 = scalar_select %p413, %s22, 1
      %p415 = scmp.lt.s32.totalorder %s23, 3
      %s416 = scalar_select %p415, %s23, 3
      %s417 = smul.addr %s416, 10
      %s418 = smul.addr %s414, 40
      %s419 = sadd.s32 %s417, %s418
      %s420 = smul.addr %s419, 4
      %s421 = scalar_lea.vmem %s6, %s420
      %p422 = scmp.lt.s32.totalorder %s22, 1
      %s423 = scalar_select %p422, %s22, 1
      %p424 = scmp.lt.s32.totalorder %s23, 3
      %s425 = scalar_select %p424, %s23, 3
      %s426 = smul.addr %s425, 10
      %s427 = smul.addr %s423, 40
      %s428 = sadd.s32 %s426, %s427
      %s429 = smul.addr %s428, 8
      %s430 = scalar_lea.vmem %s7, %s429
      %v432 = vld [vmem:[%s390] sm:$0xf]
      %v433 = vld [vmem:[%s390 + $0x4] sm:$0xf]
      %v434 = vld [vmem:[%s390 + $0x8] sm:$0xf]
      %v435 = vld [vmem:[%s390 + $0xc] sm:$0xf]
      %v436 = vld [vmem:[%s390 + $0x10] sm:$0xf]
      %v437 = vld [vmem:[%s390 + $0x14] sm:$0xf]
      %v438 = vld [vmem:[%s390 + $0x18] sm:$0xf]
      %v439 = vld [vmem:[%s390 + $0x1c] sm:$0xf]
      %v440 = vld [vmem:[%s390 + $0x20] sm:$0xf]
      %v441 = vld [vmem:[%s390 + $0x24] sm:$0xf]
      %v442 = vld [vmem:[%s3] sm:$0xf]
      %v443 = vld [vmem:[%s3 + $0x4] sm:$0xf]
      %v444 = vld [vmem:[%s3 + $0x8] sm:$0xf]
      %v445 = vld [vmem:[%s3 + $0xc] sm:$0xf]
      %v446 = vld [vmem:[%s3 + $0x10] sm:$0xf]
      %v447 = vld [vmem:[%s3 + $0x14] sm:$0xf]
      %v448 = vld [vmem:[%s3 + $0x18] sm:$0xf]
      %v449 = vld [vmem:[%s3 + $0x1c] sm:$0xf]
      %v450 = vld [vmem:[%s3 + $0x20] sm:$0xf]
      %v451 = vld [vmem:[%s3 + $0x24] sm:$0xf]
      %v452 = vld [vmem:[%s3 + $0x28] sm:$0xf]
      %v453 = vld [vmem:[%s3 + $0x2c] sm:$0xf]
      %v454 = vld [vmem:[%s3 + $0x30] sm:$0xf]
      %v455 = vld [vmem:[%s3 + $0x34] sm:$0xf]
      %v456 = vld [vmem:[%s3 + $0x38] sm:$0xf]
      %v457 = vld [vmem:[%s3 + $0x3c] sm:$0xf]
      %v458 = vld [vmem:[%s390 + $0x28] sm:$0x1]
      %v459 = vld [vmem:[%s3 + $0x40] sm:$0xf]
      %v460 = vld [vmem:[%s3 + $0x44] sm:$0xf]
      %v461 = vld [vmem:[%s3 + $0x48] sm:$0xf]
      %v462 = vld [vmem:[%s3 + $0x4c] sm:$0xf]
      %v463 = vld [vmem:[%s3 + $0x50] sm:$0xf]
      %v464 = vld [vmem:[%s3 + $0x54] sm:$0xf]
      %v465 = vld [vmem:[%s3 + $0x58] sm:$0xf]
      %v466 = vld [vmem:[%s3 + $0x5c] sm:$0xf]
      %v467 = vld [vmem:[%s3 + $0x60] sm:$0xf]
      %v468 = vld [vmem:[%s3 + $0x64] sm:$0xf]
      %v469 = vld [vmem:[%s3 + $0x68] sm:$0xf]
      %v470 = vld [vmem:[%s3 + $0x6c] sm:$0xf]
      %v471 = vld [vmem:[%s3 + $0x70] sm:$0xf]
      %v472 = vld [vmem:[%s3 + $0x74] sm:$0xf]
      %v473 = vld [vmem:[%s3 + $0x78] sm:$0xf]
      %v474 = vld [vmem:[%s3 + $0x7c] sm:$0xf]
      %v486 = vunpack.c.l.b16 %v432
      %v487 = vunpack.c.l.b16 %v433
      %v488 = vunpack.c.l.b16 %v434
      %v489 = vunpack.c.l.b16 %v435
      %v490 = vunpack.c.l.b16 %v436
      %v491 = vunpack.c.l.b16 %v437
      %v492 = vunpack.c.l.b16 %v438
      %v493 = vunpack.c.l.b16 %v439
      %v494 = vunpack.c.l.b16 %v440
      %v495 = vunpack.c.l.b16 %v441
      %v496 = vunpack.c.l.b16 %v458
      %v497 = vpack.c.b16 %v487, %v486
      %v498 = vpack.c.b16 %v489, %v488
      %v499 = vpack.c.b16 %v491, %v490
      %v500 = vpack.c.b16 %v493, %v492
      %v501 = vpack.c.b16 %v495, %v494
      %v502 = vpack.c.b16 %v496, %v496
      %vm503 = vsmask.f32 7424
      %v505 = vshrl.u32 %v497, 16
      %v507 = vshll.u32 %v497, 16
      %v509 = vrot.slane %v507, 1
      %v510 = vor.u32 %v505, %v509
      %v512 = vshll.u32 %v498, 16
      %v514 = vrot.slane %v512, 1
      %v515 = vsel %vm503, %v510, %v514
      %v516 = vshrl.u32 %v498, 16
      %v518 = vor.u32 %v516, %v514
      %v520 = vshll.u32 %v499, 16
      %v522 = vrot.slane %v520, 1
      %v523 = vsel %vm503, %v518, %v522
      %v524 = vshrl.u32 %v499, 16
      %v526 = vor.u32 %v524, %v522
      %v528 = vshll.u32 %v500, 16
      %v530 = vrot.slane %v528, 1
      %v531 = vsel %vm503, %v526, %v530
      %v532 = vshrl.u32 %v500, 16
      %v534 = vor.u32 %v532, %v530
      %v536 = vshll.u32 %v501, 16
      %v538 = vrot.slane %v536, 1
      %v539 = vsel %vm503, %v534, %v538
      %v540 = vshrl.u32 %v501, 16
      %v542 = vor.u32 %v540, %v538
      %v544 = vshll.u32 %v502, 16
      %v546 = vrot.slane %v544, 1
      %v547 = vsel %vm503, %v542, %v546
      %v569 = vunpack.c.l.b16 %v459
      %v570 = vunpack.c.l.b16 %v460
      %v571 = vunpack.c.l.b16 %v461
      %v572 = vunpack.c.l.b16 %v462
      %v573 = vunpack.c.l.b16 %v463
      %v574 = vunpack.c.l.b16 %v464
      %v575 = vunpack.c.l.b16 %v465
      %v576 = vunpack.c.l.b16 %v466
      %v577 = vunpack.c.l.b16 %v467
      %v578 = vunpack.c.l.b16 %v468
      %v579 = vunpack.c.l.b16 %v469
      %v580 = vunpack.c.l.b16 %v470
      %v581 = vunpack.c.l.b16 %v471
      %v582 = vunpack.c.l.b16 %v472
      %v583 = vunpack.c.l.b16 %v473
      %v584 = vunpack.c.l.b16 %v474
      %v585 = vpack.c.b16 %v570, %v569
      %v586 = vpack.c.b16 %v572, %v571
      %v587 = vpack.c.b16 %v574, %v573
      %v588 = vpack.c.b16 %v576, %v575
      %v589 = vpack.c.b16 %v578, %v577
      %v590 = vpack.c.b16 %v580, %v579
      %v591 = vpack.c.b16 %v582, %v581
      %v592 = vpack.c.b16 %v584, %v583
      %601 = vmatprep.subr.bf16.mxu0 0
      %602 = vmatpush1.bf16.msra.mxu0 %v592
      %603 = vmatprep.subr.bf16.mxu0 0
      %604 = vmatpush1.bf16.msra.mxu0 %v591
      %605 = vmatprep.subr.bf16.mxu0 0
      %606 = vmatpush1.bf16.msra.mxu0 %v590
      %607 = vmatprep.subr.bf16.mxu0 0
      %608 = vmatpush1.bf16.msra.mxu0 %v589
      %609 = vmatprep.subr.bf16.mxu0 0
      %610 = vmatpush1.bf16.msra.mxu0 %v588
      %611 = vmatprep.subr.bf16.mxu0 0
      %612 = vmatpush1.bf16.msra.mxu0 %v587
      %613 = vmatprep.subr.bf16.mxu0 0
      %614 = vmatpush1.bf16.msra.mxu0 %v586
      %615 = vmatprep.subr.bf16.mxu0 0
      %616 = vmatpush1.bf16.msra.mxu0 %v585
      %617 = vmatprep.subr.bf16.mxu0 0
      %618 = vmatpush2.bf16.msra.mxu0 0
      %619 = vmatprep.subr.bf16.mxu0 0
      %620 = vmatpush2.bf16.msra.mxu0 0
      %621 = vmatprep.subr.bf16.mxu0 0
      %622 = vmatpush2.bf16.msra.mxu0 0
      %623 = vmatprep.subr.bf16.mxu0 0
      %624 = vmatpush2.bf16.msra.mxu0 0
      %625 = vmatprep.subr.bf16.mxu0 0
      %626 = vmatpush2.bf16.msra.mxu0 0
      %627 = vmatprep.subr.bf16.mxu0 0
      %628 = vmatpush2.bf16.msra.mxu0 0
      %629 = vmatprep.subr.bf16.mxu0 0
      %630 = vmatpush2.bf16.msra.mxu0 0
      %631 = vmatprep.subr.bf16.mxu0 0
      %632 = vmatpush2.bf16.msra.mxu0 0
      %633 = vmatprep.mubr.bf16.mxu0 0
      %634 = vmatmul.mubr.bf16.gmra.mxu0 %v515
      %v635 = vpop.f32.mrf.mxu0
      %v636 = vadd.f32 0.0, %v635
      %v637 = vpop.f32.mrf.mxu0
      %v638 = vpop.f32.mrf.mxu0
      %v639 = vadd.f32 0.0, %v638
      %v640 = vpop.f32.mrf.mxu0
      %641 = vmatprep.mubr.bf16.mxu0 0
      %642 = vmatmul.mubr.bf16.gmra.mxu0 %v523
      %v643 = vpop.f32.mrf.mxu0
      %v644 = vadd.f32 0.0, %v643
      %v645 = vpop.f32.mrf.mxu0
      %v646 = vpop.f32.mrf.mxu0
      %v647 = vadd.f32 0.0, %v646
      %v648 = vpop.f32.mrf.mxu0
      %649 = vmatprep.mubr.bf16.mxu0 0
      %650 = vmatmul.mubr.bf16.gmra.mxu0 %v531
      %v651 = vpop.f32.mrf.mxu0
      %v652 = vadd.f32 0.0, %v651
      %v653 = vpop.f32.mrf.mxu0
      %v654 = vpop.f32.mrf.mxu0
      %v655 = vadd.f32 0.0, %v654
      %v656 = vpop.f32.mrf.mxu0
      %657 = vmatprep.mubr.bf16.mxu0 0
      %658 = vmatmul.mubr.bf16.gmra.mxu0 %v539
      %v659 = vpop.f32.mrf.mxu0
      %v660 = vadd.f32 0.0, %v659
      %v661 = vpop.f32.mrf.mxu0
      %v662 = vpop.f32.mrf.mxu0
      %v663 = vadd.f32 0.0, %v662
      %v664 = vpop.f32.mrf.mxu0
      %665 = vmatprep.mubr.bf16.mxu0 0
      %666 = vmatmul.mubr.bf16.gmra.mxu0 %v547
      %v667 = vpop.f32.mrf.mxu0
      %v668 = vadd.f32 0.0, %v667
      %v669 = vpop.f32.mrf.mxu0
      %v670 = vpop.f32.mrf.mxu0
      %v671 = vadd.f32 0.0, %v670
      %v672 = vpop.f32.mrf.mxu0
      %673 = vdwg.mxu0
      %v695 = vunpack.c.l.b16 %v442
      %v696 = vunpack.c.l.b16 %v443
      %v697 = vunpack.c.l.b16 %v444
      %v698 = vunpack.c.l.b16 %v445
      %v699 = vunpack.c.l.b16 %v446
      %v700 = vunpack.c.l.b16 %v447
      %v701 = vunpack.c.l.b16 %v448
      %v702 = vunpack.c.l.b16 %v449
      %v703 = vunpack.c.l.b16 %v450
      %v704 = vunpack.c.l.b16 %v451
      %v705 = vunpack.c.l.b16 %v452
      %v706 = vunpack.c.l.b16 %v453
      %v707 = vunpack.c.l.b16 %v454
      %v708 = vunpack.c.l.b16 %v455
      %v709 = vunpack.c.l.b16 %v456
      %v710 = vunpack.c.l.b16 %v457
      %v711 = vpack.c.b16 %v696, %v695
      %v712 = vpack.c.b16 %v698, %v697
      %v713 = vpack.c.b16 %v700, %v699
      %v714 = vpack.c.b16 %v702, %v701
      %v715 = vpack.c.b16 %v704, %v703
      %v716 = vpack.c.b16 %v706, %v705
      %v717 = vpack.c.b16 %v708, %v707
      %v718 = vpack.c.b16 %v710, %v709
      %727 = vmatprep.subr.bf16.mxu0 0
      %728 = vmatpush1.bf16.msra.mxu0 %v718
      %729 = vmatprep.subr.bf16.mxu0 0
      %730 = vmatpush1.bf16.msra.mxu0 %v717
      %731 = vmatprep.subr.bf16.mxu0 0
      %732 = vmatpush1.bf16.msra.mxu0 %v716
      %733 = vmatprep.subr.bf16.mxu0 0
      %734 = vmatpush1.bf16.msra.mxu0 %v715
      %735 = vmatprep.subr.bf16.mxu0 0
      %736 = vmatpush1.bf16.msra.mxu0 %v714
      %737 = vmatprep.subr.bf16.mxu0 0
      %738 = vmatpush1.bf16.msra.mxu0 %v713
      %739 = vmatprep.subr.bf16.mxu0 0
      %740 = vmatpush1.bf16.msra.mxu0 %v712
      %741 = vmatprep.subr.bf16.mxu0 0
      %742 = vmatpush1.bf16.msra.mxu0 %v711
      %743 = vmatprep.subr.bf16.mxu0 0
      %744 = vmatpush2.bf16.msra.mxu0 0
      %745 = vmatprep.subr.bf16.mxu0 0
      %746 = vmatpush2.bf16.msra.mxu0 0
      %747 = vmatprep.subr.bf16.mxu0 0
      %748 = vmatpush2.bf16.msra.mxu0 0
      %749 = vmatprep.subr.bf16.mxu0 0
      %750 = vmatpush2.bf16.msra.mxu0 0
      %751 = vmatprep.subr.bf16.mxu0 0
      %752 = vmatpush2.bf16.msra.mxu0 0
      %753 = vmatprep.subr.bf16.mxu0 0
      %754 = vmatpush2.bf16.msra.mxu0 0
      %755 = vmatprep.subr.bf16.mxu0 0
      %756 = vmatpush2.bf16.msra.mxu0 0
      %757 = vmatprep.subr.bf16.mxu0 0
      %758 = vmatpush2.bf16.msra.mxu0 0
      %759 = vmatprep.mubr.bf16.mxu0 0
      %760 = vmatmul.mubr.bf16.gmra.mxu0 %v497
      %v761 = vpop.f32.mrf.mxu0
      %v762 = vadd.f32 %v636, %v761
      %v763 = vpop.f32.mrf.mxu0
      %v764 = vpop.f32.mrf.mxu0
      %v765 = vadd.f32 %v639, %v764
      %v766 = vpop.f32.mrf.mxu0
      %767 = vmatprep.mubr.bf16.mxu0 0
      %768 = vmatmul.mubr.bf16.gmra.mxu0 %v498
      %v769 = vpop.f32.mrf.mxu0
      %v770 = vadd.f32 %v644, %v769
      %v771 = vpop.f32.mrf.mxu0
      %v772 = vpop.f32.mrf.mxu0
      %v773 = vadd.f32 %v647, %v772
      %v774 = vpop.f32.mrf.mxu0
      %775 = vmatprep.mubr.bf16.mxu0 0
      %776 = vmatmul.mubr.bf16.gmra.mxu0 %v499
      %v777 = vpop.f32.mrf.mxu0
      %v778 = vadd.f32 %v652, %v777
      %v779 = vpop.f32.mrf.mxu0
      %v780 = vpop.f32.mrf.mxu0
      %v781 = vadd.f32 %v655, %v780
      %v782 = vpop.f32.mrf.mxu0
      %783 = vmatprep.mubr.bf16.mxu0 0
      %784 = vmatmul.mubr.bf16.gmra.mxu0 %v500
      %v785 = vpop.f32.mrf.mxu0
      %v786 = vadd.f32 %v660, %v785
      %v787 = vpop.f32.mrf.mxu0
      %v788 = vpop.f32.mrf.mxu0
      %v789 = vadd.f32 %v663, %v788
      %v790 = vpop.f32.mrf.mxu0
      %791 = vmatprep.mubr.bf16.mxu0 0
      %792 = vmatmul.mubr.bf16.gmra.mxu0 %v501
      %v793 = vpop.f32.mrf.mxu0
      %v794 = vadd.f32 %v668, %v793
      %v795 = vpop.f32.mrf.mxu0
      %v796 = vpop.f32.mrf.mxu0
      %v797 = vadd.f32 %v671, %v796
      %v798 = vpop.f32.mrf.mxu0
      %799 = vdwg.mxu0
      %v800 = vld [vmem:[%s390] sm:$0xe]
      %v801 = vld [vmem:[%s3 + $0x80] sm:$0xf]
      %v802 = vld [vmem:[%s3 + $0x84] sm:$0xf]
      %v803 = vld [vmem:[%s3 + $0x88] sm:$0xf]
      %v804 = vld [vmem:[%s3 + $0x8c] sm:$0xf]
      %v805 = vld [vmem:[%s3 + $0x90] sm:$0xf]
      %v806 = vld [vmem:[%s3 + $0x94] sm:$0xf]
      %v807 = vld [vmem:[%s3 + $0x98] sm:$0xf]
      %v808 = vld [vmem:[%s3 + $0x9c] sm:$0xf]
      %v809 = vld [vmem:[%s3 + $0xa0] sm:$0xf]
      %v810 = vld [vmem:[%s3 + $0xa4] sm:$0xf]
      %v811 = vld [vmem:[%s3 + $0xa8] sm:$0xf]
      %v812 = vld [vmem:[%s3 + $0xac] sm:$0xf]
      %v813 = vld [vmem:[%s3 + $0xb0] sm:$0xf]
      %v814 = vld [vmem:[%s3 + $0xb4] sm:$0xf]
      %v815 = vld [vmem:[%s3 + $0xb8] sm:$0xf]
      %v816 = vld [vmem:[%s3 + $0xbc] sm:$0xf]
      %v818 = vunpack.c.l.b16 %v800
      %v819 = vpack.c.b16 %v487, %v818
      %vm820 = vcmask 1046528
      %v821 = vrot.slane %v819, 1
      %v822 = vrot.slane %v498, 1
      %v823 = vsel %vm820, %v821, %v822
      %v824 = vrot.slane %v499, 1
      %v825 = vsel %vm820, %v822, %v824
      %v826 = vrot.slane %v500, 1
      %v827 = vsel %vm820, %v824, %v826
      %v828 = vrot.slane %v501, 1
      %v829 = vsel %vm820, %v826, %v828
      %v830 = vrot.slane %v502, 1
      %v831 = vsel %vm820, %v828, %v830
      %v853 = vunpack.c.l.b16 %v801
      %v854 = vunpack.c.l.b16 %v802
      %v855 = vunpack.c.l.b16 %v803
      %v856 = vunpack.c.l.b16 %v804
      %v857 = vunpack.c.l.b16 %v805
      %v858 = vunpack.c.l.b16 %v806
      %v859 = vunpack.c.l.b16 %v807
      %v860 = vunpack.c.l.b16 %v808
      %v861 = vunpack.c.l.b16 %v809
      %v862 = vunpack.c.l.b16 %v810
      %v863 = vunpack.c.l.b16 %v811
      %v864 = vunpack.c.l.b16 %v812
      %v865 = vunpack.c.l.b16 %v813
      %v866 = vunpack.c.l.b16 %v814
      %v867 = vunpack.c.l.b16 %v815
      %v868 = vunpack.c.l.b16 %v816
      %v869 = vpack.c.b16 %v854, %v853
      %v870 = vpack.c.b16 %v856, %v855
      %v871 = vpack.c.b16 %v858, %v857
      %v872 = vpack.c.b16 %v860, %v859
      %v873 = vpack.c.b16 %v862, %v861
      %v874 = vpack.c.b16 %v864, %v863
      %v875 = vpack.c.b16 %v866, %v865
      %v876 = vpack.c.b16 %v868, %v867
      %885 = vmatprep.subr.bf16.mxu0 0
      %886 = vmatpush1.bf16.msra.mxu0 %v876
      %887 = vmatprep.subr.bf16.mxu0 0
      %888 = vmatpush1.bf16.msra.mxu0 %v875
      %889 = vmatprep.subr.bf16.mxu0 0
      %890 = vmatpush1.bf16.msra.mxu0 %v874
      %891 = vmatprep.subr.bf16.mxu0 0
      %892 = vmatpush1.bf16.msra.mxu0 %v873
      %893 = vmatprep.subr.bf16.mxu0 0
      %894 = vmatpush1.bf16.msra.mxu0 %v872
      %895 = vmatprep.subr.bf16.mxu0 0
      %896 = vmatpush1.bf16.msra.mxu0 %v871
      %897 = vmatprep.subr.bf16.mxu0 0
      %898 = vmatpush1.bf16.msra.mxu0 %v870
      %899 = vmatprep.subr.bf16.mxu0 0
      %900 = vmatpush1.bf16.msra.mxu0 %v869
      %901 = vmatprep.subr.bf16.mxu0 0
      %902 = vmatpush2.bf16.msra.mxu0 0
      %903 = vmatprep.subr.bf16.mxu0 0
      %904 = vmatpush2.bf16.msra.mxu0 0
      %905 = vmatprep.subr.bf16.mxu0 0
      %906 = vmatpush2.bf16.msra.mxu0 0
      %907 = vmatprep.subr.bf16.mxu0 0
      %908 = vmatpush2.bf16.msra.mxu0 0
      %909 = vmatprep.subr.bf16.mxu0 0
      %910 = vmatpush2.bf16.msra.mxu0 0
      %911 = vmatprep.subr.bf16.mxu0 0
      %912 = vmatpush2.bf16.msra.mxu0 0
      %913 = vmatprep.subr.bf16.mxu0 0
      %914 = vmatpush2.bf16.msra.mxu0 0
      %915 = vmatprep.subr.bf16.mxu0 0
      %916 = vmatpush2.bf16.msra.mxu0 0
      %917 = vmatprep.mubr.bf16.mxu0 0
      %918 = vmatmul.mubr.bf16.gmra.mxu0 %v823
      %v919 = vpop.f32.mrf.mxu0
      %v920 = vadd.f32 0.0, %v919
      %v921 = vpop.f32.mrf.mxu0
      %v922 = vpop.f32.mrf.mxu0
      %v923 = vadd.f32 0.0, %v922
      %v924 = vpop.f32.mrf.mxu0
      %925 = vmatprep.mubr.bf16.mxu0 0
      %926 = vmatmul.mubr.bf16.gmra.mxu0 %v825
      %v927 = vpop.f32.mrf.mxu0
      %v928 = vadd.f32 0.0, %v927
      %v929 = vpop.f32.mrf.mxu0
      %v930 = vpop.f32.mrf.mxu0
      %v931 = vadd.f32 0.0, %v930
      %v932 = vpop.f32.mrf.mxu0
      %933 = vmatprep.mubr.bf16.mxu0 0
      %934 = vmatmul.mubr.bf16.gmra.mxu0 %v827
      %v935 = vpop.f32.mrf.mxu0
      %v936 = vadd.f32 0.0, %v935
      %v937 = vpop.f32.mrf.mxu0
      %v938 = vpop.f32.mrf.mxu0
      %v939 = vadd.f32 0.0, %v938
      %v940 = vpop.f32.mrf.mxu0
      %941 = vmatprep.mubr.bf16.mxu0 0
      %942 = vmatmul.mubr.bf16.gmra.mxu0 %v829
      %v943 = vpop.f32.mrf.mxu0
      %v944 = vadd.f32 0.0, %v943
      %v945 = vpop.f32.mrf.mxu0
      %v946 = vpop.f32.mrf.mxu0
      %v947 = vadd.f32 0.0, %v946
      %v948 = vpop.f32.mrf.mxu0
      %949 = vmatprep.mubr.bf16.mxu0 0
      %950 = vmatmul.mubr.bf16.gmra.mxu0 %v831
      %v951 = vpop.f32.mrf.mxu0
      %v952 = vadd.f32 0.0, %v951
      %v953 = vpop.f32.mrf.mxu0
      %v954 = vpop.f32.mrf.mxu0
      %v955 = vadd.f32 0.0, %v954
      %v956 = vpop.f32.mrf.mxu0
      %957 = vdwg.mxu0
      %v958 = vadd.f32 %v762, %v920
      %v959 = vadd.f32 %v765, %v923
      %v960 = vadd.f32 %v770, %v928
      %v961 = vadd.f32 %v773, %v931
      %v962 = vadd.f32 %v778, %v936
      %v963 = vadd.f32 %v781, %v939
      %v964 = vadd.f32 %v786, %v944
      %v965 = vadd.f32 %v789, %v947
      %v966 = vadd.f32 %v794, %v952
      %v967 = vadd.f32 %v797, %v955
      %v968 = vld [vmem:[%s390 + $0x4] sm:$0xe]
      %v969 = vld [vmem:[%s390 + $0x8] sm:$0xf]
      %v970 = vld [vmem:[%s390 + $0xc] sm:$0xf]
      %v971 = vld [vmem:[%s390 + $0x10] sm:$0xf]
      %v972 = vld [vmem:[%s390 + $0x14] sm:$0xf]
      %v973 = vld [vmem:[%s390 + $0x18] sm:$0xf]
      %v974 = vld [vmem:[%s390 + $0x1c] sm:$0xf]
      %v975 = vld [vmem:[%s390 + $0x20] sm:$0xf]
      %v976 = vld [vmem:[%s390 + $0x24] sm:$0xf]
      %v977 = vld [vmem:[%s390 + $0x28] sm:$0xf]
      %v978 = vld [vmem:[%s390 + $0x2c] sm:$0x1]
      %v979 = vld [vmem:[%s3 + $0xc0] sm:$0xf]
      %v980 = vld [vmem:[%s3 + $0xc4] sm:$0xf]
      %v981 = vld [vmem:[%s3 + $0xc8] sm:$0xf]
      %v982 = vld [vmem:[%s3 + $0xcc] sm:$0xf]
      %v983 = vld [vmem:[%s3 + $0xd0] sm:$0xf]
      %v984 = vld [vmem:[%s3 + $0xd4] sm:$0xf]
      %v985 = vld [vmem:[%s3 + $0xd8] sm:$0xf]
      %v986 = vld [vmem:[%s3 + $0xdc] sm:$0xf]
      %v987 = vld [vmem:[%s3 + $0xe0] sm:$0xf]
      %v988 = vld [vmem:[%s3 + $0xe4] sm:$0xf]
      %v989 = vld [vmem:[%s3 + $0xe8] sm:$0xf]
      %v990 = vld [vmem:[%s3 + $0xec] sm:$0xf]
      %v991 = vld [vmem:[%s3 + $0xf0] sm:$0xf]
      %v992 = vld [vmem:[%s3 + $0xf4] sm:$0xf]
      %v993 = vld [vmem:[%s3 + $0xf8] sm:$0xf]
      %v994 = vld [vmem:[%s3 + $0xfc] sm:$0xf]
      %v1006 = vunpack.c.l.b16 %v968
      %v1007 = vunpack.c.l.b16 %v969
      %v1008 = vunpack.c.l.b16 %v970
      %v1009 = vunpack.c.l.b16 %v971
      %v1010 = vunpack.c.l.b16 %v972
      %v1011 = vunpack.c.l.b16 %v973
      %v1012 = vunpack.c.l.b16 %v974
      %v1013 = vunpack.c.l.b16 %v975
      %v1014 = vunpack.c.l.b16 %v976
      %v1015 = vunpack.c.l.b16 %v977
      %v1016 = vunpack.c.l.b16 %v978
      %v1017 = vpack.c.b16 %v1007, %v1006
      %v1018 = vpack.c.b16 %v1009, %v1008
      %v1019 = vpack.c.b16 %v1011, %v1010
      %v1020 = vpack.c.b16 %v1013, %v1012
      %v1021 = vpack.c.b16 %v1015, %v1014
      %v1022 = vpack.c.b16 %v1016, %v1016
      %v1023 = vrot.slane %v1017, 1
      %v1024 = vrot.slane %v1018, 1
      %v1025 = vsel %vm820, %v1023, %v1024
      %v1026 = vrot.slane %v1019, 1
      %v1027 = vsel %vm820, %v1024, %v1026
      %v1028 = vrot.slane %v1020, 1
      %v1029 = vsel %vm820, %v1026, %v1028
      %v1030 = vrot.slane %v1021, 1
      %v1031 = vsel %vm820, %v1028, %v1030
      %v1032 = vrot.slane %v1022, 1
      %v1033 = vsel %vm820, %v1030, %v1032
      %v1055 = vunpack.c.l.b16 %v979
      %v1056 = vunpack.c.l.b16 %v980
      %v1057 = vunpack.c.l.b16 %v981
      %v1058 = vunpack.c.l.b16 %v982
      %v1059 = vunpack.c.l.b16 %v983
      %v1060 = vunpack.c.l.b16 %v984
      %v1061 = vunpack.c.l.b16 %v985
      %v1062 = vunpack.c.l.b16 %v986
      %v1063 = vunpack.c.l.b16 %v987
      %v1064 = vunpack.c.l.b16 %v988
      %v1065 = vunpack.c.l.b16 %v989
      %v1066 = vunpack.c.l.b16 %v990
      %v1067 = vunpack.c.l.b16 %v991
      %v1068 = vunpack.c.l.b16 %v992
      %v1069 = vunpack.c.l.b16 %v993
      %v1070 = vunpack.c.l.b16 %v994
      %v1071 = vpack.c.b16 %v1056, %v1055
      %v1072 = vpack.c.b16 %v1058, %v1057
      %v1073 = vpack.c.b16 %v1060, %v1059
      %v1074 = vpack.c.b16 %v1062, %v1061
      %v1075 = vpack.c.b16 %v1064, %v1063
      %v1076 = vpack.c.b16 %v1066, %v1065
      %v1077 = vpack.c.b16 %v1068, %v1067
      %v1078 = vpack.c.b16 %v1070, %v1069
      %1087 = vmatprep.subr.bf16.mxu0 0
      %1088 = vmatpush1.bf16.msra.mxu0 %v1078
      %1089 = vmatprep.subr.bf16.mxu0 0
      %1090 = vmatpush1.bf16.msra.mxu0 %v1077
      %1091 = vmatprep.subr.bf16.mxu0 0
      %1092 = vmatpush1.bf16.msra.mxu0 %v1076
      %1093 = vmatprep.subr.bf16.mxu0 0
      %1094 = vmatpush1.bf16.msra.mxu0 %v1075
      %1095 = vmatprep.subr.bf16.mxu0 0
      %1096 = vmatpush1.bf16.msra.mxu0 %v1074
      %1097 = vmatprep.subr.bf16.mxu0 0
      %1098 = vmatpush1.bf16.msra.mxu0 %v1073
      %1099 = vmatprep.subr.bf16.mxu0 0
      %1100 = vmatpush1.bf16.msra.mxu0 %v1072
      %1101 = vmatprep.subr.bf16.mxu0 0
      %1102 = vmatpush1.bf16.msra.mxu0 %v1071
      %1103 = vmatprep.subr.bf16.mxu0 0
      %1104 = vmatpush2.bf16.msra.mxu0 0
      %1105 = vmatprep.subr.bf16.mxu0 0
      %1106 = vmatpush2.bf16.msra.mxu0 0
      %1107 = vmatprep.subr.bf16.mxu0 0
      %1108 = vmatpush2.bf16.msra.mxu0 0
      %1109 = vmatprep.subr.bf16.mxu0 0
      %1110 = vmatpush2.bf16.msra.mxu0 0
      %1111 = vmatprep.subr.bf16.mxu0 0
      %1112 = vmatpush2.bf16.msra.mxu0 0
      %1113 = vmatprep.subr.bf16.mxu0 0
      %1114 = vmatpush2.bf16.msra.mxu0 0
      %1115 = vmatprep.subr.bf16.mxu0 0
      %1116 = vmatpush2.bf16.msra.mxu0 0
      %1117 = vmatprep.subr.bf16.mxu0 0
      %1118 = vmatpush2.bf16.msra.mxu0 0
      %1119 = vmatprep.mubr.bf16.mxu0 0
      %1120 = vmatmul.mubr.bf16.gmra.mxu0 %v1025
      %v1121 = vpop.f32.mrf.mxu0
      %v1122 = vadd.f32 0.0, %v1121
      %v1123 = vpop.f32.mrf.mxu0
      %v1124 = vpop.f32.mrf.mxu0
      %v1125 = vadd.f32 0.0, %v1124
      %v1126 = vpop.f32.mrf.mxu0
      %1127 = vmatprep.mubr.bf16.mxu0 0
      %1128 = vmatmul.mubr.bf16.gmra.mxu0 %v1027
      %v1129 = vpop.f32.mrf.mxu0
      %v1130 = vadd.f32 0.0, %v1129
      %v1131 = vpop.f32.mrf.mxu0
      %v1132 = vpop.f32.mrf.mxu0
      %v1133 = vadd.f32 0.0, %v1132
      %v1134 = vpop.f32.mrf.mxu0
      %1135 = vmatprep.mubr.bf16.mxu0 0
      %1136 = vmatmul.mubr.bf16.gmra.mxu0 %v1029
      %v1137 = vpop.f32.mrf.mxu0
      %v1138 = vadd.f32 0.0, %v1137
      %v1139 = vpop.f32.mrf.mxu0
      %v1140 = vpop.f32.mrf.mxu0
      %v1141 = vadd.f32 0.0, %v1140
      %v1142 = vpop.f32.mrf.mxu0
      %1143 = vmatprep.mubr.bf16.mxu0 0
      %1144 = vmatmul.mubr.bf16.gmra.mxu0 %v1031
      %v1145 = vpop.f32.mrf.mxu0
      %v1146 = vadd.f32 0.0, %v1145
      %v1147 = vpop.f32.mrf.mxu0
      %v1148 = vpop.f32.mrf.mxu0
      %v1149 = vadd.f32 0.0, %v1148
      %v1150 = vpop.f32.mrf.mxu0
      %1151 = vmatprep.mubr.bf16.mxu0 0
      %1152 = vmatmul.mubr.bf16.gmra.mxu0 %v1033
      %v1153 = vpop.f32.mrf.mxu0
      %v1154 = vadd.f32 0.0, %v1153
      %v1155 = vpop.f32.mrf.mxu0
      %v1156 = vpop.f32.mrf.mxu0
      %v1157 = vadd.f32 0.0, %v1156
      %v1158 = vpop.f32.mrf.mxu0
      %1159 = vdwg.mxu0
      %v1160 = vadd.f32 %v958, %v1122
      %v1161 = vadd.f32 %v959, %v1125
      %v1162 = vadd.f32 %v960, %v1130
      %v1163 = vadd.f32 %v961, %v1133
      %v1164 = vadd.f32 %v962, %v1138
      %v1165 = vadd.f32 %v963, %v1141
      %v1166 = vadd.f32 %v964, %v1146
      %v1167 = vadd.f32 %v965, %v1149
      %v1168 = vadd.f32 %v966, %v1154
      %v1169 = vadd.f32 %v967, %v1157
      %v1170 = vld [vmem:[%s390 + $0x2c] sm:$0x3]
      %v1171 = vld [vmem:[%s3 + $0x100] sm:$0xf]
      %v1172 = vld [vmem:[%s3 + $0x104] sm:$0xf]
      %v1173 = vld [vmem:[%s3 + $0x108] sm:$0xf]
      %v1174 = vld [vmem:[%s3 + $0x10c] sm:$0xf]
      %v1175 = vld [vmem:[%s3 + $0x110] sm:$0xf]
      %v1176 = vld [vmem:[%s3 + $0x114] sm:$0xf]
      %v1177 = vld [vmem:[%s3 + $0x118] sm:$0xf]
      %v1178 = vld [vmem:[%s3 + $0x11c] sm:$0xf]
      %v1179 = vld [vmem:[%s3 + $0x120] sm:$0xf]
      %v1180 = vld [vmem:[%s3 + $0x124] sm:$0xf]
      %v1181 = vld [vmem:[%s3 + $0x128] sm:$0xf]
      %v1182 = vld [vmem:[%s3 + $0x12c] sm:$0xf]
      %v1183 = vld [vmem:[%s3 + $0x130] sm:$0xf]
      %v1184 = vld [vmem:[%s3 + $0x134] sm:$0xf]
      %v1185 = vld [vmem:[%s3 + $0x138] sm:$0xf]
      %v1186 = vld [vmem:[%s3 + $0x13c] sm:$0xf]
      %v1188 = vunpack.c.l.b16 %v1170
      %v1189 = vpack.c.b16 %v1188, %v1188
      %vm1190 = vsmask.f32 6400
      %v1192 = vshrl.u32 %v1017, 16
      %v1194 = vrot.slane %v1192, 1
      %v1195 = vshll.u32 %v1017, 16
      %v1197 = vrot.slane %v1195, 2
      %v1198 = vor.u32 %v1194, %v1197
      %v1200 = vshrl.u32 %v1018, 16
      %v1202 = vrot.slane %v1200, 1
      %v1203 = vshll.u32 %v1018, 16
      %v1205 = vrot.slane %v1203, 2
      %v1206 = vor.u32 %v1202, %v1205
      %v1207 = vsel %vm1190, %v1198, %v1206
      %v1209 = vshrl.u32 %v1019, 16
      %v1211 = vrot.slane %v1209, 1
      %v1212 = vshll.u32 %v1019, 16
      %v1214 = vrot.slane %v1212, 2
      %v1215 = vor.u32 %v1211, %v1214
      %v1216 = vsel %vm1190, %v1206, %v1215
      %v1218 = vshrl.u32 %v1020, 16
      %v1220 = vrot.slane %v1218, 1
      %v1221 = vshll.u32 %v1020, 16
      %v1223 = vrot.slane %v1221, 2
      %v1224 = vor.u32 %v1220, %v1223
      %v1225 = vsel %vm1190, %v1215, %v1224
      %v1227 = vshrl.u32 %v1021, 16
      %v1229 = vrot.slane %v1227, 1
      %v1230 = vshll.u32 %v1021, 16
      %v1232 = vrot.slane %v1230, 2
      %v1233 = vor.u32 %v1229, %v1232
      %v1234 = vsel %vm1190, %v1224, %v1233
      %v1236 = vshrl.u32 %v1189, 16
      %v1238 = vrot.slane %v1236, 1
      %v1239 = vshll.u32 %v1189, 16
      %v1241 = vrot.slane %v1239, 2
      %v1242 = vor.u32 %v1238, %v1241
      %v1243 = vsel %vm1190, %v1233, %v1242
      %v1265 = vunpack.c.l.b16 %v1171
      %v1266 = vunpack.c.l.b16 %v1172
      %v1267 = vunpack.c.l.b16 %v1173
      %v1268 = vunpack.c.l.b16 %v1174
      %v1269 = vunpack.c.l.b16 %v1175
      %v1270 = vunpack.c.l.b16 %v1176
      %v1271 = vunpack.c.l.b16 %v1177
      %v1272 = vunpack.c.l.b16 %v1178
      %v1273 = vunpack.c.l.b16 %v1179
      %v1274 = vunpack.c.l.b16 %v1180
      %v1275 = vunpack.c.l.b16 %v1181
      %v1276 = vunpack.c.l.b16 %v1182
      %v1277 = vunpack.c.l.b16 %v1183
      %v1278 = vunpack.c.l.b16 %v1184
      %v1279 = vunpack.c.l.b16 %v1185
      %v1280 = vunpack.c.l.b16 %v1186
      %v1281 = vpack.c.b16 %v1266, %v1265
      %v1282 = vpack.c.b16 %v1268, %v1267
      %v1283 = vpack.c.b16 %v1270, %v1269
      %v1284 = vpack.c.b16 %v1272, %v1271
      %v1285 = vpack.c.b16 %v1274, %v1273
      %v1286 = vpack.c.b16 %v1276, %v1275
      %v1287 = vpack.c.b16 %v1278, %v1277
      %v1288 = vpack.c.b16 %v1280, %v1279
      %1297 = vmatprep.subr.bf16.mxu0 0
      %1298 = vmatpush1.bf16.msra.mxu0 %v1288
      %1299 = vmatprep.subr.bf16.mxu0 0
      %1300 = vmatpush1.bf16.msra.mxu0 %v1287
      %1301 = vmatprep.subr.bf16.mxu0 0
      %1302 = vmatpush1.bf16.msra.mxu0 %v1286
      %1303 = vmatprep.subr.bf16.mxu0 0
      %1304 = vmatpush1.bf16.msra.mxu0 %v1285
      %1305 = vmatprep.subr.bf16.mxu0 0
      %1306 = vmatpush1.bf16.msra.mxu0 %v1284
      %1307 = vmatprep.subr.bf16.mxu0 0
      %1308 = vmatpush1.bf16.msra.mxu0 %v1283
      %1309 = vmatprep.subr.bf16.mxu0 0
      %1310 = vmatpush1.bf16.msra.mxu0 %v1282
      %1311 = vmatprep.subr.bf16.mxu0 0
      %1312 = vmatpush1.bf16.msra.mxu0 %v1281
      %1313 = vmatprep.subr.bf16.mxu0 0
      %1314 = vmatpush2.bf16.msra.mxu0 0
      %1315 = vmatprep.subr.bf16.mxu0 0
      %1316 = vmatpush2.bf16.msra.mxu0 0
      %1317 = vmatprep.subr.bf16.mxu0 0
      %1318 = vmatpush2.bf16.msra.mxu0 0
      %1319 = vmatprep.subr.bf16.mxu0 0
      %1320 = vmatpush2.bf16.msra.mxu0 0
      %1321 = vmatprep.subr.bf16.mxu0 0
      %1322 = vmatpush2.bf16.msra.mxu0 0
      %1323 = vmatprep.subr.bf16.mxu0 0
      %1324 = vmatpush2.bf16.msra.mxu0 0
      %1325 = vmatprep.subr.bf16.mxu0 0
      %1326 = vmatpush2.bf16.msra.mxu0 0
      %1327 = vmatprep.subr.bf16.mxu0 0
      %1328 = vmatpush2.bf16.msra.mxu0 0
      %1329 = vmatprep.mubr.bf16.mxu0 0
      %1330 = vmatmul.mubr.bf16.gmra.mxu0 %v1207
      %v1331 = vpop.f32.mrf.mxu0
      %v1332 = vadd.f32 0.0, %v1331
      %v1333 = vpop.f32.mrf.mxu0
      %v1334 = vpop.f32.mrf.mxu0
      %v1335 = vadd.f32 0.0, %v1334
      %v1336 = vpop.f32.mrf.mxu0
      %1337 = vmatprep.mubr.bf16.mxu0 0
      %1338 = vmatmul.mubr.bf16.gmra.mxu0 %v1216
      %v1339 = vpop.f32.mrf.mxu0
      %v1340 = vadd.f32 0.0, %v1339
      %v1341 = vpop.f32.mrf.mxu0
      %v1342 = vpop.f32.mrf.mxu0
      %v1343 = vadd.f32 0.0, %v1342
      %v1344 = vpop.f32.mrf.mxu0
      %1345 = vmatprep.mubr.bf16.mxu0 0
      %1346 = vmatmul.mubr.bf16.gmra.mxu0 %v1225
      %v1347 = vpop.f32.mrf.mxu0
      %v1348 = vadd.f32 0.0, %v1347
      %v1349 = vpop.f32.mrf.mxu0
      %v1350 = vpop.f32.mrf.mxu0
      %v1351 = vadd.f32 0.0, %v1350
      %v1352 = vpop.f32.mrf.mxu0
      %1353 = vmatprep.mubr.bf16.mxu0 0
      %1354 = vmatmul.mubr.bf16.gmra.mxu0 %v1234
      %v1355 = vpop.f32.mrf.mxu0
      %v1356 = vadd.f32 0.0, %v1355
      %v1357 = vpop.f32.mrf.mxu0
      %v1358 = vpop.f32.mrf.mxu0
      %v1359 = vadd.f32 0.0, %v1358
      %v1360 = vpop.f32.mrf.mxu0
      %1361 = vmatprep.mubr.bf16.mxu0 0
      %1362 = vmatmul.mubr.bf16.gmra.mxu0 %v1243
      %v1363 = vpop.f32.mrf.mxu0
      %v1364 = vadd.f32 0.0, %v1363
      %v1365 = vpop.f32.mrf.mxu0
      %v1366 = vpop.f32.mrf.mxu0
      %v1367 = vadd.f32 0.0, %v1366
      %v1368 = vpop.f32.mrf.mxu0
      %1369 = vdwg.mxu0
      %v1370 = vadd.f32 %v1160, %v1332
      %v1371 = vadd.f32 %v1161, %v1335
      %v1372 = vadd.f32 %v1162, %v1340
      %v1373 = vadd.f32 %v1163, %v1343
      %v1374 = vadd.f32 %v1164, %v1348
      %v1375 = vadd.f32 %v1165, %v1351
      %v1376 = vadd.f32 %v1166, %v1356
      %v1377 = vadd.f32 %v1167, %v1359
      %v1378 = vadd.f32 %v1168, %v1364
      %v1379 = vadd.f32 %v1169, %v1367
      %v1380 = vld [vmem:[%s390 + $0x4] sm:$0xc]
      %v1381 = vld [vmem:[%s3 + $0x140] sm:$0xf]
      %v1382 = vld [vmem:[%s3 + $0x144] sm:$0xf]
      %v1383 = vld [vmem:[%s3 + $0x148] sm:$0xf]
      %v1384 = vld [vmem:[%s3 + $0x14c] sm:$0xf]
      %v1385 = vld [vmem:[%s3 + $0x150] sm:$0xf]
      %v1386 = vld [vmem:[%s3 + $0x154] sm:$0xf]
      %v1387 = vld [vmem:[%s3 + $0x158] sm:$0xf]
      %v1388 = vld [vmem:[%s3 + $0x15c] sm:$0xf]
      %v1389 = vld [vmem:[%s3 + $0x160] sm:$0xf]
      %v1390 = vld [vmem:[%s3 + $0x164] sm:$0xf]
      %v1391 = vld [vmem:[%s3 + $0x168] sm:$0xf]
      %v1392 = vld [vmem:[%s3 + $0x16c] sm:$0xf]
      %v1393 = vld [vmem:[%s3 + $0x170] sm:$0xf]
      %v1394 = vld [vmem:[%s3 + $0x174] sm:$0xf]
      %v1395 = vld [vmem:[%s3 + $0x178] sm:$0xf]
      %v1396 = vld [vmem:[%s3 + $0x17c] sm:$0xf]
      %v1398 = vunpack.c.l.b16 %v1380
      %v1399 = vpack.c.b16 %v1007, %v1398
      %vm1400 = vcmask 1045504
      %v1401 = vrot.slane %v1399, 2
      %v1402 = vrot.slane %v1018, 2
      %v1403 = vsel %vm1400, %v1401, %v1402
      %v1404 = vrot.slane %v1019, 2
      %v1405 = vsel %vm1400, %v1402, %v1404
      %v1406 = vrot.slane %v1020, 2
      %v1407 = vsel %vm1400, %v1404, %v1406
      %v1408 = vrot.slane %v1021, 2
      %v1409 = vsel %vm1400, %v1406, %v1408
      %v1410 = vrot.slane %v1189, 2
      %v1411 = vsel %vm1400, %v1408, %v1410
      %v1433 = vunpack.c.l.b16 %v1381
      %v1434 = vunpack.c.l.b16 %v1382
      %v1435 = vunpack.c.l.b16 %v1383
      %v1436 = vunpack.c.l.b16 %v1384
      %v1437 = vunpack.c.l.b16 %v1385
      %v1438 = vunpack.c.l.b16 %v1386
      %v1439 = vunpack.c.l.b16 %v1387
      %v1440 = vunpack.c.l.b16 %v1388
      %v1441 = vunpack.c.l.b16 %v1389
      %v1442 = vunpack.c.l.b16 %v1390
      %v1443 = vunpack.c.l.b16 %v1391
      %v1444 = vunpack.c.l.b16 %v1392
      %v1445 = vunpack.c.l.b16 %v1393
      %v1446 = vunpack.c.l.b16 %v1394
      %v1447 = vunpack.c.l.b16 %v1395
      %v1448 = vunpack.c.l.b16 %v1396
      %v1449 = vpack.c.b16 %v1434, %v1433
      %v1450 = vpack.c.b16 %v1436, %v1435
      %v1451 = vpack.c.b16 %v1438, %v1437
      %v1452 = vpack.c.b16 %v1440, %v1439
      %v1453 = vpack.c.b16 %v1442, %v1441
      %v1454 = vpack.c.b16 %v1444, %v1443
      %v1455 = vpack.c.b16 %v1446, %v1445
      %v1456 = vpack.c.b16 %v1448, %v1447
      %1465 = vmatprep.subr.bf16.mxu0 0
      %1466 = vmatpush1.bf16.msra.mxu0 %v1456
      %1467 = vmatprep.subr.bf16.mxu0 0
      %1468 = vmatpush1.bf16.msra.mxu0 %v1455
      %1469 = vmatprep.subr.bf16.mxu0 0
      %1470 = vmatpush1.bf16.msra.mxu0 %v1454
      %1471 = vmatprep.subr.bf16.mxu0 0
      %1472 = vmatpush1.bf16.msra.mxu0 %v1453
      %1473 = vmatprep.subr.bf16.mxu0 0
      %1474 = vmatpush1.bf16.msra.mxu0 %v1452
      %1475 = vmatprep.subr.bf16.mxu0 0
      %1476 = vmatpush1.bf16.msra.mxu0 %v1451
      %1477 = vmatprep.subr.bf16.mxu0 0
      %1478 = vmatpush1.bf16.msra.mxu0 %v1450
      %1479 = vmatprep.subr.bf16.mxu0 0
      %1480 = vmatpush1.bf16.msra.mxu0 %v1449
      %1481 = vmatprep.subr.bf16.mxu0 0
      %1482 = vmatpush2.bf16.msra.mxu0 0
      %1483 = vmatprep.subr.bf16.mxu0 0
      %1484 = vmatpush2.bf16.msra.mxu0 0
      %1485 = vmatprep.subr.bf16.mxu0 0
      %1486 = vmatpush2.bf16.msra.mxu0 0
      %1487 = vmatprep.subr.bf16.mxu0 0
      %1488 = vmatpush2.bf16.msra.mxu0 0
      %1489 = vmatprep.subr.bf16.mxu0 0
      %1490 = vmatpush2.bf16.msra.mxu0 0
      %1491 = vmatprep.subr.bf16.mxu0 0
      %1492 = vmatpush2.bf16.msra.mxu0 0
      %1493 = vmatprep.subr.bf16.mxu0 0
      %1494 = vmatpush2.bf16.msra.mxu0 0
      %1495 = vmatprep.subr.bf16.mxu0 0
      %1496 = vmatpush2.bf16.msra.mxu0 0
      %1497 = vmatprep.mubr.bf16.mxu0 0
      %1498 = vmatmul.mubr.bf16.gmra.mxu0 %v1403
      %v1499 = vpop.f32.mrf.mxu0
      %v1500 = vadd.f32 0.0, %v1499
      %v1501 = vpop.f32.mrf.mxu0
      %v1502 = vpop.f32.mrf.mxu0
      %v1503 = vadd.f32 0.0, %v1502
      %v1504 = vpop.f32.mrf.mxu0
      %1505 = vmatprep.mubr.bf16.mxu0 0
      %1506 = vmatmul.mubr.bf16.gmra.mxu0 %v1405
      %v1507 = vpop.f32.mrf.mxu0
      %v1508 = vadd.f32 0.0, %v1507
      %v1509 = vpop.f32.mrf.mxu0
      %v1510 = vpop.f32.mrf.mxu0
      %v1511 = vadd.f32 0.0, %v1510
      %v1512 = vpop.f32.mrf.mxu0
      %1513 = vmatprep.mubr.bf16.mxu0 0
      %1514 = vmatmul.mubr.bf16.gmra.mxu0 %v1407
      %v1515 = vpop.f32.mrf.mxu0
      %v1516 = vadd.f32 0.0, %v1515
      %v1517 = vpop.f32.mrf.mxu0
      %v1518 = vpop.f32.mrf.mxu0
      %v1519 = vadd.f32 0.0, %v1518
      %v1520 = vpop.f32.mrf.mxu0
      %1521 = vmatprep.mubr.bf16.mxu0 0
      %1522 = vmatmul.mubr.bf16.gmra.mxu0 %v1409
      %v1523 = vpop.f32.mrf.mxu0
      %v1524 = vadd.f32 0.0, %v1523
      %v1525 = vpop.f32.mrf.mxu0
      %v1526 = vpop.f32.mrf.mxu0
      %v1527 = vadd.f32 0.0, %v1526
      %v1528 = vpop.f32.mrf.mxu0
      %1529 = vmatprep.mubr.bf16.mxu0 0
      %1530 = vmatmul.mubr.bf16.gmra.mxu0 %v1411
      %v1531 = vpop.f32.mrf.mxu0
      %v1532 = vadd.f32 0.0, %v1531
      %v1533 = vpop.f32.mrf.mxu0
      %v1534 = vpop.f32.mrf.mxu0
      %v1535 = vadd.f32 0.0, %v1534
      %v1536 = vpop.f32.mrf.mxu0
      %1537 = vdwg.mxu0
      %v1538 = vadd.f32 %v1370, %v1500
      %v1539 = vadd.f32 %v1371, %v1503
      %v1540 = vadd.f32 %v1372, %v1508
      %v1541 = vadd.f32 %v1373, %v1511
      %v1542 = vadd.f32 %v1374, %v1516
      %v1543 = vadd.f32 %v1375, %v1519
      %v1544 = vadd.f32 %v1376, %v1524
      %v1545 = vadd.f32 %v1377, %v1527
      %v1546 = vadd.f32 %v1378, %v1532
      %v1547 = vadd.f32 %v1379, %v1535
      %v1548 = vld [vmem:[%s390 + $0x8] sm:$0xc]
      %v1549 = vld [vmem:[%s390 + $0xc] sm:$0xf]
      %v1550 = vld [vmem:[%s390 + $0x10] sm:$0xf]
      %v1551 = vld [vmem:[%s390 + $0x14] sm:$0xf]
      %v1552 = vld [vmem:[%s390 + $0x18] sm:$0xf]
      %v1553 = vld [vmem:[%s390 + $0x1c] sm:$0xf]
      %v1554 = vld [vmem:[%s390 + $0x20] sm:$0xf]
      %v1555 = vld [vmem:[%s390 + $0x24] sm:$0xf]
      %v1556 = vld [vmem:[%s390 + $0x28] sm:$0xf]
      %v1557 = vld [vmem:[%s390 + $0x2c] sm:$0xf]
      %v1558 = vld [vmem:[%s390 + $0x30] sm:$0x3]
      %v1559 = vld [vmem:[%s3 + $0x180] sm:$0xf]
      %v1560 = vld [vmem:[%s3 + $0x184] sm:$0xf]
      %v1561 = vld [vmem:[%s3 + $0x188] sm:$0xf]
      %v1562 = vld [vmem:[%s3 + $0x18c] sm:$0xf]
      %v1563 = vld [vmem:[%s3 + $0x190] sm:$0xf]
      %v1564 = vld [vmem:[%s3 + $0x194] sm:$0xf]
      %v1565 = vld [vmem:[%s3 + $0x198] sm:$0xf]
      %v1566 = vld [vmem:[%s3 + $0x19c] sm:$0xf]
      %v1567 = vld [vmem:[%s3 + $0x1a0] sm:$0xf]
      %v1568 = vld [vmem:[%s3 + $0x1a4] sm:$0xf]
      %v1569 = vld [vmem:[%s3 + $0x1a8] sm:$0xf]
      %v1570 = vld [vmem:[%s3 + $0x1ac] sm:$0xf]
      %v1571 = vld [vmem:[%s3 + $0x1b0] sm:$0xf]
      %v1572 = vld [vmem:[%s3 + $0x1b4] sm:$0xf]
      %v1573 = vld [vmem:[%s3 + $0x1b8] sm:$0xf]
      %v1574 = vld [vmem:[%s3 + $0x1bc] sm:$0xf]
      %v1586 = vunpack.c.l.b16 %v1548
      %v1587 = vunpack.c.l.b16 %v1549
      %v1588 = vunpack.c.l.b16 %v1550
      %v1589 = vunpack.c.l.b16 %v1551
      %v1590 = vunpack.c.l.b16 %v1552
      %v1591 = vunpack.c.l.b16 %v1553
      %v1592 = vunpack.c.l.b16 %v1554
      %v1593 = vunpack.c.l.b16 %v1555
      %v1594 = vunpack.c.l.b16 %v1556
      %v1595 = vunpack.c.l.b16 %v1557
      %v1596 = vunpack.c.l.b16 %v1558
      %v1597 = vpack.c.b16 %v1587, %v1586
      %v1598 = vpack.c.b16 %v1589, %v1588
      %v1599 = vpack.c.b16 %v1591, %v1590
      %v1600 = vpack.c.b16 %v1593, %v1592
      %v1601 = vpack.c.b16 %v1595, %v1594
      %v1602 = vpack.c.b16 %v1596, %v1596
      %v1603 = vrot.slane %v1597, 2
      %v1604 = vrot.slane %v1598, 2
      %v1605 = vsel %vm1400, %v1603, %v1604
      %v1606 = vrot.slane %v1599, 2
      %v1607 = vsel %vm1400, %v1604, %v1606
      %v1608 = vrot.slane %v1600, 2
      %v1609 = vsel %vm1400, %v1606, %v1608
      %v1610 = vrot.slane %v1601, 2
      %v1611 = vsel %vm1400, %v1608, %v1610
      %v1612 = vrot.slane %v1602, 2
      %v1613 = vsel %vm1400, %v1610, %v1612
      %v1635 = vunpack.c.l.b16 %v1559
      %v1636 = vunpack.c.l.b16 %v1560
      %v1637 = vunpack.c.l.b16 %v1561
      %v1638 = vunpack.c.l.b16 %v1562
      %v1639 = vunpack.c.l.b16 %v1563
      %v1640 = vunpack.c.l.b16 %v1564
      %v1641 = vunpack.c.l.b16 %v1565
      %v1642 = vunpack.c.l.b16 %v1566
      %v1643 = vunpack.c.l.b16 %v1567
      %v1644 = vunpack.c.l.b16 %v1568
      %v1645 = vunpack.c.l.b16 %v1569
      %v1646 = vunpack.c.l.b16 %v1570
      %v1647 = vunpack.c.l.b16 %v1571
      %v1648 = vunpack.c.l.b16 %v1572
      %v1649 = vunpack.c.l.b16 %v1573
      %v1650 = vunpack.c.l.b16 %v1574
      %v1651 = vpack.c.b16 %v1636, %v1635
      %v1652 = vpack.c.b16 %v1638, %v1637
      %v1653 = vpack.c.b16 %v1640, %v1639
      %v1654 = vpack.c.b16 %v1642, %v1641
      %v1655 = vpack.c.b16 %v1644, %v1643
      %v1656 = vpack.c.b16 %v1646, %v1645
      %v1657 = vpack.c.b16 %v1648, %v1647
      %v1658 = vpack.c.b16 %v1650, %v1649
      %1667 = vmatprep.subr.bf16.mxu0 0
      %1668 = vmatpush1.bf16.msra.mxu0 %v1658
      %1669 = vmatprep.subr.bf16.mxu0 0
      %1670 = vmatpush1.bf16.msra.mxu0 %v1657
      %1671 = vmatprep.subr.bf16.mxu0 0
      %1672 = vmatpush1.bf16.msra.mxu0 %v1656
      %1673 = vmatprep.subr.bf16.mxu0 0
      %1674 = vmatpush1.bf16.msra.mxu0 %v1655
      %1675 = vmatprep.subr.bf16.mxu0 0
      %1676 = vmatpush1.bf16.msra.mxu0 %v1654
      %1677 = vmatprep.subr.bf16.mxu0 0
      %1678 = vmatpush1.bf16.msra.mxu0 %v1653
      %1679 = vmatprep.subr.bf16.mxu0 0
      %1680 = vmatpush1.bf16.msra.mxu0 %v1652
      %1681 = vmatprep.subr.bf16.mxu0 0
      %1682 = vmatpush1.bf16.msra.mxu0 %v1651
      %1683 = vmatprep.subr.bf16.mxu0 0
      %1684 = vmatpush2.bf16.msra.mxu0 0
      %1685 = vmatprep.subr.bf16.mxu0 0
      %1686 = vmatpush2.bf16.msra.mxu0 0
      %1687 = vmatprep.subr.bf16.mxu0 0
      %1688 = vmatpush2.bf16.msra.mxu0 0
      %1689 = vmatprep.subr.bf16.mxu0 0
      %1690 = vmatpush2.bf16.msra.mxu0 0
      %1691 = vmatprep.subr.bf16.mxu0 0
      %1692 = vmatpush2.bf16.msra.mxu0 0
      %1693 = vmatprep.subr.bf16.mxu0 0
      %1694 = vmatpush2.bf16.msra.mxu0 0
      %1695 = vmatprep.subr.bf16.mxu0 0
      %1696 = vmatpush2.bf16.msra.mxu0 0
      %1697 = vmatprep.subr.bf16.mxu0 0
      %1698 = vmatpush2.bf16.msra.mxu0 0
      %1699 = vmatprep.mubr.bf16.mxu0 0
      %1700 = vmatmul.mubr.bf16.gmra.mxu0 %v1605
      %v1701 = vpop.f32.mrf.mxu0
      %v1702 = vadd.f32 0.0, %v1701
      %v1703 = vpop.f32.mrf.mxu0
      %v1704 = vpop.f32.mrf.mxu0
      %v1705 = vadd.f32 0.0, %v1704
      %v1706 = vpop.f32.mrf.mxu0
      %1707 = vmatprep.mubr.bf16.mxu0 0
      %1708 = vmatmul.mubr.bf16.gmra.mxu0 %v1607
      %v1709 = vpop.f32.mrf.mxu0
      %v1710 = vadd.f32 0.0, %v1709
      %v1711 = vpop.f32.mrf.mxu0
      %v1712 = vpop.f32.mrf.mxu0
      %v1713 = vadd.f32 0.0, %v1712
      %v1714 = vpop.f32.mrf.mxu0
      %1715 = vmatprep.mubr.bf16.mxu0 0
      %1716 = vmatmul.mubr.bf16.gmra.mxu0 %v1609
      %v1717 = vpop.f32.mrf.mxu0
      %v1718 = vadd.f32 0.0, %v1717
      %v1719 = vpop.f32.mrf.mxu0
      %v1720 = vpop.f32.mrf.mxu0
      %v1721 = vadd.f32 0.0, %v1720
      %v1722 = vpop.f32.mrf.mxu0
      %1723 = vmatprep.mubr.bf16.mxu0 0
      %1724 = vmatmul.mubr.bf16.gmra.mxu0 %v1611
      %v1725 = vpop.f32.mrf.mxu0
      %v1726 = vadd.f32 0.0, %v1725
      %v1727 = vpop.f32.mrf.mxu0
      %v1728 = vpop.f32.mrf.mxu0
      %v1729 = vadd.f32 0.0, %v1728
      %v1730 = vpop.f32.mrf.mxu0
      %1731 = vmatprep.mubr.bf16.mxu0 0
      %1732 = vmatmul.mubr.bf16.gmra.mxu0 %v1613
      %v1733 = vpop.f32.mrf.mxu0
      %v1734 = vadd.f32 0.0, %v1733
      %v1735 = vpop.f32.mrf.mxu0
      %v1736 = vpop.f32.mrf.mxu0
      %v1737 = vadd.f32 0.0, %v1736
      %v1738 = vpop.f32.mrf.mxu0
      %1739 = vdwg.mxu0
      %v1740 = vadd.f32 %v1538, %v1702
      %v1741 = vadd.f32 %v1539, %v1705
      %v1742 = vadd.f32 %v1540, %v1710
      %v1743 = vadd.f32 %v1541, %v1713
      %v1744 = vadd.f32 %v1542, %v1718
      %v1745 = vadd.f32 %v1543, %v1721
      %v1746 = vadd.f32 %v1544, %v1726
      %v1747 = vadd.f32 %v1545, %v1729
      %v1748 = vadd.f32 %v1546, %v1734
      %v1749 = vadd.f32 %v1547, %v1737
      %v1750 = vld [vmem:[%s390 + $0x30] sm:$0x7]
      %v1751 = vld [vmem:[%s3 + $0x1c0] sm:$0xf]
      %v1752 = vld [vmem:[%s3 + $0x1c4] sm:$0xf]
      %v1753 = vld [vmem:[%s3 + $0x1c8] sm:$0xf]
      %v1754 = vld [vmem:[%s3 + $0x1cc] sm:$0xf]
      %v1755 = vld [vmem:[%s3 + $0x1d0] sm:$0xf]
      %v1756 = vld [vmem:[%s3 + $0x1d4] sm:$0xf]
      %v1757 = vld [vmem:[%s3 + $0x1d8] sm:$0xf]
      %v1758 = vld [vmem:[%s3 + $0x1dc] sm:$0xf]
      %v1759 = vld [vmem:[%s3 + $0x1e0] sm:$0xf]
      %v1760 = vld [vmem:[%s3 + $0x1e4] sm:$0xf]
      %v1761 = vld [vmem:[%s3 + $0x1e8] sm:$0xf]
      %v1762 = vld [vmem:[%s3 + $0x1ec] sm:$0xf]
      %v1763 = vld [vmem:[%s3 + $0x1f0] sm:$0xf]
      %v1764 = vld [vmem:[%s3 + $0x1f4] sm:$0xf]
      %v1765 = vld [vmem:[%s3 + $0x1f8] sm:$0xf]
      %v1766 = vld [vmem:[%s3 + $0x1fc] sm:$0xf]
      %v1768 = vunpack.c.l.b16 %v1750
      %v1769 = vpack.c.b16 %v1768, %v1768
      %vm1770 = vsmask.f32 5376
      %v1772 = vshrl.u32 %v1597, 16
      %v1774 = vrot.slane %v1772, 2
      %v1775 = vshll.u32 %v1597, 16
      %v1777 = vrot.slane %v1775, 3
      %v1778 = vor.u32 %v1774, %v1777
      %v1780 = vshrl.u32 %v1598, 16
      %v1782 = vrot.slane %v1780, 2
      %v1783 = vshll.u32 %v1598, 16
      %v1785 = vrot.slane %v1783, 3
      %v1786 = vor.u32 %v1782, %v1785
      %v1787 = vsel %vm1770, %v1778, %v1786
      %v1789 = vshrl.u32 %v1599, 16
      %v1791 = vrot.slane %v1789, 2
      %v1792 = vshll.u32 %v1599, 16
      %v1794 = vrot.slane %v1792, 3
      %v1795 = vor.u32 %v1791, %v1794
      %v1796 = vsel %vm1770, %v1786, %v1795
      %v1798 = vshrl.u32 %v1600, 16
      %v1800 = vrot.slane %v1798, 2
      %v1801 = vshll.u32 %v1600, 16
      %v1803 = vrot.slane %v1801, 3
      %v1804 = vor.u32 %v1800, %v1803
      %v1805 = vsel %vm1770, %v1795, %v1804
      %v1807 = vshrl.u32 %v1601, 16
      %v1809 = vrot.slane %v1807, 2
      %v1810 = vshll.u32 %v1601, 16
      %v1812 = vrot.slane %v1810, 3
      %v1813 = vor.u32 %v1809, %v1812
      %v1814 = vsel %vm1770, %v1804, %v1813
      %v1816 = vshrl.u32 %v1769, 16
      %v1818 = vrot.slane %v1816, 2
      %v1819 = vshll.u32 %v1769, 16
      %v1821 = vrot.slane %v1819, 3
      %v1822 = vor.u32 %v1818, %v1821
      %v1823 = vsel %vm1770, %v1813, %v1822
      %v1845 = vunpack.c.l.b16 %v1751
      %v1846 = vunpack.c.l.b16 %v1752
      %v1847 = vunpack.c.l.b16 %v1753
      %v1848 = vunpack.c.l.b16 %v1754
      %v1849 = vunpack.c.l.b16 %v1755
      %v1850 = vunpack.c.l.b16 %v1756
      %v1851 = vunpack.c.l.b16 %v1757
      %v1852 = vunpack.c.l.b16 %v1758
      %v1853 = vunpack.c.l.b16 %v1759
      %v1854 = vunpack.c.l.b16 %v1760
      %v1855 = vunpack.c.l.b16 %v1761
      %v1856 = vunpack.c.l.b16 %v1762
      %v1857 = vunpack.c.l.b16 %v1763
      %v1858 = vunpack.c.l.b16 %v1764
      %v1859 = vunpack.c.l.b16 %v1765
      %v1860 = vunpack.c.l.b16 %v1766
      %v1861 = vpack.c.b16 %v1846, %v1845
      %v1862 = vpack.c.b16 %v1848, %v1847
      %v1863 = vpack.c.b16 %v1850, %v1849
      %v1864 = vpack.c.b16 %v1852, %v1851
      %v1865 = vpack.c.b16 %v1854, %v1853
      %v1866 = vpack.c.b16 %v1856, %v1855
      %v1867 = vpack.c.b16 %v1858, %v1857
      %v1868 = vpack.c.b16 %v1860, %v1859
      %1877 = vmatprep.subr.bf16.mxu0 0
      %1878 = vmatpush1.bf16.msra.mxu0 %v1868
      %1879 = vmatprep.subr.bf16.mxu0 0
      %1880 = vmatpush1.bf16.msra.mxu0 %v1867
      %1881 = vmatprep.subr.bf16.mxu0 0
      %1882 = vmatpush1.bf16.msra.mxu0 %v1866
      %1883 = vmatprep.subr.bf16.mxu0 0
      %1884 = vmatpush1.bf16.msra.mxu0 %v1865
      %1885 = vmatprep.subr.bf16.mxu0 0
      %1886 = vmatpush1.bf16.msra.mxu0 %v1864
      %1887 = vmatprep.subr.bf16.mxu0 0
      %1888 = vmatpush1.bf16.msra.mxu0 %v1863
      %1889 = vmatprep.subr.bf16.mxu0 0
      %1890 = vmatpush1.bf16.msra.mxu0 %v1862
      %1891 = vmatprep.subr.bf16.mxu0 0
      %1892 = vmatpush1.bf16.msra.mxu0 %v1861
      %1893 = vmatprep.subr.bf16.mxu0 0
      %1894 = vmatpush2.bf16.msra.mxu0 0
      %1895 = vmatprep.subr.bf16.mxu0 0
      %1896 = vmatpush2.bf16.msra.mxu0 0
      %1897 = vmatprep.subr.bf16.mxu0 0
      %1898 = vmatpush2.bf16.msra.mxu0 0
      %1899 = vmatprep.subr.bf16.mxu0 0
      %1900 = vmatpush2.bf16.msra.mxu0 0
      %1901 = vmatprep.subr.bf16.mxu0 0
      %1902 = vmatpush2.bf16.msra.mxu0 0
      %1903 = vmatprep.subr.bf16.mxu0 0
      %1904 = vmatpush2.bf16.msra.mxu0 0
      %1905 = vmatprep.subr.bf16.mxu0 0
      %1906 = vmatpush2.bf16.msra.mxu0 0
      %1907 = vmatprep.subr.bf16.mxu0 0
      %1908 = vmatpush2.bf16.msra.mxu0 0
      %1909 = vmatprep.mubr.bf16.mxu0 0
      %1910 = vmatmul.mubr.bf16.gmra.mxu0 %v1787
      %v1911 = vpop.f32.mrf.mxu0
      %v1912 = vadd.f32 0.0, %v1911
      %v1913 = vpop.f32.mrf.mxu0
      %v1914 = vpop.f32.mrf.mxu0
      %v1915 = vadd.f32 0.0, %v1914
      %v1916 = vpop.f32.mrf.mxu0
      %1917 = vmatprep.mubr.bf16.mxu0 0
      %1918 = vmatmul.mubr.bf16.gmra.mxu0 %v1796
      %v1919 = vpop.f32.mrf.mxu0
      %v1920 = vadd.f32 0.0, %v1919
      %v1921 = vpop.f32.mrf.mxu0
      %v1922 = vpop.f32.mrf.mxu0
      %v1923 = vadd.f32 0.0, %v1922
      %v1924 = vpop.f32.mrf.mxu0
      %1925 = vmatprep.mubr.bf16.mxu0 0
      %1926 = vmatmul.mubr.bf16.gmra.mxu0 %v1805
      %v1927 = vpop.f32.mrf.mxu0
      %v1928 = vadd.f32 0.0, %v1927
      %v1929 = vpop.f32.mrf.mxu0
      %v1930 = vpop.f32.mrf.mxu0
      %v1931 = vadd.f32 0.0, %v1930
      %v1932 = vpop.f32.mrf.mxu0
      %1933 = vmatprep.mubr.bf16.mxu0 0
      %1934 = vmatmul.mubr.bf16.gmra.mxu0 %v1814
      %v1935 = vpop.f32.mrf.mxu0
      %v1936 = vadd.f32 0.0, %v1935
      %v1937 = vpop.f32.mrf.mxu0
      %v1938 = vpop.f32.mrf.mxu0
      %v1939 = vadd.f32 0.0, %v1938
      %v1940 = vpop.f32.mrf.mxu0
      %1941 = vmatprep.mubr.bf16.mxu0 0
      %1942 = vmatmul.mubr.bf16.gmra.mxu0 %v1823
      %v1943 = vpop.f32.mrf.mxu0
      %v1944 = vadd.f32 0.0, %v1943
      %v1945 = vpop.f32.mrf.mxu0
      %v1946 = vpop.f32.mrf.mxu0
      %v1947 = vadd.f32 0.0, %v1946
      %v1948 = vpop.f32.mrf.mxu0
      %1949 = vdwg.mxu0
      %v1950 = vadd.f32 %v1740, %v1912
      %v1951 = vadd.f32 %v1741, %v1915
      %v1952 = vadd.f32 %v1742, %v1920
      %v1953 = vadd.f32 %v1743, %v1923
      %v1954 = vadd.f32 %v1744, %v1928
      %v1955 = vadd.f32 %v1745, %v1931
      %v1956 = vadd.f32 %v1746, %v1936
      %v1957 = vadd.f32 %v1747, %v1939
      %v1958 = vadd.f32 %v1748, %v1944
      %v1959 = vadd.f32 %v1749, %v1947
      %v1960 = vld [vmem:[%s390 + $0x8] sm:$0x8]
      %v1961 = vld [vmem:[%s3 + $0x200] sm:$0xf]
      %v1962 = vld [vmem:[%s3 + $0x204] sm:$0xf]
      %v1963 = vld [vmem:[%s3 + $0x208] sm:$0xf]
      %v1964 = vld [vmem:[%s3 + $0x20c] sm:$0xf]
      %v1965 = vld [vmem:[%s3 + $0x210] sm:$0xf]
      %v1966 = vld [vmem:[%s3 + $0x214] sm:$0xf]
      %v1967 = vld [vmem:[%s3 + $0x218] sm:$0xf]
      %v1968 = vld [vmem:[%s3 + $0x21c] sm:$0xf]
      %v1969 = vld [vmem:[%s3 + $0x220] sm:$0xf]
      %v1970 = vld [vmem:[%s3 + $0x224] sm:$0xf]
      %v1971 = vld [vmem:[%s3 + $0x228] sm:$0xf]
      %v1972 = vld [vmem:[%s3 + $0x22c] sm:$0xf]
      %v1973 = vld [vmem:[%s3 + $0x230] sm:$0xf]
      %v1974 = vld [vmem:[%s3 + $0x234] sm:$0xf]
      %v1975 = vld [vmem:[%s3 + $0x238] sm:$0xf]
      %v1976 = vld [vmem:[%s3 + $0x23c] sm:$0xf]
      %v1978 = vunpack.c.l.b16 %v1960
      %v1979 = vpack.c.b16 %v1587, %v1978
      %vm1980 = vcmask 1044480
      %v1981 = vrot.slane %v1979, 3
      %v1982 = vrot.slane %v1598, 3
      %v1983 = vsel %vm1980, %v1981, %v1982
      %v1984 = vrot.slane %v1599, 3
      %v1985 = vsel %vm1980, %v1982, %v1984
      %v1986 = vrot.slane %v1600, 3
      %v1987 = vsel %vm1980, %v1984, %v1986
      %v1988 = vrot.slane %v1601, 3
      %v1989 = vsel %vm1980, %v1986, %v1988
      %v1990 = vrot.slane %v1769, 3
      %v1991 = vsel %vm1980, %v1988, %v1990
      %v2013 = vunpack.c.l.b16 %v1961
      %v2014 = vunpack.c.l.b16 %v1962
      %v2015 = vunpack.c.l.b16 %v1963
      %v2016 = vunpack.c.l.b16 %v1964
      %v2017 = vunpack.c.l.b16 %v1965
      %v2018 = vunpack.c.l.b16 %v1966
      %v2019 = vunpack.c.l.b16 %v1967
      %v2020 = vunpack.c.l.b16 %v1968
      %v2021 = vunpack.c.l.b16 %v1969
      %v2022 = vunpack.c.l.b16 %v1970
      %v2023 = vunpack.c.l.b16 %v1971
      %v2024 = vunpack.c.l.b16 %v1972
      %v2025 = vunpack.c.l.b16 %v1973
      %v2026 = vunpack.c.l.b16 %v1974
      %v2027 = vunpack.c.l.b16 %v1975
      %v2028 = vunpack.c.l.b16 %v1976
      %v2029 = vpack.c.b16 %v2014, %v2013
      %v2030 = vpack.c.b16 %v2016, %v2015
      %v2031 = vpack.c.b16 %v2018, %v2017
      %v2032 = vpack.c.b16 %v2020, %v2019
      %v2033 = vpack.c.b16 %v2022, %v2021
      %v2034 = vpack.c.b16 %v2024, %v2023
      %v2035 = vpack.c.b16 %v2026, %v2025
      %v2036 = vpack.c.b16 %v2028, %v2027
      %2045 = vmatprep.subr.bf16.mxu0 0
      %2046 = vmatpush1.bf16.msra.mxu0 %v2036
      %2047 = vmatprep.subr.bf16.mxu0 0
      %2048 = vmatpush1.bf16.msra.mxu0 %v2035
      %2049 = vmatprep.subr.bf16.mxu0 0
      %2050 = vmatpush1.bf16.msra.mxu0 %v2034
      %2051 = vmatprep.subr.bf16.mxu0 0
      %2052 = vmatpush1.bf16.msra.mxu0 %v2033
      %2053 = vmatprep.subr.bf16.mxu0 0
      %2054 = vmatpush1.bf16.msra.mxu0 %v2032
      %2055 = vmatprep.subr.bf16.mxu0 0
      %2056 = vmatpush1.bf16.msra.mxu0 %v2031
      %2057 = vmatprep.subr.bf16.mxu0 0
      %2058 = vmatpush1.bf16.msra.mxu0 %v2030
      %2059 = vmatprep.subr.bf16.mxu0 0
      %2060 = vmatpush1.bf16.msra.mxu0 %v2029
      %2061 = vmatprep.subr.bf16.mxu0 0
      %2062 = vmatpush2.bf16.msra.mxu0 0
      %2063 = vmatprep.subr.bf16.mxu0 0
      %2064 = vmatpush2.bf16.msra.mxu0 0
      %2065 = vmatprep.subr.bf16.mxu0 0
      %2066 = vmatpush2.bf16.msra.mxu0 0
      %2067 = vmatprep.subr.bf16.mxu0 0
      %2068 = vmatpush2.bf16.msra.mxu0 0
      %2069 = vmatprep.subr.bf16.mxu0 0
      %2070 = vmatpush2.bf16.msra.mxu0 0
      %2071 = vmatprep.subr.bf16.mxu0 0
      %2072 = vmatpush2.bf16.msra.mxu0 0
      %2073 = vmatprep.subr.bf16.mxu0 0
      %2074 = vmatpush2.bf16.msra.mxu0 0
      %2075 = vmatprep.subr.bf16.mxu0 0
      %2076 = vmatpush2.bf16.msra.mxu0 0
      %2077 = vmatprep.mubr.bf16.mxu0 0
      %2078 = vmatmul.mubr.bf16.gmra.mxu0 %v1983
      %v2079 = vpop.f32.mrf.mxu0
      %v2080 = vadd.f32 0.0, %v2079
      %v2081 = vpop.f32.mrf.mxu0
      %v2082 = vpop.f32.mrf.mxu0
      %v2083 = vadd.f32 0.0, %v2082
      %v2084 = vpop.f32.mrf.mxu0
      %2085 = vmatprep.mubr.bf16.mxu0 0
      %2086 = vmatmul.mubr.bf16.gmra.mxu0 %v1985
      %v2087 = vpop.f32.mrf.mxu0
      %v2088 = vadd.f32 0.0, %v2087
      %v2089 = vpop.f32.mrf.mxu0
      %v2090 = vpop.f32.mrf.mxu0
      %v2091 = vadd.f32 0.0, %v2090
      %v2092 = vpop.f32.mrf.mxu0
      %2093 = vmatprep.mubr.bf16.mxu0 0
      %2094 = vmatmul.mubr.bf16.gmra.mxu0 %v1987
      %v2095 = vpop.f32.mrf.mxu0
      %v2096 = vadd.f32 0.0, %v2095
      %v2097 = vpop.f32.mrf.mxu0
      %v2098 = vpop.f32.mrf.mxu0
      %v2099 = vadd.f32 0.0, %v2098
      %v2100 = vpop.f32.mrf.mxu0
      %2101 = vmatprep.mubr.bf16.mxu0 0
      %2102 = vmatmul.mubr.bf16.gmra.mxu0 %v1989
      %v2103 = vpop.f32.mrf.mxu0
      %v2104 = vadd.f32 0.0, %v2103
      %v2105 = vpop.f32.mrf.mxu0
      %v2106 = vpop.f32.mrf.mxu0
      %v2107 = vadd.f32 0.0, %v2106
      %v2108 = vpop.f32.mrf.mxu0
      %2109 = vmatprep.mubr.bf16.mxu0 0
      %2110 = vmatmul.mubr.bf16.gmra.mxu0 %v1991
      %v2111 = vpop.f32.mrf.mxu0
      %v2112 = vadd.f32 0.0, %v2111
      %v2113 = vpop.f32.mrf.mxu0
      %v2114 = vpop.f32.mrf.mxu0
      %v2115 = vadd.f32 0.0, %v2114
      %v2116 = vpop.f32.mrf.mxu0
      %2117 = vdwg.mxu0
      %v2118 = vadd.f32 %v1950, %v2080
      %v2119 = vadd.f32 %v1951, %v2083
      %v2120 = vadd.f32 %v1952, %v2088
      %v2121 = vadd.f32 %v1953, %v2091
      %v2122 = vadd.f32 %v1954, %v2096
      %v2123 = vadd.f32 %v1955, %v2099
      %v2124 = vadd.f32 %v1956, %v2104
      %v2125 = vadd.f32 %v1957, %v2107
      %v2126 = vadd.f32 %v1958, %v2112
      %v2127 = vadd.f32 %v1959, %v2115
      %v2128 = vld [vmem:[%s400] sm:$0xf]
      %v2129 = vld [vmem:[%s400 + $0x4] sm:$0xf]
      %v2130 = vld [vmem:[%s400 + $0x8] sm:$0xf]
      %v2131 = vld [vmem:[%s400 + $0xc] sm:$0xf]
      %v2132 = vld [vmem:[%s400 + $0x10] sm:$0xf]
      %v2133 = vld [vmem:[%s400 + $0x14] sm:$0xf]
      %v2134 = vld [vmem:[%s400 + $0x18] sm:$0xf]
      %v2135 = vld [vmem:[%s400 + $0x1c] sm:$0xf]
      %v2136 = vld [vmem:[%s400 + $0x20] sm:$0xf]
      %v2137 = vld [vmem:[%s400 + $0x24] sm:$0xf]
      %v2138 = vld [vmem:[%s3 + $0x240] sm:$0xf]
      %v2139 = vld [vmem:[%s3 + $0x244] sm:$0xf]
      %v2140 = vld [vmem:[%s3 + $0x248] sm:$0xf]
      %v2141 = vld [vmem:[%s3 + $0x24c] sm:$0xf]
      %v2142 = vld [vmem:[%s3 + $0x250] sm:$0xf]
      %v2143 = vld [vmem:[%s3 + $0x254] sm:$0xf]
      %v2144 = vld [vmem:[%s3 + $0x258] sm:$0xf]
      %v2145 = vld [vmem:[%s3 + $0x25c] sm:$0xf]
      %v2146 = vld [vmem:[%s3 + $0x260] sm:$0xf]
      %v2147 = vld [vmem:[%s3 + $0x264] sm:$0xf]
      %v2148 = vld [vmem:[%s3 + $0x268] sm:$0xf]
      %v2149 = vld [vmem:[%s3 + $0x26c] sm:$0xf]
      %v2150 = vld [vmem:[%s3 + $0x270] sm:$0xf]
      %v2151 = vld [vmem:[%s3 + $0x274] sm:$0xf]
      %v2152 = vld [vmem:[%s3 + $0x278] sm:$0xf]
      %v2153 = vld [vmem:[%s3 + $0x27c] sm:$0xf]
      %v2164 = vunpack.c.l.b16 %v2128
      %v2165 = vunpack.c.l.b16 %v2129
      %v2166 = vunpack.c.l.b16 %v2130
      %v2167 = vunpack.c.l.b16 %v2131
      %v2168 = vunpack.c.l.b16 %v2132
      %v2169 = vunpack.c.l.b16 %v2133
      %v2170 = vunpack.c.l.b16 %v2134
      %v2171 = vunpack.c.l.b16 %v2135
      %v2172 = vunpack.c.l.b16 %v2136
      %v2173 = vunpack.c.l.b16 %v2137
      %v2174 = vpack.c.b16 %v2165, %v2164
      %v2175 = vpack.c.b16 %v2167, %v2166
      %v2176 = vpack.c.b16 %v2169, %v2168
      %v2177 = vpack.c.b16 %v2171, %v2170
      %v2178 = vpack.c.b16 %v2173, %v2172
      %v2200 = vunpack.c.l.b16 %v2138
      %v2201 = vunpack.c.l.b16 %v2139
      %v2202 = vunpack.c.l.b16 %v2140
      %v2203 = vunpack.c.l.b16 %v2141
      %v2204 = vunpack.c.l.b16 %v2142
      %v2205 = vunpack.c.l.b16 %v2143
      %v2206 = vunpack.c.l.b16 %v2144
      %v2207 = vunpack.c.l.b16 %v2145
      %v2208 = vunpack.c.l.b16 %v2146
      %v2209 = vunpack.c.l.b16 %v2147
      %v2210 = vunpack.c.l.b16 %v2148
      %v2211 = vunpack.c.l.b16 %v2149
      %v2212 = vunpack.c.l.b16 %v2150
      %v2213 = vunpack.c.l.b16 %v2151
      %v2214 = vunpack.c.l.b16 %v2152
      %v2215 = vunpack.c.l.b16 %v2153
      %v2216 = vpack.c.b16 %v2201, %v2200
      %v2217 = vpack.c.b16 %v2203, %v2202
      %v2218 = vpack.c.b16 %v2205, %v2204
      %v2219 = vpack.c.b16 %v2207, %v2206
      %v2220 = vpack.c.b16 %v2209, %v2208
      %v2221 = vpack.c.b16 %v2211, %v2210
      %v2222 = vpack.c.b16 %v2213, %v2212
      %v2223 = vpack.c.b16 %v2215, %v2214
      %2232 = vmatprep.subr.bf16.mxu0 0
      %2233 = vmatpush1.bf16.msra.mxu0 %v2223
      %2234 = vmatprep.subr.bf16.mxu0 0
      %2235 = vmatpush1.bf16.msra.mxu0 %v2222
      %2236 = vmatprep.subr.bf16.mxu0 0
      %2237 = vmatpush1.bf16.msra.mxu0 %v2221
      %2238 = vmatprep.subr.bf16.mxu0 0
      %2239 = vmatpush1.bf16.msra.mxu0 %v2220
      %2240 = vmatprep.subr.bf16.mxu0 0
      %2241 = vmatpush1.bf16.msra.mxu0 %v2219
      %2242 = vmatprep.subr.bf16.mxu0 0
      %2243 = vmatpush1.bf16.msra.mxu0 %v2218
      %2244 = vmatprep.subr.bf16.mxu0 0
      %2245 = vmatpush1.bf16.msra.mxu0 %v2217
      %2246 = vmatprep.subr.bf16.mxu0 0
      %2247 = vmatpush1.bf16.msra.mxu0 %v2216
      %2248 = vmatprep.subr.bf16.mxu0 0
      %2249 = vmatpush2.bf16.msra.mxu0 0
      %2250 = vmatprep.subr.bf16.mxu0 0
      %2251 = vmatpush2.bf16.msra.mxu0 0
      %2252 = vmatprep.subr.bf16.mxu0 0
      %2253 = vmatpush2.bf16.msra.mxu0 0
      %2254 = vmatprep.subr.bf16.mxu0 0
      %2255 = vmatpush2.bf16.msra.mxu0 0
      %2256 = vmatprep.subr.bf16.mxu0 0
      %2257 = vmatpush2.bf16.msra.mxu0 0
      %2258 = vmatprep.subr.bf16.mxu0 0
      %2259 = vmatpush2.bf16.msra.mxu0 0
      %2260 = vmatprep.subr.bf16.mxu0 0
      %2261 = vmatpush2.bf16.msra.mxu0 0
      %2262 = vmatprep.subr.bf16.mxu0 0
      %2263 = vmatpush2.bf16.msra.mxu0 0
      %2264 = vmatprep.mubr.bf16.mxu0 0
      %2265 = vmatmul.mubr.bf16.gmra.mxu0 %v2174
      %v2266 = vpop.f32.mrf.mxu0
      %v2267 = vadd.f32 0.0, %v2266
      %v2268 = vpop.f32.mrf.mxu0
      %v2269 = vpop.f32.mrf.mxu0
      %v2270 = vadd.f32 0.0, %v2269
      %v2271 = vpop.f32.mrf.mxu0
      %2272 = vmatprep.mubr.bf16.mxu0 0
      %2273 = vmatmul.mubr.bf16.gmra.mxu0 %v2175
      %v2274 = vpop.f32.mrf.mxu0
      %v2275 = vadd.f32 0.0, %v2274
      %v2276 = vpop.f32.mrf.mxu0
      %v2277 = vpop.f32.mrf.mxu0
      %v2278 = vadd.f32 0.0, %v2277
      %v2279 = vpop.f32.mrf.mxu0
      %2280 = vmatprep.mubr.bf16.mxu0 0
      %2281 = vmatmul.mubr.bf16.gmra.mxu0 %v2176
      %v2282 = vpop.f32.mrf.mxu0
      %v2283 = vadd.f32 0.0, %v2282
      %v2284 = vpop.f32.mrf.mxu0
      %v2285 = vpop.f32.mrf.mxu0
      %v2286 = vadd.f32 0.0, %v2285
      %v2287 = vpop.f32.mrf.mxu0
      %2288 = vmatprep.mubr.bf16.mxu0 0
      %2289 = vmatmul.mubr.bf16.gmra.mxu0 %v2177
      %v2290 = vpop.f32.mrf.mxu0
      %v2291 = vadd.f32 0.0, %v2290
      %v2292 = vpop.f32.mrf.mxu0
      %v2293 = vpop.f32.mrf.mxu0
      %v2294 = vadd.f32 0.0, %v2293
      %v2295 = vpop.f32.mrf.mxu0
      %2296 = vmatprep.mubr.bf16.mxu0 0
      %2297 = vmatmul.mubr.bf16.gmra.mxu0 %v2178
      %v2298 = vpop.f32.mrf.mxu0
      %v2299 = vadd.f32 0.0, %v2298
      %v2300 = vpop.f32.mrf.mxu0
      %v2301 = vpop.f32.mrf.mxu0
      %v2302 = vadd.f32 0.0, %v2301
      %v2303 = vpop.f32.mrf.mxu0
      %2304 = vdwg.mxu0
      %v2305 = vadd.f32 %v2118, %v2267
      %v2306 = vadd.f32 %v2119, %v2270
      %v2307 = vadd.f32 %v2120, %v2275
      %v2308 = vadd.f32 %v2121, %v2278
      %v2309 = vadd.f32 %v2122, %v2283
      %v2310 = vadd.f32 %v2123, %v2286
      %v2311 = vadd.f32 %v2124, %v2291
      %v2312 = vadd.f32 %v2125, %v2294
      %v2313 = vadd.f32 %v2126, %v2299
      %v2314 = vadd.f32 %v2127, %v2302
      %v2315 = vld [vmem:[%s400] sm:$0xf]
      %v2316 = vld [vmem:[%s400 + $0x4] sm:$0xf]
      %v2317 = vld [vmem:[%s400 + $0x8] sm:$0xf]
      %v2318 = vld [vmem:[%s400 + $0xc] sm:$0xf]
      %v2319 = vld [vmem:[%s400 + $0x10] sm:$0xf]
      %v2320 = vld [vmem:[%s400 + $0x14] sm:$0xf]
      %v2321 = vld [vmem:[%s400 + $0x18] sm:$0xf]
      %v2322 = vld [vmem:[%s400 + $0x1c] sm:$0xf]
      %v2323 = vld [vmem:[%s400 + $0x20] sm:$0xf]
      %v2324 = vld [vmem:[%s400 + $0x24] sm:$0xf]
      %v2325 = vld [vmem:[%s400 + $0x28] sm:$0x1]
      %v2326 = vld [vmem:[%s3 + $0x280] sm:$0xf]
      %v2327 = vld [vmem:[%s3 + $0x284] sm:$0xf]
      %v2328 = vld [vmem:[%s3 + $0x288] sm:$0xf]
      %v2329 = vld [vmem:[%s3 + $0x28c] sm:$0xf]
      %v2330 = vld [vmem:[%s3 + $0x290] sm:$0xf]
      %v2331 = vld [vmem:[%s3 + $0x294] sm:$0xf]
      %v2332 = vld [vmem:[%s3 + $0x298] sm:$0xf]
      %v2333 = vld [vmem:[%s3 + $0x29c] sm:$0xf]
      %v2334 = vld [vmem:[%s3 + $0x2a0] sm:$0xf]
      %v2335 = vld [vmem:[%s3 + $0x2a4] sm:$0xf]
      %v2336 = vld [vmem:[%s3 + $0x2a8] sm:$0xf]
      %v2337 = vld [vmem:[%s3 + $0x2ac] sm:$0xf]
      %v2338 = vld [vmem:[%s3 + $0x2b0] sm:$0xf]
      %v2339 = vld [vmem:[%s3 + $0x2b4] sm:$0xf]
      %v2340 = vld [vmem:[%s3 + $0x2b8] sm:$0xf]
      %v2341 = vld [vmem:[%s3 + $0x2bc] sm:$0xf]
      %v2353 = vunpack.c.l.b16 %v2315
      %v2354 = vunpack.c.l.b16 %v2316
      %v2355 = vunpack.c.l.b16 %v2317
      %v2356 = vunpack.c.l.b16 %v2318
      %v2357 = vunpack.c.l.b16 %v2319
      %v2358 = vunpack.c.l.b16 %v2320
      %v2359 = vunpack.c.l.b16 %v2321
      %v2360 = vunpack.c.l.b16 %v2322
      %v2361 = vunpack.c.l.b16 %v2323
      %v2362 = vunpack.c.l.b16 %v2324
      %v2363 = vunpack.c.l.b16 %v2325
      %v2364 = vpack.c.b16 %v2354, %v2353
      %v2365 = vpack.c.b16 %v2356, %v2355
      %v2366 = vpack.c.b16 %v2358, %v2357
      %v2367 = vpack.c.b16 %v2360, %v2359
      %v2368 = vpack.c.b16 %v2362, %v2361
      %v2369 = vpack.c.b16 %v2363, %v2363
      %v2371 = vshrl.u32 %v2364, 16
      %v2373 = vshll.u32 %v2364, 16
      %v2375 = vrot.slane %v2373, 1
      %v2376 = vor.u32 %v2371, %v2375
      %v2378 = vshll.u32 %v2365, 16
      %v2380 = vrot.slane %v2378, 1
      %v2381 = vsel %vm503, %v2376, %v2380
      %v2382 = vshrl.u32 %v2365, 16
      %v2384 = vor.u32 %v2382, %v2380
      %v2386 = vshll.u32 %v2366, 16
      %v2388 = vrot.slane %v2386, 1
      %v2389 = vsel %vm503, %v2384, %v2388
      %v2390 = vshrl.u32 %v2366, 16
      %v2392 = vor.u32 %v2390, %v2388
      %v2394 = vshll.u32 %v2367, 16
      %v2396 = vrot.slane %v2394, 1
      %v2397 = vsel %vm503, %v2392, %v2396
      %v2398 = vshrl.u32 %v2367, 16
      %v2400 = vor.u32 %v2398, %v2396
      %v2402 = vshll.u32 %v2368, 16
      %v2404 = vrot.slane %v2402, 1
      %v2405 = vsel %vm503, %v2400, %v2404
      %v2406 = vshrl.u32 %v2368, 16
      %v2408 = vor.u32 %v2406, %v2404
      %v2410 = vshll.u32 %v2369, 16
      %v2412 = vrot.slane %v2410, 1
      %v2413 = vsel %vm503, %v2408, %v2412
      %v2435 = vunpack.c.l.b16 %v2326
      %v2436 = vunpack.c.l.b16 %v2327
      %v2437 = vunpack.c.l.b16 %v2328
      %v2438 = vunpack.c.l.b16 %v2329
      %v2439 = vunpack.c.l.b16 %v2330
      %v2440 = vunpack.c.l.b16 %v2331
      %v2441 = vunpack.c.l.b16 %v2332
      %v2442 = vunpack.c.l.b16 %v2333
      %v2443 = vunpack.c.l.b16 %v2334
      %v2444 = vunpack.c.l.b16 %v2335
      %v2445 = vunpack.c.l.b16 %v2336
      %v2446 = vunpack.c.l.b16 %v2337
      %v2447 = vunpack.c.l.b16 %v2338
      %v2448 = vunpack.c.l.b16 %v2339
      %v2449 = vunpack.c.l.b16 %v2340
      %v2450 = vunpack.c.l.b16 %v2341
      %v2451 = vpack.c.b16 %v2436, %v2435
      %v2452 = vpack.c.b16 %v2438, %v2437
      %v2453 = vpack.c.b16 %v2440, %v2439
      %v2454 = vpack.c.b16 %v2442, %v2441
      %v2455 = vpack.c.b16 %v2444, %v2443
      %v2456 = vpack.c.b16 %v2446, %v2445
      %v2457 = vpack.c.b16 %v2448, %v2447
      %v2458 = vpack.c.b16 %v2450, %v2449
      %2467 = vmatprep.subr.bf16.mxu0 0
      %2468 = vmatpush1.bf16.msra.mxu0 %v2458
      %2469 = vmatprep.subr.bf16.mxu0 0
      %2470 = vmatpush1.bf16.msra.mxu0 %v2457
      %2471 = vmatprep.subr.bf16.mxu0 0
      %2472 = vmatpush1.bf16.msra.mxu0 %v2456
      %2473 = vmatprep.subr.bf16.mxu0 0
      %2474 = vmatpush1.bf16.msra.mxu0 %v2455
      %2475 = vmatprep.subr.bf16.mxu0 0
      %2476 = vmatpush1.bf16.msra.mxu0 %v2454
      %2477 = vmatprep.subr.bf16.mxu0 0
      %2478 = vmatpush1.bf16.msra.mxu0 %v2453
      %2479 = vmatprep.subr.bf16.mxu0 0
      %2480 = vmatpush1.bf16.msra.mxu0 %v2452
      %2481 = vmatprep.subr.bf16.mxu0 0
      %2482 = vmatpush1.bf16.msra.mxu0 %v2451
      %2483 = vmatprep.subr.bf16.mxu0 0
      %2484 = vmatpush2.bf16.msra.mxu0 0
      %2485 = vmatprep.subr.bf16.mxu0 0
      %2486 = vmatpush2.bf16.msra.mxu0 0
      %2487 = vmatprep.subr.bf16.mxu0 0
      %2488 = vmatpush2.bf16.msra.mxu0 0
      %2489 = vmatprep.subr.bf16.mxu0 0
      %2490 = vmatpush2.bf16.msra.mxu0 0
      %2491 = vmatprep.subr.bf16.mxu0 0
      %2492 = vmatpush2.bf16.msra.mxu0 0
      %2493 = vmatprep.subr.bf16.mxu0 0
      %2494 = vmatpush2.bf16.msra.mxu0 0
      %2495 = vmatprep.subr.bf16.mxu0 0
      %2496 = vmatpush2.bf16.msra.mxu0 0
      %2497 = vmatprep.subr.bf16.mxu0 0
      %2498 = vmatpush2.bf16.msra.mxu0 0
      %2499 = vmatprep.mubr.bf16.mxu0 0
      %2500 = vmatmul.mubr.bf16.gmra.mxu0 %v2381
      %v2501 = vpop.f32.mrf.mxu0
      %v2502 = vadd.f32 0.0, %v2501
      %v2503 = vpop.f32.mrf.mxu0
      %v2504 = vpop.f32.mrf.mxu0
      %v2505 = vadd.f32 0.0, %v2504
      %v2506 = vpop.f32.mrf.mxu0
      %2507 = vmatprep.mubr.bf16.mxu0 0
      %2508 = vmatmul.mubr.bf16.gmra.mxu0 %v2389
      %v2509 = vpop.f32.mrf.mxu0
      %v2510 = vadd.f32 0.0, %v2509
      %v2511 = vpop.f32.mrf.mxu0
      %v2512 = vpop.f32.mrf.mxu0
      %v2513 = vadd.f32 0.0, %v2512
      %v2514 = vpop.f32.mrf.mxu0
      %2515 = vmatprep.mubr.bf16.mxu0 0
      %2516 = vmatmul.mubr.bf16.gmra.mxu0 %v2397
      %v2517 = vpop.f32.mrf.mxu0
      %v2518 = vadd.f32 0.0, %v2517
      %v2519 = vpop.f32.mrf.mxu0
      %v2520 = vpop.f32.mrf.mxu0
      %v2521 = vadd.f32 0.0, %v2520
      %v2522 = vpop.f32.mrf.mxu0
      %2523 = vmatprep.mubr.bf16.mxu0 0
      %2524 = vmatmul.mubr.bf16.gmra.mxu0 %v2405
      %v2525 = vpop.f32.mrf.mxu0
      %v2526 = vadd.f32 0.0, %v2525
      %v2527 = vpop.f32.mrf.mxu0
      %v2528 = vpop.f32.mrf.mxu0
      %v2529 = vadd.f32 0.0, %v2528
      %v2530 = vpop.f32.mrf.mxu0
      %2531 = vmatprep.mubr.bf16.mxu0 0
      %2532 = vmatmul.mubr.bf16.gmra.mxu0 %v2413
      %v2533 = vpop.f32.mrf.mxu0
      %v2534 = vadd.f32 0.0, %v2533
      %v2535 = vpop.f32.mrf.mxu0
      %v2536 = vpop.f32.mrf.mxu0
      %v2537 = vadd.f32 0.0, %v2536
      %v2538 = vpop.f32.mrf.mxu0
      %2539 = vdwg.mxu0
      %v2540 = vadd.f32 %v2305, %v2502
      %v2541 = vadd.f32 %v2306, %v2505
      %v2542 = vadd.f32 %v2307, %v2510
      %v2543 = vadd.f32 %v2308, %v2513
      %v2544 = vadd.f32 %v2309, %v2518
      %v2545 = vadd.f32 %v2310, %v2521
      %v2546 = vadd.f32 %v2311, %v2526
      %v2547 = vadd.f32 %v2312, %v2529
      %v2548 = vadd.f32 %v2313, %v2534
      %v2549 = vadd.f32 %v2314, %v2537
      %v2550 = vld [vmem:[%s400] sm:$0xe]
      %v2551 = vld [vmem:[%s3 + $0x2c0] sm:$0xf]
      %v2552 = vld [vmem:[%s3 + $0x2c4] sm:$0xf]
      %v2553 = vld [vmem:[%s3 + $0x2c8] sm:$0xf]
      %v2554 = vld [vmem:[%s3 + $0x2cc] sm:$0xf]
      %v2555 = vld [vmem:[%s3 + $0x2d0] sm:$0xf]
      %v2556 = vld [vmem:[%s3 + $0x2d4] sm:$0xf]
      %v2557 = vld [vmem:[%s3 + $0x2d8] sm:$0xf]
      %v2558 = vld [vmem:[%s3 + $0x2dc] sm:$0xf]
      %v2559 = vld [vmem:[%s3 + $0x2e0] sm:$0xf]
      %v2560 = vld [vmem:[%s3 + $0x2e4] sm:$0xf]
      %v2561 = vld [vmem:[%s3 + $0x2e8] sm:$0xf]
      %v2562 = vld [vmem:[%s3 + $0x2ec] sm:$0xf]
      %v2563 = vld [vmem:[%s3 + $0x2f0] sm:$0xf]
      %v2564 = vld [vmem:[%s3 + $0x2f4] sm:$0xf]
      %v2565 = vld [vmem:[%s3 + $0x2f8] sm:$0xf]
      %v2566 = vld [vmem:[%s3 + $0x2fc] sm:$0xf]
      %v2568 = vunpack.c.l.b16 %v2550
      %v2569 = vpack.c.b16 %v2354, %v2568
      %v2570 = vrot.slane %v2569, 1
      %v2571 = vrot.slane %v2365, 1
      %v2572 = vsel %vm820, %v2570, %v2571
      %v2573 = vrot.slane %v2366, 1
      %v2574 = vsel %vm820, %v2571, %v2573
      %v2575 = vrot.slane %v2367, 1
      %v2576 = vsel %vm820, %v2573, %v2575
      %v2577 = vrot.slane %v2368, 1
      %v2578 = vsel %vm820, %v2575, %v2577
      %v2579 = vrot.slane %v2369, 1
      %v2580 = vsel %vm820, %v2577, %v2579
      %v2602 = vunpack.c.l.b16 %v2551
      %v2603 = vunpack.c.l.b16 %v2552
      %v2604 = vunpack.c.l.b16 %v2553
      %v2605 = vunpack.c.l.b16 %v2554
      %v2606 = vunpack.c.l.b16 %v2555
      %v2607 = vunpack.c.l.b16 %v2556
      %v2608 = vunpack.c.l.b16 %v2557
      %v2609 = vunpack.c.l.b16 %v2558
      %v2610 = vunpack.c.l.b16 %v2559
      %v2611 = vunpack.c.l.b16 %v2560
      %v2612 = vunpack.c.l.b16 %v2561
      %v2613 = vunpack.c.l.b16 %v2562
      %v2614 = vunpack.c.l.b16 %v2563
      %v2615 = vunpack.c.l.b16 %v2564
      %v2616 = vunpack.c.l.b16 %v2565
      %v2617 = vunpack.c.l.b16 %v2566
      %v2618 = vpack.c.b16 %v2603, %v2602
      %v2619 = vpack.c.b16 %v2605, %v2604
      %v2620 = vpack.c.b16 %v2607, %v2606
      %v2621 = vpack.c.b16 %v2609, %v2608
      %v2622 = vpack.c.b16 %v2611, %v2610
      %v2623 = vpack.c.b16 %v2613, %v2612
      %v2624 = vpack.c.b16 %v2615, %v2614
      %v2625 = vpack.c.b16 %v2617, %v2616
      %2634 = vmatprep.subr.bf16.mxu0 0
      %2635 = vmatpush1.bf16.msra.mxu0 %v2625
      %2636 = vmatprep.subr.bf16.mxu0 0
      %2637 = vmatpush1.bf16.msra.mxu0 %v2624
      %2638 = vmatprep.subr.bf16.mxu0 0
      %2639 = vmatpush1.bf16.msra.mxu0 %v2623
      %2640 = vmatprep.subr.bf16.mxu0 0
      %2641 = vmatpush1.bf16.msra.mxu0 %v2622
      %2642 = vmatprep.subr.bf16.mxu0 0
      %2643 = vmatpush1.bf16.msra.mxu0 %v2621
      %2644 = vmatprep.subr.bf16.mxu0 0
      %2645 = vmatpush1.bf16.msra.mxu0 %v2620
      %2646 = vmatprep.subr.bf16.mxu0 0
      %2647 = vmatpush1.bf16.msra.mxu0 %v2619
      %2648 = vmatprep.subr.bf16.mxu0 0
      %2649 = vmatpush1.bf16.msra.mxu0 %v2618
      %2650 = vmatprep.subr.bf16.mxu0 0
      %2651 = vmatpush2.bf16.msra.mxu0 0
      %2652 = vmatprep.subr.bf16.mxu0 0
      %2653 = vmatpush2.bf16.msra.mxu0 0
      %2654 = vmatprep.subr.bf16.mxu0 0
      %2655 = vmatpush2.bf16.msra.mxu0 0
      %2656 = vmatprep.subr.bf16.mxu0 0
      %2657 = vmatpush2.bf16.msra.mxu0 0
      %2658 = vmatprep.subr.bf16.mxu0 0
      %2659 = vmatpush2.bf16.msra.mxu0 0
      %2660 = vmatprep.subr.bf16.mxu0 0
      %2661 = vmatpush2.bf16.msra.mxu0 0
      %2662 = vmatprep.subr.bf16.mxu0 0
      %2663 = vmatpush2.bf16.msra.mxu0 0
      %2664 = vmatprep.subr.bf16.mxu0 0
      %2665 = vmatpush2.bf16.msra.mxu0 0
      %2666 = vmatprep.mubr.bf16.mxu0 0
      %2667 = vmatmul.mubr.bf16.gmra.mxu0 %v2572
      %v2668 = vpop.f32.mrf.mxu0
      %v2669 = vadd.f32 0.0, %v2668
      %v2670 = vpop.f32.mrf.mxu0
      %v2671 = vpop.f32.mrf.mxu0
      %v2672 = vadd.f32 0.0, %v2671
      %v2673 = vpop.f32.mrf.mxu0
      %2674 = vmatprep.mubr.bf16.mxu0 0
      %2675 = vmatmul.mubr.bf16.gmra.mxu0 %v2574
      %v2676 = vpop.f32.mrf.mxu0
      %v2677 = vadd.f32 0.0, %v2676
      %v2678 = vpop.f32.mrf.mxu0
      %v2679 = vpop.f32.mrf.mxu0
      %v2680 = vadd.f32 0.0, %v2679
      %v2681 = vpop.f32.mrf.mxu0
      %2682 = vmatprep.mubr.bf16.mxu0 0
      %2683 = vmatmul.mubr.bf16.gmra.mxu0 %v2576
      %v2684 = vpop.f32.mrf.mxu0
      %v2685 = vadd.f32 0.0, %v2684
      %v2686 = vpop.f32.mrf.mxu0
      %v2687 = vpop.f32.mrf.mxu0
      %v2688 = vadd.f32 0.0, %v2687
      %v2689 = vpop.f32.mrf.mxu0
      %2690 = vmatprep.mubr.bf16.mxu0 0
      %2691 = vmatmul.mubr.bf16.gmra.mxu0 %v2578
      %v2692 = vpop.f32.mrf.mxu0
      %v2693 = vadd.f32 0.0, %v2692
      %v2694 = vpop.f32.mrf.mxu0
      %v2695 = vpop.f32.mrf.mxu0
      %v2696 = vadd.f32 0.0, %v2695
      %v2697 = vpop.f32.mrf.mxu0
      %2698 = vmatprep.mubr.bf16.mxu0 0
      %2699 = vmatmul.mubr.bf16.gmra.mxu0 %v2580
      %v2700 = vpop.f32.mrf.mxu0
      %v2701 = vadd.f32 0.0, %v2700
      %v2702 = vpop.f32.mrf.mxu0
      %v2703 = vpop.f32.mrf.mxu0
      %v2704 = vadd.f32 0.0, %v2703
      %v2705 = vpop.f32.mrf.mxu0
      %2706 = vdwg.mxu0
      %v2707 = vadd.f32 %v2540, %v2669
      %v2708 = vadd.f32 %v2541, %v2672
      %v2709 = vadd.f32 %v2542, %v2677
      %v2710 = vadd.f32 %v2543, %v2680
      %v2711 = vadd.f32 %v2544, %v2685
      %v2712 = vadd.f32 %v2545, %v2688
      %v2713 = vadd.f32 %v2546, %v2693
      %v2714 = vadd.f32 %v2547, %v2696
      %v2715 = vadd.f32 %v2548, %v2701
      %v2716 = vadd.f32 %v2549, %v2704
      %v2717 = vld [vmem:[%s400 + $0x4] sm:$0xe]
      %v2718 = vld [vmem:[%s400 + $0x8] sm:$0xf]
      %v2719 = vld [vmem:[%s400 + $0xc] sm:$0xf]
      %v2720 = vld [vmem:[%s400 + $0x10] sm:$0xf]
      %v2721 = vld [vmem:[%s400 + $0x14] sm:$0xf]
      %v2722 = vld [vmem:[%s400 + $0x18] sm:$0xf]
      %v2723 = vld [vmem:[%s400 + $0x1c] sm:$0xf]
      %v2724 = vld [vmem:[%s400 + $0x20] sm:$0xf]
      %v2725 = vld [vmem:[%s400 + $0x24] sm:$0xf]
      %v2726 = vld [vmem:[%s400 + $0x28] sm:$0xf]
      %v2727 = vld [vmem:[%s400 + $0x2c] sm:$0x1]
      %v2728 = vld [vmem:[%s3 + $0x300] sm:$0xf]
      %v2729 = vld [vmem:[%s3 + $0x304] sm:$0xf]
      %v2730 = vld [vmem:[%s3 + $0x308] sm:$0xf]
      %v2731 = vld [vmem:[%s3 + $0x30c] sm:$0xf]
      %v2732 = vld [vmem:[%s3 + $0x310] sm:$0xf]
      %v2733 = vld [vmem:[%s3 + $0x314] sm:$0xf]
      %v2734 = vld [vmem:[%s3 + $0x318] sm:$0xf]
      %v2735 = vld [vmem:[%s3 + $0x31c] sm:$0xf]
      %v2736 = vld [vmem:[%s3 + $0x320] sm:$0xf]
      %v2737 = vld [vmem:[%s3 + $0x324] sm:$0xf]
      %v2738 = vld [vmem:[%s3 + $0x328] sm:$0xf]
      %v2739 = vld [vmem:[%s3 + $0x32c] sm:$0xf]
      %v2740 = vld [vmem:[%s3 + $0x330] sm:$0xf]
      %v2741 = vld [vmem:[%s3 + $0x334] sm:$0xf]
      %v2742 = vld [vmem:[%s3 + $0x338] sm:$0xf]
      %v2743 = vld [vmem:[%s3 + $0x33c] sm:$0xf]
      %v2755 = vunpack.c.l.b16 %v2717
      %v2756 = vunpack.c.l.b16 %v2718
      %v2757 = vunpack.c.l.b16 %v2719
      %v2758 = vunpack.c.l.b16 %v2720
      %v2759 = vunpack.c.l.b16 %v2721
      %v2760 = vunpack.c.l.b16 %v2722
      %v2761 = vunpack.c.l.b16 %v2723
      %v2762 = vunpack.c.l.b16 %v2724
      %v2763 = vunpack.c.l.b16 %v2725
      %v2764 = vunpack.c.l.b16 %v2726
      %v2765 = vunpack.c.l.b16 %v2727
      %v2766 = vpack.c.b16 %v2756, %v2755
      %v2767 = vpack.c.b16 %v2758, %v2757
      %v2768 = vpack.c.b16 %v2760, %v2759
      %v2769 = vpack.c.b16 %v2762, %v2761
      %v2770 = vpack.c.b16 %v2764, %v2763
      %v2771 = vpack.c.b16 %v2765, %v2765
      %v2772 = vrot.slane %v2766, 1
      %v2773 = vrot.slane %v2767, 1
      %v2774 = vsel %vm820, %v2772, %v2773
      %v2775 = vrot.slane %v2768, 1
      %v2776 = vsel %vm820, %v2773, %v2775
      %v2777 = vrot.slane %v2769, 1
      %v2778 = vsel %vm820, %v2775, %v2777
      %v2779 = vrot.slane %v2770, 1
      %v2780 = vsel %vm820, %v2777, %v2779
      %v2781 = vrot.slane %v2771, 1
      %v2782 = vsel %vm820, %v2779, %v2781
      %v2804 = vunpack.c.l.b16 %v2728
      %v2805 = vunpack.c.l.b16 %v2729
      %v2806 = vunpack.c.l.b16 %v2730
      %v2807 = vunpack.c.l.b16 %v2731
      %v2808 = vunpack.c.l.b16 %v2732
      %v2809 = vunpack.c.l.b16 %v2733
      %v2810 = vunpack.c.l.b16 %v2734
      %v2811 = vunpack.c.l.b16 %v2735
      %v2812 = vunpack.c.l.b16 %v2736
      %v2813 = vunpack.c.l.b16 %v2737
      %v2814 = vunpack.c.l.b16 %v2738
      %v2815 = vunpack.c.l.b16 %v2739
      %v2816 = vunpack.c.l.b16 %v2740
      %v2817 = vunpack.c.l.b16 %v2741
      %v2818 = vunpack.c.l.b16 %v2742
      %v2819 = vunpack.c.l.b16 %v2743
      %v2820 = vpack.c.b16 %v2805, %v2804
      %v2821 = vpack.c.b16 %v2807, %v2806
      %v2822 = vpack.c.b16 %v2809, %v2808
      %v2823 = vpack.c.b16 %v2811, %v2810
      %v2824 = vpack.c.b16 %v2813, %v2812
      %v2825 = vpack.c.b16 %v2815, %v2814
      %v2826 = vpack.c.b16 %v2817, %v2816
      %v2827 = vpack.c.b16 %v2819, %v2818
      %2836 = vmatprep.subr.bf16.mxu0 0
      %2837 = vmatpush1.bf16.msra.mxu0 %v2827
      %2838 = vmatprep.subr.bf16.mxu0 0
      %2839 = vmatpush1.bf16.msra.mxu0 %v2826
      %2840 = vmatprep.subr.bf16.mxu0 0
      %2841 = vmatpush1.bf16.msra.mxu0 %v2825
      %2842 = vmatprep.subr.bf16.mxu0 0
      %2843 = vmatpush1.bf16.msra.mxu0 %v2824
      %2844 = vmatprep.subr.bf16.mxu0 0
      %2845 = vmatpush1.bf16.msra.mxu0 %v2823
      %2846 = vmatprep.subr.bf16.mxu0 0
      %2847 = vmatpush1.bf16.msra.mxu0 %v2822
      %2848 = vmatprep.subr.bf16.mxu0 0
      %2849 = vmatpush1.bf16.msra.mxu0 %v2821
      %2850 = vmatprep.subr.bf16.mxu0 0
      %2851 = vmatpush1.bf16.msra.mxu0 %v2820
      %2852 = vmatprep.subr.bf16.mxu0 0
      %2853 = vmatpush2.bf16.msra.mxu0 0
      %2854 = vmatprep.subr.bf16.mxu0 0
      %2855 = vmatpush2.bf16.msra.mxu0 0
      %2856 = vmatprep.subr.bf16.mxu0 0
      %2857 = vmatpush2.bf16.msra.mxu0 0
      %2858 = vmatprep.subr.bf16.mxu0 0
      %2859 = vmatpush2.bf16.msra.mxu0 0
      %2860 = vmatprep.subr.bf16.mxu0 0
      %2861 = vmatpush2.bf16.msra.mxu0 0
      %2862 = vmatprep.subr.bf16.mxu0 0
      %2863 = vmatpush2.bf16.msra.mxu0 0
      %2864 = vmatprep.subr.bf16.mxu0 0
      %2865 = vmatpush2.bf16.msra.mxu0 0
      %2866 = vmatprep.subr.bf16.mxu0 0
      %2867 = vmatpush2.bf16.msra.mxu0 0
      %2868 = vmatprep.mubr.bf16.mxu0 0
      %2869 = vmatmul.mubr.bf16.gmra.mxu0 %v2774
      %v2870 = vpop.f32.mrf.mxu0
      %v2871 = vadd.f32 0.0, %v2870
      %v2872 = vpop.f32.mrf.mxu0
      %v2873 = vpop.f32.mrf.mxu0
      %v2874 = vadd.f32 0.0, %v2873
      %v2875 = vpop.f32.mrf.mxu0
      %2876 = vmatprep.mubr.bf16.mxu0 0
      %2877 = vmatmul.mubr.bf16.gmra.mxu0 %v2776
      %v2878 = vpop.f32.mrf.mxu0
      %v2879 = vadd.f32 0.0, %v2878
      %v2880 = vpop.f32.mrf.mxu0
      %v2881 = vpop.f32.mrf.mxu0
      %v2882 = vadd.f32 0.0, %v2881
      %v2883 = vpop.f32.mrf.mxu0
      %2884 = vmatprep.mubr.bf16.mxu0 0
      %2885 = vmatmul.mubr.bf16.gmra.mxu0 %v2778
      %v2886 = vpop.f32.mrf.mxu0
      %v2887 = vadd.f32 0.0, %v2886
      %v2888 = vpop.f32.mrf.mxu0
      %v2889 = vpop.f32.mrf.mxu0
      %v2890 = vadd.f32 0.0, %v2889
      %v2891 = vpop.f32.mrf.mxu0
      %2892 = vmatprep.mubr.bf16.mxu0 0
      %2893 = vmatmul.mubr.bf16.gmra.mxu0 %v2780
      %v2894 = vpop.f32.mrf.mxu0
      %v2895 = vadd.f32 0.0, %v2894
      %v2896 = vpop.f32.mrf.mxu0
      %v2897 = vpop.f32.mrf.mxu0
      %v2898 = vadd.f32 0.0, %v2897
      %v2899 = vpop.f32.mrf.mxu0
      %2900 = vmatprep.mubr.bf16.mxu0 0
      %2901 = vmatmul.mubr.bf16.gmra.mxu0 %v2782
      %v2902 = vpop.f32.mrf.mxu0
      %v2903 = vadd.f32 0.0, %v2902
      %v2904 = vpop.f32.mrf.mxu0
      %v2905 = vpop.f32.mrf.mxu0
      %v2906 = vadd.f32 0.0, %v2905
      %v2907 = vpop.f32.mrf.mxu0
      %2908 = vdwg.mxu0
      %v2909 = vadd.f32 %v2707, %v2871
      %v2910 = vadd.f32 %v2708, %v2874
      %v2911 = vadd.f32 %v2709, %v2879
      %v2912 = vadd.f32 %v2710, %v2882
      %v2913 = vadd.f32 %v2711, %v2887
      %v2914 = vadd.f32 %v2712, %v2890
      %v2915 = vadd.f32 %v2713, %v2895
      %v2916 = vadd.f32 %v2714, %v2898
      %v2917 = vadd.f32 %v2715, %v2903
      %v2918 = vadd.f32 %v2716, %v2906
      %v2919 = vld [vmem:[%s400 + $0x2c] sm:$0x3]
      %v2920 = vld [vmem:[%s3 + $0x340] sm:$0xf]
      %v2921 = vld [vmem:[%s3 + $0x344] sm:$0xf]
      %v2922 = vld [vmem:[%s3 + $0x348] sm:$0xf]
      %v2923 = vld [vmem:[%s3 + $0x34c] sm:$0xf]
      %v2924 = vld [vmem:[%s3 + $0x350] sm:$0xf]
      %v2925 = vld [vmem:[%s3 + $0x354] sm:$0xf]
      %v2926 = vld [vmem:[%s3 + $0x358] sm:$0xf]
      %v2927 = vld [vmem:[%s3 + $0x35c] sm:$0xf]
      %v2928 = vld [vmem:[%s3 + $0x360] sm:$0xf]
      %v2929 = vld [vmem:[%s3 + $0x364] sm:$0xf]
      %v2930 = vld [vmem:[%s3 + $0x368] sm:$0xf]
      %v2931 = vld [vmem:[%s3 + $0x36c] sm:$0xf]
      %v2932 = vld [vmem:[%s3 + $0x370] sm:$0xf]
      %v2933 = vld [vmem:[%s3 + $0x374] sm:$0xf]
      %v2934 = vld [vmem:[%s3 + $0x378] sm:$0xf]
      %v2935 = vld [vmem:[%s3 + $0x37c] sm:$0xf]
      %v2937 = vunpack.c.l.b16 %v2919
      %v2938 = vpack.c.b16 %v2937, %v2937
      %v2940 = vshrl.u32 %v2766, 16
      %v2942 = vrot.slane %v2940, 1
      %v2943 = vshll.u32 %v2766, 16
      %v2945 = vrot.slane %v2943, 2
      %v2946 = vor.u32 %v2942, %v2945
      %v2948 = vshrl.u32 %v2767, 16
      %v2950 = vrot.slane %v2948, 1
      %v2951 = vshll.u32 %v2767, 16
      %v2953 = vrot.slane %v2951, 2
      %v2954 = vor.u32 %v2950, %v2953
      %v2955 = vsel %vm1190, %v2946, %v2954
      %v2957 = vshrl.u32 %v2768, 16
      %v2959 = vrot.slane %v2957, 1
      %v2960 = vshll.u32 %v2768, 16
      %v2962 = vrot.slane %v2960, 2
      %v2963 = vor.u32 %v2959, %v2962
      %v2964 = vsel %vm1190, %v2954, %v2963
      %v2966 = vshrl.u32 %v2769, 16
      %v2968 = vrot.slane %v2966, 1
      %v2969 = vshll.u32 %v2769, 16
      %v2971 = vrot.slane %v2969, 2
      %v2972 = vor.u32 %v2968, %v2971
      %v2973 = vsel %vm1190, %v2963, %v2972
      %v2975 = vshrl.u32 %v2770, 16
      %v2977 = vrot.slane %v2975, 1
      %v2978 = vshll.u32 %v2770, 16
      %v2980 = vrot.slane %v2978, 2
      %v2981 = vor.u32 %v2977, %v2980
      %v2982 = vsel %vm1190, %v2972, %v2981
      %v2984 = vshrl.u32 %v2938, 16
      %v2986 = vrot.slane %v2984, 1
      %v2987 = vshll.u32 %v2938, 16
      %v2989 = vrot.slane %v2987, 2
      %v2990 = vor.u32 %v2986, %v2989
      %v2991 = vsel %vm1190, %v2981, %v2990
      %v3013 = vunpack.c.l.b16 %v2920
      %v3014 = vunpack.c.l.b16 %v2921
      %v3015 = vunpack.c.l.b16 %v2922
      %v3016 = vunpack.c.l.b16 %v2923
      %v3017 = vunpack.c.l.b16 %v2924
      %v3018 = vunpack.c.l.b16 %v2925
      %v3019 = vunpack.c.l.b16 %v2926
      %v3020 = vunpack.c.l.b16 %v2927
      %v3021 = vunpack.c.l.b16 %v2928
      %v3022 = vunpack.c.l.b16 %v2929
      %v3023 = vunpack.c.l.b16 %v2930
      %v3024 = vunpack.c.l.b16 %v2931
      %v3025 = vunpack.c.l.b16 %v2932
      %v3026 = vunpack.c.l.b16 %v2933
      %v3027 = vunpack.c.l.b16 %v2934
      %v3028 = vunpack.c.l.b16 %v2935
      %v3029 = vpack.c.b16 %v3014, %v3013
      %v3030 = vpack.c.b16 %v3016, %v3015
      %v3031 = vpack.c.b16 %v3018, %v3017
      %v3032 = vpack.c.b16 %v3020, %v3019
      %v3033 = vpack.c.b16 %v3022, %v3021
      %v3034 = vpack.c.b16 %v3024, %v3023
      %v3035 = vpack.c.b16 %v3026, %v3025
      %v3036 = vpack.c.b16 %v3028, %v3027
      %3045 = vmatprep.subr.bf16.mxu0 0
      %3046 = vmatpush1.bf16.msra.mxu0 %v3036
      %3047 = vmatprep.subr.bf16.mxu0 0
      %3048 = vmatpush1.bf16.msra.mxu0 %v3035
      %3049 = vmatprep.subr.bf16.mxu0 0
      %3050 = vmatpush1.bf16.msra.mxu0 %v3034
      %3051 = vmatprep.subr.bf16.mxu0 0
      %3052 = vmatpush1.bf16.msra.mxu0 %v3033
      %3053 = vmatprep.subr.bf16.mxu0 0
      %3054 = vmatpush1.bf16.msra.mxu0 %v3032
      %3055 = vmatprep.subr.bf16.mxu0 0
      %3056 = vmatpush1.bf16.msra.mxu0 %v3031
      %3057 = vmatprep.subr.bf16.mxu0 0
      %3058 = vmatpush1.bf16.msra.mxu0 %v3030
      %3059 = vmatprep.subr.bf16.mxu0 0
      %3060 = vmatpush1.bf16.msra.mxu0 %v3029
      %3061 = vmatprep.subr.bf16.mxu0 0
      %3062 = vmatpush2.bf16.msra.mxu0 0
      %3063 = vmatprep.subr.bf16.mxu0 0
      %3064 = vmatpush2.bf16.msra.mxu0 0
      %3065 = vmatprep.subr.bf16.mxu0 0
      %3066 = vmatpush2.bf16.msra.mxu0 0
      %3067 = vmatprep.subr.bf16.mxu0 0
      %3068 = vmatpush2.bf16.msra.mxu0 0
      %3069 = vmatprep.subr.bf16.mxu0 0
      %3070 = vmatpush2.bf16.msra.mxu0 0
      %3071 = vmatprep.subr.bf16.mxu0 0
      %3072 = vmatpush2.bf16.msra.mxu0 0
      %3073 = vmatprep.subr.bf16.mxu0 0
      %3074 = vmatpush2.bf16.msra.mxu0 0
      %3075 = vmatprep.subr.bf16.mxu0 0
      %3076 = vmatpush2.bf16.msra.mxu0 0
      %3077 = vmatprep.mubr.bf16.mxu0 0
      %3078 = vmatmul.mubr.bf16.gmra.mxu0 %v2955
      %v3079 = vpop.f32.mrf.mxu0
      %v3080 = vadd.f32 0.0, %v3079
      %v3081 = vpop.f32.mrf.mxu0
      %v3082 = vpop.f32.mrf.mxu0
      %v3083 = vadd.f32 0.0, %v3082
      %v3084 = vpop.f32.mrf.mxu0
      %3085 = vmatprep.mubr.bf16.mxu0 0
      %3086 = vmatmul.mubr.bf16.gmra.mxu0 %v2964
      %v3087 = vpop.f32.mrf.mxu0
      %v3088 = vadd.f32 0.0, %v3087
      %v3089 = vpop.f32.mrf.mxu0
      %v3090 = vpop.f32.mrf.mxu0
      %v3091 = vadd.f32 0.0, %v3090
      %v3092 = vpop.f32.mrf.mxu0
      %3093 = vmatprep.mubr.bf16.mxu0 0
      %3094 = vmatmul.mubr.bf16.gmra.mxu0 %v2973
      %v3095 = vpop.f32.mrf.mxu0
      %v3096 = vadd.f32 0.0, %v3095
      %v3097 = vpop.f32.mrf.mxu0
      %v3098 = vpop.f32.mrf.mxu0
      %v3099 = vadd.f32 0.0, %v3098
      %v3100 = vpop.f32.mrf.mxu0
      %3101 = vmatprep.mubr.bf16.mxu0 0
      %3102 = vmatmul.mubr.bf16.gmra.mxu0 %v2982
      %v3103 = vpop.f32.mrf.mxu0
      %v3104 = vadd.f32 0.0, %v3103
      %v3105 = vpop.f32.mrf.mxu0
      %v3106 = vpop.f32.mrf.mxu0
      %v3107 = vadd.f32 0.0, %v3106
      %v3108 = vpop.f32.mrf.mxu0
      %3109 = vmatprep.mubr.bf16.mxu0 0
      %3110 = vmatmul.mubr.bf16.gmra.mxu0 %v2991
      %v3111 = vpop.f32.mrf.mxu0
      %v3112 = vadd.f32 0.0, %v3111
      %v3113 = vpop.f32.mrf.mxu0
      %v3114 = vpop.f32.mrf.mxu0
      %v3115 = vadd.f32 0.0, %v3114
      %v3116 = vpop.f32.mrf.mxu0
      %3117 = vdwg.mxu0
      %v3118 = vadd.f32 %v2909, %v3080
      %v3119 = vadd.f32 %v2910, %v3083
      %v3120 = vadd.f32 %v2911, %v3088
      %v3121 = vadd.f32 %v2912, %v3091
      %v3122 = vadd.f32 %v2913, %v3096
      %v3123 = vadd.f32 %v2914, %v3099
      %v3124 = vadd.f32 %v2915, %v3104
      %v3125 = vadd.f32 %v2916, %v3107
      %v3126 = vadd.f32 %v2917, %v3112
      %v3127 = vadd.f32 %v2918, %v3115
      %v3128 = vld [vmem:[%s400 + $0x4] sm:$0xc]
      %v3129 = vld [vmem:[%s3 + $0x380] sm:$0xf]
      %v3130 = vld [vmem:[%s3 + $0x384] sm:$0xf]
      %v3131 = vld [vmem:[%s3 + $0x388] sm:$0xf]
      %v3132 = vld [vmem:[%s3 + $0x38c] sm:$0xf]
      %v3133 = vld [vmem:[%s3 + $0x390] sm:$0xf]
      %v3134 = vld [vmem:[%s3 + $0x394] sm:$0xf]
      %v3135 = vld [vmem:[%s3 + $0x398] sm:$0xf]
      %v3136 = vld [vmem:[%s3 + $0x39c] sm:$0xf]
      %v3137 = vld [vmem:[%s3 + $0x3a0] sm:$0xf]
      %v3138 = vld [vmem:[%s3 + $0x3a4] sm:$0xf]
      %v3139 = vld [vmem:[%s3 + $0x3a8] sm:$0xf]
      %v3140 = vld [vmem:[%s3 + $0x3ac] sm:$0xf]
      %v3141 = vld [vmem:[%s3 + $0x3b0] sm:$0xf]
      %v3142 = vld [vmem:[%s3 + $0x3b4] sm:$0xf]
      %v3143 = vld [vmem:[%s3 + $0x3b8] sm:$0xf]
      %v3144 = vld [vmem:[%s3 + $0x3bc] sm:$0xf]
      %v3146 = vunpack.c.l.b16 %v3128
      %v3147 = vpack.c.b16 %v2756, %v3146
      %v3148 = vrot.slane %v3147, 2
      %v3149 = vrot.slane %v2767, 2
      %v3150 = vsel %vm1400, %v3148, %v3149
      %v3151 = vrot.slane %v2768, 2
      %v3152 = vsel %vm1400, %v3149, %v3151
      %v3153 = vrot.slane %v2769, 2
      %v3154 = vsel %vm1400, %v3151, %v3153
      %v3155 = vrot.slane %v2770, 2
      %v3156 = vsel %vm1400, %v3153, %v3155
      %v3157 = vrot.slane %v2938, 2
      %v3158 = vsel %vm1400, %v3155, %v3157
      %v3180 = vunpack.c.l.b16 %v3129
      %v3181 = vunpack.c.l.b16 %v3130
      %v3182 = vunpack.c.l.b16 %v3131
      %v3183 = vunpack.c.l.b16 %v3132
      %v3184 = vunpack.c.l.b16 %v3133
      %v3185 = vunpack.c.l.b16 %v3134
      %v3186 = vunpack.c.l.b16 %v3135
      %v3187 = vunpack.c.l.b16 %v3136
      %v3188 = vunpack.c.l.b16 %v3137
      %v3189 = vunpack.c.l.b16 %v3138
      %v3190 = vunpack.c.l.b16 %v3139
      %v3191 = vunpack.c.l.b16 %v3140
      %v3192 = vunpack.c.l.b16 %v3141
      %v3193 = vunpack.c.l.b16 %v3142
      %v3194 = vunpack.c.l.b16 %v3143
      %v3195 = vunpack.c.l.b16 %v3144
      %v3196 = vpack.c.b16 %v3181, %v3180
      %v3197 = vpack.c.b16 %v3183, %v3182
      %v3198 = vpack.c.b16 %v3185, %v3184
      %v3199 = vpack.c.b16 %v3187, %v3186
      %v3200 = vpack.c.b16 %v3189, %v3188
      %v3201 = vpack.c.b16 %v3191, %v3190
      %v3202 = vpack.c.b16 %v3193, %v3192
      %v3203 = vpack.c.b16 %v3195, %v3194
      %3212 = vmatprep.subr.bf16.mxu0 0
      %3213 = vmatpush1.bf16.msra.mxu0 %v3203
      %3214 = vmatprep.subr.bf16.mxu0 0
      %3215 = vmatpush1.bf16.msra.mxu0 %v3202
      %3216 = vmatprep.subr.bf16.mxu0 0
      %3217 = vmatpush1.bf16.msra.mxu0 %v3201
      %3218 = vmatprep.subr.bf16.mxu0 0
      %3219 = vmatpush1.bf16.msra.mxu0 %v3200
      %3220 = vmatprep.subr.bf16.mxu0 0
      %3221 = vmatpush1.bf16.msra.mxu0 %v3199
      %3222 = vmatprep.subr.bf16.mxu0 0
      %3223 = vmatpush1.bf16.msra.mxu0 %v3198
      %3224 = vmatprep.subr.bf16.mxu0 0
      %3225 = vmatpush1.bf16.msra.mxu0 %v3197
      %3226 = vmatprep.subr.bf16.mxu0 0
      %3227 = vmatpush1.bf16.msra.mxu0 %v3196
      %3228 = vmatprep.subr.bf16.mxu0 0
      %3229 = vmatpush2.bf16.msra.mxu0 0
      %3230 = vmatprep.subr.bf16.mxu0 0
      %3231 = vmatpush2.bf16.msra.mxu0 0
      %3232 = vmatprep.subr.bf16.mxu0 0
      %3233 = vmatpush2.bf16.msra.mxu0 0
      %3234 = vmatprep.subr.bf16.mxu0 0
      %3235 = vmatpush2.bf16.msra.mxu0 0
      %3236 = vmatprep.subr.bf16.mxu0 0
      %3237 = vmatpush2.bf16.msra.mxu0 0
      %3238 = vmatprep.subr.bf16.mxu0 0
      %3239 = vmatpush2.bf16.msra.mxu0 0
      %3240 = vmatprep.subr.bf16.mxu0 0
      %3241 = vmatpush2.bf16.msra.mxu0 0
      %3242 = vmatprep.subr.bf16.mxu0 0
      %3243 = vmatpush2.bf16.msra.mxu0 0
      %3244 = vmatprep.mubr.bf16.mxu0 0
      %3245 = vmatmul.mubr.bf16.gmra.mxu0 %v3150
      %v3246 = vpop.f32.mrf.mxu0
      %v3247 = vadd.f32 0.0, %v3246
      %v3248 = vpop.f32.mrf.mxu0
      %v3249 = vpop.f32.mrf.mxu0
      %v3250 = vadd.f32 0.0, %v3249
      %v3251 = vpop.f32.mrf.mxu0
      %3252 = vmatprep.mubr.bf16.mxu0 0
      %3253 = vmatmul.mubr.bf16.gmra.mxu0 %v3152
      %v3254 = vpop.f32.mrf.mxu0
      %v3255 = vadd.f32 0.0, %v3254
      %v3256 = vpop.f32.mrf.mxu0
      %v3257 = vpop.f32.mrf.mxu0
      %v3258 = vadd.f32 0.0, %v3257
      %v3259 = vpop.f32.mrf.mxu0
      %3260 = vmatprep.mubr.bf16.mxu0 0
      %3261 = vmatmul.mubr.bf16.gmra.mxu0 %v3154
      %v3262 = vpop.f32.mrf.mxu0
      %v3263 = vadd.f32 0.0, %v3262
      %v3264 = vpop.f32.mrf.mxu0
      %v3265 = vpop.f32.mrf.mxu0
      %v3266 = vadd.f32 0.0, %v3265
      %v3267 = vpop.f32.mrf.mxu0
      %3268 = vmatprep.mubr.bf16.mxu0 0
      %3269 = vmatmul.mubr.bf16.gmra.mxu0 %v3156
      %v3270 = vpop.f32.mrf.mxu0
      %v3271 = vadd.f32 0.0, %v3270
      %v3272 = vpop.f32.mrf.mxu0
      %v3273 = vpop.f32.mrf.mxu0
      %v3274 = vadd.f32 0.0, %v3273
      %v3275 = vpop.f32.mrf.mxu0
      %3276 = vmatprep.mubr.bf16.mxu0 0
      %3277 = vmatmul.mubr.bf16.gmra.mxu0 %v3158
      %v3278 = vpop.f32.mrf.mxu0
      %v3279 = vadd.f32 0.0, %v3278
      %v3280 = vpop.f32.mrf.mxu0
      %v3281 = vpop.f32.mrf.mxu0
      %v3282 = vadd.f32 0.0, %v3281
      %v3283 = vpop.f32.mrf.mxu0
      %3284 = vdwg.mxu0
      %v3285 = vadd.f32 %v3118, %v3247
      %v3286 = vadd.f32 %v3119, %v3250
      %v3287 = vadd.f32 %v3120, %v3255
      %v3288 = vadd.f32 %v3121, %v3258
      %v3289 = vadd.f32 %v3122, %v3263
      %v3290 = vadd.f32 %v3123, %v3266
      %v3291 = vadd.f32 %v3124, %v3271
      %v3292 = vadd.f32 %v3125, %v3274
      %v3293 = vadd.f32 %v3126, %v3279
      %v3294 = vadd.f32 %v3127, %v3282
      %v3295 = vld [vmem:[%s400 + $0x8] sm:$0xc]
      %v3296 = vld [vmem:[%s400 + $0xc] sm:$0xf]
      %v3297 = vld [vmem:[%s400 + $0x10] sm:$0xf]
      %v3298 = vld [vmem:[%s400 + $0x14] sm:$0xf]
      %v3299 = vld [vmem:[%s400 + $0x18] sm:$0xf]
      %v3300 = vld [vmem:[%s400 + $0x1c] sm:$0xf]
      %v3301 = vld [vmem:[%s400 + $0x20] sm:$0xf]
      %v3302 = vld [vmem:[%s400 + $0x24] sm:$0xf]
      %v3303 = vld [vmem:[%s400 + $0x28] sm:$0xf]
      %v3304 = vld [vmem:[%s400 + $0x2c] sm:$0xf]
      %v3305 = vld [vmem:[%s400 + $0x30] sm:$0x3]
      %v3306 = vld [vmem:[%s3 + $0x3c0] sm:$0xf]
      %v3307 = vld [vmem:[%s3 + $0x3c4] sm:$0xf]
      %v3308 = vld [vmem:[%s3 + $0x3c8] sm:$0xf]
      %v3309 = vld [vmem:[%s3 + $0x3cc] sm:$0xf]
      %v3310 = vld [vmem:[%s3 + $0x3d0] sm:$0xf]
      %v3311 = vld [vmem:[%s3 + $0x3d4] sm:$0xf]
      %v3312 = vld [vmem:[%s3 + $0x3d8] sm:$0xf]
      %v3313 = vld [vmem:[%s3 + $0x3dc] sm:$0xf]
      %v3314 = vld [vmem:[%s3 + $0x3e0] sm:$0xf]
      %v3315 = vld [vmem:[%s3 + $0x3e4] sm:$0xf]
      %v3316 = vld [vmem:[%s3 + $0x3e8] sm:$0xf]
      %v3317 = vld [vmem:[%s3 + $0x3ec] sm:$0xf]
      %v3318 = vld [vmem:[%s3 + $0x3f0] sm:$0xf]
      %v3319 = vld [vmem:[%s3 + $0x3f4] sm:$0xf]
      %v3320 = vld [vmem:[%s3 + $0x3f8] sm:$0xf]
      %v3321 = vld [vmem:[%s3 + $0x3fc] sm:$0xf]
      %v3333 = vunpack.c.l.b16 %v3295
      %v3334 = vunpack.c.l.b16 %v3296
      %v3335 = vunpack.c.l.b16 %v3297
      %v3336 = vunpack.c.l.b16 %v3298
      %v3337 = vunpack.c.l.b16 %v3299
      %v3338 = vunpack.c.l.b16 %v3300
      %v3339 = vunpack.c.l.b16 %v3301
      %v3340 = vunpack.c.l.b16 %v3302
      %v3341 = vunpack.c.l.b16 %v3303
      %v3342 = vunpack.c.l.b16 %v3304
      %v3343 = vunpack.c.l.b16 %v3305
      %v3344 = vpack.c.b16 %v3334, %v3333
      %v3345 = vpack.c.b16 %v3336, %v3335
      %v3346 = vpack.c.b16 %v3338, %v3337
      %v3347 = vpack.c.b16 %v3340, %v3339
      %v3348 = vpack.c.b16 %v3342, %v3341
      %v3349 = vpack.c.b16 %v3343, %v3343
      %v3350 = vrot.slane %v3344, 2
      %v3351 = vrot.slane %v3345, 2
      %v3352 = vsel %vm1400, %v3350, %v3351
      %v3353 = vrot.slane %v3346, 2
      %v3354 = vsel %vm1400, %v3351, %v3353
      %v3355 = vrot.slane %v3347, 2
      %v3356 = vsel %vm1400, %v3353, %v3355
      %v3357 = vrot.slane %v3348, 2
      %v3358 = vsel %vm1400, %v3355, %v3357
      %v3359 = vrot.slane %v3349, 2
      %v3360 = vsel %vm1400, %v3357, %v3359
      %v3382 = vunpack.c.l.b16 %v3306
      %v3383 = vunpack.c.l.b16 %v3307
      %v3384 = vunpack.c.l.b16 %v3308
      %v3385 = vunpack.c.l.b16 %v3309
      %v3386 = vunpack.c.l.b16 %v3310
      %v3387 = vunpack.c.l.b16 %v3311
      %v3388 = vunpack.c.l.b16 %v3312
      %v3389 = vunpack.c.l.b16 %v3313
      %v3390 = vunpack.c.l.b16 %v3314
      %v3391 = vunpack.c.l.b16 %v3315
      %v3392 = vunpack.c.l.b16 %v3316
      %v3393 = vunpack.c.l.b16 %v3317
      %v3394 = vunpack.c.l.b16 %v3318
      %v3395 = vunpack.c.l.b16 %v3319
      %v3396 = vunpack.c.l.b16 %v3320
      %v3397 = vunpack.c.l.b16 %v3321
      %v3398 = vpack.c.b16 %v3383, %v3382
      %v3399 = vpack.c.b16 %v3385, %v3384
      %v3400 = vpack.c.b16 %v3387, %v3386
      %v3401 = vpack.c.b16 %v3389, %v3388
      %v3402 = vpack.c.b16 %v3391, %v3390
      %v3403 = vpack.c.b16 %v3393, %v3392
      %v3404 = vpack.c.b16 %v3395, %v3394
      %v3405 = vpack.c.b16 %v3397, %v3396
      %3414 = vmatprep.subr.bf16.mxu0 0
      %3415 = vmatpush1.bf16.msra.mxu0 %v3405
      %3416 = vmatprep.subr.bf16.mxu0 0
      %3417 = vmatpush1.bf16.msra.mxu0 %v3404
      %3418 = vmatprep.subr.bf16.mxu0 0
      %3419 = vmatpush1.bf16.msra.mxu0 %v3403
      %3420 = vmatprep.subr.bf16.mxu0 0
      %3421 = vmatpush1.bf16.msra.mxu0 %v3402
      %3422 = vmatprep.subr.bf16.mxu0 0
      %3423 = vmatpush1.bf16.msra.mxu0 %v3401
      %3424 = vmatprep.subr.bf16.mxu0 0
      %3425 = vmatpush1.bf16.msra.mxu0 %v3400
      %3426 = vmatprep.subr.bf16.mxu0 0
      %3427 = vmatpush1.bf16.msra.mxu0 %v3399
      %3428 = vmatprep.subr.bf16.mxu0 0
      %3429 = vmatpush1.bf16.msra.mxu0 %v3398
      %3430 = vmatprep.subr.bf16.mxu0 0
      %3431 = vmatpush2.bf16.msra.mxu0 0
      %3432 = vmatprep.subr.bf16.mxu0 0
      %3433 = vmatpush2.bf16.msra.mxu0 0
      %3434 = vmatprep.subr.bf16.mxu0 0
      %3435 = vmatpush2.bf16.msra.mxu0 0
      %3436 = vmatprep.subr.bf16.mxu0 0
      %3437 = vmatpush2.bf16.msra.mxu0 0
      %3438 = vmatprep.subr.bf16.mxu0 0
      %3439 = vmatpush2.bf16.msra.mxu0 0
      %3440 = vmatprep.subr.bf16.mxu0 0
      %3441 = vmatpush2.bf16.msra.mxu0 0
      %3442 = vmatprep.subr.bf16.mxu0 0
      %3443 = vmatpush2.bf16.msra.mxu0 0
      %3444 = vmatprep.subr.bf16.mxu0 0
      %3445 = vmatpush2.bf16.msra.mxu0 0
      %3446 = vmatprep.mubr.bf16.mxu0 0
      %3447 = vmatmul.mubr.bf16.gmra.mxu0 %v3352
      %v3448 = vpop.f32.mrf.mxu0
      %v3449 = vadd.f32 0.0, %v3448
      %v3450 = vpop.f32.mrf.mxu0
      %v3451 = vpop.f32.mrf.mxu0
      %v3452 = vadd.f32 0.0, %v3451
      %v3453 = vpop.f32.mrf.mxu0
      %3454 = vmatprep.mubr.bf16.mxu0 0
      %3455 = vmatmul.mubr.bf16.gmra.mxu0 %v3354
      %v3456 = vpop.f32.mrf.mxu0
      %v3457 = vadd.f32 0.0, %v3456
      %v3458 = vpop.f32.mrf.mxu0
      %v3459 = vpop.f32.mrf.mxu0
      %v3460 = vadd.f32 0.0, %v3459
      %v3461 = vpop.f32.mrf.mxu0
      %3462 = vmatprep.mubr.bf16.mxu0 0
      %3463 = vmatmul.mubr.bf16.gmra.mxu0 %v3356
      %v3464 = vpop.f32.mrf.mxu0
      %v3465 = vadd.f32 0.0, %v3464
      %v3466 = vpop.f32.mrf.mxu0
      %v3467 = vpop.f32.mrf.mxu0
      %v3468 = vadd.f32 0.0, %v3467
      %v3469 = vpop.f32.mrf.mxu0
      %3470 = vmatprep.mubr.bf16.mxu0 0
      %3471 = vmatmul.mubr.bf16.gmra.mxu0 %v3358
      %v3472 = vpop.f32.mrf.mxu0
      %v3473 = vadd.f32 0.0, %v3472
      %v3474 = vpop.f32.mrf.mxu0
      %v3475 = vpop.f32.mrf.mxu0
      %v3476 = vadd.f32 0.0, %v3475
      %v3477 = vpop.f32.mrf.mxu0
      %3478 = vmatprep.mubr.bf16.mxu0 0
      %3479 = vmatmul.mubr.bf16.gmra.mxu0 %v3360
      %v3480 = vpop.f32.mrf.mxu0
      %v3481 = vadd.f32 0.0, %v3480
      %v3482 = vpop.f32.mrf.mxu0
      %v3483 = vpop.f32.mrf.mxu0
      %v3484 = vadd.f32 0.0, %v3483
      %v3485 = vpop.f32.mrf.mxu0
      %3486 = vdwg.mxu0
      %v3487 = vadd.f32 %v3285, %v3449
      %v3488 = vadd.f32 %v3286, %v3452
      %v3489 = vadd.f32 %v3287, %v3457
      %v3490 = vadd.f32 %v3288, %v3460
      %v3491 = vadd.f32 %v3289, %v3465
      %v3492 = vadd.f32 %v3290, %v3468
      %v3493 = vadd.f32 %v3291, %v3473
      %v3494 = vadd.f32 %v3292, %v3476
      %v3495 = vadd.f32 %v3293, %v3481
      %v3496 = vadd.f32 %v3294, %v3484
      %v3497 = vld [vmem:[%s400 + $0x30] sm:$0x7]
      %v3498 = vld [vmem:[%s3 + $0x400] sm:$0xf]
      %v3499 = vld [vmem:[%s3 + $0x404] sm:$0xf]
      %v3500 = vld [vmem:[%s3 + $0x408] sm:$0xf]
      %v3501 = vld [vmem:[%s3 + $0x40c] sm:$0xf]
      %v3502 = vld [vmem:[%s3 + $0x410] sm:$0xf]
      %v3503 = vld [vmem:[%s3 + $0x414] sm:$0xf]
      %v3504 = vld [vmem:[%s3 + $0x418] sm:$0xf]
      %v3505 = vld [vmem:[%s3 + $0x41c] sm:$0xf]
      %v3506 = vld [vmem:[%s3 + $0x420] sm:$0xf]
      %v3507 = vld [vmem:[%s3 + $0x424] sm:$0xf]
      %v3508 = vld [vmem:[%s3 + $0x428] sm:$0xf]
      %v3509 = vld [vmem:[%s3 + $0x42c] sm:$0xf]
      %v3510 = vld [vmem:[%s3 + $0x430] sm:$0xf]
      %v3511 = vld [vmem:[%s3 + $0x434] sm:$0xf]
      %v3512 = vld [vmem:[%s3 + $0x438] sm:$0xf]
      %v3513 = vld [vmem:[%s3 + $0x43c] sm:$0xf]
      %v3515 = vunpack.c.l.b16 %v3497
      %v3516 = vpack.c.b16 %v3515, %v3515
      %v3518 = vshrl.u32 %v3344, 16
      %v3520 = vrot.slane %v3518, 2
      %v3521 = vshll.u32 %v3344, 16
      %v3523 = vrot.slane %v3521, 3
      %v3524 = vor.u32 %v3520, %v3523
      %v3526 = vshrl.u32 %v3345, 16
      %v3528 = vrot.slane %v3526, 2
      %v3529 = vshll.u32 %v3345, 16
      %v3531 = vrot.slane %v3529, 3
      %v3532 = vor.u32 %v3528, %v3531
      %v3533 = vsel %vm1770, %v3524, %v3532
      %v3535 = vshrl.u32 %v3346, 16
      %v3537 = vrot.slane %v3535, 2
      %v3538 = vshll.u32 %v3346, 16
      %v3540 = vrot.slane %v3538, 3
      %v3541 = vor.u32 %v3537, %v3540
      %v3542 = vsel %vm1770, %v3532, %v3541
      %v3544 = vshrl.u32 %v3347, 16
      %v3546 = vrot.slane %v3544, 2
      %v3547 = vshll.u32 %v3347, 16
      %v3549 = vrot.slane %v3547, 3
      %v3550 = vor.u32 %v3546, %v3549
      %v3551 = vsel %vm1770, %v3541, %v3550
      %v3553 = vshrl.u32 %v3348, 16
      %v3555 = vrot.slane %v3553, 2
      %v3556 = vshll.u32 %v3348, 16
      %v3558 = vrot.slane %v3556, 3
      %v3559 = vor.u32 %v3555, %v3558
      %v3560 = vsel %vm1770, %v3550, %v3559
      %v3562 = vshrl.u32 %v3516, 16
      %v3564 = vrot.slane %v3562, 2
      %v3565 = vshll.u32 %v3516, 16
      %v3567 = vrot.slane %v3565, 3
      %v3568 = vor.u32 %v3564, %v3567
      %v3569 = vsel %vm1770, %v3559, %v3568
      %v3591 = vunpack.c.l.b16 %v3498
      %v3592 = vunpack.c.l.b16 %v3499
      %v3593 = vunpack.c.l.b16 %v3500
      %v3594 = vunpack.c.l.b16 %v3501
      %v3595 = vunpack.c.l.b16 %v3502
      %v3596 = vunpack.c.l.b16 %v3503
      %v3597 = vunpack.c.l.b16 %v3504
      %v3598 = vunpack.c.l.b16 %v3505
      %v3599 = vunpack.c.l.b16 %v3506
      %v3600 = vunpack.c.l.b16 %v3507
      %v3601 = vunpack.c.l.b16 %v3508
      %v3602 = vunpack.c.l.b16 %v3509
      %v3603 = vunpack.c.l.b16 %v3510
      %v3604 = vunpack.c.l.b16 %v3511
      %v3605 = vunpack.c.l.b16 %v3512
      %v3606 = vunpack.c.l.b16 %v3513
      %v3607 = vpack.c.b16 %v3592, %v3591
      %v3608 = vpack.c.b16 %v3594, %v3593
      %v3609 = vpack.c.b16 %v3596, %v3595
      %v3610 = vpack.c.b16 %v3598, %v3597
      %v3611 = vpack.c.b16 %v3600, %v3599
      %v3612 = vpack.c.b16 %v3602, %v3601
      %v3613 = vpack.c.b16 %v3604, %v3603
      %v3614 = vpack.c.b16 %v3606, %v3605
      %3623 = vmatprep.subr.bf16.mxu0 0
      %3624 = vmatpush1.bf16.msra.mxu0 %v3614
      %3625 = vmatprep.subr.bf16.mxu0 0
      %3626 = vmatpush1.bf16.msra.mxu0 %v3613
      %3627 = vmatprep.subr.bf16.mxu0 0
      %3628 = vmatpush1.bf16.msra.mxu0 %v3612
      %3629 = vmatprep.subr.bf16.mxu0 0
      %3630 = vmatpush1.bf16.msra.mxu0 %v3611
      %3631 = vmatprep.subr.bf16.mxu0 0
      %3632 = vmatpush1.bf16.msra.mxu0 %v3610
      %3633 = vmatprep.subr.bf16.mxu0 0
      %3634 = vmatpush1.bf16.msra.mxu0 %v3609
      %3635 = vmatprep.subr.bf16.mxu0 0
      %3636 = vmatpush1.bf16.msra.mxu0 %v3608
      %3637 = vmatprep.subr.bf16.mxu0 0
      %3638 = vmatpush1.bf16.msra.mxu0 %v3607
      %3639 = vmatprep.subr.bf16.mxu0 0
      %3640 = vmatpush2.bf16.msra.mxu0 0
      %3641 = vmatprep.subr.bf16.mxu0 0
      %3642 = vmatpush2.bf16.msra.mxu0 0
      %3643 = vmatprep.subr.bf16.mxu0 0
      %3644 = vmatpush2.bf16.msra.mxu0 0
      %3645 = vmatprep.subr.bf16.mxu0 0
      %3646 = vmatpush2.bf16.msra.mxu0 0
      %3647 = vmatprep.subr.bf16.mxu0 0
      %3648 = vmatpush2.bf16.msra.mxu0 0
      %3649 = vmatprep.subr.bf16.mxu0 0
      %3650 = vmatpush2.bf16.msra.mxu0 0
      %3651 = vmatprep.subr.bf16.mxu0 0
      %3652 = vmatpush2.bf16.msra.mxu0 0
      %3653 = vmatprep.subr.bf16.mxu0 0
      %3654 = vmatpush2.bf16.msra.mxu0 0
      %3655 = vmatprep.mubr.bf16.mxu0 0
      %3656 = vmatmul.mubr.bf16.gmra.mxu0 %v3533
      %v3657 = vpop.f32.mrf.mxu0
      %v3658 = vadd.f32 0.0, %v3657
      %v3659 = vpop.f32.mrf.mxu0
      %v3660 = vpop.f32.mrf.mxu0
      %v3661 = vadd.f32 0.0, %v3660
      %v3662 = vpop.f32.mrf.mxu0
      %3663 = vmatprep.mubr.bf16.mxu0 0
      %3664 = vmatmul.mubr.bf16.gmra.mxu0 %v3542
      %v3665 = vpop.f32.mrf.mxu0
      %v3666 = vadd.f32 0.0, %v3665
      %v3667 = vpop.f32.mrf.mxu0
      %v3668 = vpop.f32.mrf.mxu0
      %v3669 = vadd.f32 0.0, %v3668
      %v3670 = vpop.f32.mrf.mxu0
      %3671 = vmatprep.mubr.bf16.mxu0 0
      %3672 = vmatmul.mubr.bf16.gmra.mxu0 %v3551
      %v3673 = vpop.f32.mrf.mxu0
      %v3674 = vadd.f32 0.0, %v3673
      %v3675 = vpop.f32.mrf.mxu0
      %v3676 = vpop.f32.mrf.mxu0
      %v3677 = vadd.f32 0.0, %v3676
      %v3678 = vpop.f32.mrf.mxu0
      %3679 = vmatprep.mubr.bf16.mxu0 0
      %3680 = vmatmul.mubr.bf16.gmra.mxu0 %v3560
      %v3681 = vpop.f32.mrf.mxu0
      %v3682 = vadd.f32 0.0, %v3681
      %v3683 = vpop.f32.mrf.mxu0
      %v3684 = vpop.f32.mrf.mxu0
      %v3685 = vadd.f32 0.0, %v3684
      %v3686 = vpop.f32.mrf.mxu0
      %3687 = vmatprep.mubr.bf16.mxu0 0
      %3688 = vmatmul.mubr.bf16.gmra.mxu0 %v3569
      %v3689 = vpop.f32.mrf.mxu0
      %v3690 = vadd.f32 0.0, %v3689
      %v3691 = vpop.f32.mrf.mxu0
      %v3692 = vpop.f32.mrf.mxu0
      %v3693 = vadd.f32 0.0, %v3692
      %v3694 = vpop.f32.mrf.mxu0
      %3695 = vdwg.mxu0
      %v3696 = vadd.f32 %v3487, %v3658
      %v3697 = vadd.f32 %v3488, %v3661
      %v3698 = vadd.f32 %v3489, %v3666
      %v3699 = vadd.f32 %v3490, %v3669
      %v3700 = vadd.f32 %v3491, %v3674
      %v3701 = vadd.f32 %v3492, %v3677
      %v3702 = vadd.f32 %v3493, %v3682
      %v3703 = vadd.f32 %v3494, %v3685
      %v3704 = vadd.f32 %v3495, %v3690
      %v3705 = vadd.f32 %v3496, %v3693
      %v3706 = vld [vmem:[%s400 + $0x8] sm:$0x8]
      %v3707 = vld [vmem:[%s3 + $0x440] sm:$0xf]
      %v3708 = vld [vmem:[%s3 + $0x444] sm:$0xf]
      %v3709 = vld [vmem:[%s3 + $0x448] sm:$0xf]
      %v3710 = vld [vmem:[%s3 + $0x44c] sm:$0xf]
      %v3711 = vld [vmem:[%s3 + $0x450] sm:$0xf]
      %v3712 = vld [vmem:[%s3 + $0x454] sm:$0xf]
      %v3713 = vld [vmem:[%s3 + $0x458] sm:$0xf]
      %v3714 = vld [vmem:[%s3 + $0x45c] sm:$0xf]
      %v3715 = vld [vmem:[%s3 + $0x460] sm:$0xf]
      %v3716 = vld [vmem:[%s3 + $0x464] sm:$0xf]
      %v3717 = vld [vmem:[%s3 + $0x468] sm:$0xf]
      %v3718 = vld [vmem:[%s3 + $0x46c] sm:$0xf]
      %v3719 = vld [vmem:[%s3 + $0x470] sm:$0xf]
      %v3720 = vld [vmem:[%s3 + $0x474] sm:$0xf]
      %v3721 = vld [vmem:[%s3 + $0x478] sm:$0xf]
      %v3722 = vld [vmem:[%s3 + $0x47c] sm:$0xf]
      %v3724 = vunpack.c.l.b16 %v3706
      %v3725 = vpack.c.b16 %v3334, %v3724
      %v3726 = vrot.slane %v3725, 3
      %v3727 = vrot.slane %v3345, 3
      %v3728 = vsel %vm1980, %v3726, %v3727
      %v3729 = vrot.slane %v3346, 3
      %v3730 = vsel %vm1980, %v3727, %v3729
      %v3731 = vrot.slane %v3347, 3
      %v3732 = vsel %vm1980, %v3729, %v3731
      %v3733 = vrot.slane %v3348, 3
      %v3734 = vsel %vm1980, %v3731, %v3733
      %v3735 = vrot.slane %v3516, 3
      %v3736 = vsel %vm1980, %v3733, %v3735
      %v3758 = vunpack.c.l.b16 %v3707
      %v3759 = vunpack.c.l.b16 %v3708
      %v3760 = vunpack.c.l.b16 %v3709
      %v3761 = vunpack.c.l.b16 %v3710
      %v3762 = vunpack.c.l.b16 %v3711
      %v3763 = vunpack.c.l.b16 %v3712
      %v3764 = vunpack.c.l.b16 %v3713
      %v3765 = vunpack.c.l.b16 %v3714
      %v3766 = vunpack.c.l.b16 %v3715
      %v3767 = vunpack.c.l.b16 %v3716
      %v3768 = vunpack.c.l.b16 %v3717
      %v3769 = vunpack.c.l.b16 %v3718
      %v3770 = vunpack.c.l.b16 %v3719
      %v3771 = vunpack.c.l.b16 %v3720
      %v3772 = vunpack.c.l.b16 %v3721
      %v3773 = vunpack.c.l.b16 %v3722
      %v3774 = vpack.c.b16 %v3759, %v3758
      %v3775 = vpack.c.b16 %v3761, %v3760
      %v3776 = vpack.c.b16 %v3763, %v3762
      %v3777 = vpack.c.b16 %v3765, %v3764
      %v3778 = vpack.c.b16 %v3767, %v3766
      %v3779 = vpack.c.b16 %v3769, %v3768
      %v3780 = vpack.c.b16 %v3771, %v3770
      %v3781 = vpack.c.b16 %v3773, %v3772
      %3790 = vmatprep.subr.bf16.mxu0 0
      %3791 = vmatpush1.bf16.msra.mxu0 %v3781
      %3792 = vmatprep.subr.bf16.mxu0 0
      %3793 = vmatpush1.bf16.msra.mxu0 %v3780
      %3794 = vmatprep.subr.bf16.mxu0 0
      %3795 = vmatpush1.bf16.msra.mxu0 %v3779
      %3796 = vmatprep.subr.bf16.mxu0 0
      %3797 = vmatpush1.bf16.msra.mxu0 %v3778
      %3798 = vmatprep.subr.bf16.mxu0 0
      %3799 = vmatpush1.bf16.msra.mxu0 %v3777
      %3800 = vmatprep.subr.bf16.mxu0 0
      %3801 = vmatpush1.bf16.msra.mxu0 %v3776
      %3802 = vmatprep.subr.bf16.mxu0 0
      %3803 = vmatpush1.bf16.msra.mxu0 %v3775
      %3804 = vmatprep.subr.bf16.mxu0 0
      %3805 = vmatpush1.bf16.msra.mxu0 %v3774
      %3806 = vmatprep.subr.bf16.mxu0 0
      %3807 = vmatpush2.bf16.msra.mxu0 0
      %3808 = vmatprep.subr.bf16.mxu0 0
      %3809 = vmatpush2.bf16.msra.mxu0 0
      %3810 = vmatprep.subr.bf16.mxu0 0
      %3811 = vmatpush2.bf16.msra.mxu0 0
      %3812 = vmatprep.subr.bf16.mxu0 0
      %3813 = vmatpush2.bf16.msra.mxu0 0
      %3814 = vmatprep.subr.bf16.mxu0 0
      %3815 = vmatpush2.bf16.msra.mxu0 0
      %3816 = vmatprep.subr.bf16.mxu0 0
      %3817 = vmatpush2.bf16.msra.mxu0 0
      %3818 = vmatprep.subr.bf16.mxu0 0
      %3819 = vmatpush2.bf16.msra.mxu0 0
      %3820 = vmatprep.subr.bf16.mxu0 0
      %3821 = vmatpush2.bf16.msra.mxu0 0
      %3822 = vmatprep.mubr.bf16.mxu0 0
      %3823 = vmatmul.mubr.bf16.gmra.mxu0 %v3728
      %v3824 = vpop.f32.mrf.mxu0
      %v3825 = vadd.f32 0.0, %v3824
      %v3826 = vpop.f32.mrf.mxu0
      %v3827 = vpop.f32.mrf.mxu0
      %v3828 = vadd.f32 0.0, %v3827
      %v3829 = vpop.f32.mrf.mxu0
      %3830 = vmatprep.mubr.bf16.mxu0 0
      %3831 = vmatmul.mubr.bf16.gmra.mxu0 %v3730
      %v3832 = vpop.f32.mrf.mxu0
      %v3833 = vadd.f32 0.0, %v3832
      %v3834 = vpop.f32.mrf.mxu0
      %v3835 = vpop.f32.mrf.mxu0
      %v3836 = vadd.f32 0.0, %v3835
      %v3837 = vpop.f32.mrf.mxu0
      %3838 = vmatprep.mubr.bf16.mxu0 0
      %3839 = vmatmul.mubr.bf16.gmra.mxu0 %v3732
      %v3840 = vpop.f32.mrf.mxu0
      %v3841 = vadd.f32 0.0, %v3840
      %v3842 = vpop.f32.mrf.mxu0
      %v3843 = vpop.f32.mrf.mxu0
      %v3844 = vadd.f32 0.0, %v3843
      %v3845 = vpop.f32.mrf.mxu0
      %3846 = vmatprep.mubr.bf16.mxu0 0
      %3847 = vmatmul.mubr.bf16.gmra.mxu0 %v3734
      %v3848 = vpop.f32.mrf.mxu0
      %v3849 = vadd.f32 0.0, %v3848
      %v3850 = vpop.f32.mrf.mxu0
      %v3851 = vpop.f32.mrf.mxu0
      %v3852 = vadd.f32 0.0, %v3851
      %v3853 = vpop.f32.mrf.mxu0
      %3854 = vmatprep.mubr.bf16.mxu0 0
      %3855 = vmatmul.mubr.bf16.gmra.mxu0 %v3736
      %v3856 = vpop.f32.mrf.mxu0
      %v3857 = vadd.f32 0.0, %v3856
      %v3858 = vpop.f32.mrf.mxu0
      %v3859 = vpop.f32.mrf.mxu0
      %v3860 = vadd.f32 0.0, %v3859
      %v3861 = vpop.f32.mrf.mxu0
      %3862 = vdwg.mxu0
      %v3863 = vadd.f32 %v3696, %v3825
      %v3864 = vadd.f32 %v3697, %v3828
      %v3865 = vadd.f32 %v3698, %v3833
      %v3866 = vadd.f32 %v3699, %v3836
      %v3867 = vadd.f32 %v3700, %v3841
      %v3868 = vadd.f32 %v3701, %v3844
      %v3869 = vadd.f32 %v3702, %v3849
      %v3870 = vadd.f32 %v3703, %v3852
      %v3871 = vadd.f32 %v3704, %v3857
      %v3872 = vadd.f32 %v3705, %v3860
      %v3873 = vld [vmem:[%s411] sm:$0xf]
      %v3874 = vld [vmem:[%s411 + $0x4] sm:$0xf]
      %v3875 = vld [vmem:[%s411 + $0x8] sm:$0xf]
      %v3876 = vld [vmem:[%s411 + $0xc] sm:$0xf]
      %v3877 = vld [vmem:[%s411 + $0x10] sm:$0xf]
      %v3878 = vld [vmem:[%s411 + $0x14] sm:$0xf]
      %v3879 = vld [vmem:[%s411 + $0x18] sm:$0xf]
      %v3880 = vld [vmem:[%s411 + $0x1c] sm:$0xf]
      %v3881 = vld [vmem:[%s411 + $0x20] sm:$0xf]
      %v3882 = vld [vmem:[%s411 + $0x24] sm:$0xf]
      %v3883 = vld [vmem:[%s3 + $0x480] sm:$0xf]
      %v3884 = vld [vmem:[%s3 + $0x484] sm:$0xf]
      %v3885 = vld [vmem:[%s3 + $0x488] sm:$0xf]
      %v3886 = vld [vmem:[%s3 + $0x48c] sm:$0xf]
      %v3887 = vld [vmem:[%s3 + $0x490] sm:$0xf]
      %v3888 = vld [vmem:[%s3 + $0x494] sm:$0xf]
      %v3889 = vld [vmem:[%s3 + $0x498] sm:$0xf]
      %v3890 = vld [vmem:[%s3 + $0x49c] sm:$0xf]
      %v3891 = vld [vmem:[%s3 + $0x4a0] sm:$0xf]
      %v3892 = vld [vmem:[%s3 + $0x4a4] sm:$0xf]
      %v3893 = vld [vmem:[%s3 + $0x4a8] sm:$0xf]
      %v3894 = vld [vmem:[%s3 + $0x4ac] sm:$0xf]
      %v3895 = vld [vmem:[%s3 + $0x4b0] sm:$0xf]
      %v3896 = vld [vmem:[%s3 + $0x4b4] sm:$0xf]
      %v3897 = vld [vmem:[%s3 + $0x4b8] sm:$0xf]
      %v3898 = vld [vmem:[%s3 + $0x4bc] sm:$0xf]
      %v3909 = vunpack.c.l.b16 %v3873
      %v3910 = vunpack.c.l.b16 %v3874
      %v3911 = vunpack.c.l.b16 %v3875
      %v3912 = vunpack.c.l.b16 %v3876
      %v3913 = vunpack.c.l.b16 %v3877
      %v3914 = vunpack.c.l.b16 %v3878
      %v3915 = vunpack.c.l.b16 %v3879
      %v3916 = vunpack.c.l.b16 %v3880
      %v3917 = vunpack.c.l.b16 %v3881
      %v3918 = vunpack.c.l.b16 %v3882
      %v3919 = vpack.c.b16 %v3910, %v3909
      %v3920 = vpack.c.b16 %v3912, %v3911
      %v3921 = vpack.c.b16 %v3914, %v3913
      %v3922 = vpack.c.b16 %v3916, %v3915
      %v3923 = vpack.c.b16 %v3918, %v3917
      %v3945 = vunpack.c.l.b16 %v3883
      %v3946 = vunpack.c.l.b16 %v3884
      %v3947 = vunpack.c.l.b16 %v3885
      %v3948 = vunpack.c.l.b16 %v3886
      %v3949 = vunpack.c.l.b16 %v3887
      %v3950 = vunpack.c.l.b16 %v3888
      %v3951 = vunpack.c.l.b16 %v3889
      %v3952 = vunpack.c.l.b16 %v3890
      %v3953 = vunpack.c.l.b16 %v3891
      %v3954 = vunpack.c.l.b16 %v3892
      %v3955 = vunpack.c.l.b16 %v3893
      %v3956 = vunpack.c.l.b16 %v3894
      %v3957 = vunpack.c.l.b16 %v3895
      %v3958 = vunpack.c.l.b16 %v3896
      %v3959 = vunpack.c.l.b16 %v3897
      %v3960 = vunpack.c.l.b16 %v3898
      %v3961 = vpack.c.b16 %v3946, %v3945
      %v3962 = vpack.c.b16 %v3948, %v3947
      %v3963 = vpack.c.b16 %v3950, %v3949
      %v3964 = vpack.c.b16 %v3952, %v3951
      %v3965 = vpack.c.b16 %v3954, %v3953
      %v3966 = vpack.c.b16 %v3956, %v3955
      %v3967 = vpack.c.b16 %v3958, %v3957
      %v3968 = vpack.c.b16 %v3960, %v3959
      %3977 = vmatprep.subr.bf16.mxu0 0
      %3978 = vmatpush1.bf16.msra.mxu0 %v3968
      %3979 = vmatprep.subr.bf16.mxu0 0
      %3980 = vmatpush1.bf16.msra.mxu0 %v3967
      %3981 = vmatprep.subr.bf16.mxu0 0
      %3982 = vmatpush1.bf16.msra.mxu0 %v3966
      %3983 = vmatprep.subr.bf16.mxu0 0
      %3984 = vmatpush1.bf16.msra.mxu0 %v3965
      %3985 = vmatprep.subr.bf16.mxu0 0
      %3986 = vmatpush1.bf16.msra.mxu0 %v3964
      %3987 = vmatprep.subr.bf16.mxu0 0
      %3988 = vmatpush1.bf16.msra.mxu0 %v3963
      %3989 = vmatprep.subr.bf16.mxu0 0
      %3990 = vmatpush1.bf16.msra.mxu0 %v3962
      %3991 = vmatprep.subr.bf16.mxu0 0
      %3992 = vmatpush1.bf16.msra.mxu0 %v3961
      %3993 = vmatprep.subr.bf16.mxu0 0
      %3994 = vmatpush2.bf16.msra.mxu0 0
      %3995 = vmatprep.subr.bf16.mxu0 0
      %3996 = vmatpush2.bf16.msra.mxu0 0
      %3997 = vmatprep.subr.bf16.mxu0 0
      %3998 = vmatpush2.bf16.msra.mxu0 0
      %3999 = vmatprep.subr.bf16.mxu0 0
      %4000 = vmatpush2.bf16.msra.mxu0 0
      %4001 = vmatprep.subr.bf16.mxu0 0
      %4002 = vmatpush2.bf16.msra.mxu0 0
      %4003 = vmatprep.subr.bf16.mxu0 0
      %4004 = vmatpush2.bf16.msra.mxu0 0
      %4005 = vmatprep.subr.bf16.mxu0 0
      %4006 = vmatpush2.bf16.msra.mxu0 0
      %4007 = vmatprep.subr.bf16.mxu0 0
      %4008 = vmatpush2.bf16.msra.mxu0 0
      %4009 = vmatprep.mubr.bf16.mxu0 0
      %4010 = vmatmul.mubr.bf16.gmra.mxu0 %v3919
      %v4011 = vpop.f32.mrf.mxu0
      %v4012 = vadd.f32 0.0, %v4011
      %v4013 = vpop.f32.mrf.mxu0
      %v4014 = vpop.f32.mrf.mxu0
      %v4015 = vadd.f32 0.0, %v4014
      %v4016 = vpop.f32.mrf.mxu0
      %4017 = vmatprep.mubr.bf16.mxu0 0
      %4018 = vmatmul.mubr.bf16.gmra.mxu0 %v3920
      %v4019 = vpop.f32.mrf.mxu0
      %v4020 = vadd.f32 0.0, %v4019
      %v4021 = vpop.f32.mrf.mxu0
      %v4022 = vpop.f32.mrf.mxu0
      %v4023 = vadd.f32 0.0, %v4022
      %v4024 = vpop.f32.mrf.mxu0
      %4025 = vmatprep.mubr.bf16.mxu0 0
      %4026 = vmatmul.mubr.bf16.gmra.mxu0 %v3921
      %v4027 = vpop.f32.mrf.mxu0
      %v4028 = vadd.f32 0.0, %v4027
      %v4029 = vpop.f32.mrf.mxu0
      %v4030 = vpop.f32.mrf.mxu0
      %v4031 = vadd.f32 0.0, %v4030
      %v4032 = vpop.f32.mrf.mxu0
      %4033 = vmatprep.mubr.bf16.mxu0 0
      %4034 = vmatmul.mubr.bf16.gmra.mxu0 %v3922
      %v4035 = vpop.f32.mrf.mxu0
      %v4036 = vadd.f32 0.0, %v4035
      %v4037 = vpop.f32.mrf.mxu0
      %v4038 = vpop.f32.mrf.mxu0
      %v4039 = vadd.f32 0.0, %v4038
      %v4040 = vpop.f32.mrf.mxu0
      %4041 = vmatprep.mubr.bf16.mxu0 0
      %4042 = vmatmul.mubr.bf16.gmra.mxu0 %v3923
      %v4043 = vpop.f32.mrf.mxu0
      %v4044 = vadd.f32 0.0, %v4043
      %v4045 = vpop.f32.mrf.mxu0
      %v4046 = vpop.f32.mrf.mxu0
      %v4047 = vadd.f32 0.0, %v4046
      %v4048 = vpop.f32.mrf.mxu0
      %4049 = vdwg.mxu0
      %v4050 = vadd.f32 %v3863, %v4012
      %v4051 = vadd.f32 %v3864, %v4015
      %v4052 = vadd.f32 %v3865, %v4020
      %v4053 = vadd.f32 %v3866, %v4023
      %v4054 = vadd.f32 %v3867, %v4028
      %v4055 = vadd.f32 %v3868, %v4031
      %v4056 = vadd.f32 %v3869, %v4036
      %v4057 = vadd.f32 %v3870, %v4039
      %v4058 = vadd.f32 %v3871, %v4044
      %v4059 = vadd.f32 %v3872, %v4047
      %v4060 = vld [vmem:[%s411] sm:$0xf]
      %v4061 = vld [vmem:[%s411 + $0x4] sm:$0xf]
      %v4062 = vld [vmem:[%s411 + $0x8] sm:$0xf]
      %v4063 = vld [vmem:[%s411 + $0xc] sm:$0xf]
      %v4064 = vld [vmem:[%s411 + $0x10] sm:$0xf]
      %v4065 = vld [vmem:[%s411 + $0x14] sm:$0xf]
      %v4066 = vld [vmem:[%s411 + $0x18] sm:$0xf]
      %v4067 = vld [vmem:[%s411 + $0x1c] sm:$0xf]
      %v4068 = vld [vmem:[%s411 + $0x20] sm:$0xf]
      %v4069 = vld [vmem:[%s411 + $0x24] sm:$0xf]
      %v4070 = vld [vmem:[%s411 + $0x28] sm:$0x1]
      %v4071 = vld [vmem:[%s3 + $0x4c0] sm:$0xf]
      %v4072 = vld [vmem:[%s3 + $0x4c4] sm:$0xf]
      %v4073 = vld [vmem:[%s3 + $0x4c8] sm:$0xf]
      %v4074 = vld [vmem:[%s3 + $0x4cc] sm:$0xf]
      %v4075 = vld [vmem:[%s3 + $0x4d0] sm:$0xf]
      %v4076 = vld [vmem:[%s3 + $0x4d4] sm:$0xf]
      %v4077 = vld [vmem:[%s3 + $0x4d8] sm:$0xf]
      %v4078 = vld [vmem:[%s3 + $0x4dc] sm:$0xf]
      %v4079 = vld [vmem:[%s3 + $0x4e0] sm:$0xf]
      %v4080 = vld [vmem:[%s3 + $0x4e4] sm:$0xf]
      %v4081 = vld [vmem:[%s3 + $0x4e8] sm:$0xf]
      %v4082 = vld [vmem:[%s3 + $0x4ec] sm:$0xf]
      %v4083 = vld [vmem:[%s3 + $0x4f0] sm:$0xf]
      %v4084 = vld [vmem:[%s3 + $0x4f4] sm:$0xf]
      %v4085 = vld [vmem:[%s3 + $0x4f8] sm:$0xf]
      %v4086 = vld [vmem:[%s3 + $0x4fc] sm:$0xf]
      %v4098 = vunpack.c.l.b16 %v4060
      %v4099 = vunpack.c.l.b16 %v4061
      %v4100 = vunpack.c.l.b16 %v4062
      %v4101 = vunpack.c.l.b16 %v4063
      %v4102 = vunpack.c.l.b16 %v4064
      %v4103 = vunpack.c.l.b16 %v4065
      %v4104 = vunpack.c.l.b16 %v4066
      %v4105 = vunpack.c.l.b16 %v4067
      %v4106 = vunpack.c.l.b16 %v4068
      %v4107 = vunpack.c.l.b16 %v4069
      %v4108 = vunpack.c.l.b16 %v4070
      %v4109 = vpack.c.b16 %v4099, %v4098
      %v4110 = vpack.c.b16 %v4101, %v4100
      %v4111 = vpack.c.b16 %v4103, %v4102
      %v4112 = vpack.c.b16 %v4105, %v4104
      %v4113 = vpack.c.b16 %v4107, %v4106
      %v4114 = vpack.c.b16 %v4108, %v4108
      %v4116 = vshrl.u32 %v4109, 16
      %v4118 = vshll.u32 %v4109, 16
      %v4120 = vrot.slane %v4118, 1
      %v4121 = vor.u32 %v4116, %v4120
      %v4123 = vshll.u32 %v4110, 16
      %v4125 = vrot.slane %v4123, 1
      %v4126 = vsel %vm503, %v4121, %v4125
      %v4127 = vshrl.u32 %v4110, 16
      %v4129 = vor.u32 %v4127, %v4125
      %v4131 = vshll.u32 %v4111, 16
      %v4133 = vrot.slane %v4131, 1
      %v4134 = vsel %vm503, %v4129, %v4133
      %v4135 = vshrl.u32 %v4111, 16
      %v4137 = vor.u32 %v4135, %v4133
      %v4139 = vshll.u32 %v4112, 16
      %v4141 = vrot.slane %v4139, 1
      %v4142 = vsel %vm503, %v4137, %v4141
      %v4143 = vshrl.u32 %v4112, 16
      %v4145 = vor.u32 %v4143, %v4141
      %v4147 = vshll.u32 %v4113, 16
      %v4149 = vrot.slane %v4147, 1
      %v4150 = vsel %vm503, %v4145, %v4149
      %v4151 = vshrl.u32 %v4113, 16
      %v4153 = vor.u32 %v4151, %v4149
      %v4155 = vshll.u32 %v4114, 16
      %v4157 = vrot.slane %v4155, 1
      %v4158 = vsel %vm503, %v4153, %v4157
      %v4180 = vunpack.c.l.b16 %v4071
      %v4181 = vunpack.c.l.b16 %v4072
      %v4182 = vunpack.c.l.b16 %v4073
      %v4183 = vunpack.c.l.b16 %v4074
      %v4184 = vunpack.c.l.b16 %v4075
      %v4185 = vunpack.c.l.b16 %v4076
      %v4186 = vunpack.c.l.b16 %v4077
      %v4187 = vunpack.c.l.b16 %v4078
      %v4188 = vunpack.c.l.b16 %v4079
      %v4189 = vunpack.c.l.b16 %v4080
      %v4190 = vunpack.c.l.b16 %v4081
      %v4191 = vunpack.c.l.b16 %v4082
      %v4192 = vunpack.c.l.b16 %v4083
      %v4193 = vunpack.c.l.b16 %v4084
      %v4194 = vunpack.c.l.b16 %v4085
      %v4195 = vunpack.c.l.b16 %v4086
      %v4196 = vpack.c.b16 %v4181, %v4180
      %v4197 = vpack.c.b16 %v4183, %v4182
      %v4198 = vpack.c.b16 %v4185, %v4184
      %v4199 = vpack.c.b16 %v4187, %v4186
      %v4200 = vpack.c.b16 %v4189, %v4188
      %v4201 = vpack.c.b16 %v4191, %v4190
      %v4202 = vpack.c.b16 %v4193, %v4192
      %v4203 = vpack.c.b16 %v4195, %v4194
      %4212 = vmatprep.subr.bf16.mxu0 0
      %4213 = vmatpush1.bf16.msra.mxu0 %v4203
      %4214 = vmatprep.subr.bf16.mxu0 0
      %4215 = vmatpush1.bf16.msra.mxu0 %v4202
      %4216 = vmatprep.subr.bf16.mxu0 0
      %4217 = vmatpush1.bf16.msra.mxu0 %v4201
      %4218 = vmatprep.subr.bf16.mxu0 0
      %4219 = vmatpush1.bf16.msra.mxu0 %v4200
      %4220 = vmatprep.subr.bf16.mxu0 0
      %4221 = vmatpush1.bf16.msra.mxu0 %v4199
      %4222 = vmatprep.subr.bf16.mxu0 0
      %4223 = vmatpush1.bf16.msra.mxu0 %v4198
      %4224 = vmatprep.subr.bf16.mxu0 0
      %4225 = vmatpush1.bf16.msra.mxu0 %v4197
      %4226 = vmatprep.subr.bf16.mxu0 0
      %4227 = vmatpush1.bf16.msra.mxu0 %v4196
      %4228 = vmatprep.subr.bf16.mxu0 0
      %4229 = vmatpush2.bf16.msra.mxu0 0
      %4230 = vmatprep.subr.bf16.mxu0 0
      %4231 = vmatpush2.bf16.msra.mxu0 0
      %4232 = vmatprep.subr.bf16.mxu0 0
      %4233 = vmatpush2.bf16.msra.mxu0 0
      %4234 = vmatprep.subr.bf16.mxu0 0
      %4235 = vmatpush2.bf16.msra.mxu0 0
      %4236 = vmatprep.subr.bf16.mxu0 0
      %4237 = vmatpush2.bf16.msra.mxu0 0
      %4238 = vmatprep.subr.bf16.mxu0 0
      %4239 = vmatpush2.bf16.msra.mxu0 0
      %4240 = vmatprep.subr.bf16.mxu0 0
      %4241 = vmatpush2.bf16.msra.mxu0 0
      %4242 = vmatprep.subr.bf16.mxu0 0
      %4243 = vmatpush2.bf16.msra.mxu0 0
      %4244 = vmatprep.mubr.bf16.mxu0 0
      %4245 = vmatmul.mubr.bf16.gmra.mxu0 %v4126
      %v4246 = vpop.f32.mrf.mxu0
      %v4247 = vadd.f32 0.0, %v4246
      %v4248 = vpop.f32.mrf.mxu0
      %v4249 = vpop.f32.mrf.mxu0
      %v4250 = vadd.f32 0.0, %v4249
      %v4251 = vpop.f32.mrf.mxu0
      %4252 = vmatprep.mubr.bf16.mxu0 0
      %4253 = vmatmul.mubr.bf16.gmra.mxu0 %v4134
      %v4254 = vpop.f32.mrf.mxu0
      %v4255 = vadd.f32 0.0, %v4254
      %v4256 = vpop.f32.mrf.mxu0
      %v4257 = vpop.f32.mrf.mxu0
      %v4258 = vadd.f32 0.0, %v4257
      %v4259 = vpop.f32.mrf.mxu0
      %4260 = vmatprep.mubr.bf16.mxu0 0
      %4261 = vmatmul.mubr.bf16.gmra.mxu0 %v4142
      %v4262 = vpop.f32.mrf.mxu0
      %v4263 = vadd.f32 0.0, %v4262
      %v4264 = vpop.f32.mrf.mxu0
      %v4265 = vpop.f32.mrf.mxu0
      %v4266 = vadd.f32 0.0, %v4265
      %v4267 = vpop.f32.mrf.mxu0
      %4268 = vmatprep.mubr.bf16.mxu0 0
      %4269 = vmatmul.mubr.bf16.gmra.mxu0 %v4150
      %v4270 = vpop.f32.mrf.mxu0
      %v4271 = vadd.f32 0.0, %v4270
      %v4272 = vpop.f32.mrf.mxu0
      %v4273 = vpop.f32.mrf.mxu0
      %v4274 = vadd.f32 0.0, %v4273
      %v4275 = vpop.f32.mrf.mxu0
      %4276 = vmatprep.mubr.bf16.mxu0 0
      %4277 = vmatmul.mubr.bf16.gmra.mxu0 %v4158
      %v4278 = vpop.f32.mrf.mxu0
      %v4279 = vadd.f32 0.0, %v4278
      %v4280 = vpop.f32.mrf.mxu0
      %v4281 = vpop.f32.mrf.mxu0
      %v4282 = vadd.f32 0.0, %v4281
      %v4283 = vpop.f32.mrf.mxu0
      %4284 = vdwg.mxu0
      %v4285 = vadd.f32 %v4050, %v4247
      %v4286 = vadd.f32 %v4051, %v4250
      %v4287 = vadd.f32 %v4052, %v4255
      %v4288 = vadd.f32 %v4053, %v4258
      %v4289 = vadd.f32 %v4054, %v4263
      %v4290 = vadd.f32 %v4055, %v4266
      %v4291 = vadd.f32 %v4056, %v4271
      %v4292 = vadd.f32 %v4057, %v4274
      %v4293 = vadd.f32 %v4058, %v4279
      %v4294 = vadd.f32 %v4059, %v4282
      %v4295 = vld [vmem:[%s411] sm:$0xe]
      %v4296 = vld [vmem:[%s3 + $0x500] sm:$0xf]
      %v4297 = vld [vmem:[%s3 + $0x504] sm:$0xf]
      %v4298 = vld [vmem:[%s3 + $0x508] sm:$0xf]
      %v4299 = vld [vmem:[%s3 + $0x50c] sm:$0xf]
      %v4300 = vld [vmem:[%s3 + $0x510] sm:$0xf]
      %v4301 = vld [vmem:[%s3 + $0x514] sm:$0xf]
      %v4302 = vld [vmem:[%s3 + $0x518] sm:$0xf]
      %v4303 = vld [vmem:[%s3 + $0x51c] sm:$0xf]
      %v4304 = vld [vmem:[%s3 + $0x520] sm:$0xf]
      %v4305 = vld [vmem:[%s3 + $0x524] sm:$0xf]
      %v4306 = vld [vmem:[%s3 + $0x528] sm:$0xf]
      %v4307 = vld [vmem:[%s3 + $0x52c] sm:$0xf]
      %v4308 = vld [vmem:[%s3 + $0x530] sm:$0xf]
      %v4309 = vld [vmem:[%s3 + $0x534] sm:$0xf]
      %v4310 = vld [vmem:[%s3 + $0x538] sm:$0xf]
      %v4311 = vld [vmem:[%s3 + $0x53c] sm:$0xf]
      %v4313 = vunpack.c.l.b16 %v4295
      %v4314 = vpack.c.b16 %v4099, %v4313
      %v4315 = vrot.slane %v4314, 1
      %v4316 = vrot.slane %v4110, 1
      %v4317 = vsel %vm820, %v4315, %v4316
      %v4318 = vrot.slane %v4111, 1
      %v4319 = vsel %vm820, %v4316, %v4318
      %v4320 = vrot.slane %v4112, 1
      %v4321 = vsel %vm820, %v4318, %v4320
      %v4322 = vrot.slane %v4113, 1
      %v4323 = vsel %vm820, %v4320, %v4322
      %v4324 = vrot.slane %v4114, 1
      %v4325 = vsel %vm820, %v4322, %v4324
      %v4347 = vunpack.c.l.b16 %v4296
      %v4348 = vunpack.c.l.b16 %v4297
      %v4349 = vunpack.c.l.b16 %v4298
      %v4350 = vunpack.c.l.b16 %v4299
      %v4351 = vunpack.c.l.b16 %v4300
      %v4352 = vunpack.c.l.b16 %v4301
      %v4353 = vunpack.c.l.b16 %v4302
      %v4354 = vunpack.c.l.b16 %v4303
      %v4355 = vunpack.c.l.b16 %v4304
      %v4356 = vunpack.c.l.b16 %v4305
      %v4357 = vunpack.c.l.b16 %v4306
      %v4358 = vunpack.c.l.b16 %v4307
      %v4359 = vunpack.c.l.b16 %v4308
      %v4360 = vunpack.c.l.b16 %v4309
      %v4361 = vunpack.c.l.b16 %v4310
      %v4362 = vunpack.c.l.b16 %v4311
      %v4363 = vpack.c.b16 %v4348, %v4347
      %v4364 = vpack.c.b16 %v4350, %v4349
      %v4365 = vpack.c.b16 %v4352, %v4351
      %v4366 = vpack.c.b16 %v4354, %v4353
      %v4367 = vpack.c.b16 %v4356, %v4355
      %v4368 = vpack.c.b16 %v4358, %v4357
      %v4369 = vpack.c.b16 %v4360, %v4359
      %v4370 = vpack.c.b16 %v4362, %v4361
      %4379 = vmatprep.subr.bf16.mxu0 0
      %4380 = vmatpush1.bf16.msra.mxu0 %v4370
      %4381 = vmatprep.subr.bf16.mxu0 0
      %4382 = vmatpush1.bf16.msra.mxu0 %v4369
      %4383 = vmatprep.subr.bf16.mxu0 0
      %4384 = vmatpush1.bf16.msra.mxu0 %v4368
      %4385 = vmatprep.subr.bf16.mxu0 0
      %4386 = vmatpush1.bf16.msra.mxu0 %v4367
      %4387 = vmatprep.subr.bf16.mxu0 0
      %4388 = vmatpush1.bf16.msra.mxu0 %v4366
      %4389 = vmatprep.subr.bf16.mxu0 0
      %4390 = vmatpush1.bf16.msra.mxu0 %v4365
      %4391 = vmatprep.subr.bf16.mxu0 0
      %4392 = vmatpush1.bf16.msra.mxu0 %v4364
      %4393 = vmatprep.subr.bf16.mxu0 0
      %4394 = vmatpush1.bf16.msra.mxu0 %v4363
      %4395 = vmatprep.subr.bf16.mxu0 0
      %4396 = vmatpush2.bf16.msra.mxu0 0
      %4397 = vmatprep.subr.bf16.mxu0 0
      %4398 = vmatpush2.bf16.msra.mxu0 0
      %4399 = vmatprep.subr.bf16.mxu0 0
      %4400 = vmatpush2.bf16.msra.mxu0 0
      %4401 = vmatprep.subr.bf16.mxu0 0
      %4402 = vmatpush2.bf16.msra.mxu0 0
      %4403 = vmatprep.subr.bf16.mxu0 0
      %4404 = vmatpush2.bf16.msra.mxu0 0
      %4405 = vmatprep.subr.bf16.mxu0 0
      %4406 = vmatpush2.bf16.msra.mxu0 0
      %4407 = vmatprep.subr.bf16.mxu0 0
      %4408 = vmatpush2.bf16.msra.mxu0 0
      %4409 = vmatprep.subr.bf16.mxu0 0
      %4410 = vmatpush2.bf16.msra.mxu0 0
      %4411 = vmatprep.mubr.bf16.mxu0 0
      %4412 = vmatmul.mubr.bf16.gmra.mxu0 %v4317
      %v4413 = vpop.f32.mrf.mxu0
      %v4414 = vadd.f32 0.0, %v4413
      %v4415 = vpop.f32.mrf.mxu0
      %v4416 = vpop.f32.mrf.mxu0
      %v4417 = vadd.f32 0.0, %v4416
      %v4418 = vpop.f32.mrf.mxu0
      %4419 = vmatprep.mubr.bf16.mxu0 0
      %4420 = vmatmul.mubr.bf16.gmra.mxu0 %v4319
      %v4421 = vpop.f32.mrf.mxu0
      %v4422 = vadd.f32 0.0, %v4421
      %v4423 = vpop.f32.mrf.mxu0
      %v4424 = vpop.f32.mrf.mxu0
      %v4425 = vadd.f32 0.0, %v4424
      %v4426 = vpop.f32.mrf.mxu0
      %4427 = vmatprep.mubr.bf16.mxu0 0
      %4428 = vmatmul.mubr.bf16.gmra.mxu0 %v4321
      %v4429 = vpop.f32.mrf.mxu0
      %v4430 = vadd.f32 0.0, %v4429
      %v4431 = vpop.f32.mrf.mxu0
      %v4432 = vpop.f32.mrf.mxu0
      %v4433 = vadd.f32 0.0, %v4432
      %v4434 = vpop.f32.mrf.mxu0
      %4435 = vmatprep.mubr.bf16.mxu0 0
      %4436 = vmatmul.mubr.bf16.gmra.mxu0 %v4323
      %v4437 = vpop.f32.mrf.mxu0
      %v4438 = vadd.f32 0.0, %v4437
      %v4439 = vpop.f32.mrf.mxu0
      %v4440 = vpop.f32.mrf.mxu0
      %v4441 = vadd.f32 0.0, %v4440
      %v4442 = vpop.f32.mrf.mxu0
      %4443 = vmatprep.mubr.bf16.mxu0 0
      %4444 = vmatmul.mubr.bf16.gmra.mxu0 %v4325
      %v4445 = vpop.f32.mrf.mxu0
      %v4446 = vadd.f32 0.0, %v4445
      %v4447 = vpop.f32.mrf.mxu0
      %v4448 = vpop.f32.mrf.mxu0
      %v4449 = vadd.f32 0.0, %v4448
      %v4450 = vpop.f32.mrf.mxu0
      %4451 = vdwg.mxu0
      %v4452 = vadd.f32 %v4285, %v4414
      %v4453 = vadd.f32 %v4286, %v4417
      %v4454 = vadd.f32 %v4287, %v4422
      %v4455 = vadd.f32 %v4288, %v4425
      %v4456 = vadd.f32 %v4289, %v4430
      %v4457 = vadd.f32 %v4290, %v4433
      %v4458 = vadd.f32 %v4291, %v4438
      %v4459 = vadd.f32 %v4292, %v4441
      %v4460 = vadd.f32 %v4293, %v4446
      %v4461 = vadd.f32 %v4294, %v4449
      %v4462 = vld [vmem:[%s411 + $0x4] sm:$0xe]
      %v4463 = vld [vmem:[%s411 + $0x8] sm:$0xf]
      %v4464 = vld [vmem:[%s411 + $0xc] sm:$0xf]
      %v4465 = vld [vmem:[%s411 + $0x10] sm:$0xf]
      %v4466 = vld [vmem:[%s411 + $0x14] sm:$0xf]
      %v4467 = vld [vmem:[%s411 + $0x18] sm:$0xf]
      %v4468 = vld [vmem:[%s411 + $0x1c] sm:$0xf]
      %v4469 = vld [vmem:[%s411 + $0x20] sm:$0xf]
      %v4470 = vld [vmem:[%s411 + $0x24] sm:$0xf]
      %v4471 = vld [vmem:[%s411 + $0x28] sm:$0xf]
      %v4472 = vld [vmem:[%s411 + $0x2c] sm:$0x1]
      %v4473 = vld [vmem:[%s3 + $0x540] sm:$0xf]
      %v4474 = vld [vmem:[%s3 + $0x544] sm:$0xf]
      %v4475 = vld [vmem:[%s3 + $0x548] sm:$0xf]
      %v4476 = vld [vmem:[%s3 + $0x54c] sm:$0xf]
      %v4477 = vld [vmem:[%s3 + $0x550] sm:$0xf]
      %v4478 = vld [vmem:[%s3 + $0x554] sm:$0xf]
      %v4479 = vld [vmem:[%s3 + $0x558] sm:$0xf]
      %v4480 = vld [vmem:[%s3 + $0x55c] sm:$0xf]
      %v4481 = vld [vmem:[%s3 + $0x560] sm:$0xf]
      %v4482 = vld [vmem:[%s3 + $0x564] sm:$0xf]
      %v4483 = vld [vmem:[%s3 + $0x568] sm:$0xf]
      %v4484 = vld [vmem:[%s3 + $0x56c] sm:$0xf]
      %v4485 = vld [vmem:[%s3 + $0x570] sm:$0xf]
      %v4486 = vld [vmem:[%s3 + $0x574] sm:$0xf]
      %v4487 = vld [vmem:[%s3 + $0x578] sm:$0xf]
      %v4488 = vld [vmem:[%s3 + $0x57c] sm:$0xf]
      %v4500 = vunpack.c.l.b16 %v4462
      %v4501 = vunpack.c.l.b16 %v4463
      %v4502 = vunpack.c.l.b16 %v4464
      %v4503 = vunpack.c.l.b16 %v4465
      %v4504 = vunpack.c.l.b16 %v4466
      %v4505 = vunpack.c.l.b16 %v4467
      %v4506 = vunpack.c.l.b16 %v4468
      %v4507 = vunpack.c.l.b16 %v4469
      %v4508 = vunpack.c.l.b16 %v4470
      %v4509 = vunpack.c.l.b16 %v4471
      %v4510 = vunpack.c.l.b16 %v4472
      %v4511 = vpack.c.b16 %v4501, %v4500
      %v4512 = vpack.c.b16 %v4503, %v4502
      %v4513 = vpack.c.b16 %v4505, %v4504
      %v4514 = vpack.c.b16 %v4507, %v4506
      %v4515 = vpack.c.b16 %v4509, %v4508
      %v4516 = vpack.c.b16 %v4510, %v4510
      %v4517 = vrot.slane %v4511, 1
      %v4518 = vrot.slane %v4512, 1
      %v4519 = vsel %vm820, %v4517, %v4518
      %v4520 = vrot.slane %v4513, 1
      %v4521 = vsel %vm820, %v4518, %v4520
      %v4522 = vrot.slane %v4514, 1
      %v4523 = vsel %vm820, %v4520, %v4522
      %v4524 = vrot.slane %v4515, 1
      %v4525 = vsel %vm820, %v4522, %v4524
      %v4526 = vrot.slane %v4516, 1
      %v4527 = vsel %vm820, %v4524, %v4526
      %v4549 = vunpack.c.l.b16 %v4473
      %v4550 = vunpack.c.l.b16 %v4474
      %v4551 = vunpack.c.l.b16 %v4475
      %v4552 = vunpack.c.l.b16 %v4476
      %v4553 = vunpack.c.l.b16 %v4477
      %v4554 = vunpack.c.l.b16 %v4478
      %v4555 = vunpack.c.l.b16 %v4479
      %v4556 = vunpack.c.l.b16 %v4480
      %v4557 = vunpack.c.l.b16 %v4481
      %v4558 = vunpack.c.l.b16 %v4482
      %v4559 = vunpack.c.l.b16 %v4483
      %v4560 = vunpack.c.l.b16 %v4484
      %v4561 = vunpack.c.l.b16 %v4485
      %v4562 = vunpack.c.l.b16 %v4486
      %v4563 = vunpack.c.l.b16 %v4487
      %v4564 = vunpack.c.l.b16 %v4488
      %v4565 = vpack.c.b16 %v4550, %v4549
      %v4566 = vpack.c.b16 %v4552, %v4551
      %v4567 = vpack.c.b16 %v4554, %v4553
      %v4568 = vpack.c.b16 %v4556, %v4555
      %v4569 = vpack.c.b16 %v4558, %v4557
      %v4570 = vpack.c.b16 %v4560, %v4559
      %v4571 = vpack.c.b16 %v4562, %v4561
      %v4572 = vpack.c.b16 %v4564, %v4563
      %4581 = vmatprep.subr.bf16.mxu0 0
      %4582 = vmatpush1.bf16.msra.mxu0 %v4572
      %4583 = vmatprep.subr.bf16.mxu0 0
      %4584 = vmatpush1.bf16.msra.mxu0 %v4571
      %4585 = vmatprep.subr.bf16.mxu0 0
      %4586 = vmatpush1.bf16.msra.mxu0 %v4570
      %4587 = vmatprep.subr.bf16.mxu0 0
      %4588 = vmatpush1.bf16.msra.mxu0 %v4569
      %4589 = vmatprep.subr.bf16.mxu0 0
      %4590 = vmatpush1.bf16.msra.mxu0 %v4568
      %4591 = vmatprep.subr.bf16.mxu0 0
      %4592 = vmatpush1.bf16.msra.mxu0 %v4567
      %4593 = vmatprep.subr.bf16.mxu0 0
      %4594 = vmatpush1.bf16.msra.mxu0 %v4566
      %4595 = vmatprep.subr.bf16.mxu0 0
      %4596 = vmatpush1.bf16.msra.mxu0 %v4565
      %4597 = vmatprep.subr.bf16.mxu0 0
      %4598 = vmatpush2.bf16.msra.mxu0 0
      %4599 = vmatprep.subr.bf16.mxu0 0
      %4600 = vmatpush2.bf16.msra.mxu0 0
      %4601 = vmatprep.subr.bf16.mxu0 0
      %4602 = vmatpush2.bf16.msra.mxu0 0
      %4603 = vmatprep.subr.bf16.mxu0 0
      %4604 = vmatpush2.bf16.msra.mxu0 0
      %4605 = vmatprep.subr.bf16.mxu0 0
      %4606 = vmatpush2.bf16.msra.mxu0 0
      %4607 = vmatprep.subr.bf16.mxu0 0
      %4608 = vmatpush2.bf16.msra.mxu0 0
      %4609 = vmatprep.subr.bf16.mxu0 0
      %4610 = vmatpush2.bf16.msra.mxu0 0
      %4611 = vmatprep.subr.bf16.mxu0 0
      %4612 = vmatpush2.bf16.msra.mxu0 0
      %4613 = vmatprep.mubr.bf16.mxu0 0
      %4614 = vmatmul.mubr.bf16.gmra.mxu0 %v4519
      %v4615 = vpop.f32.mrf.mxu0
      %v4616 = vadd.f32 0.0, %v4615
      %v4617 = vpop.f32.mrf.mxu0
      %v4618 = vpop.f32.mrf.mxu0
      %v4619 = vadd.f32 0.0, %v4618
      %v4620 = vpop.f32.mrf.mxu0
      %4621 = vmatprep.mubr.bf16.mxu0 0
      %4622 = vmatmul.mubr.bf16.gmra.mxu0 %v4521
      %v4623 = vpop.f32.mrf.mxu0
      %v4624 = vadd.f32 0.0, %v4623
      %v4625 = vpop.f32.mrf.mxu0
      %v4626 = vpop.f32.mrf.mxu0
      %v4627 = vadd.f32 0.0, %v4626
      %v4628 = vpop.f32.mrf.mxu0
      %4629 = vmatprep.mubr.bf16.mxu0 0
      %4630 = vmatmul.mubr.bf16.gmra.mxu0 %v4523
      %v4631 = vpop.f32.mrf.mxu0
      %v4632 = vadd.f32 0.0, %v4631
      %v4633 = vpop.f32.mrf.mxu0
      %v4634 = vpop.f32.mrf.mxu0
      %v4635 = vadd.f32 0.0, %v4634
      %v4636 = vpop.f32.mrf.mxu0
      %4637 = vmatprep.mubr.bf16.mxu0 0
      %4638 = vmatmul.mubr.bf16.gmra.mxu0 %v4525
      %v4639 = vpop.f32.mrf.mxu0
      %v4640 = vadd.f32 0.0, %v4639
      %v4641 = vpop.f32.mrf.mxu0
      %v4642 = vpop.f32.mrf.mxu0
      %v4643 = vadd.f32 0.0, %v4642
      %v4644 = vpop.f32.mrf.mxu0
      %4645 = vmatprep.mubr.bf16.mxu0 0
      %4646 = vmatmul.mubr.bf16.gmra.mxu0 %v4527
      %v4647 = vpop.f32.mrf.mxu0
      %v4648 = vadd.f32 0.0, %v4647
      %v4649 = vpop.f32.mrf.mxu0
      %v4650 = vpop.f32.mrf.mxu0
      %v4651 = vadd.f32 0.0, %v4650
      %v4652 = vpop.f32.mrf.mxu0
      %4653 = vdwg.mxu0
      %v4654 = vadd.f32 %v4452, %v4616
      %v4655 = vadd.f32 %v4453, %v4619
      %v4656 = vadd.f32 %v4454, %v4624
      %v4657 = vadd.f32 %v4455, %v4627
      %v4658 = vadd.f32 %v4456, %v4632
      %v4659 = vadd.f32 %v4457, %v4635
      %v4660 = vadd.f32 %v4458, %v4640
      %v4661 = vadd.f32 %v4459, %v4643
      %v4662 = vadd.f32 %v4460, %v4648
      %v4663 = vadd.f32 %v4461, %v4651
      %v4664 = vld [vmem:[%s411 + $0x2c] sm:$0x3]
      %v4665 = vld [vmem:[%s3 + $0x580] sm:$0xf]
      %v4666 = vld [vmem:[%s3 + $0x584] sm:$0xf]
      %v4667 = vld [vmem:[%s3 + $0x588] sm:$0xf]
      %v4668 = vld [vmem:[%s3 + $0x58c] sm:$0xf]
      %v4669 = vld [vmem:[%s3 + $0x590] sm:$0xf]
      %v4670 = vld [vmem:[%s3 + $0x594] sm:$0xf]
      %v4671 = vld [vmem:[%s3 + $0x598] sm:$0xf]
      %v4672 = vld [vmem:[%s3 + $0x59c] sm:$0xf]
      %v4673 = vld [vmem:[%s3 + $0x5a0] sm:$0xf]
      %v4674 = vld [vmem:[%s3 + $0x5a4] sm:$0xf]
      %v4675 = vld [vmem:[%s3 + $0x5a8] sm:$0xf]
      %v4676 = vld [vmem:[%s3 + $0x5ac] sm:$0xf]
      %v4677 = vld [vmem:[%s3 + $0x5b0] sm:$0xf]
      %v4678 = vld [vmem:[%s3 + $0x5b4] sm:$0xf]
      %v4679 = vld [vmem:[%s3 + $0x5b8] sm:$0xf]
      %v4680 = vld [vmem:[%s3 + $0x5bc] sm:$0xf]
      %v4682 = vunpack.c.l.b16 %v4664
      %v4683 = vpack.c.b16 %v4682, %v4682
      %v4685 = vshrl.u32 %v4511, 16
      %v4687 = vrot.slane %v4685, 1
      %v4688 = vshll.u32 %v4511, 16
      %v4690 = vrot.slane %v4688, 2
      %v4691 = vor.u32 %v4687, %v4690
      %v4693 = vshrl.u32 %v4512, 16
      %v4695 = vrot.slane %v4693, 1
      %v4696 = vshll.u32 %v4512, 16
      %v4698 = vrot.slane %v4696, 2
      %v4699 = vor.u32 %v4695, %v4698
      %v4700 = vsel %vm1190, %v4691, %v4699
      %v4702 = vshrl.u32 %v4513, 16
      %v4704 = vrot.slane %v4702, 1
      %v4705 = vshll.u32 %v4513, 16
      %v4707 = vrot.slane %v4705, 2
      %v4708 = vor.u32 %v4704, %v4707
      %v4709 = vsel %vm1190, %v4699, %v4708
      %v4711 = vshrl.u32 %v4514, 16
      %v4713 = vrot.slane %v4711, 1
      %v4714 = vshll.u32 %v4514, 16
      %v4716 = vrot.slane %v4714, 2
      %v4717 = vor.u32 %v4713, %v4716
      %v4718 = vsel %vm1190, %v4708, %v4717
      %v4720 = vshrl.u32 %v4515, 16
      %v4722 = vrot.slane %v4720, 1
      %v4723 = vshll.u32 %v4515, 16
      %v4725 = vrot.slane %v4723, 2
      %v4726 = vor.u32 %v4722, %v4725
      %v4727 = vsel %vm1190, %v4717, %v4726
      %v4729 = vshrl.u32 %v4683, 16
      %v4731 = vrot.slane %v4729, 1
      %v4732 = vshll.u32 %v4683, 16
      %v4734 = vrot.slane %v4732, 2
      %v4735 = vor.u32 %v4731, %v4734
      %v4736 = vsel %vm1190, %v4726, %v4735
      %v4758 = vunpack.c.l.b16 %v4665
      %v4759 = vunpack.c.l.b16 %v4666
      %v4760 = vunpack.c.l.b16 %v4667
      %v4761 = vunpack.c.l.b16 %v4668
      %v4762 = vunpack.c.l.b16 %v4669
      %v4763 = vunpack.c.l.b16 %v4670
      %v4764 = vunpack.c.l.b16 %v4671
      %v4765 = vunpack.c.l.b16 %v4672
      %v4766 = vunpack.c.l.b16 %v4673
      %v4767 = vunpack.c.l.b16 %v4674
      %v4768 = vunpack.c.l.b16 %v4675
      %v4769 = vunpack.c.l.b16 %v4676
      %v4770 = vunpack.c.l.b16 %v4677
      %v4771 = vunpack.c.l.b16 %v4678
      %v4772 = vunpack.c.l.b16 %v4679
      %v4773 = vunpack.c.l.b16 %v4680
      %v4774 = vpack.c.b16 %v4759, %v4758
      %v4775 = vpack.c.b16 %v4761, %v4760
      %v4776 = vpack.c.b16 %v4763, %v4762
      %v4777 = vpack.c.b16 %v4765, %v4764
      %v4778 = vpack.c.b16 %v4767, %v4766
      %v4779 = vpack.c.b16 %v4769, %v4768
      %v4780 = vpack.c.b16 %v4771, %v4770
      %v4781 = vpack.c.b16 %v4773, %v4772
      %4790 = vmatprep.subr.bf16.mxu0 0
      %4791 = vmatpush1.bf16.msra.mxu0 %v4781
      %4792 = vmatprep.subr.bf16.mxu0 0
      %4793 = vmatpush1.bf16.msra.mxu0 %v4780
      %4794 = vmatprep.subr.bf16.mxu0 0
      %4795 = vmatpush1.bf16.msra.mxu0 %v4779
      %4796 = vmatprep.subr.bf16.mxu0 0
      %4797 = vmatpush1.bf16.msra.mxu0 %v4778
      %4798 = vmatprep.subr.bf16.mxu0 0
      %4799 = vmatpush1.bf16.msra.mxu0 %v4777
      %4800 = vmatprep.subr.bf16.mxu0 0
      %4801 = vmatpush1.bf16.msra.mxu0 %v4776
      %4802 = vmatprep.subr.bf16.mxu0 0
      %4803 = vmatpush1.bf16.msra.mxu0 %v4775
      %4804 = vmatprep.subr.bf16.mxu0 0
      %4805 = vmatpush1.bf16.msra.mxu0 %v4774
      %4806 = vmatprep.subr.bf16.mxu0 0
      %4807 = vmatpush2.bf16.msra.mxu0 0
      %4808 = vmatprep.subr.bf16.mxu0 0
      %4809 = vmatpush2.bf16.msra.mxu0 0
      %4810 = vmatprep.subr.bf16.mxu0 0
      %4811 = vmatpush2.bf16.msra.mxu0 0
      %4812 = vmatprep.subr.bf16.mxu0 0
      %4813 = vmatpush2.bf16.msra.mxu0 0
      %4814 = vmatprep.subr.bf16.mxu0 0
      %4815 = vmatpush2.bf16.msra.mxu0 0
      %4816 = vmatprep.subr.bf16.mxu0 0
      %4817 = vmatpush2.bf16.msra.mxu0 0
      %4818 = vmatprep.subr.bf16.mxu0 0
      %4819 = vmatpush2.bf16.msra.mxu0 0
      %4820 = vmatprep.subr.bf16.mxu0 0
      %4821 = vmatpush2.bf16.msra.mxu0 0
      %4822 = vmatprep.mubr.bf16.mxu0 0
      %4823 = vmatmul.mubr.bf16.gmra.mxu0 %v4700
      %v4824 = vpop.f32.mrf.mxu0
      %v4825 = vadd.f32 0.0, %v4824
      %v4826 = vpop.f32.mrf.mxu0
      %v4827 = vpop.f32.mrf.mxu0
      %v4828 = vadd.f32 0.0, %v4827
      %v4829 = vpop.f32.mrf.mxu0
      %4830 = vmatprep.mubr.bf16.mxu0 0
      %4831 = vmatmul.mubr.bf16.gmra.mxu0 %v4709
      %v4832 = vpop.f32.mrf.mxu0
      %v4833 = vadd.f32 0.0, %v4832
      %v4834 = vpop.f32.mrf.mxu0
      %v4835 = vpop.f32.mrf.mxu0
      %v4836 = vadd.f32 0.0, %v4835
      %v4837 = vpop.f32.mrf.mxu0
      %4838 = vmatprep.mubr.bf16.mxu0 0
      %4839 = vmatmul.mubr.bf16.gmra.mxu0 %v4718
      %v4840 = vpop.f32.mrf.mxu0
      %v4841 = vadd.f32 0.0, %v4840
      %v4842 = vpop.f32.mrf.mxu0
      %v4843 = vpop.f32.mrf.mxu0
      %v4844 = vadd.f32 0.0, %v4843
      %v4845 = vpop.f32.mrf.mxu0
      %4846 = vmatprep.mubr.bf16.mxu0 0
      %4847 = vmatmul.mubr.bf16.gmra.mxu0 %v4727
      %v4848 = vpop.f32.mrf.mxu0
      %v4849 = vadd.f32 0.0, %v4848
      %v4850 = vpop.f32.mrf.mxu0
      %v4851 = vpop.f32.mrf.mxu0
      %v4852 = vadd.f32 0.0, %v4851
      %v4853 = vpop.f32.mrf.mxu0
      %4854 = vmatprep.mubr.bf16.mxu0 0
      %4855 = vmatmul.mubr.bf16.gmra.mxu0 %v4736
      %v4856 = vpop.f32.mrf.mxu0
      %v4857 = vadd.f32 0.0, %v4856
      %v4858 = vpop.f32.mrf.mxu0
      %v4859 = vpop.f32.mrf.mxu0
      %v4860 = vadd.f32 0.0, %v4859
      %v4861 = vpop.f32.mrf.mxu0
      %4862 = vdwg.mxu0
      %v4863 = vadd.f32 %v4654, %v4825
      %v4864 = vadd.f32 %v4655, %v4828
      %v4865 = vadd.f32 %v4656, %v4833
      %v4866 = vadd.f32 %v4657, %v4836
      %v4867 = vadd.f32 %v4658, %v4841
      %v4868 = vadd.f32 %v4659, %v4844
      %v4869 = vadd.f32 %v4660, %v4849
      %v4870 = vadd.f32 %v4661, %v4852
      %v4871 = vadd.f32 %v4662, %v4857
      %v4872 = vadd.f32 %v4663, %v4860
      %v4873 = vld [vmem:[%s411 + $0x4] sm:$0xc]
      %v4874 = vld [vmem:[%s3 + $0x5c0] sm:$0xf]
      %v4875 = vld [vmem:[%s3 + $0x5c4] sm:$0xf]
      %v4876 = vld [vmem:[%s3 + $0x5c8] sm:$0xf]
      %v4877 = vld [vmem:[%s3 + $0x5cc] sm:$0xf]
      %v4878 = vld [vmem:[%s3 + $0x5d0] sm:$0xf]
      %v4879 = vld [vmem:[%s3 + $0x5d4] sm:$0xf]
      %v4880 = vld [vmem:[%s3 + $0x5d8] sm:$0xf]
      %v4881 = vld [vmem:[%s3 + $0x5dc] sm:$0xf]
      %v4882 = vld [vmem:[%s3 + $0x5e0] sm:$0xf]
      %v4883 = vld [vmem:[%s3 + $0x5e4] sm:$0xf]
      %v4884 = vld [vmem:[%s3 + $0x5e8] sm:$0xf]
      %v4885 = vld [vmem:[%s3 + $0x5ec] sm:$0xf]
      %v4886 = vld [vmem:[%s3 + $0x5f0] sm:$0xf]
      %v4887 = vld [vmem:[%s3 + $0x5f4] sm:$0xf]
      %v4888 = vld [vmem:[%s3 + $0x5f8] sm:$0xf]
      %v4889 = vld [vmem:[%s3 + $0x5fc] sm:$0xf]
      %v4891 = vunpack.c.l.b16 %v4873
      %v4892 = vpack.c.b16 %v4501, %v4891
      %v4893 = vrot.slane %v4892, 2
      %v4894 = vrot.slane %v4512, 2
      %v4895 = vsel %vm1400, %v4893, %v4894
      %v4896 = vrot.slane %v4513, 2
      %v4897 = vsel %vm1400, %v4894, %v4896
      %v4898 = vrot.slane %v4514, 2
      %v4899 = vsel %vm1400, %v4896, %v4898
      %v4900 = vrot.slane %v4515, 2
      %v4901 = vsel %vm1400, %v4898, %v4900
      %v4902 = vrot.slane %v4683, 2
      %v4903 = vsel %vm1400, %v4900, %v4902
      %v4925 = vunpack.c.l.b16 %v4874
      %v4926 = vunpack.c.l.b16 %v4875
      %v4927 = vunpack.c.l.b16 %v4876
      %v4928 = vunpack.c.l.b16 %v4877
      %v4929 = vunpack.c.l.b16 %v4878
      %v4930 = vunpack.c.l.b16 %v4879
      %v4931 = vunpack.c.l.b16 %v4880
      %v4932 = vunpack.c.l.b16 %v4881
      %v4933 = vunpack.c.l.b16 %v4882
      %v4934 = vunpack.c.l.b16 %v4883
      %v4935 = vunpack.c.l.b16 %v4884
      %v4936 = vunpack.c.l.b16 %v4885
      %v4937 = vunpack.c.l.b16 %v4886
      %v4938 = vunpack.c.l.b16 %v4887
      %v4939 = vunpack.c.l.b16 %v4888
      %v4940 = vunpack.c.l.b16 %v4889
      %v4941 = vpack.c.b16 %v4926, %v4925
      %v4942 = vpack.c.b16 %v4928, %v4927
      %v4943 = vpack.c.b16 %v4930, %v4929
      %v4944 = vpack.c.b16 %v4932, %v4931
      %v4945 = vpack.c.b16 %v4934, %v4933
      %v4946 = vpack.c.b16 %v4936, %v4935
      %v4947 = vpack.c.b16 %v4938, %v4937
      %v4948 = vpack.c.b16 %v4940, %v4939
      %4957 = vmatprep.subr.bf16.mxu0 0
      %4958 = vmatpush1.bf16.msra.mxu0 %v4948
      %4959 = vmatprep.subr.bf16.mxu0 0
      %4960 = vmatpush1.bf16.msra.mxu0 %v4947
      %4961 = vmatprep.subr.bf16.mxu0 0
      %4962 = vmatpush1.bf16.msra.mxu0 %v4946
      %4963 = vmatprep.subr.bf16.mxu0 0
      %4964 = vmatpush1.bf16.msra.mxu0 %v4945
      %4965 = vmatprep.subr.bf16.mxu0 0
      %4966 = vmatpush1.bf16.msra.mxu0 %v4944
      %4967 = vmatprep.subr.bf16.mxu0 0
      %4968 = vmatpush1.bf16.msra.mxu0 %v4943
      %4969 = vmatprep.subr.bf16.mxu0 0
      %4970 = vmatpush1.bf16.msra.mxu0 %v4942
      %4971 = vmatprep.subr.bf16.mxu0 0
      %4972 = vmatpush1.bf16.msra.mxu0 %v4941
      %4973 = vmatprep.subr.bf16.mxu0 0
      %4974 = vmatpush2.bf16.msra.mxu0 0
      %4975 = vmatprep.subr.bf16.mxu0 0
      %4976 = vmatpush2.bf16.msra.mxu0 0
      %4977 = vmatprep.subr.bf16.mxu0 0
      %4978 = vmatpush2.bf16.msra.mxu0 0
      %4979 = vmatprep.subr.bf16.mxu0 0
      %4980 = vmatpush2.bf16.msra.mxu0 0
      %4981 = vmatprep.subr.bf16.mxu0 0
      %4982 = vmatpush2.bf16.msra.mxu0 0
      %4983 = vmatprep.subr.bf16.mxu0 0
      %4984 = vmatpush2.bf16.msra.mxu0 0
      %4985 = vmatprep.subr.bf16.mxu0 0
      %4986 = vmatpush2.bf16.msra.mxu0 0
      %4987 = vmatprep.subr.bf16.mxu0 0
      %4988 = vmatpush2.bf16.msra.mxu0 0
      %4989 = vmatprep.mubr.bf16.mxu0 0
      %4990 = vmatmul.mubr.bf16.gmra.mxu0 %v4895
      %v4991 = vpop.f32.mrf.mxu0
      %v4992 = vadd.f32 0.0, %v4991
      %v4993 = vpop.f32.mrf.mxu0
      %v4994 = vpop.f32.mrf.mxu0
      %v4995 = vadd.f32 0.0, %v4994
      %v4996 = vpop.f32.mrf.mxu0
      %4997 = vmatprep.mubr.bf16.mxu0 0
      %4998 = vmatmul.mubr.bf16.gmra.mxu0 %v4897
      %v4999 = vpop.f32.mrf.mxu0
      %v5000 = vadd.f32 0.0, %v4999
      %v5001 = vpop.f32.mrf.mxu0
      %v5002 = vpop.f32.mrf.mxu0
      %v5003 = vadd.f32 0.0, %v5002
      %v5004 = vpop.f32.mrf.mxu0
      %5005 = vmatprep.mubr.bf16.mxu0 0
      %5006 = vmatmul.mubr.bf16.gmra.mxu0 %v4899
      %v5007 = vpop.f32.mrf.mxu0
      %v5008 = vadd.f32 0.0, %v5007
      %v5009 = vpop.f32.mrf.mxu0
      %v5010 = vpop.f32.mrf.mxu0
      %v5011 = vadd.f32 0.0, %v5010
      %v5012 = vpop.f32.mrf.mxu0
      %5013 = vmatprep.mubr.bf16.mxu0 0
      %5014 = vmatmul.mubr.bf16.gmra.mxu0 %v4901
      %v5015 = vpop.f32.mrf.mxu0
      %v5016 = vadd.f32 0.0, %v5015
      %v5017 = vpop.f32.mrf.mxu0
      %v5018 = vpop.f32.mrf.mxu0
      %v5019 = vadd.f32 0.0, %v5018
      %v5020 = vpop.f32.mrf.mxu0
      %5021 = vmatprep.mubr.bf16.mxu0 0
      %5022 = vmatmul.mubr.bf16.gmra.mxu0 %v4903
      %v5023 = vpop.f32.mrf.mxu0
      %v5024 = vadd.f32 0.0, %v5023
      %v5025 = vpop.f32.mrf.mxu0
      %v5026 = vpop.f32.mrf.mxu0
      %v5027 = vadd.f32 0.0, %v5026
      %v5028 = vpop.f32.mrf.mxu0
      %5029 = vdwg.mxu0
      %v5030 = vadd.f32 %v4863, %v4992
      %v5031 = vadd.f32 %v4864, %v4995
      %v5032 = vadd.f32 %v4865, %v5000
      %v5033 = vadd.f32 %v4866, %v5003
      %v5034 = vadd.f32 %v4867, %v5008
      %v5035 = vadd.f32 %v4868, %v5011
      %v5036 = vadd.f32 %v4869, %v5016
      %v5037 = vadd.f32 %v4870, %v5019
      %v5038 = vadd.f32 %v4871, %v5024
      %v5039 = vadd.f32 %v4872, %v5027
      %v5040 = vld [vmem:[%s411 + $0x8] sm:$0xc]
      %v5041 = vld [vmem:[%s411 + $0xc] sm:$0xf]
      %v5042 = vld [vmem:[%s411 + $0x10] sm:$0xf]
      %v5043 = vld [vmem:[%s411 + $0x14] sm:$0xf]
      %v5044 = vld [vmem:[%s411 + $0x18] sm:$0xf]
      %v5045 = vld [vmem:[%s411 + $0x1c] sm:$0xf]
      %v5046 = vld [vmem:[%s411 + $0x20] sm:$0xf]
      %v5047 = vld [vmem:[%s411 + $0x24] sm:$0xf]
      %v5048 = vld [vmem:[%s411 + $0x28] sm:$0xf]
      %v5049 = vld [vmem:[%s411 + $0x2c] sm:$0xf]
      %v5050 = vld [vmem:[%s411 + $0x30] sm:$0x3]
      %v5051 = vld [vmem:[%s3 + $0x600] sm:$0xf]
      %v5052 = vld [vmem:[%s3 + $0x604] sm:$0xf]
      %v5053 = vld [vmem:[%s3 + $0x608] sm:$0xf]
      %v5054 = vld [vmem:[%s3 + $0x60c] sm:$0xf]
      %v5055 = vld [vmem:[%s3 + $0x610] sm:$0xf]
      %v5056 = vld [vmem:[%s3 + $0x614] sm:$0xf]
      %v5057 = vld [vmem:[%s3 + $0x618] sm:$0xf]
      %v5058 = vld [vmem:[%s3 + $0x61c] sm:$0xf]
      %v5059 = vld [vmem:[%s3 + $0x620] sm:$0xf]
      %v5060 = vld [vmem:[%s3 + $0x624] sm:$0xf]
      %v5061 = vld [vmem:[%s3 + $0x628] sm:$0xf]
      %v5062 = vld [vmem:[%s3 + $0x62c] sm:$0xf]
      %v5063 = vld [vmem:[%s3 + $0x630] sm:$0xf]
      %v5064 = vld [vmem:[%s3 + $0x634] sm:$0xf]
      %v5065 = vld [vmem:[%s3 + $0x638] sm:$0xf]
      %v5066 = vld [vmem:[%s3 + $0x63c] sm:$0xf]
      %v5078 = vunpack.c.l.b16 %v5040
      %v5079 = vunpack.c.l.b16 %v5041
      %v5080 = vunpack.c.l.b16 %v5042
      %v5081 = vunpack.c.l.b16 %v5043
      %v5082 = vunpack.c.l.b16 %v5044
      %v5083 = vunpack.c.l.b16 %v5045
      %v5084 = vunpack.c.l.b16 %v5046
      %v5085 = vunpack.c.l.b16 %v5047
      %v5086 = vunpack.c.l.b16 %v5048
      %v5087 = vunpack.c.l.b16 %v5049
      %v5088 = vunpack.c.l.b16 %v5050
      %v5089 = vpack.c.b16 %v5079, %v5078
      %v5090 = vpack.c.b16 %v5081, %v5080
      %v5091 = vpack.c.b16 %v5083, %v5082
      %v5092 = vpack.c.b16 %v5085, %v5084
      %v5093 = vpack.c.b16 %v5087, %v5086
      %v5094 = vpack.c.b16 %v5088, %v5088
      %v5095 = vrot.slane %v5089, 2
      %v5096 = vrot.slane %v5090, 2
      %v5097 = vsel %vm1400, %v5095, %v5096
      %v5098 = vrot.slane %v5091, 2
      %v5099 = vsel %vm1400, %v5096, %v5098
      %v5100 = vrot.slane %v5092, 2
      %v5101 = vsel %vm1400, %v5098, %v5100
      %v5102 = vrot.slane %v5093, 2
      %v5103 = vsel %vm1400, %v5100, %v5102
      %v5104 = vrot.slane %v5094, 2
      %v5105 = vsel %vm1400, %v5102, %v5104
      %v5127 = vunpack.c.l.b16 %v5051
      %v5128 = vunpack.c.l.b16 %v5052
      %v5129 = vunpack.c.l.b16 %v5053
      %v5130 = vunpack.c.l.b16 %v5054
      %v5131 = vunpack.c.l.b16 %v5055
      %v5132 = vunpack.c.l.b16 %v5056
      %v5133 = vunpack.c.l.b16 %v5057
      %v5134 = vunpack.c.l.b16 %v5058
      %v5135 = vunpack.c.l.b16 %v5059
      %v5136 = vunpack.c.l.b16 %v5060
      %v5137 = vunpack.c.l.b16 %v5061
      %v5138 = vunpack.c.l.b16 %v5062
      %v5139 = vunpack.c.l.b16 %v5063
      %v5140 = vunpack.c.l.b16 %v5064
      %v5141 = vunpack.c.l.b16 %v5065
      %v5142 = vunpack.c.l.b16 %v5066
      %v5143 = vpack.c.b16 %v5128, %v5127
      %v5144 = vpack.c.b16 %v5130, %v5129
      %v5145 = vpack.c.b16 %v5132, %v5131
      %v5146 = vpack.c.b16 %v5134, %v5133
      %v5147 = vpack.c.b16 %v5136, %v5135
      %v5148 = vpack.c.b16 %v5138, %v5137
      %v5149 = vpack.c.b16 %v5140, %v5139
      %v5150 = vpack.c.b16 %v5142, %v5141
      %5159 = vmatprep.subr.bf16.mxu0 0
      %5160 = vmatpush1.bf16.msra.mxu0 %v5150
      %5161 = vmatprep.subr.bf16.mxu0 0
      %5162 = vmatpush1.bf16.msra.mxu0 %v5149
      %5163 = vmatprep.subr.bf16.mxu0 0
      %5164 = vmatpush1.bf16.msra.mxu0 %v5148
      %5165 = vmatprep.subr.bf16.mxu0 0
      %5166 = vmatpush1.bf16.msra.mxu0 %v5147
      %5167 = vmatprep.subr.bf16.mxu0 0
      %5168 = vmatpush1.bf16.msra.mxu0 %v5146
      %5169 = vmatprep.subr.bf16.mxu0 0
      %5170 = vmatpush1.bf16.msra.mxu0 %v5145
      %5171 = vmatprep.subr.bf16.mxu0 0
      %5172 = vmatpush1.bf16.msra.mxu0 %v5144
      %5173 = vmatprep.subr.bf16.mxu0 0
      %5174 = vmatpush1.bf16.msra.mxu0 %v5143
      %5175 = vmatprep.subr.bf16.mxu0 0
      %5176 = vmatpush2.bf16.msra.mxu0 0
      %5177 = vmatprep.subr.bf16.mxu0 0
      %5178 = vmatpush2.bf16.msra.mxu0 0
      %5179 = vmatprep.subr.bf16.mxu0 0
      %5180 = vmatpush2.bf16.msra.mxu0 0
      %5181 = vmatprep.subr.bf16.mxu0 0
      %5182 = vmatpush2.bf16.msra.mxu0 0
      %5183 = vmatprep.subr.bf16.mxu0 0
      %5184 = vmatpush2.bf16.msra.mxu0 0
      %5185 = vmatprep.subr.bf16.mxu0 0
      %5186 = vmatpush2.bf16.msra.mxu0 0
      %5187 = vmatprep.subr.bf16.mxu0 0
      %5188 = vmatpush2.bf16.msra.mxu0 0
      %5189 = vmatprep.subr.bf16.mxu0 0
      %5190 = vmatpush2.bf16.msra.mxu0 0
      %5191 = vmatprep.mubr.bf16.mxu0 0
      %5192 = vmatmul.mubr.bf16.gmra.mxu0 %v5097
      %v5193 = vpop.f32.mrf.mxu0
      %v5194 = vadd.f32 0.0, %v5193
      %v5195 = vpop.f32.mrf.mxu0
      %v5196 = vpop.f32.mrf.mxu0
      %v5197 = vadd.f32 0.0, %v5196
      %v5198 = vpop.f32.mrf.mxu0
      %5199 = vmatprep.mubr.bf16.mxu0 0
      %5200 = vmatmul.mubr.bf16.gmra.mxu0 %v5099
      %v5201 = vpop.f32.mrf.mxu0
      %v5202 = vadd.f32 0.0, %v5201
      %v5203 = vpop.f32.mrf.mxu0
      %v5204 = vpop.f32.mrf.mxu0
      %v5205 = vadd.f32 0.0, %v5204
      %v5206 = vpop.f32.mrf.mxu0
      %5207 = vmatprep.mubr.bf16.mxu0 0
      %5208 = vmatmul.mubr.bf16.gmra.mxu0 %v5101
      %v5209 = vpop.f32.mrf.mxu0
      %v5210 = vadd.f32 0.0, %v5209
      %v5211 = vpop.f32.mrf.mxu0
      %v5212 = vpop.f32.mrf.mxu0
      %v5213 = vadd.f32 0.0, %v5212
      %v5214 = vpop.f32.mrf.mxu0
      %5215 = vmatprep.mubr.bf16.mxu0 0
      %5216 = vmatmul.mubr.bf16.gmra.mxu0 %v5103
      %v5217 = vpop.f32.mrf.mxu0
      %v5218 = vadd.f32 0.0, %v5217
      %v5219 = vpop.f32.mrf.mxu0
      %v5220 = vpop.f32.mrf.mxu0
      %v5221 = vadd.f32 0.0, %v5220
      %v5222 = vpop.f32.mrf.mxu0
      %5223 = vmatprep.mubr.bf16.mxu0 0
      %5224 = vmatmul.mubr.bf16.gmra.mxu0 %v5105
      %v5225 = vpop.f32.mrf.mxu0
      %v5226 = vadd.f32 0.0, %v5225
      %v5227 = vpop.f32.mrf.mxu0
      %v5228 = vpop.f32.mrf.mxu0
      %v5229 = vadd.f32 0.0, %v5228
      %v5230 = vpop.f32.mrf.mxu0
      %5231 = vdwg.mxu0
      %v5232 = vadd.f32 %v5030, %v5194
      %v5233 = vadd.f32 %v5031, %v5197
      %v5234 = vadd.f32 %v5032, %v5202
      %v5235 = vadd.f32 %v5033, %v5205
      %v5236 = vadd.f32 %v5034, %v5210
      %v5237 = vadd.f32 %v5035, %v5213
      %v5238 = vadd.f32 %v5036, %v5218
      %v5239 = vadd.f32 %v5037, %v5221
      %v5240 = vadd.f32 %v5038, %v5226
      %v5241 = vadd.f32 %v5039, %v5229
      %v5242 = vld [vmem:[%s411 + $0x30] sm:$0x7]
      %v5243 = vld [vmem:[%s3 + $0x640] sm:$0xf]
      %v5244 = vld [vmem:[%s3 + $0x644] sm:$0xf]
      %v5245 = vld [vmem:[%s3 + $0x648] sm:$0xf]
      %v5246 = vld [vmem:[%s3 + $0x64c] sm:$0xf]
      %v5247 = vld [vmem:[%s3 + $0x650] sm:$0xf]
      %v5248 = vld [vmem:[%s3 + $0x654] sm:$0xf]
      %v5249 = vld [vmem:[%s3 + $0x658] sm:$0xf]
      %v5250 = vld [vmem:[%s3 + $0x65c] sm:$0xf]
      %v5251 = vld [vmem:[%s3 + $0x660] sm:$0xf]
      %v5252 = vld [vmem:[%s3 + $0x664] sm:$0xf]
      %v5253 = vld [vmem:[%s3 + $0x668] sm:$0xf]
      %v5254 = vld [vmem:[%s3 + $0x66c] sm:$0xf]
      %v5255 = vld [vmem:[%s3 + $0x670] sm:$0xf]
      %v5256 = vld [vmem:[%s3 + $0x674] sm:$0xf]
      %v5257 = vld [vmem:[%s3 + $0x678] sm:$0xf]
      %v5258 = vld [vmem:[%s3 + $0x67c] sm:$0xf]
      %v5260 = vunpack.c.l.b16 %v5242
      %v5261 = vpack.c.b16 %v5260, %v5260
      %v5263 = vshrl.u32 %v5089, 16
      %v5265 = vrot.slane %v5263, 2
      %v5266 = vshll.u32 %v5089, 16
      %v5268 = vrot.slane %v5266, 3
      %v5269 = vor.u32 %v5265, %v5268
      %v5271 = vshrl.u32 %v5090, 16
      %v5273 = vrot.slane %v5271, 2
      %v5274 = vshll.u32 %v5090, 16
      %v5276 = vrot.slane %v5274, 3
      %v5277 = vor.u32 %v5273, %v5276
      %v5278 = vsel %vm1770, %v5269, %v5277
      %v5280 = vshrl.u32 %v5091, 16
      %v5282 = vrot.slane %v5280, 2
      %v5283 = vshll.u32 %v5091, 16
      %v5285 = vrot.slane %v5283, 3
      %v5286 = vor.u32 %v5282, %v5285
      %v5287 = vsel %vm1770, %v5277, %v5286
      %v5289 = vshrl.u32 %v5092, 16
      %v5291 = vrot.slane %v5289, 2
      %v5292 = vshll.u32 %v5092, 16
      %v5294 = vrot.slane %v5292, 3
      %v5295 = vor.u32 %v5291, %v5294
      %v5296 = vsel %vm1770, %v5286, %v5295
      %v5298 = vshrl.u32 %v5093, 16
      %v5300 = vrot.slane %v5298, 2
      %v5301 = vshll.u32 %v5093, 16
      %v5303 = vrot.slane %v5301, 3
      %v5304 = vor.u32 %v5300, %v5303
      %v5305 = vsel %vm1770, %v5295, %v5304
      %v5307 = vshrl.u32 %v5261, 16
      %v5309 = vrot.slane %v5307, 2
      %v5310 = vshll.u32 %v5261, 16
      %v5312 = vrot.slane %v5310, 3
      %v5313 = vor.u32 %v5309, %v5312
      %v5314 = vsel %vm1770, %v5304, %v5313
      %v5336 = vunpack.c.l.b16 %v5243
      %v5337 = vunpack.c.l.b16 %v5244
      %v5338 = vunpack.c.l.b16 %v5245
      %v5339 = vunpack.c.l.b16 %v5246
      %v5340 = vunpack.c.l.b16 %v5247
      %v5341 = vunpack.c.l.b16 %v5248
      %v5342 = vunpack.c.l.b16 %v5249
      %v5343 = vunpack.c.l.b16 %v5250
      %v5344 = vunpack.c.l.b16 %v5251
      %v5345 = vunpack.c.l.b16 %v5252
      %v5346 = vunpack.c.l.b16 %v5253
      %v5347 = vunpack.c.l.b16 %v5254
      %v5348 = vunpack.c.l.b16 %v5255
      %v5349 = vunpack.c.l.b16 %v5256
      %v5350 = vunpack.c.l.b16 %v5257
      %v5351 = vunpack.c.l.b16 %v5258
      %v5352 = vpack.c.b16 %v5337, %v5336
      %v5353 = vpack.c.b16 %v5339, %v5338
      %v5354 = vpack.c.b16 %v5341, %v5340
      %v5355 = vpack.c.b16 %v5343, %v5342
      %v5356 = vpack.c.b16 %v5345, %v5344
      %v5357 = vpack.c.b16 %v5347, %v5346
      %v5358 = vpack.c.b16 %v5349, %v5348
      %v5359 = vpack.c.b16 %v5351, %v5350
      %5368 = vmatprep.subr.bf16.mxu0 0
      %5369 = vmatpush1.bf16.msra.mxu0 %v5359
      %5370 = vmatprep.subr.bf16.mxu0 0
      %5371 = vmatpush1.bf16.msra.mxu0 %v5358
      %5372 = vmatprep.subr.bf16.mxu0 0
      %5373 = vmatpush1.bf16.msra.mxu0 %v5357
      %5374 = vmatprep.subr.bf16.mxu0 0
      %5375 = vmatpush1.bf16.msra.mxu0 %v5356
      %5376 = vmatprep.subr.bf16.mxu0 0
      %5377 = vmatpush1.bf16.msra.mxu0 %v5355
      %5378 = vmatprep.subr.bf16.mxu0 0
      %5379 = vmatpush1.bf16.msra.mxu0 %v5354
      %5380 = vmatprep.subr.bf16.mxu0 0
      %5381 = vmatpush1.bf16.msra.mxu0 %v5353
      %5382 = vmatprep.subr.bf16.mxu0 0
      %5383 = vmatpush1.bf16.msra.mxu0 %v5352
      %5384 = vmatprep.subr.bf16.mxu0 0
      %5385 = vmatpush2.bf16.msra.mxu0 0
      %5386 = vmatprep.subr.bf16.mxu0 0
      %5387 = vmatpush2.bf16.msra.mxu0 0
      %5388 = vmatprep.subr.bf16.mxu0 0
      %5389 = vmatpush2.bf16.msra.mxu0 0
      %5390 = vmatprep.subr.bf16.mxu0 0
      %5391 = vmatpush2.bf16.msra.mxu0 0
      %5392 = vmatprep.subr.bf16.mxu0 0
      %5393 = vmatpush2.bf16.msra.mxu0 0
      %5394 = vmatprep.subr.bf16.mxu0 0
      %5395 = vmatpush2.bf16.msra.mxu0 0
      %5396 = vmatprep.subr.bf16.mxu0 0
      %5397 = vmatpush2.bf16.msra.mxu0 0
      %5398 = vmatprep.subr.bf16.mxu0 0
      %5399 = vmatpush2.bf16.msra.mxu0 0
      %5400 = vmatprep.mubr.bf16.mxu0 0
      %5401 = vmatmul.mubr.bf16.gmra.mxu0 %v5278
      %v5402 = vpop.f32.mrf.mxu0
      %v5403 = vadd.f32 0.0, %v5402
      %v5404 = vpop.f32.mrf.mxu0
      %v5405 = vpop.f32.mrf.mxu0
      %v5406 = vadd.f32 0.0, %v5405
      %v5407 = vpop.f32.mrf.mxu0
      %5408 = vmatprep.mubr.bf16.mxu0 0
      %5409 = vmatmul.mubr.bf16.gmra.mxu0 %v5287
      %v5410 = vpop.f32.mrf.mxu0
      %v5411 = vadd.f32 0.0, %v5410
      %v5412 = vpop.f32.mrf.mxu0
      %v5413 = vpop.f32.mrf.mxu0
      %v5414 = vadd.f32 0.0, %v5413
      %v5415 = vpop.f32.mrf.mxu0
      %5416 = vmatprep.mubr.bf16.mxu0 0
      %5417 = vmatmul.mubr.bf16.gmra.mxu0 %v5296
      %v5418 = vpop.f32.mrf.mxu0
      %v5419 = vadd.f32 0.0, %v5418
      %v5420 = vpop.f32.mrf.mxu0
      %v5421 = vpop.f32.mrf.mxu0
      %v5422 = vadd.f32 0.0, %v5421
      %v5423 = vpop.f32.mrf.mxu0
      %5424 = vmatprep.mubr.bf16.mxu0 0
      %5425 = vmatmul.mubr.bf16.gmra.mxu0 %v5305
      %v5426 = vpop.f32.mrf.mxu0
      %v5427 = vadd.f32 0.0, %v5426
      %v5428 = vpop.f32.mrf.mxu0
      %v5429 = vpop.f32.mrf.mxu0
      %v5430 = vadd.f32 0.0, %v5429
      %v5431 = vpop.f32.mrf.mxu0
      %5432 = vmatprep.mubr.bf16.mxu0 0
      %5433 = vmatmul.mubr.bf16.gmra.mxu0 %v5314
      %v5434 = vpop.f32.mrf.mxu0
      %v5435 = vadd.f32 0.0, %v5434
      %v5436 = vpop.f32.mrf.mxu0
      %v5437 = vpop.f32.mrf.mxu0
      %v5438 = vadd.f32 0.0, %v5437
      %v5439 = vpop.f32.mrf.mxu0
      %5440 = vdwg.mxu0
      %v5441 = vadd.f32 %v5232, %v5403
      %v5442 = vadd.f32 %v5233, %v5406
      %v5443 = vadd.f32 %v5234, %v5411
      %v5444 = vadd.f32 %v5235, %v5414
      %v5445 = vadd.f32 %v5236, %v5419
      %v5446 = vadd.f32 %v5237, %v5422
      %v5447 = vadd.f32 %v5238, %v5427
      %v5448 = vadd.f32 %v5239, %v5430
      %v5449 = vadd.f32 %v5240, %v5435
      %v5450 = vadd.f32 %v5241, %v5438
      %v5451 = vld [vmem:[%s411 + $0x8] sm:$0x8]
      %v5452 = vld [vmem:[%s3 + $0x680] sm:$0xf]
      %v5453 = vld [vmem:[%s3 + $0x684] sm:$0xf]
      %v5454 = vld [vmem:[%s3 + $0x688] sm:$0xf]
      %v5455 = vld [vmem:[%s3 + $0x68c] sm:$0xf]
      %v5456 = vld [vmem:[%s3 + $0x690] sm:$0xf]
      %v5457 = vld [vmem:[%s3 + $0x694] sm:$0xf]
      %v5458 = vld [vmem:[%s3 + $0x698] sm:$0xf]
      %v5459 = vld [vmem:[%s3 + $0x69c] sm:$0xf]
      %v5460 = vld [vmem:[%s3 + $0x6a0] sm:$0xf]
      %v5461 = vld [vmem:[%s3 + $0x6a4] sm:$0xf]
      %v5462 = vld [vmem:[%s3 + $0x6a8] sm:$0xf]
      %v5463 = vld [vmem:[%s3 + $0x6ac] sm:$0xf]
      %v5464 = vld [vmem:[%s3 + $0x6b0] sm:$0xf]
      %v5465 = vld [vmem:[%s3 + $0x6b4] sm:$0xf]
      %v5466 = vld [vmem:[%s3 + $0x6b8] sm:$0xf]
      %v5467 = vld [vmem:[%s3 + $0x6bc] sm:$0xf]
      %v5469 = vunpack.c.l.b16 %v5451
      %v5470 = vpack.c.b16 %v5079, %v5469
      %v5471 = vrot.slane %v5470, 3
      %v5472 = vrot.slane %v5090, 3
      %v5473 = vsel %vm1980, %v5471, %v5472
      %v5474 = vrot.slane %v5091, 3
      %v5475 = vsel %vm1980, %v5472, %v5474
      %v5476 = vrot.slane %v5092, 3
      %v5477 = vsel %vm1980, %v5474, %v5476
      %v5478 = vrot.slane %v5093, 3
      %v5479 = vsel %vm1980, %v5476, %v5478
      %v5480 = vrot.slane %v5261, 3
      %v5481 = vsel %vm1980, %v5478, %v5480
      %v5503 = vunpack.c.l.b16 %v5452
      %v5504 = vunpack.c.l.b16 %v5453
      %v5505 = vunpack.c.l.b16 %v5454
      %v5506 = vunpack.c.l.b16 %v5455
      %v5507 = vunpack.c.l.b16 %v5456
      %v5508 = vunpack.c.l.b16 %v5457
      %v5509 = vunpack.c.l.b16 %v5458
      %v5510 = vunpack.c.l.b16 %v5459
      %v5511 = vunpack.c.l.b16 %v5460
      %v5512 = vunpack.c.l.b16 %v5461
      %v5513 = vunpack.c.l.b16 %v5462
      %v5514 = vunpack.c.l.b16 %v5463
      %v5515 = vunpack.c.l.b16 %v5464
      %v5516 = vunpack.c.l.b16 %v5465
      %v5517 = vunpack.c.l.b16 %v5466
      %v5518 = vunpack.c.l.b16 %v5467
      %v5519 = vpack.c.b16 %v5504, %v5503
      %v5520 = vpack.c.b16 %v5506, %v5505
      %v5521 = vpack.c.b16 %v5508, %v5507
      %v5522 = vpack.c.b16 %v5510, %v5509
      %v5523 = vpack.c.b16 %v5512, %v5511
      %v5524 = vpack.c.b16 %v5514, %v5513
      %v5525 = vpack.c.b16 %v5516, %v5515
      %v5526 = vpack.c.b16 %v5518, %v5517
      %5535 = vmatprep.subr.bf16.mxu0 0
      %5536 = vmatpush1.bf16.msra.mxu0 %v5526
      %5537 = vmatprep.subr.bf16.mxu0 0
      %5538 = vmatpush1.bf16.msra.mxu0 %v5525
      %5539 = vmatprep.subr.bf16.mxu0 0
      %5540 = vmatpush1.bf16.msra.mxu0 %v5524
      %5541 = vmatprep.subr.bf16.mxu0 0
      %5542 = vmatpush1.bf16.msra.mxu0 %v5523
      %5543 = vmatprep.subr.bf16.mxu0 0
      %5544 = vmatpush1.bf16.msra.mxu0 %v5522
      %5545 = vmatprep.subr.bf16.mxu0 0
      %5546 = vmatpush1.bf16.msra.mxu0 %v5521
      %5547 = vmatprep.subr.bf16.mxu0 0
      %5548 = vmatpush1.bf16.msra.mxu0 %v5520
      %5549 = vmatprep.subr.bf16.mxu0 0
      %5550 = vmatpush1.bf16.msra.mxu0 %v5519
      %5551 = vmatprep.subr.bf16.mxu0 0
      %5552 = vmatpush2.bf16.msra.mxu0 0
      %5553 = vmatprep.subr.bf16.mxu0 0
      %5554 = vmatpush2.bf16.msra.mxu0 0
      %5555 = vmatprep.subr.bf16.mxu0 0
      %5556 = vmatpush2.bf16.msra.mxu0 0
      %5557 = vmatprep.subr.bf16.mxu0 0
      %5558 = vmatpush2.bf16.msra.mxu0 0
      %5559 = vmatprep.subr.bf16.mxu0 0
      %5560 = vmatpush2.bf16.msra.mxu0 0
      %5561 = vmatprep.subr.bf16.mxu0 0
      %5562 = vmatpush2.bf16.msra.mxu0 0
      %5563 = vmatprep.subr.bf16.mxu0 0
      %5564 = vmatpush2.bf16.msra.mxu0 0
      %5565 = vmatprep.subr.bf16.mxu0 0
      %5566 = vmatpush2.bf16.msra.mxu0 0
      %5567 = vmatprep.mubr.bf16.mxu0 0
      %5568 = vmatmul.mubr.bf16.gmra.mxu0 %v5473
      %v5569 = vpop.f32.mrf.mxu0
      %v5570 = vadd.f32 0.0, %v5569
      %v5571 = vpop.f32.mrf.mxu0
      %v5572 = vpop.f32.mrf.mxu0
      %v5573 = vadd.f32 0.0, %v5572
      %v5574 = vpop.f32.mrf.mxu0
      %5575 = vmatprep.mubr.bf16.mxu0 0
      %5576 = vmatmul.mubr.bf16.gmra.mxu0 %v5475
      %v5577 = vpop.f32.mrf.mxu0
      %v5578 = vadd.f32 0.0, %v5577
      %v5579 = vpop.f32.mrf.mxu0
      %v5580 = vpop.f32.mrf.mxu0
      %v5581 = vadd.f32 0.0, %v5580
      %v5582 = vpop.f32.mrf.mxu0
      %5583 = vmatprep.mubr.bf16.mxu0 0
      %5584 = vmatmul.mubr.bf16.gmra.mxu0 %v5477
      %v5585 = vpop.f32.mrf.mxu0
      %v5586 = vadd.f32 0.0, %v5585
      %v5587 = vpop.f32.mrf.mxu0
      %v5588 = vpop.f32.mrf.mxu0
      %v5589 = vadd.f32 0.0, %v5588
      %v5590 = vpop.f32.mrf.mxu0
      %5591 = vmatprep.mubr.bf16.mxu0 0
      %5592 = vmatmul.mubr.bf16.gmra.mxu0 %v5479
      %v5593 = vpop.f32.mrf.mxu0
      %v5594 = vadd.f32 0.0, %v5593
      %v5595 = vpop.f32.mrf.mxu0
      %v5596 = vpop.f32.mrf.mxu0
      %v5597 = vadd.f32 0.0, %v5596
      %v5598 = vpop.f32.mrf.mxu0
      %5599 = vmatprep.mubr.bf16.mxu0 0
      %5600 = vmatmul.mubr.bf16.gmra.mxu0 %v5481
      %v5601 = vpop.f32.mrf.mxu0
      %v5602 = vadd.f32 0.0, %v5601
      %v5603 = vpop.f32.mrf.mxu0
      %v5604 = vpop.f32.mrf.mxu0
      %v5605 = vadd.f32 0.0, %v5604
      %v5606 = vpop.f32.mrf.mxu0
      %5607 = vdwg.mxu0
      %v5608 = vadd.f32 %v5441, %v5570
      %v5609 = vadd.f32 %v5442, %v5573
      %v5610 = vadd.f32 %v5443, %v5578
      %v5611 = vadd.f32 %v5444, %v5581
      %v5612 = vadd.f32 %v5445, %v5586
      %v5613 = vadd.f32 %v5446, %v5589
      %v5614 = vadd.f32 %v5447, %v5594
      %v5615 = vadd.f32 %v5448, %v5597
      %v5616 = vadd.f32 %v5449, %v5602
      %v5617 = vadd.f32 %v5450, %v5605
      %v5618 = vld [vmem:[%s4] sm:$0x1]
      %v5620 = vlaneseq
      %v5621 = vshrl.u32 %v5620, 7
      %v5622 = vsub.s32 0, %v5621
      %v5623 = vrot.slane %v5618, %v5622
      %v5625 = vmul.f32 %v5608, %v5623
      %v5626 = vmul.f32 %v5609, %v5623
      %v5627 = vmul.f32 %v5610, %v5623
      %v5628 = vmul.f32 %v5611, %v5623
      %v5629 = vmul.f32 %v5612, %v5623
      %v5630 = vmul.f32 %v5613, %v5623
      %v5631 = vmul.f32 %v5614, %v5623
      %v5632 = vmul.f32 %v5615, %v5623
      %v5633 = vmul.f32 %v5616, %v5623
      %v5634 = vmul.f32 %v5617, %v5623
      %v5635 = vld [vmem:[%s5] sm:$0x1]
      %v5637 = vlaneseq
      %v5638 = vshrl.u32 %v5637, 7
      %v5639 = vsub.s32 0, %v5638
      %v5640 = vrot.slane %v5635, %v5639
      %v5642 = vadd.f32 %v5625, %v5640
      %v5643 = vadd.f32 %v5626, %v5640
      %v5644 = vadd.f32 %v5627, %v5640
      %v5645 = vadd.f32 %v5628, %v5640
      %v5646 = vadd.f32 %v5629, %v5640
      %v5647 = vadd.f32 %v5630, %v5640
      %v5648 = vadd.f32 %v5631, %v5640
      %v5649 = vadd.f32 %v5632, %v5640
      %v5650 = vadd.f32 %v5633, %v5640
      %v5651 = vadd.f32 %v5634, %v5640
      %v5652 = vld [vmem:[%s421] sm:$0xf]
      %v5653 = vld [vmem:[%s421 + $0x4] sm:$0xf]
      %v5654 = vld [vmem:[%s421 + $0x8] sm:$0xf]
      %v5655 = vld [vmem:[%s421 + $0xc] sm:$0xf]
      %v5656 = vld [vmem:[%s421 + $0x10] sm:$0xf]
      %v5657 = vld [vmem:[%s421 + $0x14] sm:$0xf]
      %v5658 = vld [vmem:[%s421 + $0x18] sm:$0xf]
      %v5659 = vld [vmem:[%s421 + $0x1c] sm:$0xf]
      %v5660 = vld [vmem:[%s421 + $0x20] sm:$0xf]
      %v5661 = vld [vmem:[%s421 + $0x24] sm:$0xf]
      %v5662 = vunpack.c.l.bf16 %v5652
      %v5663 = vunpack.c.l.bf16 %v5653
      %v5664 = vunpack.c.l.bf16 %v5654
      %v5665 = vunpack.c.l.bf16 %v5655
      %v5666 = vunpack.c.l.bf16 %v5656
      %v5667 = vunpack.c.l.bf16 %v5657
      %v5668 = vunpack.c.l.bf16 %v5658
      %v5669 = vunpack.c.l.bf16 %v5659
      %v5670 = vunpack.c.l.bf16 %v5660
      %v5671 = vunpack.c.l.bf16 %v5661
      %v5672 = vadd.f32 %v5642, %v5662
      %v5673 = vadd.f32 %v5643, %v5663
      %v5674 = vadd.f32 %v5644, %v5664
      %v5675 = vadd.f32 %v5645, %v5665
      %v5676 = vadd.f32 %v5646, %v5666
      %v5677 = vadd.f32 %v5647, %v5667
      %v5678 = vadd.f32 %v5648, %v5668
      %v5679 = vadd.f32 %v5649, %v5669
      %v5680 = vadd.f32 %v5650, %v5670
      %v5681 = vadd.f32 %v5651, %v5671
      %v5682 = vmax.f32 %v5672, 0.0
      %v5683 = vmax.f32 %v5673, 0.0
      %v5684 = vmax.f32 %v5674, 0.0
      %v5685 = vmax.f32 %v5675, 0.0
      %v5686 = vmax.f32 %v5676, 0.0
      %v5687 = vmax.f32 %v5677, 0.0
      %v5688 = vmax.f32 %v5678, 0.0
      %v5689 = vmax.f32 %v5679, 0.0
      %v5690 = vmax.f32 %v5680, 0.0
      %v5691 = vmax.f32 %v5681, 0.0
      %5692 = vst [vmem:[%s430] sm:$0xff] %v5682
      %5693 = vst [vmem:[%s430 + $0x8] sm:$0xff] %v5683
      %5694 = vst [vmem:[%s430 + $0x10] sm:$0xff] %v5684
      %5695 = vst [vmem:[%s430 + $0x18] sm:$0xff] %v5685
      %5696 = vst [vmem:[%s430 + $0x20] sm:$0xff] %v5686
      %5697 = vst [vmem:[%s430 + $0x28] sm:$0xff] %v5687
      %5698 = vst [vmem:[%s430 + $0x30] sm:$0xff] %v5688
      %5699 = vst [vmem:[%s430 + $0x38] sm:$0xff] %v5689
      %5700 = vst [vmem:[%s430 + $0x40] sm:$0xff] %v5690
      %5701 = vst [vmem:[%s430 + $0x48] sm:$0xff] %v5691
      %p5702 = scmp.lt.s32.totalorder %s22, 1
      %s5703 = scalar_select %p5702, %s22, 1
      %p5704 = scmp.lt.s32.totalorder %s23, 3
      %s5705 = scalar_select %p5704, %s23, 3
      %s5706 = smul.addr %s5705, 10
      %s5707 = smul.addr %s5703, 40
      %s5708 = sadd.s32 %s5706, %s5707
      %s5709 = smul.addr %s5708, 8
      %s5710 = scalar_lea.vmem %s7, %s5709
      // Predicated region
      $region49: #{basic_block_forward.3} parent=47 // pred_check
        %p5711 = pneg %p229
      $region50: #{basic_block_forward.3} parent=47 // pred_check_branch
        %5713 = sbr.rel (%p5711) target = $region52
      $region51: #{basic_block_forward.3} parent=47 // pred_region
        _
      $region52: #{basic_block_forward.3} parent=47 // pred_fallthru
        _
    $region48: #{basic_block_forward.3} parent=5 // pred_fallthru
      _
    %p5714 = scmp.le.s32.totalorder 2, %s13
    // Predicated region
    $region53: #{basic_block_forward.3} parent=5 // pred_check
      %p5715 = pneg %p5714
    $region54: #{basic_block_forward.3} parent=5 // pred_check_branch
      %5717 = sbr.rel (%p5715) target = $region56
    $region55: #{basic_block_forward.3} parent=5 // pred_region
      %s5718 = ssub.s32 %s13, 2
      // Predicated region
      $region57: #{basic_block_forward.3} parent=55 // pred_check
        %p5719 = pneg %p235
      $region58: #{basic_block_forward.3} parent=55 // pred_check_branch
        %5721 = sbr.rel (%p5719) target = $region60
      $region59: #{basic_block_forward.3} parent=55 // pred_region
        %p5722 = scmp.lt.s32.totalorder %s24, 1
        %s5723 = scalar_select %p5722, %s24, 1
        %p5724 = scmp.lt.s32.totalorder %s25, 3
        %s5725 = scalar_select %p5724, %s25, 3
        %s5726 = smul.addr %s5725, 10
        %s5727 = smul.addr %s5723, 40
        %s5728 = sadd.s32 %s5726, %s5727
        %s5729 = smul.addr %s5728, 8
        %s5730 = scalar_lea.vmem %s7, %s5729
      $region60: #{basic_block_forward.3} parent=55 // pred_fallthru
        _
    $region56: #{basic_block_forward.3} parent=5 // pred_fallthru
      _
  $region6: #{basic_block_forward.3} parent=0 // loop_footer
    %s17 = sadd.s32 1, %s13
  $region7: #{basic_block_forward.3} parent=0 // loop_footer_branch
    %12 = sbr.rel target = $region3
  $region8: #{basic_block_forward.3} parent=0 // loop_exit
    _

</llo_original>
